<compile_context>
chip_gen: v5e
topology: v5e:2x2
jax: 0.10.0
libtpu: 0.0.40
codegen_flags: <defaults>
</compile_context>

<pallas_src>
import jax
import jax.numpy as jnp
from jax.experimental import pallas as pl
from jax.experimental.pallas import tpu as pltpu

H, W = 13, 4                      # spatial size of the module's input
HP, WP = H + 2, W + 2             # 15, 6  (zero-padded spatial grid)
NPAD = HP * WP                    # 90 padded positions
NROWS = 96                        # rows computed per layer (>= NPAD, mult of 8)
OFF = 8                           # frame row offset (mult of 8, >= max shift 7)
FRAME = 112                       # frame rows: OFF + 7 + NROWS <= FRAME
CIN0 = 16                         # layer-1 in-channels padded 6 -> 16
CHANNELS = [(CIN0, 64), (64, 128), (128, 256), (256, 256)]
TAPS = [(dy, dx) for dy in (-1, 0, 1) for dx in (-1, 0, 1)]   # 9 kernel taps


def _conv3x3(in_ref, w_ref, cin, cout):
    """3x3 same-conv: 9 row-shifted bf16 x bf16 MXU matmuls, f32 accumulate."""
    acc = jnp.zeros((NROWS, cout), jnp.float32)
    for t, (dy, dx) in enumerate(TAPS):
        shift = dy * WP + dx                               # static, in [-7, 7]
        xs = in_ref[pl.ds(OFF + shift, NROWS), :].astype(jnp.bfloat16)
        wt = w_ref[pl.ds(t * cin, cin), :]                 # already bf16
        acc = acc + jnp.dot(xs, wt, preferred_element_type=jnp.float32)
    return acc


def cnn_c_kernel(x_ref, w1_ref, w2_ref, w3_ref, w4_hbm_ref, b_ref, out_ref,
                 a1, a2, a3, w4_vmem, w4_sem):
    # Kick off the largest weight transfer immediately; it overlaps with
    # layers 1-3 and is only waited on right before layer 4.
    w4_copy = pltpu.make_async_copy(w4_hbm_ref, w4_vmem, w4_sem)
    w4_copy.start()

    # Interior-pixel mask, built in-kernel.  Row q of the flattened padded map
    # has yy = q // 6, xx = q % 6; interior means 1<=yy<=13 and 1<=xx<=4.
    # Use float math (exact for these small integers) to avoid vector int div.
    q = jax.lax.broadcasted_iota(jnp.int32, (NROWS, 1), 0).astype(jnp.float32)
    yy = jnp.floor((q + 0.5) * (1.0 / WP))
    xx = q - yy * WP
    mask = ((yy >= 1.0) & (yy <= float(H)) &
            (xx >= 1.0) & (xx <= float(W))).astype(jnp.float32)   # (NROWS, 1)

    def bias(layer, cout):
        return b_ref[pl.ds(layer, 1), pl.ds(0, cout)]             # (1, cout) f32

    def store_frame(scratch, vals):
        cout = scratch.shape[-1]
        # Only the halo rows need zeroing; rows [OFF, OFF+NROWS) are written
        # below with already-masked values (tail rows q >= NPAD are zero too).
        scratch[pl.ds(0, OFF), :] = jnp.zeros((OFF, cout), scratch.dtype)
        scratch[pl.ds(OFF + NROWS, FRAME - OFF - NROWS), :] = jnp.zeros(
            (FRAME - OFF - NROWS, cout), scratch.dtype)
        scratch[pl.ds(OFF, NROWS), :] = vals

    store_frame(a1, (_conv3x3(x_ref, w1_ref, CIN0, 64) + bias(0, 64)) * mask)
    store_frame(a2, (_conv3x3(a1, w2_ref, 64, 128) + bias(1, 128)) * mask)
    store_frame(a3, (_conv3x3(a2, w3_ref, 128, 256) + bias(2, 256)) * mask)

    w4_copy.wait()
    # Final layer: wrapper keeps only interior pixels, so no halo masking.
    out_ref[...] = _conv3x3(a3, w4_vmem, 256, 256) + bias(3, 256)


@jax.jit
def cnn_c_forward(x_chw, kparams):
    """x_chw: (6, 13, 4) f32  ->  (256, 13, 4) f32 (matches CNN_C.forward)."""
    assert x_chw.shape == (6, H, W), x_chw.shape
    w1, w2, w3, w4, b_all = kparams

    # Build padded, channels-last, flattened input frame (FRAME, CIN0).
    x_hwc = jnp.transpose(x_chw, (1, 2, 0)).astype(jnp.float32)      # (13, 4, 6)
    padded = jnp.zeros((HP, WP, CIN0), jnp.float32)
    padded = padded.at[1:H + 1, 1:W + 1, :6].set(x_hwc)
    frame = jnp.zeros((FRAME, CIN0), jnp.float32)
    frame = frame.at[OFF:OFF + NPAD, :].set(padded.reshape(NPAD, CIN0))

    def fullspec(shape):
        return pl.BlockSpec(shape, lambda i, s=shape: (0,) * len(s))

    wsum = sum(ci * co for ci, co in CHANNELS)
    cost = pl.CostEstimate(
        flops=2 * NROWS * 9 * wsum, transcendentals=0,
        bytes_accessed=2 * 9 * wsum + frame.size * 4 + b_all.size * 4
        + NROWS * 256 * 4)

    out = pl.pallas_call(
        cnn_c_kernel,
        out_shape=jax.ShapeDtypeStruct((NROWS, 256), jnp.float32),
        grid_spec=pltpu.PrefetchScalarGridSpec(
            num_scalar_prefetch=0,
            grid=(1,),
            in_specs=[
                fullspec((FRAME, CIN0)),
                fullspec(w1.shape),
                fullspec(w2.shape),
                fullspec(w3.shape),
                pl.BlockSpec(memory_space=pl.ANY),   # w4: manual, overlapped DMA
                fullspec(b_all.shape),
            ],
            out_specs=fullspec((NROWS, 256)),
            scratch_shapes=[
                pltpu.VMEM((FRAME, 64), jnp.float32),    # layer-1 output frame
                pltpu.VMEM((FRAME, 128), jnp.float32),   # layer-2 output frame
                pltpu.VMEM((FRAME, 256), jnp.float32),   # layer-3 output frame
                pltpu.VMEM(w4.shape, jnp.bfloat16),      # w4 landing buffer
                pltpu.SemaphoreType.DMA,                 # w4 DMA semaphore
            ],
        ),
        compiler_params=pltpu.CompilerParams(
            dimension_semantics=("arbitrary",),
        ),
        cost_estimate=cost,
    )(frame, w1, w2, w3, w4, b_all)

    out_hwc = out[:NPAD].reshape(HP, WP, 256)[1:H + 1, 1:W + 1, :]    # (13, 4, 256)
    return jnp.transpose(out_hwc, (2, 0, 1))                          # (256, 13, 4)


def init_params(key):
    """Synthetic Conv2d params with PyTorch-default init.

    Returns (ref_params, kparams):
      ref_params[i] = (weight_f32 (Cout,Cin,3,3), bias (Cout,)) -- weights are
        the bf16-quantized values cast back to f32 so the reference matches the
        weights the kernel streams.
      kparams      = (w1k, w2k, w3k, w4k, b_all) with wik bf16 (9*Cin_pad, Cout)
        tap-major stacks and b_all a packed (8, 256) f32 bias buffer.
    """
    keys = jax.random.split(key, 8)
    shapes = [(64, 6), (128, 64), (256, 128), (256, 256)]     # (Cout, Cin)
    ref_params, kweights = [], []
    b_all = jnp.zeros((8, 256), jnp.float32)
    for i, (cout, cin) in enumerate(shapes):
        fan_in = cin * 9
        bound = 1.0 / jnp.sqrt(jnp.float32(fan_in))
        w = jax.random.uniform(keys[2 * i], (cout, cin, 3, 3), jnp.float32, -bound, bound)
        b = jax.random.uniform(keys[2 * i + 1], (cout,), jnp.float32, -bound, bound)

        w_bf16 = w.astype(jnp.bfloat16)                       # streamed dtype
        cin_pad = CIN0 if i == 0 else cin
        wk = jnp.transpose(w_bf16, (2, 3, 1, 0))              # (3, 3, Cin, Cout)
        if cin_pad != cin:
            wk = jnp.pad(wk, ((0, 0), (0, 0), (0, cin_pad - cin), (0, 0)))
        wk = wk.reshape(9 * cin_pad, cout)                    # tap-major stack

        ref_params.append((w_bf16.astype(jnp.float32), b))
        kweights.append(wk)
        b_all = b_all.at[i, :cout].set(b)
    return ref_params, (*kweights, b_all)


def reference_forward(x_chw, ref_params):
    """Pure-JAX reference matching torch's Conv2d(k=3, s=1, p=1) chain."""
    y = x_chw[None].astype(jnp.float32)                       # (1, 6, 13, 4)
    for w, b in ref_params:
        y = jax.lax.conv_general_dilated(
            y, w, window_strides=(1, 1), padding=((1, 1), (1, 1)),
            dimension_numbers=("NCHW", "OIHW", "NCHW"),
            precision=jax.lax.Precision.HIGHEST)
        y = y + b.reshape(1, -1, 1, 1)
    return y[0]                                               # (256, 13, 4)


if __name__ == "__main__":
    key = jax.random.PRNGKey(0)
    kx, kp = jax.random.split(key)

    # CNN_C.forward requires input shape (6, 13, 4).
    x = jax.random.normal(kx, (6, H, W), jnp.float32)
    ref_params, kparams = init_params(kp)

    out = jax.block_until_ready(cnn_c_forward(x, kparams))
    assert out.shape == (256, H, W), out.shape

    ref = reference_forward(x, ref_params)
    # Tolerance sized for bf16 MXU inputs (bf16 weights + activations cast to
    # bf16 at the dot) with f32 accumulation over a fan-in of up to 2304.
    # TODO(synk): if f32-weight parity with the original PyTorch module is
    # required, stream f32 weights instead and retighten this tolerance.
    max_err = float(jnp.max(jnp.abs(out - ref)))
    assert jnp.allclose(out, ref, atol=3e-3, rtol=2e-2), max_err

    print("KERNEL_OK")
</pallas_src>

<mosaic_0001>
module attributes {stable_mosaic.version = 11 : i64} {
  func.func @cnn_c_kernel(%arg0: i32, %arg1: memref<112x16xf32, #tpu.memory_space<vmem>>, %arg2: memref<144x64xbf16, #tpu.memory_space<vmem>>, %arg3: memref<576x128xbf16, #tpu.memory_space<vmem>>, %arg4: memref<1152x256xbf16, #tpu.memory_space<vmem>>, %arg5: memref<2304x256xbf16, #tpu.memory_space<any>>, %arg6: memref<8x256xf32, #tpu.memory_space<vmem>>, %arg7: memref<96x256xf32, #tpu.memory_space<vmem>>, %arg8: memref<112x64xf32, #tpu.memory_space<vmem>>, %arg9: memref<112x128xf32, #tpu.memory_space<vmem>>, %arg10: memref<112x256xf32, #tpu.memory_space<vmem>>, %arg11: memref<2304x256xbf16, #tpu.memory_space<vmem>>, %arg12: memref<!tpu.dma_semaphore, #tpu.memory_space<semaphore_mem>>) attributes {dimension_semantics = [#tpu.dimension_semantics<arbitrary>], iteration_bounds = array<i64: 1>, scalar_prefetch = 0 : i64, scratch_operands = 5 : i64, tpu.core_type = #tpu.core_type<tc>, window_params = [{pipeline_mode = #tpu.pipeline_mode<synchronous>, transform_indices = @transform_0, window_bounds = array<i64: 112, 16>}, {pipeline_mode = #tpu.pipeline_mode<synchronous>, transform_indices = @transform_1, window_bounds = array<i64: 144, 64>}, {pipeline_mode = #tpu.pipeline_mode<synchronous>, transform_indices = @transform_2, window_bounds = array<i64: 576, 128>}, {pipeline_mode = #tpu.pipeline_mode<synchronous>, transform_indices = @transform_3, window_bounds = array<i64: 1152, 256>}, {}, {pipeline_mode = #tpu.pipeline_mode<synchronous>, transform_indices = @transform_5, window_bounds = array<i64: 8, 256>}, {pipeline_mode = #tpu.pipeline_mode<synchronous>, transform_indices = @transform_6, window_bounds = array<i64: 96, 256>}]} {
    tpu.enqueue_dma source(%arg5 : memref<2304x256xbf16, #tpu.memory_space<any>>) target(%arg11 : memref<2304x256xbf16, #tpu.memory_space<vmem>>) target_semaphore(%arg12 : memref<!tpu.dma_semaphore, #tpu.memory_space<semaphore_mem>>)
    %0 = tpu.iota {dimensions = array<i32: 0>} : vector<96x1xi32>
    %1 = arith.sitofp %0 : vector<96x1xi32> to vector<96x1xf32>
    %cst = arith.constant 5.000000e-01 : f32
    %2 = vector.broadcast %cst : f32 to vector<96x1xf32>
    %3 = arith.addf %1, %2 : vector<96x1xf32>
    %cst_0 = arith.constant 0.166666672 : f32
    %4 = vector.broadcast %cst_0 : f32 to vector<96x1xf32>
    %5 = arith.mulf %3, %4 : vector<96x1xf32>
    %6 = math.floor %5 : vector<96x1xf32>
    %cst_1 = arith.constant 6.000000e+00 : f32
    %7 = vector.broadcast %cst_1 : f32 to vector<96x1xf32>
    %8 = arith.mulf %6, %7 : vector<96x1xf32>
    %9 = arith.subf %1, %8 : vector<96x1xf32>
    %cst_2 = arith.constant 1.000000e+00 : f32
    %10 = vector.broadcast %cst_2 : f32 to vector<96x1xf32>
    %11 = arith.cmpf oge, %6, %10 : vector<96x1xf32>
    %cst_3 = arith.constant 1.300000e+01 : f32
    %12 = vector.broadcast %cst_3 : f32 to vector<96x1xf32>
    %13 = arith.cmpf ole, %6, %12 : vector<96x1xf32>
    %14 = arith.andi %11, %13 : vector<96x1xi1>
    %cst_4 = arith.constant 1.000000e+00 : f32
    %15 = vector.broadcast %cst_4 : f32 to vector<96x1xf32>
    %16 = arith.cmpf oge, %9, %15 : vector<96x1xf32>
    %17 = arith.andi %14, %16 : vector<96x1xi1>
    %cst_5 = arith.constant 4.000000e+00 : f32
    %18 = vector.broadcast %cst_5 : f32 to vector<96x1xf32>
    %19 = arith.cmpf ole, %9, %18 : vector<96x1xf32>
    %20 = arith.andi %17, %19 : vector<96x1xi1>
    %21 = arith.extui %20 : vector<96x1xi1> to vector<96x1xi32>
    %22 = arith.sitofp %21 : vector<96x1xi32> to vector<96x1xf32>
    %cst_6 = arith.constant 0.000000e+00 : f32
    %23 = vector.broadcast %cst_6 : f32 to vector<96x64xf32>
    %c1 = arith.constant 1 : index
    %c0 = arith.constant 0 : index
    %24 = vector.load %arg1[%c1, %c0] : memref<112x16xf32, #tpu.memory_space<vmem>>, vector<96x16xf32>
    %25 = arith.truncf %24 : vector<96x16xf32> to vector<96x16xbf16>
    %c0_7 = arith.constant 0 : index
    %c0_8 = arith.constant 0 : index
    %26 = vector.load %arg2[%c0_7, %c0_8] : memref<144x64xbf16, #tpu.memory_space<vmem>>, vector<16x64xbf16>
    %cst_9 = arith.constant dense<0.000000e+00> : vector<96x64xf32>
    %27 = tpu.matmul %25, %26, %cst_9 {dimension_numbers = #tpu.dot_dimension_numbers<[1], [0], [0], [1], [0, 0, 1, 1], [], []>} : vector<96x16xbf16>, vector<16x64xbf16>, vector<96x64xf32> -> vector<96x64xf32>
    %28 = arith.addf %23, %27 : vector<96x64xf32>
    %c2 = arith.constant 2 : index
    %c0_10 = arith.constant 0 : index
    %29 = vector.load %arg1[%c2, %c0_10] : memref<112x16xf32, #tpu.memory_space<vmem>>, vector<96x16xf32>
    %30 = arith.truncf %29 : vector<96x16xf32> to vector<96x16xbf16>
    %c16 = arith.constant 16 : index
    %c0_11 = arith.constant 0 : index
    %31 = vector.load %arg2[%c16, %c0_11] : memref<144x64xbf16, #tpu.memory_space<vmem>>, vector<16x64xbf16>
    %cst_12 = arith.constant dense<0.000000e+00> : vector<96x64xf32>
    %32 = tpu.matmul %30, %31, %cst_12 {dimension_numbers = #tpu.dot_dimension_numbers<[1], [0], [0], [1], [0, 0, 1, 1], [], []>} : vector<96x16xbf16>, vector<16x64xbf16>, vector<96x64xf32> -> vector<96x64xf32>
    %33 = arith.addf %28, %32 : vector<96x64xf32>
    %c3 = arith.constant 3 : index
    %c0_13 = arith.constant 0 : index
    %34 = vector.load %arg1[%c3, %c0_13] : memref<112x16xf32, #tpu.memory_space<vmem>>, vector<96x16xf32>
    %35 = arith.truncf %34 : vector<96x16xf32> to vector<96x16xbf16>
    %c32 = arith.constant 32 : index
    %c0_14 = arith.constant 0 : index
    %36 = vector.load %arg2[%c32, %c0_14] : memref<144x64xbf16, #tpu.memory_space<vmem>>, vector<16x64xbf16>
    %cst_15 = arith.constant dense<0.000000e+00> : vector<96x64xf32>
    %37 = tpu.matmul %35, %36, %cst_15 {dimension_numbers = #tpu.dot_dimension_numbers<[1], [0], [0], [1], [0, 0, 1, 1], [], []>} : vector<96x16xbf16>, vector<16x64xbf16>, vector<96x64xf32> -> vector<96x64xf32>
    %38 = arith.addf %33, %37 : vector<96x64xf32>
    %c7 = arith.constant 7 : index
    %c0_16 = arith.constant 0 : index
    %39 = vector.load %arg1[%c7, %c0_16] : memref<112x16xf32, #tpu.memory_space<vmem>>, vector<96x16xf32>
    %40 = arith.truncf %39 : vector<96x16xf32> to vector<96x16xbf16>
    %c48 = arith.constant 48 : index
    %c0_17 = arith.constant 0 : index
    %41 = vector.load %arg2[%c48, %c0_17] : memref<144x64xbf16, #tpu.memory_space<vmem>>, vector<16x64xbf16>
    %cst_18 = arith.constant dense<0.000000e+00> : vector<96x64xf32>
    %42 = tpu.matmul %40, %41, %cst_18 {dimension_numbers = #tpu.dot_dimension_numbers<[1], [0], [0], [1], [0, 0, 1, 1], [], []>} : vector<96x16xbf16>, vector<16x64xbf16>, vector<96x64xf32> -> vector<96x64xf32>
    %43 = arith.addf %38, %42 : vector<96x64xf32>
    %c8 = arith.constant 8 : index
    %c0_19 = arith.constant 0 : index
    %44 = vector.load %arg1[%c8, %c0_19] : memref<112x16xf32, #tpu.memory_space<vmem>>, vector<96x16xf32>
    %45 = arith.truncf %44 : vector<96x16xf32> to vector<96x16xbf16>
    %c64 = arith.constant 64 : index
    %c0_20 = arith.constant 0 : index
    %46 = vector.load %arg2[%c64, %c0_20] : memref<144x64xbf16, #tpu.memory_space<vmem>>, vector<16x64xbf16>
    %cst_21 = arith.constant dense<0.000000e+00> : vector<96x64xf32>
    %47 = tpu.matmul %45, %46, %cst_21 {dimension_numbers = #tpu.dot_dimension_numbers<[1], [0], [0], [1], [0, 0, 1, 1], [], []>} : vector<96x16xbf16>, vector<16x64xbf16>, vector<96x64xf32> -> vector<96x64xf32>
    %48 = arith.addf %43, %47 : vector<96x64xf32>
    %c9 = arith.constant 9 : index
    %c0_22 = arith.constant 0 : index
    %49 = vector.load %arg1[%c9, %c0_22] : memref<112x16xf32, #tpu.memory_space<vmem>>, vector<96x16xf32>
    %50 = arith.truncf %49 : vector<96x16xf32> to vector<96x16xbf16>
    %c80 = arith.constant 80 : index
    %c0_23 = arith.constant 0 : index
    %51 = vector.load %arg2[%c80, %c0_23] : memref<144x64xbf16, #tpu.memory_space<vmem>>, vector<16x64xbf16>
    %cst_24 = arith.constant dense<0.000000e+00> : vector<96x64xf32>
    %52 = tpu.matmul %50, %51, %cst_24 {dimension_numbers = #tpu.dot_dimension_numbers<[1], [0], [0], [1], [0, 0, 1, 1], [], []>} : vector<96x16xbf16>, vector<16x64xbf16>, vector<96x64xf32> -> vector<96x64xf32>
    %53 = arith.addf %48, %52 : vector<96x64xf32>
    %c13 = arith.constant 13 : index
    %c0_25 = arith.constant 0 : index
    %54 = vector.load %arg1[%c13, %c0_25] : memref<112x16xf32, #tpu.memory_space<vmem>>, vector<96x16xf32>
    %55 = arith.truncf %54 : vector<96x16xf32> to vector<96x16xbf16>
    %c96 = arith.constant 96 : index
    %c0_26 = arith.constant 0 : index
    %56 = vector.load %arg2[%c96, %c0_26] : memref<144x64xbf16, #tpu.memory_space<vmem>>, vector<16x64xbf16>
    %cst_27 = arith.constant dense<0.000000e+00> : vector<96x64xf32>
    %57 = tpu.matmul %55, %56, %cst_27 {dimension_numbers = #tpu.dot_dimension_numbers<[1], [0], [0], [1], [0, 0, 1, 1], [], []>} : vector<96x16xbf16>, vector<16x64xbf16>, vector<96x64xf32> -> vector<96x64xf32>
    %58 = arith.addf %53, %57 : vector<96x64xf32>
    %c14 = arith.constant 14 : index
    %c0_28 = arith.constant 0 : index
    %59 = vector.load %arg1[%c14, %c0_28] : memref<112x16xf32, #tpu.memory_space<vmem>>, vector<96x16xf32>
    %60 = arith.truncf %59 : vector<96x16xf32> to vector<96x16xbf16>
    %c112 = arith.constant 112 : index
    %c0_29 = arith.constant 0 : index
    %61 = vector.load %arg2[%c112, %c0_29] : memref<144x64xbf16, #tpu.memory_space<vmem>>, vector<16x64xbf16>
    %cst_30 = arith.constant dense<0.000000e+00> : vector<96x64xf32>
    %62 = tpu.matmul %60, %61, %cst_30 {dimension_numbers = #tpu.dot_dimension_numbers<[1], [0], [0], [1], [0, 0, 1, 1], [], []>} : vector<96x16xbf16>, vector<16x64xbf16>, vector<96x64xf32> -> vector<96x64xf32>
    %63 = arith.addf %58, %62 : vector<96x64xf32>
    %c15 = arith.constant 15 : index
    %c0_31 = arith.constant 0 : index
    %64 = vector.load %arg1[%c15, %c0_31] : memref<112x16xf32, #tpu.memory_space<vmem>>, vector<96x16xf32>
    %65 = arith.truncf %64 : vector<96x16xf32> to vector<96x16xbf16>
    %c128 = arith.constant 128 : index
    %c0_32 = arith.constant 0 : index
    %66 = vector.load %arg2[%c128, %c0_32] : memref<144x64xbf16, #tpu.memory_space<vmem>>, vector<16x64xbf16>
    %cst_33 = arith.constant dense<0.000000e+00> : vector<96x64xf32>
    %67 = tpu.matmul %65, %66, %cst_33 {dimension_numbers = #tpu.dot_dimension_numbers<[1], [0], [0], [1], [0, 0, 1, 1], [], []>} : vector<96x16xbf16>, vector<16x64xbf16>, vector<96x64xf32> -> vector<96x64xf32>
    %68 = arith.addf %63, %67 : vector<96x64xf32>
    %c0_34 = arith.constant 0 : index
    %c0_35 = arith.constant 0 : index
    %69 = vector.load %arg6[%c0_34, %c0_35] : memref<8x256xf32, #tpu.memory_space<vmem>>, vector<1x64xf32>
    %70 = vector.broadcast %69 : vector<1x64xf32> to vector<96x64xf32>
    %71 = arith.addf %68, %70 : vector<96x64xf32>
    %72 = vector.broadcast %22 : vector<96x1xf32> to vector<96x64xf32>
    %73 = arith.mulf %71, %72 : vector<96x64xf32>
    %cst_36 = arith.constant 0.000000e+00 : f32
    %74 = vector.broadcast %cst_36 : f32 to vector<8x64xf32>
    %c0_37 = arith.constant 0 : index
    %c0_38 = arith.constant 0 : index
    %75 = vector.load %arg8[%c0_37, %c0_38] : memref<112x64xf32, #tpu.memory_space<vmem>>, vector<8x64xf32>
    tpu.vector_store %arg8[%c0_37, %c0_38], %74 {strides = array<i32>} : memref<112x64xf32, #tpu.memory_space<vmem>>, vector<8x64xf32>,
    %cst_39 = arith.constant 0.000000e+00 : f32
    %76 = vector.broadcast %cst_39 : f32 to vector<8x64xf32>
    %c104 = arith.constant 104 : index
    %c0_40 = arith.constant 0 : index
    %77 = vector.load %arg8[%c104, %c0_40] : memref<112x64xf32, #tpu.memory_space<vmem>>, vector<8x64xf32>
    tpu.vector_store %arg8[%c104, %c0_40], %76 {strides = array<i32>} : memref<112x64xf32, #tpu.memory_space<vmem>>, vector<8x64xf32>,
    %c8_41 = arith.constant 8 : index
    %c0_42 = arith.constant 0 : index
    %78 = vector.load %arg8[%c8_41, %c0_42] : memref<112x64xf32, #tpu.memory_space<vmem>>, vector<96x64xf32>
    tpu.vector_store %arg8[%c8_41, %c0_42], %73 {strides = array<i32>} : memref<112x64xf32, #tpu.memory_space<vmem>>, vector<96x64xf32>,
    %cst_43 = arith.constant 0.000000e+00 : f32
    %79 = vector.broadcast %cst_43 : f32 to vector<96x128xf32>
    %c1_44 = arith.constant 1 : index
    %c0_45 = arith.constant 0 : index
    %80 = vector.load %arg8[%c1_44, %c0_45] : memref<112x64xf32, #tpu.memory_space<vmem>>, vector<96x64xf32>
    %81 = arith.truncf %80 : vector<96x64xf32> to vector<96x64xbf16>
    %c0_46 = arith.constant 0 : index
    %c0_47 = arith.constant 0 : index
    %82 = vector.load %arg3[%c0_46, %c0_47] : memref<576x128xbf16, #tpu.memory_space<vmem>>, vector<64x128xbf16>
    %cst_48 = arith.constant dense<0.000000e+00> : vector<96x128xf32>
    %83 = tpu.matmul %81, %82, %cst_48 {dimension_numbers = #tpu.dot_dimension_numbers<[1], [0], [0], [1], [0, 0, 1, 1], [], []>} : vector<96x64xbf16>, vector<64x128xbf16>, vector<96x128xf32> -> vector<96x128xf32>
    %84 = arith.addf %79, %83 : vector<96x128xf32>
    %c2_49 = arith.constant 2 : index
    %c0_50 = arith.constant 0 : index
    %85 = vector.load %arg8[%c2_49, %c0_50] : memref<112x64xf32, #tpu.memory_space<vmem>>, vector<96x64xf32>
    %86 = arith.truncf %85 : vector<96x64xf32> to vector<96x64xbf16>
    %c64_51 = arith.constant 64 : index
    %c0_52 = arith.constant 0 : index
    %87 = vector.load %arg3[%c64_51, %c0_52] : memref<576x128xbf16, #tpu.memory_space<vmem>>, vector<64x128xbf16>
    %cst_53 = arith.constant dense<0.000000e+00> : vector<96x128xf32>
    %88 = tpu.matmul %86, %87, %cst_53 {dimension_numbers = #tpu.dot_dimension_numbers<[1], [0], [0], [1], [0, 0, 1, 1], [], []>} : vector<96x64xbf16>, vector<64x128xbf16>, vector<96x128xf32> -> vector<96x128xf32>
    %89 = arith.addf %84, %88 : vector<96x128xf32>
    %c3_54 = arith.constant 3 : index
    %c0_55 = arith.constant 0 : index
    %90 = vector.load %arg8[%c3_54, %c0_55] : memref<112x64xf32, #tpu.memory_space<vmem>>, vector<96x64xf32>
    %91 = arith.truncf %90 : vector<96x64xf32> to vector<96x64xbf16>
    %c128_56 = arith.constant 128 : index
    %c0_57 = arith.constant 0 : index
    %92 = vector.load %arg3[%c128_56, %c0_57] : memref<576x128xbf16, #tpu.memory_space<vmem>>, vector<64x128xbf16>
    %cst_58 = arith.constant dense<0.000000e+00> : vector<96x128xf32>
    %93 = tpu.matmul %91, %92, %cst_58 {dimension_numbers = #tpu.dot_dimension_numbers<[1], [0], [0], [1], [0, 0, 1, 1], [], []>} : vector<96x64xbf16>, vector<64x128xbf16>, vector<96x128xf32> -> vector<96x128xf32>
    %94 = arith.addf %89, %93 : vector<96x128xf32>
    %c7_59 = arith.constant 7 : index
    %c0_60 = arith.constant 0 : index
    %95 = vector.load %arg8[%c7_59, %c0_60] : memref<112x64xf32, #tpu.memory_space<vmem>>, vector<96x64xf32>
    %96 = arith.truncf %95 : vector<96x64xf32> to vector<96x64xbf16>
    %c192 = arith.constant 192 : index
    %c0_61 = arith.constant 0 : index
    %97 = vector.load %arg3[%c192, %c0_61] : memref<576x128xbf16, #tpu.memory_space<vmem>>, vector<64x128xbf16>
    %cst_62 = arith.constant dense<0.000000e+00> : vector<96x128xf32>
    %98 = tpu.matmul %96, %97, %cst_62 {dimension_numbers = #tpu.dot_dimension_numbers<[1], [0], [0], [1], [0, 0, 1, 1], [], []>} : vector<96x64xbf16>, vector<64x128xbf16>, vector<96x128xf32> -> vector<96x128xf32>
    %99 = arith.addf %94, %98 : vector<96x128xf32>
    %c8_63 = arith.constant 8 : index
    %c0_64 = arith.constant 0 : index
    %100 = vector.load %arg8[%c8_63, %c0_64] : memref<112x64xf32, #tpu.memory_space<vmem>>, vector<96x64xf32>
    %101 = arith.truncf %100 : vector<96x64xf32> to vector<96x64xbf16>
    %c256 = arith.constant 256 : index
    %c0_65 = arith.constant 0 : index
    %102 = vector.load %arg3[%c256, %c0_65] : memref<576x128xbf16, #tpu.memory_space<vmem>>, vector<64x128xbf16>
    %cst_66 = arith.constant dense<0.000000e+00> : vector<96x128xf32>
    %103 = tpu.matmul %101, %102, %cst_66 {dimension_numbers = #tpu.dot_dimension_numbers<[1], [0], [0], [1], [0, 0, 1, 1], [], []>} : vector<96x64xbf16>, vector<64x128xbf16>, vector<96x128xf32> -> vector<96x128xf32>
    %104 = arith.addf %99, %103 : vector<96x128xf32>
    %c9_67 = arith.constant 9 : index
    %c0_68 = arith.constant 0 : index
    %105 = vector.load %arg8[%c9_67, %c0_68] : memref<112x64xf32, #tpu.memory_space<vmem>>, vector<96x64xf32>
    %106 = arith.truncf %105 : vector<96x64xf32> to vector<96x64xbf16>
    %c320 = arith.constant 320 : index
    %c0_69 = arith.constant 0 : index
    %107 = vector.load %arg3[%c320, %c0_69] : memref<576x128xbf16, #tpu.memory_space<vmem>>, vector<64x128xbf16>
    %cst_70 = arith.constant dense<0.000000e+00> : vector<96x128xf32>
    %108 = tpu.matmul %106, %107, %cst_70 {dimension_numbers = #tpu.dot_dimension_numbers<[1], [0], [0], [1], [0, 0, 1, 1], [], []>} : vector<96x64xbf16>, vector<64x128xbf16>, vector<96x128xf32> -> vector<96x128xf32>
    %109 = arith.addf %104, %108 : vector<96x128xf32>
    %c13_71 = arith.constant 13 : index
    %c0_72 = arith.constant 0 : index
    %110 = vector.load %arg8[%c13_71, %c0_72] : memref<112x64xf32, #tpu.memory_space<vmem>>, vector<96x64xf32>
    %111 = arith.truncf %110 : vector<96x64xf32> to vector<96x64xbf16>
    %c384 = arith.constant 384 : index
    %c0_73 = arith.constant 0 : index
    %112 = vector.load %arg3[%c384, %c0_73] : memref<576x128xbf16, #tpu.memory_space<vmem>>, vector<64x128xbf16>
    %cst_74 = arith.constant dense<0.000000e+00> : vector<96x128xf32>
    %113 = tpu.matmul %111, %112, %cst_74 {dimension_numbers = #tpu.dot_dimension_numbers<[1], [0], [0], [1], [0, 0, 1, 1], [], []>} : vector<96x64xbf16>, vector<64x128xbf16>, vector<96x128xf32> -> vector<96x128xf32>
    %114 = arith.addf %109, %113 : vector<96x128xf32>
    %c14_75 = arith.constant 14 : index
    %c0_76 = arith.constant 0 : index
    %115 = vector.load %arg8[%c14_75, %c0_76] : memref<112x64xf32, #tpu.memory_space<vmem>>, vector<96x64xf32>
    %116 = arith.truncf %115 : vector<96x64xf32> to vector<96x64xbf16>
    %c448 = arith.constant 448 : index
    %c0_77 = arith.constant 0 : index
    %117 = vector.load %arg3[%c448, %c0_77] : memref<576x128xbf16, #tpu.memory_space<vmem>>, vector<64x128xbf16>
    %cst_78 = arith.constant dense<0.000000e+00> : vector<96x128xf32>
    %118 = tpu.matmul %116, %117, %cst_78 {dimension_numbers = #tpu.dot_dimension_numbers<[1], [0], [0], [1], [0, 0, 1, 1], [], []>} : vector<96x64xbf16>, vector<64x128xbf16>, vector<96x128xf32> -> vector<96x128xf32>
    %119 = arith.addf %114, %118 : vector<96x128xf32>
    %c15_79 = arith.constant 15 : index
    %c0_80 = arith.constant 0 : index
    %120 = vector.load %arg8[%c15_79, %c0_80] : memref<112x64xf32, #tpu.memory_space<vmem>>, vector<96x64xf32>
    %121 = arith.truncf %120 : vector<96x64xf32> to vector<96x64xbf16>
    %c512 = arith.constant 512 : index
    %c0_81 = arith.constant 0 : index
    %122 = vector.load %arg3[%c512, %c0_81] : memref<576x128xbf16, #tpu.memory_space<vmem>>, vector<64x128xbf16>
    %cst_82 = arith.constant dense<0.000000e+00> : vector<96x128xf32>
    %123 = tpu.matmul %121, %122, %cst_82 {dimension_numbers = #tpu.dot_dimension_numbers<[1], [0], [0], [1], [0, 0, 1, 1], [], []>} : vector<96x64xbf16>, vector<64x128xbf16>, vector<96x128xf32> -> vector<96x128xf32>
    %124 = arith.addf %119, %123 : vector<96x128xf32>
    %c1_83 = arith.constant 1 : index
    %c0_84 = arith.constant 0 : index
    %125 = vector.load %arg6[%c1_83, %c0_84] : memref<8x256xf32, #tpu.memory_space<vmem>>, vector<1x128xf32>
    %126 = vector.broadcast %125 : vector<1x128xf32> to vector<96x128xf32>
    %127 = arith.addf %124, %126 : vector<96x128xf32>
    %128 = vector.broadcast %22 : vector<96x1xf32> to vector<96x128xf32>
    %129 = arith.mulf %127, %128 : vector<96x128xf32>
    %cst_85 = arith.constant 0.000000e+00 : f32
    %130 = vector.broadcast %cst_85 : f32 to vector<8x128xf32>
    %c0_86 = arith.constant 0 : index
    %c0_87 = arith.constant 0 : index
    %131 = vector.load %arg9[%c0_86, %c0_87] : memref<112x128xf32, #tpu.memory_space<vmem>>, vector<8x128xf32>
    tpu.vector_store %arg9[%c0_86, %c0_87], %130 {strides = array<i32>} : memref<112x128xf32, #tpu.memory_space<vmem>>, vector<8x128xf32>,
    %cst_88 = arith.constant 0.000000e+00 : f32
    %132 = vector.broadcast %cst_88 : f32 to vector<8x128xf32>
    %c104_89 = arith.constant 104 : index
    %c0_90 = arith.constant 0 : index
    %133 = vector.load %arg9[%c104_89, %c0_90] : memref<112x128xf32, #tpu.memory_space<vmem>>, vector<8x128xf32>
    tpu.vector_store %arg9[%c104_89, %c0_90], %132 {strides = array<i32>} : memref<112x128xf32, #tpu.memory_space<vmem>>, vector<8x128xf32>,
    %c8_91 = arith.constant 8 : index
    %c0_92 = arith.constant 0 : index
    %134 = vector.load %arg9[%c8_91, %c0_92] : memref<112x128xf32, #tpu.memory_space<vmem>>, vector<96x128xf32>
    tpu.vector_store %arg9[%c8_91, %c0_92], %129 {strides = array<i32>} : memref<112x128xf32, #tpu.memory_space<vmem>>, vector<96x128xf32>,
    %cst_93 = arith.constant 0.000000e+00 : f32
    %135 = vector.broadcast %cst_93 : f32 to vector<96x256xf32>
    %c1_94 = arith.constant 1 : index
    %c0_95 = arith.constant 0 : index
    %136 = vector.load %arg9[%c1_94, %c0_95] : memref<112x128xf32, #tpu.memory_space<vmem>>, vector<96x128xf32>
    %137 = arith.truncf %136 : vector<96x128xf32> to vector<96x128xbf16>
    %c0_96 = arith.constant 0 : index
    %c0_97 = arith.constant 0 : index
    %138 = vector.load %arg4[%c0_96, %c0_97] : memref<1152x256xbf16, #tpu.memory_space<vmem>>, vector<128x256xbf16>
    %cst_98 = arith.constant dense<0.000000e+00> : vector<96x256xf32>
    %139 = tpu.matmul %137, %138, %cst_98 {dimension_numbers = #tpu.dot_dimension_numbers<[1], [0], [0], [1], [0, 0, 1, 1], [], []>} : vector<96x128xbf16>, vector<128x256xbf16>, vector<96x256xf32> -> vector<96x256xf32>
    %140 = arith.addf %135, %139 : vector<96x256xf32>
    %c2_99 = arith.constant 2 : index
    %c0_100 = arith.constant 0 : index
    %141 = vector.load %arg9[%c2_99, %c0_100] : memref<112x128xf32, #tpu.memory_space<vmem>>, vector<96x128xf32>
    %142 = arith.truncf %141 : vector<96x128xf32> to vector<96x128xbf16>
    %c128_101 = arith.constant 128 : index
    %c0_102 = arith.constant 0 : index
    %143 = vector.load %arg4[%c128_101, %c0_102] : memref<1152x256xbf16, #tpu.memory_space<vmem>>, vector<128x256xbf16>
    %cst_103 = arith.constant dense<0.000000e+00> : vector<96x256xf32>
    %144 = tpu.matmul %142, %143, %cst_103 {dimension_numbers = #tpu.dot_dimension_numbers<[1], [0], [0], [1], [0, 0, 1, 1], [], []>} : vector<96x128xbf16>, vector<128x256xbf16>, vector<96x256xf32> -> vector<96x256xf32>
    %145 = arith.addf %140, %144 : vector<96x256xf32>
    %c3_104 = arith.constant 3 : index
    %c0_105 = arith.constant 0 : index
    %146 = vector.load %arg9[%c3_104, %c0_105] : memref<112x128xf32, #tpu.memory_space<vmem>>, vector<96x128xf32>
    %147 = arith.truncf %146 : vector<96x128xf32> to vector<96x128xbf16>
    %c256_106 = arith.constant 256 : index
    %c0_107 = arith.constant 0 : index
    %148 = vector.load %arg4[%c256_106, %c0_107] : memref<1152x256xbf16, #tpu.memory_space<vmem>>, vector<128x256xbf16>
    %cst_108 = arith.constant dense<0.000000e+00> : vector<96x256xf32>
    %149 = tpu.matmul %147, %148, %cst_108 {dimension_numbers = #tpu.dot_dimension_numbers<[1], [0], [0], [1], [0, 0, 1, 1], [], []>} : vector<96x128xbf16>, vector<128x256xbf16>, vector<96x256xf32> -> vector<96x256xf32>
    %150 = arith.addf %145, %149 : vector<96x256xf32>
    %c7_109 = arith.constant 7 : index
    %c0_110 = arith.constant 0 : index
    %151 = vector.load %arg9[%c7_109, %c0_110] : memref<112x128xf32, #tpu.memory_space<vmem>>, vector<96x128xf32>
    %152 = arith.truncf %151 : vector<96x128xf32> to vector<96x128xbf16>
    %c384_111 = arith.constant 384 : index
    %c0_112 = arith.constant 0 : index
    %153 = vector.load %arg4[%c384_111, %c0_112] : memref<1152x256xbf16, #tpu.memory_space<vmem>>, vector<128x256xbf16>
    %cst_113 = arith.constant dense<0.000000e+00> : vector<96x256xf32>
    %154 = tpu.matmul %152, %153, %cst_113 {dimension_numbers = #tpu.dot_dimension_numbers<[1], [0], [0], [1], [0, 0, 1, 1], [], []>} : vector<96x128xbf16>, vector<128x256xbf16>, vector<96x256xf32> -> vector<96x256xf32>
    %155 = arith.addf %150, %154 : vector<96x256xf32>
    %c8_114 = arith.constant 8 : index
    %c0_115 = arith.constant 0 : index
    %156 = vector.load %arg9[%c8_114, %c0_115] : memref<112x128xf32, #tpu.memory_space<vmem>>, vector<96x128xf32>
    %157 = arith.truncf %156 : vector<96x128xf32> to vector<96x128xbf16>
    %c512_116 = arith.constant 512 : index
    %c0_117 = arith.constant 0 : index
    %158 = vector.load %arg4[%c512_116, %c0_117] : memref<1152x256xbf16, #tpu.memory_space<vmem>>, vector<128x256xbf16>
    %cst_118 = arith.constant dense<0.000000e+00> : vector<96x256xf32>
    %159 = tpu.matmul %157, %158, %cst_118 {dimension_numbers = #tpu.dot_dimension_numbers<[1], [0], [0], [1], [0, 0, 1, 1], [], []>} : vector<96x128xbf16>, vector<128x256xbf16>, vector<96x256xf32> -> vector<96x256xf32>
    %160 = arith.addf %155, %159 : vector<96x256xf32>
    %c9_119 = arith.constant 9 : index
    %c0_120 = arith.constant 0 : index
    %161 = vector.load %arg9[%c9_119, %c0_120] : memref<112x128xf32, #tpu.memory_space<vmem>>, vector<96x128xf32>
    %162 = arith.truncf %161 : vector<96x128xf32> to vector<96x128xbf16>
    %c640 = arith.constant 640 : index
    %c0_121 = arith.constant 0 : index
    %163 = vector.load %arg4[%c640, %c0_121] : memref<1152x256xbf16, #tpu.memory_space<vmem>>, vector<128x256xbf16>
    %cst_122 = arith.constant dense<0.000000e+00> : vector<96x256xf32>
    %164 = tpu.matmul %162, %163, %cst_122 {dimension_numbers = #tpu.dot_dimension_numbers<[1], [0], [0], [1], [0, 0, 1, 1], [], []>} : vector<96x128xbf16>, vector<128x256xbf16>, vector<96x256xf32> -> vector<96x256xf32>
    %165 = arith.addf %160, %164 : vector<96x256xf32>
    %c13_123 = arith.constant 13 : index
    %c0_124 = arith.constant 0 : index
    %166 = vector.load %arg9[%c13_123, %c0_124] : memref<112x128xf32, #tpu.memory_space<vmem>>, vector<96x128xf32>
    %167 = arith.truncf %166 : vector<96x128xf32> to vector<96x128xbf16>
    %c768 = arith.constant 768 : index
    %c0_125 = arith.constant 0 : index
    %168 = vector.load %arg4[%c768, %c0_125] : memref<1152x256xbf16, #tpu.memory_space<vmem>>, vector<128x256xbf16>
    %cst_126 = arith.constant dense<0.000000e+00> : vector<96x256xf32>
    %169 = tpu.matmul %167, %168, %cst_126 {dimension_numbers = #tpu.dot_dimension_numbers<[1], [0], [0], [1], [0, 0, 1, 1], [], []>} : vector<96x128xbf16>, vector<128x256xbf16>, vector<96x256xf32> -> vector<96x256xf32>
    %170 = arith.addf %165, %169 : vector<96x256xf32>
    %c14_127 = arith.constant 14 : index
    %c0_128 = arith.constant 0 : index
    %171 = vector.load %arg9[%c14_127, %c0_128] : memref<112x128xf32, #tpu.memory_space<vmem>>, vector<96x128xf32>
    %172 = arith.truncf %171 : vector<96x128xf32> to vector<96x128xbf16>
    %c896 = arith.constant 896 : index
    %c0_129 = arith.constant 0 : index
    %173 = vector.load %arg4[%c896, %c0_129] : memref<1152x256xbf16, #tpu.memory_space<vmem>>, vector<128x256xbf16>
    %cst_130 = arith.constant dense<0.000000e+00> : vector<96x256xf32>
    %174 = tpu.matmul %172, %173, %cst_130 {dimension_numbers = #tpu.dot_dimension_numbers<[1], [0], [0], [1], [0, 0, 1, 1], [], []>} : vector<96x128xbf16>, vector<128x256xbf16>, vector<96x256xf32> -> vector<96x256xf32>
    %175 = arith.addf %170, %174 : vector<96x256xf32>
    %c15_131 = arith.constant 15 : index
    %c0_132 = arith.constant 0 : index
    %176 = vector.load %arg9[%c15_131, %c0_132] : memref<112x128xf32, #tpu.memory_space<vmem>>, vector<96x128xf32>
    %177 = arith.truncf %176 : vector<96x128xf32> to vector<96x128xbf16>
    %c1024 = arith.constant 1024 : index
    %c0_133 = arith.constant 0 : index
    %178 = vector.load %arg4[%c1024, %c0_133] : memref<1152x256xbf16, #tpu.memory_space<vmem>>, vector<128x256xbf16>
    %cst_134 = arith.constant dense<0.000000e+00> : vector<96x256xf32>
    %179 = tpu.matmul %177, %178, %cst_134 {dimension_numbers = #tpu.dot_dimension_numbers<[1], [0], [0], [1], [0, 0, 1, 1], [], []>} : vector<96x128xbf16>, vector<128x256xbf16>, vector<96x256xf32> -> vector<96x256xf32>
    %180 = arith.addf %175, %179 : vector<96x256xf32>
    %c2_135 = arith.constant 2 : index
    %c0_136 = arith.constant 0 : index
    %181 = vector.load %arg6[%c2_135, %c0_136] : memref<8x256xf32, #tpu.memory_space<vmem>>, vector<1x256xf32>
    %182 = vector.broadcast %181 : vector<1x256xf32> to vector<96x256xf32>
    %183 = arith.addf %180, %182 : vector<96x256xf32>
    %184 = vector.broadcast %22 : vector<96x1xf32> to vector<96x256xf32>
    %185 = arith.mulf %183, %184 : vector<96x256xf32>
    %cst_137 = arith.constant 0.000000e+00 : f32
    %186 = vector.broadcast %cst_137 : f32 to vector<8x256xf32>
    %c0_138 = arith.constant 0 : index
    %c0_139 = arith.constant 0 : index
    %187 = vector.load %arg10[%c0_138, %c0_139] : memref<112x256xf32, #tpu.memory_space<vmem>>, vector<8x256xf32>
    tpu.vector_store %arg10[%c0_138, %c0_139], %186 {strides = array<i32>} : memref<112x256xf32, #tpu.memory_space<vmem>>, vector<8x256xf32>,
    %cst_140 = arith.constant 0.000000e+00 : f32
    %188 = vector.broadcast %cst_140 : f32 to vector<8x256xf32>
    %c104_141 = arith.constant 104 : index
    %c0_142 = arith.constant 0 : index
    %189 = vector.load %arg10[%c104_141, %c0_142] : memref<112x256xf32, #tpu.memory_space<vmem>>, vector<8x256xf32>
    tpu.vector_store %arg10[%c104_141, %c0_142], %188 {strides = array<i32>} : memref<112x256xf32, #tpu.memory_space<vmem>>, vector<8x256xf32>,
    %c8_143 = arith.constant 8 : index
    %c0_144 = arith.constant 0 : index
    %190 = vector.load %arg10[%c8_143, %c0_144] : memref<112x256xf32, #tpu.memory_space<vmem>>, vector<96x256xf32>
    tpu.vector_store %arg10[%c8_143, %c0_144], %185 {strides = array<i32>} : memref<112x256xf32, #tpu.memory_space<vmem>>, vector<96x256xf32>,
    tpu.wait_dma2 semaphore(%arg12 : memref<!tpu.dma_semaphore, #tpu.memory_space<semaphore_mem>>) src(%arg5 : memref<2304x256xbf16, #tpu.memory_space<any>>) dst(%arg11 : memref<2304x256xbf16, #tpu.memory_space<vmem>>)
    %cst_145 = arith.constant 0.000000e+00 : f32
    %191 = vector.broadcast %cst_145 : f32 to vector<96x256xf32>
    %c1_146 = arith.constant 1 : index
    %c0_147 = arith.constant 0 : index
    %192 = vector.load %arg10[%c1_146, %c0_147] : memref<112x256xf32, #tpu.memory_space<vmem>>, vector<96x256xf32>
    %193 = arith.truncf %192 : vector<96x256xf32> to vector<96x256xbf16>
    %c0_148 = arith.constant 0 : index
    %c0_149 = arith.constant 0 : index
    %194 = vector.load %arg11[%c0_148, %c0_149] : memref<2304x256xbf16, #tpu.memory_space<vmem>>, vector<256x256xbf16>
    %cst_150 = arith.constant dense<0.000000e+00> : vector<96x256xf32>
    %195 = tpu.matmul %193, %194, %cst_150 {dimension_numbers = #tpu.dot_dimension_numbers<[1], [0], [0], [1], [0, 0, 1, 1], [], []>} : vector<96x256xbf16>, vector<256x256xbf16>, vector<96x256xf32> -> vector<96x256xf32>
    %196 = arith.addf %191, %195 : vector<96x256xf32>
    %c2_151 = arith.constant 2 : index
    %c0_152 = arith.constant 0 : index
    %197 = vector.load %arg10[%c2_151, %c0_152] : memref<112x256xf32, #tpu.memory_space<vmem>>, vector<96x256xf32>
    %198 = arith.truncf %197 : vector<96x256xf32> to vector<96x256xbf16>
    %c256_153 = arith.constant 256 : index
    %c0_154 = arith.constant 0 : index
    %199 = vector.load %arg11[%c256_153, %c0_154] : memref<2304x256xbf16, #tpu.memory_space<vmem>>, vector<256x256xbf16>
    %cst_155 = arith.constant dense<0.000000e+00> : vector<96x256xf32>
    %200 = tpu.matmul %198, %199, %cst_155 {dimension_numbers = #tpu.dot_dimension_numbers<[1], [0], [0], [1], [0, 0, 1, 1], [], []>} : vector<96x256xbf16>, vector<256x256xbf16>, vector<96x256xf32> -> vector<96x256xf32>
    %201 = arith.addf %196, %200 : vector<96x256xf32>
    %c3_156 = arith.constant 3 : index
    %c0_157 = arith.constant 0 : index
    %202 = vector.load %arg10[%c3_156, %c0_157] : memref<112x256xf32, #tpu.memory_space<vmem>>, vector<96x256xf32>
    %203 = arith.truncf %202 : vector<96x256xf32> to vector<96x256xbf16>
    %c512_158 = arith.constant 512 : index
    %c0_159 = arith.constant 0 : index
    %204 = vector.load %arg11[%c512_158, %c0_159] : memref<2304x256xbf16, #tpu.memory_space<vmem>>, vector<256x256xbf16>
    %cst_160 = arith.constant dense<0.000000e+00> : vector<96x256xf32>
    %205 = tpu.matmul %203, %204, %cst_160 {dimension_numbers = #tpu.dot_dimension_numbers<[1], [0], [0], [1], [0, 0, 1, 1], [], []>} : vector<96x256xbf16>, vector<256x256xbf16>, vector<96x256xf32> -> vector<96x256xf32>
    %206 = arith.addf %201, %205 : vector<96x256xf32>
    %c7_161 = arith.constant 7 : index
    %c0_162 = arith.constant 0 : index
    %207 = vector.load %arg10[%c7_161, %c0_162] : memref<112x256xf32, #tpu.memory_space<vmem>>, vector<96x256xf32>
    %208 = arith.truncf %207 : vector<96x256xf32> to vector<96x256xbf16>
    %c768_163 = arith.constant 768 : index
    %c0_164 = arith.constant 0 : index
    %209 = vector.load %arg11[%c768_163, %c0_164] : memref<2304x256xbf16, #tpu.memory_space<vmem>>, vector<256x256xbf16>
    %cst_165 = arith.constant dense<0.000000e+00> : vector<96x256xf32>
    %210 = tpu.matmul %208, %209, %cst_165 {dimension_numbers = #tpu.dot_dimension_numbers<[1], [0], [0], [1], [0, 0, 1, 1], [], []>} : vector<96x256xbf16>, vector<256x256xbf16>, vector<96x256xf32> -> vector<96x256xf32>
    %211 = arith.addf %206, %210 : vector<96x256xf32>
    %c8_166 = arith.constant 8 : index
    %c0_167 = arith.constant 0 : index
    %212 = vector.load %arg10[%c8_166, %c0_167] : memref<112x256xf32, #tpu.memory_space<vmem>>, vector<96x256xf32>
    %213 = arith.truncf %212 : vector<96x256xf32> to vector<96x256xbf16>
    %c1024_168 = arith.constant 1024 : index
    %c0_169 = arith.constant 0 : index
    %214 = vector.load %arg11[%c1024_168, %c0_169] : memref<2304x256xbf16, #tpu.memory_space<vmem>>, vector<256x256xbf16>
    %cst_170 = arith.constant dense<0.000000e+00> : vector<96x256xf32>
    %215 = tpu.matmul %213, %214, %cst_170 {dimension_numbers = #tpu.dot_dimension_numbers<[1], [0], [0], [1], [0, 0, 1, 1], [], []>} : vector<96x256xbf16>, vector<256x256xbf16>, vector<96x256xf32> -> vector<96x256xf32>
    %216 = arith.addf %211, %215 : vector<96x256xf32>
    %c9_171 = arith.constant 9 : index
    %c0_172 = arith.constant 0 : index
    %217 = vector.load %arg10[%c9_171, %c0_172] : memref<112x256xf32, #tpu.memory_space<vmem>>, vector<96x256xf32>
    %218 = arith.truncf %217 : vector<96x256xf32> to vector<96x256xbf16>
    %c1280 = arith.constant 1280 : index
    %c0_173 = arith.constant 0 : index
    %219 = vector.load %arg11[%c1280, %c0_173] : memref<2304x256xbf16, #tpu.memory_space<vmem>>, vector<256x256xbf16>
    %cst_174 = arith.constant dense<0.000000e+00> : vector<96x256xf32>
    %220 = tpu.matmul %218, %219, %cst_174 {dimension_numbers = #tpu.dot_dimension_numbers<[1], [0], [0], [1], [0, 0, 1, 1], [], []>} : vector<96x256xbf16>, vector<256x256xbf16>, vector<96x256xf32> -> vector<96x256xf32>
    %221 = arith.addf %216, %220 : vector<96x256xf32>
    %c13_175 = arith.constant 13 : index
    %c0_176 = arith.constant 0 : index
    %222 = vector.load %arg10[%c13_175, %c0_176] : memref<112x256xf32, #tpu.memory_space<vmem>>, vector<96x256xf32>
    %223 = arith.truncf %222 : vector<96x256xf32> to vector<96x256xbf16>
    %c1536 = arith.constant 1536 : index
    %c0_177 = arith.constant 0 : index
    %224 = vector.load %arg11[%c1536, %c0_177] : memref<2304x256xbf16, #tpu.memory_space<vmem>>, vector<256x256xbf16>
    %cst_178 = arith.constant dense<0.000000e+00> : vector<96x256xf32>
    %225 = tpu.matmul %223, %224, %cst_178 {dimension_numbers = #tpu.dot_dimension_numbers<[1], [0], [0], [1], [0, 0, 1, 1], [], []>} : vector<96x256xbf16>, vector<256x256xbf16>, vector<96x256xf32> -> vector<96x256xf32>
    %226 = arith.addf %221, %225 : vector<96x256xf32>
    %c14_179 = arith.constant 14 : index
    %c0_180 = arith.constant 0 : index
    %227 = vector.load %arg10[%c14_179, %c0_180] : memref<112x256xf32, #tpu.memory_space<vmem>>, vector<96x256xf32>
    %228 = arith.truncf %227 : vector<96x256xf32> to vector<96x256xbf16>
    %c1792 = arith.constant 1792 : index
    %c0_181 = arith.constant 0 : index
    %229 = vector.load %arg11[%c1792, %c0_181] : memref<2304x256xbf16, #tpu.memory_space<vmem>>, vector<256x256xbf16>
    %cst_182 = arith.constant dense<0.000000e+00> : vector<96x256xf32>
    %230 = tpu.matmul %228, %229, %cst_182 {dimension_numbers = #tpu.dot_dimension_numbers<[1], [0], [0], [1], [0, 0, 1, 1], [], []>} : vector<96x256xbf16>, vector<256x256xbf16>, vector<96x256xf32> -> vector<96x256xf32>
    %231 = arith.addf %226, %230 : vector<96x256xf32>
    %c15_183 = arith.constant 15 : index
    %c0_184 = arith.constant 0 : index
    %232 = vector.load %arg10[%c15_183, %c0_184] : memref<112x256xf32, #tpu.memory_space<vmem>>, vector<96x256xf32>
    %233 = arith.truncf %232 : vector<96x256xf32> to vector<96x256xbf16>
    %c2048 = arith.constant 2048 : index
    %c0_185 = arith.constant 0 : index
    %234 = vector.load %arg11[%c2048, %c0_185] : memref<2304x256xbf16, #tpu.memory_space<vmem>>, vector<256x256xbf16>
    %cst_186 = arith.constant dense<0.000000e+00> : vector<96x256xf32>
    %235 = tpu.matmul %233, %234, %cst_186 {dimension_numbers = #tpu.dot_dimension_numbers<[1], [0], [0], [1], [0, 0, 1, 1], [], []>} : vector<96x256xbf16>, vector<256x256xbf16>, vector<96x256xf32> -> vector<96x256xf32>
    %236 = arith.addf %231, %235 : vector<96x256xf32>
    %c3_187 = arith.constant 3 : index
    %c0_188 = arith.constant 0 : index
    %237 = vector.load %arg6[%c3_187, %c0_188] : memref<8x256xf32, #tpu.memory_space<vmem>>, vector<1x256xf32>
    %238 = vector.broadcast %237 : vector<1x256xf32> to vector<96x256xf32>
    %239 = arith.addf %236, %238 : vector<96x256xf32>
    %c0_189 = arith.constant 0 : index
    %c0_190 = arith.constant 0 : index
    %240 = vector.load %arg7[%c0_189, %c0_190] : memref<96x256xf32, #tpu.memory_space<vmem>>, vector<96x256xf32>
    tpu.vector_store %arg7[%c0_189, %c0_190], %239 {strides = array<i32>} : memref<96x256xf32, #tpu.memory_space<vmem>>, vector<96x256xf32>,
    return
  }
  func.func @transform_0(%arg0: i32) -> (i32, i32) {
    %c0_i32 = arith.constant 0 : i32
    %c0_i32_0 = arith.constant 0 : i32
    %c0_i32_1 = arith.constant 0 : i32
    return %c0_i32, %c0_i32_0 : i32, i32
  }
  func.func @transform_1(%arg0: i32) -> (i32, i32) {
    %c0_i32 = arith.constant 0 : i32
    %c0_i32_0 = arith.constant 0 : i32
    %c0_i32_1 = arith.constant 0 : i32
    return %c0_i32, %c0_i32_0 : i32, i32
  }
  func.func @transform_2(%arg0: i32) -> (i32, i32) {
    %c0_i32 = arith.constant 0 : i32
    %c0_i32_0 = arith.constant 0 : i32
    %c0_i32_1 = arith.constant 0 : i32
    return %c0_i32, %c0_i32_0 : i32, i32
  }
  func.func @transform_3(%arg0: i32) -> (i32, i32) {
    %c0_i32 = arith.constant 0 : i32
    %c0_i32_0 = arith.constant 0 : i32
    %c0_i32_1 = arith.constant 0 : i32
    return %c0_i32, %c0_i32_0 : i32, i32
  }
  func.func @transform_5(%arg0: i32) -> (i32, i32) {
    %c0_i32 = arith.constant 0 : i32
    %c0_i32_0 = arith.constant 0 : i32
    %c0_i32_1 = arith.constant 0 : i32
    return %c0_i32, %c0_i32_0 : i32, i32
  }
  func.func @transform_6(%arg0: i32) -> (i32, i32) {
    %c0_i32 = arith.constant 0 : i32
    %c0_i32_0 = arith.constant 0 : i32
    %c0_i32_1 = arith.constant 0 : i32
    return %c0_i32, %c0_i32_0 : i32, i32
  }
}

</mosaic_0001>

<llo_original>
// kernel: cnn_c_forward.1
$region0: #{cnn_c_forward.1}
  #allocation0 [shape = 'u32[]', space=smem, size = 0x4, offset = 0x4, fixed_abs, tag = 'smem constant byte address 0x4 - core index']
  #allocation1 [shape = 'u32[72,128]{1,0:T(1,128)}', space=vmem, size = 0x9000, scoped, tag = 'internal scratch']
  #allocation2 [shape = 'f32[112,64]{1,0:T(8,128)}', space=vmem, size = 0xe000, scoped, tag = 'scratch operand']
  #allocation3 [shape = 'f32[112,128]{1,0:T(8,128)}', space=vmem, size = 0xe000, scoped, tag = 'scratch operand']
  #allocation4 [shape = 'f32[112,256]{1,0:T(8,128)}', space=vmem, size = 0x1c000, scoped, tag = 'scratch operand']
  #allocation5 [shape = 'bf16[2304,256]{1,0:T(8,128)(2,1)}', space=vmem, size = 0x120000, scoped, tag = 'scratch operand']
  #allocation6 [shape = 's32[1]{0}', space=sflag, size = 0x4, scoped, tag = 'scratch operand']
  #allocation12 [shape = 's32[]', space=sflag, size = 0x4, offset = 0, fixed_abs, tag = 'sflag constant byte address 0x0 - dummy sync flag']
  #allocation13 [shape = 's32[]', space=sflag, size = 0x4, offset = 0, fixed_abs, tag = 'sflag constant byte address 0x0 - dummy sync flag']
  #allocation14 [shape = 'u32[]', space=smem, size = 0x4, offset = 0x44, fixed_abs, tag = 'smem constant byte address 0x44 - assertion arg 0']
  #allocation15 [shape = 'u32[]', space=smem, size = 0x4, offset = 0x48, fixed_abs, tag = 'smem constant byte address 0x48 - assertion arg 1']
  %s0 = inlined_call_operand.vmem [shape: f32[112,16], index: 0, kind: input, shape index: {}]
  %s1 = inlined_call_operand.vmem [shape: bf16[144,64], index: 1, kind: input, shape index: {}]
  %s2 = inlined_call_operand.hbm [shape: bf16[576,128], index: 2, kind: input, shape index: {}]
  %s3 = inlined_call_operand.hbm [shape: bf16[1152,256], index: 3, kind: input, shape index: {}]
  %s4 = inlined_call_operand.hbm [shape: bf16[2304,256], index: 4, kind: input, shape index: {}]
  %s5 = inlined_call_operand.hbm [shape: f32[8,256], index: 5, kind: input, shape index: {}]
  %s6 = inlined_call_operand.vmem [shape: f32[96,256], index: 6, kind: output, shape index: {}]
  %s7 = sld [smem:[#allocation0]]
  $region46: #{cnn_c_forward.1} parent=0
    _
  %s9 = ssub.s32 1, %s7
  %s10 = scalar_select 0, %s9, %s7
  $region1: #{cnn_c_forward.1} parent=0
    #allocation7 [shape = 'u8[147456]{0}', space=vmem, size = 0x24000, scoped, tag = 'input window, operand 2, single buffered']
    #allocation8 [shape = 's32[1]{0}', space=sflag, size = 0x4, scoped, tag = 'scoped memory for cnn_c_forward.1']
    #allocation9 [shape = 'u8[589824]{0}', space=vmem, size = 0x90000, scoped, tag = 'input window, operand 3, single buffered']
    #allocation10 [shape = 's32[1]{0}', space=sflag, size = 0x4, scoped, tag = 'scoped memory for cnn_c_forward.1']
    #allocation11 [shape = 'u8[8192]{0}', space=vmem, size = 0x2000, scoped, tag = 'input window, operand 5, single buffered']
    %11 = vsyncpa [#allocation8], 0
    %12 = vsyncpa [#allocation10], 0
    // Predicated region
    $region2: #{cnn_c_forward.1} parent=1 // pred_check
      _
    $region3: #{cnn_c_forward.1} parent=1 // pred_check_branch
      %14 = sbr.rel (0) target = $region5
    $region4: #{cnn_c_forward.1} parent=1 // pred_region
      _
    $region5: #{cnn_c_forward.1} parent=1 // pred_fallthru
      _
    // Predicated region
    $region6: #{cnn_c_forward.1} parent=1 // pred_check
      _
    $region7: #{cnn_c_forward.1} parent=1 // pred_check_branch
      %16 = sbr.rel (0) target = $region9
    $region8: #{cnn_c_forward.1} parent=1 // pred_region
      _
    $region9: #{cnn_c_forward.1} parent=1 // pred_fallthru
      _
    // Predicated region
    $region10: #{cnn_c_forward.1} parent=1 // pred_check
      _
    $region11: #{cnn_c_forward.1} parent=1 // pred_check_branch
      %18 = sbr.rel (0) target = $region13
    $region12: #{cnn_c_forward.1} parent=1 // pred_region
      %20 = vsyncadd [#allocation8], 0
      %s21 = sshll.u32 %s2, 4
      %s22 = int_to_ptr.hbm [resolvable:$true] %s21
      %s23 = sshll.u32 [#allocation7], 4
      %s24 = int_to_ptr.vmem [resolvable:$true] %s23
      %29 = dma.hbm_to_vmem [thread:$0]  %s22, 4608, %s24, [#allocation8], 64, 64, 4
    $region13: #{cnn_c_forward.1} parent=1 // pred_fallthru
      _
    // Predicated region
    $region14: #{cnn_c_forward.1} parent=1 // pred_check
      _
    $region15: #{cnn_c_forward.1} parent=1 // pred_check_branch
      %31 = sbr.rel (0) target = $region17
    $region16: #{cnn_c_forward.1} parent=1 // pred_region
      %33 = vsyncadd [#allocation10], 0
      %s34 = sshll.u32 %s3, 4
      %s35 = int_to_ptr.hbm [resolvable:$true] %s34
      %s36 = sshll.u32 [#allocation9], 4
      %s37 = int_to_ptr.vmem [resolvable:$true] %s36
      %42 = dma.hbm_to_vmem [thread:$0]  %s35, 18432, %s37, [#allocation10], 128, 128, 8
    $region17: #{cnn_c_forward.1} parent=1 // pred_fallthru
      _
    // Predicated region
    $region18: #{cnn_c_forward.1} parent=1 // pred_check
      _
    $region19: #{cnn_c_forward.1} parent=1 // pred_check_branch
      %44 = sbr.rel (0) target = $region21
    $region20: #{cnn_c_forward.1} parent=1 // pred_region
      %46 = vsyncadd [#allocation10], 0
      %s48 = sshll.u32 %s5, 4
      %s49 = int_to_ptr.hbm [resolvable:$true] %s48
      %s50 = sshll.u32 [#allocation11], 4
      %s51 = int_to_ptr.vmem [resolvable:$true] %s50
      %53 = dma.hbm_to_vmem [thread:$0]  %s49, 256, %s51, [#allocation10]
    $region21: #{cnn_c_forward.1} parent=1 // pred_fallthru
      _
    // Predicated region
    $region22: #{cnn_c_forward.1} parent=1 // pred_check
      _
    $region23: #{cnn_c_forward.1} parent=1 // pred_check_branch
      %55 = sbr.rel (0) target = $region25
    $region24: #{cnn_c_forward.1} parent=1 // pred_region
      %57 = dma.done [#allocation8], 4608
    $region25: #{cnn_c_forward.1} parent=1 // pred_fallthru
      _
    // Predicated region
    $region26: #{cnn_c_forward.1} parent=1 // pred_check
      _
    $region27: #{cnn_c_forward.1} parent=1 // pred_check_branch
      %59 = sbr.rel (0) target = $region29
    $region28: #{cnn_c_forward.1} parent=1 // pred_region
      %61 = dma.done [#allocation10], 18432
    $region29: #{cnn_c_forward.1} parent=1 // pred_fallthru
      _
    // Predicated region
    $region30: #{cnn_c_forward.1} parent=1 // pred_check
      _
    $region31: #{cnn_c_forward.1} parent=1 // pred_check_branch
      %63 = sbr.rel (0) target = $region33
    $region32: #{cnn_c_forward.1} parent=1 // pred_region
      %65 = dma.done [#allocation10], 256
    $region33: #{cnn_c_forward.1} parent=1 // pred_fallthru
      _
    // Predicated region
    $region34: #{cnn_c_forward.1} parent=1 // pred_check
      _
    $region35: #{cnn_c_forward.1} parent=1 // pred_check_branch
      %68 = sbr.rel target = $region37
    $region36: #{cnn_c_forward.1} parent=1 // pred_region
      %69 = sst [smem:[#allocation14]] [#allocation13]
      %70 = sst [smem:[#allocation15]] [#allocation12]
    $region37: #{cnn_c_forward.1} parent=1 // pred_fallthru
      _
    %72 = shalt.err (0)
    %s74 = sshll.u32 %s4, 4
    %s75 = int_to_ptr.hbm [resolvable:$true] %s74
    %s76 = sshll.u32 [#allocation5], 4
    %s77 = int_to_ptr.vmem [resolvable:$true] %s76
    %79 = dma.hbm_to_vmem [thread:$0]  %s75, 36864, %s77, [#allocation6]
    %v80 = vlaneseq
    %v81 = vshrl.u32 %v80, 7
    %v82 = vadd.s32 %v81, 8
    %v83 = vadd.s32 %v81, 16
    %v84 = vadd.s32 %v81, 24
    %v85 = vadd.s32 %v81, 32
    %v86 = vadd.s32 %v81, 40
    %v87 = vadd.s32 %v81, 48
    %v88 = vadd.s32 %v81, 56
    %v89 = vadd.s32 %v81, 64
    %v90 = vadd.s32 %v81, 72
    %v91 = vadd.s32 %v81, 80
    %v92 = vadd.s32 %v81, 88
    %v93 = vcvt.s32.f32 %v81
    %v94 = vcvt.s32.f32 %v82
    %v95 = vcvt.s32.f32 %v83
    %v96 = vcvt.s32.f32 %v84
    %v97 = vcvt.s32.f32 %v85
    %v98 = vcvt.s32.f32 %v86
    %v99 = vcvt.s32.f32 %v87
    %v100 = vcvt.s32.f32 %v88
    %v101 = vcvt.s32.f32 %v89
    %v102 = vcvt.s32.f32 %v90
    %v103 = vcvt.s32.f32 %v91
    %v104 = vcvt.s32.f32 %v92
    %v105 = vadd.f32 %v93, 0.5
    %v106 = vadd.f32 %v94, 0.5
    %v107 = vadd.f32 %v95, 0.5
    %v108 = vadd.f32 %v96, 0.5
    %v109 = vadd.f32 %v97, 0.5
    %v110 = vadd.f32 %v98, 0.5
    %v111 = vadd.f32 %v99, 0.5
    %v112 = vadd.f32 %v100, 0.5
    %v113 = vadd.f32 %v101, 0.5
    %v114 = vadd.f32 %v102, 0.5
    %v115 = vadd.f32 %v103, 0.5
    %v116 = vadd.f32 %v104, 0.5
    %v117 = vmul.f32 %v105, 0.16666667
    %v118 = vmul.f32 %v106, 0.16666667
    %v119 = vmul.f32 %v107, 0.16666667
    %v120 = vmul.f32 %v108, 0.16666667
    %v121 = vmul.f32 %v109, 0.16666667
    %v122 = vmul.f32 %v110, 0.16666667
    %v123 = vmul.f32 %v111, 0.16666667
    %v124 = vmul.f32 %v112, 0.16666667
    %v125 = vmul.f32 %v113, 0.16666667
    %v126 = vmul.f32 %v114, 0.16666667
    %v127 = vmul.f32 %v115, 0.16666667
    %v128 = vmul.f32 %v116, 0.16666667
    %v129 = vfloor.f32 %v117
    %v130 = vfloor.f32 %v118
    %v131 = vfloor.f32 %v119
    %v132 = vfloor.f32 %v120
    %v133 = vfloor.f32 %v121
    %v134 = vfloor.f32 %v122
    %v135 = vfloor.f32 %v123
    %v136 = vfloor.f32 %v124
    %v137 = vfloor.f32 %v125
    %v138 = vfloor.f32 %v126
    %v139 = vfloor.f32 %v127
    %v140 = vfloor.f32 %v128
    %v141 = vmul.f32 %v129, 6.0
    %v142 = vmul.f32 %v130, 6.0
    %v143 = vmul.f32 %v131, 6.0
    %v144 = vmul.f32 %v132, 6.0
    %v145 = vmul.f32 %v133, 6.0
    %v146 = vmul.f32 %v134, 6.0
    %v147 = vmul.f32 %v135, 6.0
    %v148 = vmul.f32 %v136, 6.0
    %v149 = vmul.f32 %v137, 6.0
    %v150 = vmul.f32 %v138, 6.0
    %v151 = vmul.f32 %v139, 6.0
    %v152 = vmul.f32 %v140, 6.0
    %v153 = vsub.f32 %v93, %v141
    %v154 = vsub.f32 %v94, %v142
    %v155 = vsub.f32 %v95, %v143
    %v156 = vsub.f32 %v96, %v144
    %v157 = vsub.f32 %v97, %v145
    %v158 = vsub.f32 %v98, %v146
    %v159 = vsub.f32 %v99, %v147
    %v160 = vsub.f32 %v100, %v148
    %v161 = vsub.f32 %v101, %v149
    %v162 = vsub.f32 %v102, %v150
    %v163 = vsub.f32 %v103, %v151
    %v164 = vsub.f32 %v104, %v152
    %vm165 = vcmp.ge.f32.partialorder %v129, 1.0
    %vm166 = vcmp.ge.f32.partialorder %v130, 1.0
    %vm167 = vcmp.ge.f32.partialorder %v131, 1.0
    %vm168 = vcmp.ge.f32.partialorder %v132, 1.0
    %vm169 = vcmp.ge.f32.partialorder %v133, 1.0
    %vm170 = vcmp.ge.f32.partialorder %v134, 1.0
    %vm171 = vcmp.ge.f32.partialorder %v135, 1.0
    %vm172 = vcmp.ge.f32.partialorder %v136, 1.0
    %vm173 = vcmp.ge.f32.partialorder %v137, 1.0
    %vm174 = vcmp.ge.f32.partialorder %v138, 1.0
    %vm175 = vcmp.ge.f32.partialorder %v139, 1.0
    %vm176 = vcmp.ge.f32.partialorder %v140, 1.0
    %vm177 = vcmp.le.f32.partialorder %v129, 13.0
    %vm178 = vcmp.le.f32.partialorder %v130, 13.0
    %vm179 = vcmp.le.f32.partialorder %v131, 13.0
    %vm180 = vcmp.le.f32.partialorder %v132, 13.0
    %vm181 = vcmp.le.f32.partialorder %v133, 13.0
    %vm182 = vcmp.le.f32.partialorder %v134, 13.0
    %vm183 = vcmp.le.f32.partialorder %v135, 13.0
    %vm184 = vcmp.le.f32.partialorder %v136, 13.0
    %vm185 = vcmp.le.f32.partialorder %v137, 13.0
    %vm186 = vcmp.le.f32.partialorder %v138, 13.0
    %vm187 = vcmp.le.f32.partialorder %v139, 13.0
    %vm188 = vcmp.le.f32.partialorder %v140, 13.0
    %vm189 = vmand %vm165, %vm177
    %vm190 = vmand %vm166, %vm178
    %vm191 = vmand %vm167, %vm179
    %vm192 = vmand %vm168, %vm180
    %vm193 = vmand %vm169, %vm181
    %vm194 = vmand %vm170, %vm182
    %vm195 = vmand %vm171, %vm183
    %vm196 = vmand %vm172, %vm184
    %vm197 = vmand %vm173, %vm185
    %vm198 = vmand %vm174, %vm186
    %vm199 = vmand %vm175, %vm187
    %vm200 = vmand %vm176, %vm188
    %vm201 = vcmp.ge.f32.partialorder %v153, 1.0
    %vm202 = vcmp.ge.f32.partialorder %v154, 1.0
    %vm203 = vcmp.ge.f32.partialorder %v155, 1.0
    %vm204 = vcmp.ge.f32.partialorder %v156, 1.0
    %vm205 = vcmp.ge.f32.partialorder %v157, 1.0
    %vm206 = vcmp.ge.f32.partialorder %v158, 1.0
    %vm207 = vcmp.ge.f32.partialorder %v159, 1.0
    %vm208 = vcmp.ge.f32.partialorder %v160, 1.0
    %vm209 = vcmp.ge.f32.partialorder %v161, 1.0
    %vm210 = vcmp.ge.f32.partialorder %v162, 1.0
    %vm211 = vcmp.ge.f32.partialorder %v163, 1.0
    %vm212 = vcmp.ge.f32.partialorder %v164, 1.0
    %vm213 = vmand %vm189, %vm201
    %vm214 = vmand %vm190, %vm202
    %vm215 = vmand %vm191, %vm203
    %vm216 = vmand %vm192, %vm204
    %vm217 = vmand %vm193, %vm205
    %vm218 = vmand %vm194, %vm206
    %vm219 = vmand %vm195, %vm207
    %vm220 = vmand %vm196, %vm208
    %vm221 = vmand %vm197, %vm209
    %vm222 = vmand %vm198, %vm210
    %vm223 = vmand %vm199, %vm211
    %vm224 = vmand %vm200, %vm212
    %vm225 = vcmp.le.f32.partialorder %v153, 4.0
    %vm226 = vcmp.le.f32.partialorder %v154, 4.0
    %vm227 = vcmp.le.f32.partialorder %v155, 4.0
    %vm228 = vcmp.le.f32.partialorder %v156, 4.0
    %vm229 = vcmp.le.f32.partialorder %v157, 4.0
    %vm230 = vcmp.le.f32.partialorder %v158, 4.0
    %vm231 = vcmp.le.f32.partialorder %v159, 4.0
    %vm232 = vcmp.le.f32.partialorder %v160, 4.0
    %vm233 = vcmp.le.f32.partialorder %v161, 4.0
    %vm234 = vcmp.le.f32.partialorder %v162, 4.0
    %vm235 = vcmp.le.f32.partialorder %v163, 4.0
    %vm236 = vcmp.le.f32.partialorder %v164, 4.0
    %vm237 = vmand %vm213, %vm225
    %vm238 = vmand %vm214, %vm226
    %vm239 = vmand %vm215, %vm227
    %vm240 = vmand %vm216, %vm228
    %vm241 = vmand %vm217, %vm229
    %vm242 = vmand %vm218, %vm230
    %vm243 = vmand %vm219, %vm231
    %vm244 = vmand %vm220, %vm232
    %vm245 = vmand %vm221, %vm233
    %vm246 = vmand %vm222, %vm234
    %vm247 = vmand %vm223, %vm235
    %vm248 = vmand %vm224, %vm236
    %v249 = vsel %vm237, 1, 0
    %v250 = vsel %vm238, 1, 0
    %v251 = vsel %vm239, 1, 0
    %v252 = vsel %vm240, 1, 0
    %v253 = vsel %vm241, 1, 0
    %v254 = vsel %vm242, 1, 0
    %v255 = vsel %vm243, 1, 0
    %v256 = vsel %vm244, 1, 0
    %v257 = vsel %vm245, 1, 0
    %v258 = vsel %vm246, 1, 0
    %v259 = vsel %vm247, 1, 0
    %v260 = vsel %vm248, 1, 0
    %v261 = vcvt.s32.f32 %v249
    %v262 = vcvt.s32.f32 %v250
    %v263 = vcvt.s32.f32 %v251
    %v264 = vcvt.s32.f32 %v252
    %v265 = vcvt.s32.f32 %v253
    %v266 = vcvt.s32.f32 %v254
    %v267 = vcvt.s32.f32 %v255
    %v268 = vcvt.s32.f32 %v256
    %v269 = vcvt.s32.f32 %v257
    %v270 = vcvt.s32.f32 %v258
    %v271 = vcvt.s32.f32 %v259
    %v272 = vcvt.s32.f32 %v260
    %v273 = vld [vmem:[%s0 + $0x1] sm:$0xff]
    %v274 = vld [vmem:[%s0 + $0x9] sm:$0xff]
    %v275 = vld [vmem:[%s0 + $0x11] sm:$0xff]
    %v276 = vld [vmem:[%s0 + $0x19] sm:$0xff]
    %v277 = vld [vmem:[%s0 + $0x21] sm:$0xff]
    %v278 = vld [vmem:[%s0 + $0x29] sm:$0xff]
    %v279 = vld [vmem:[%s0 + $0x31] sm:$0xff]
    %v280 = vld [vmem:[%s0 + $0x39] sm:$0xff]
    %v281 = vld [vmem:[%s0 + $0x41] sm:$0xff]
    %v282 = vld [vmem:[%s0 + $0x49] sm:$0xff]
    %v283 = vld [vmem:[%s0 + $0x51] sm:$0xff]
    %v284 = vld [vmem:[%s0 + $0x59] sm:$0xff]
    %v285 = vpack.c.bf16 %v274, %v273
    %v286 = vpack.c.bf16 %v276, %v275
    %v287 = vpack.c.bf16 %v278, %v277
    %v288 = vpack.c.bf16 %v280, %v279
    %v289 = vpack.c.bf16 %v282, %v281
    %v290 = vpack.c.bf16 %v284, %v283
    %v291 = vld [vmem:[%s1] sm:$0xf]
    %v292 = vld [vmem:[%s1 + $0x4] sm:$0xf]
    %v293 = vld [vmem:[%s0 + $0x2] sm:$0xff]
    %v294 = vld [vmem:[%s0 + $0xa] sm:$0xff]
    %v295 = vld [vmem:[%s0 + $0x12] sm:$0xff]
    %v296 = vld [vmem:[%s0 + $0x1a] sm:$0xff]
    %v297 = vld [vmem:[%s0 + $0x22] sm:$0xff]
    %v298 = vld [vmem:[%s0 + $0x2a] sm:$0xff]
    %v299 = vld [vmem:[%s0 + $0x32] sm:$0xff]
    %v300 = vld [vmem:[%s0 + $0x3a] sm:$0xff]
    %v301 = vld [vmem:[%s0 + $0x42] sm:$0xff]
    %v302 = vld [vmem:[%s0 + $0x4a] sm:$0xff]
    %v303 = vld [vmem:[%s0 + $0x52] sm:$0xff]
    %v304 = vld [vmem:[%s0 + $0x5a] sm:$0xff]
    %v305 = vpack.c.bf16 %v294, %v293
    %v306 = vpack.c.bf16 %v296, %v295
    %v307 = vpack.c.bf16 %v298, %v297
    %v308 = vpack.c.bf16 %v300, %v299
    %v309 = vpack.c.bf16 %v302, %v301
    %v310 = vpack.c.bf16 %v304, %v303
    %v311 = vld [vmem:[%s1 + $0x8] sm:$0xf]
    %v312 = vld [vmem:[%s1 + $0xc] sm:$0xf]
    %v315 = vunpack.c.l.b16 %v311
    %v316 = vunpack.c.l.b16 %v312
    %v317 = vpack.c.b16 %v316, %v315
    %vm319 = vcmask 130048
    %v321 = vsel %vm319, %v305, 0
    %v324 = vsel %vm319, %v306, 0
    %v327 = vsel %vm319, %v307, 0
    %v330 = vsel %vm319, %v308, 0
    %v333 = vsel %vm319, %v309, 0
    %v336 = vsel %vm319, %v310, 0
    %338 = vmatpush.bf16.msra.mxu0 0
    %339 = vmatpush.bf16.msra.mxu0 0
    %340 = vmatpush.bf16.msra.mxu0 0
    %341 = vmatpush.bf16.msra.mxu0 0
    %342 = vmatpush.bf16.msra.mxu0 0
    %343 = vmatpush.bf16.msra.mxu0 0
    %344 = vmatpush.bf16.msra.mxu0 0
    %345 = vmatpush.bf16.msra.mxu0 %v317
    %346 = vmatmul.bf16.gmra.mxu0 %v321
    %v347 = vpop.f32.mrf.mxu0
    %v348 = vadd.f32 0.0, %v347
    %v349 = vpop.f32.mrf.mxu0
    %v350 = vadd.f32 0.0, %v349
    %351 = vmatmul.bf16.gmra.mxu0 %v324
    %v352 = vpop.f32.mrf.mxu0
    %v353 = vadd.f32 0.0, %v352
    %v354 = vpop.f32.mrf.mxu0
    %v355 = vadd.f32 0.0, %v354
    %356 = vmatmul.bf16.gmra.mxu0 %v327
    %v357 = vpop.f32.mrf.mxu0
    %v358 = vadd.f32 0.0, %v357
    %v359 = vpop.f32.mrf.mxu0
    %v360 = vadd.f32 0.0, %v359
    %361 = vmatmul.bf16.gmra.mxu0 %v330
    %v362 = vpop.f32.mrf.mxu0
    %v363 = vadd.f32 0.0, %v362
    %v364 = vpop.f32.mrf.mxu0
    %v365 = vadd.f32 0.0, %v364
    %366 = vmatmul.bf16.gmra.mxu0 %v333
    %v367 = vpop.f32.mrf.mxu0
    %v368 = vadd.f32 0.0, %v367
    %v369 = vpop.f32.mrf.mxu0
    %v370 = vadd.f32 0.0, %v369
    %371 = vmatmul.bf16.gmra.mxu0 %v336
    %v372 = vpop.f32.mrf.mxu0
    %v373 = vadd.f32 0.0, %v372
    %v374 = vpop.f32.mrf.mxu0
    %v375 = vadd.f32 0.0, %v374
    %376 = vdwg.mxu0
    %v379 = vunpack.c.l.b16 %v291
    %v380 = vunpack.c.l.b16 %v292
    %v381 = vpack.c.b16 %v380, %v379
    %v384 = vsel %vm319, %v285, 0
    %v387 = vsel %vm319, %v286, 0
    %v390 = vsel %vm319, %v287, 0
    %v393 = vsel %vm319, %v288, 0
    %v396 = vsel %vm319, %v289, 0
    %v399 = vsel %vm319, %v290, 0
    %401 = vmatpush.bf16.msra.mxu0 0
    %402 = vmatpush.bf16.msra.mxu0 0
    %403 = vmatpush.bf16.msra.mxu0 0
    %404 = vmatpush.bf16.msra.mxu0 0
    %405 = vmatpush.bf16.msra.mxu0 0
    %406 = vmatpush.bf16.msra.mxu0 0
    %407 = vmatpush.bf16.msra.mxu0 0
    %408 = vmatpush.bf16.msra.mxu0 %v381
    %409 = vmatmul.bf16.gmra.mxu0 %v384
    %v410 = vpop.f32.mrf.mxu0
    %v411 = vadd.f32 %v348, %v410
    %v412 = vpop.f32.mrf.mxu0
    %v413 = vadd.f32 %v350, %v412
    %414 = vmatmul.bf16.gmra.mxu0 %v387
    %v415 = vpop.f32.mrf.mxu0
    %v416 = vadd.f32 %v353, %v415
    %v417 = vpop.f32.mrf.mxu0
    %v418 = vadd.f32 %v355, %v417
    %419 = vmatmul.bf16.gmra.mxu0 %v390
    %v420 = vpop.f32.mrf.mxu0
    %v421 = vadd.f32 %v358, %v420
    %v422 = vpop.f32.mrf.mxu0
    %v423 = vadd.f32 %v360, %v422
    %424 = vmatmul.bf16.gmra.mxu0 %v393
    %v425 = vpop.f32.mrf.mxu0
    %v426 = vadd.f32 %v363, %v425
    %v427 = vpop.f32.mrf.mxu0
    %v428 = vadd.f32 %v365, %v427
    %429 = vmatmul.bf16.gmra.mxu0 %v396
    %v430 = vpop.f32.mrf.mxu0
    %v431 = vadd.f32 %v368, %v430
    %v432 = vpop.f32.mrf.mxu0
    %v433 = vadd.f32 %v370, %v432
    %434 = vmatmul.bf16.gmra.mxu0 %v399
    %v435 = vpop.f32.mrf.mxu0
    %v436 = vadd.f32 %v373, %v435
    %v437 = vpop.f32.mrf.mxu0
    %v438 = vadd.f32 %v375, %v437
    %439 = vdwg.mxu0
    %v440 = vld [vmem:[%s0 + $0x3] sm:$0xff]
    %v441 = vld [vmem:[%s0 + $0xb] sm:$0xff]
    %v442 = vld [vmem:[%s0 + $0x13] sm:$0xff]
    %v443 = vld [vmem:[%s0 + $0x1b] sm:$0xff]
    %v444 = vld [vmem:[%s0 + $0x23] sm:$0xff]
    %v445 = vld [vmem:[%s0 + $0x2b] sm:$0xff]
    %v446 = vld [vmem:[%s0 + $0x33] sm:$0xff]
    %v447 = vld [vmem:[%s0 + $0x3b] sm:$0xff]
    %v448 = vld [vmem:[%s0 + $0x43] sm:$0xff]
    %v449 = vld [vmem:[%s0 + $0x4b] sm:$0xff]
    %v450 = vld [vmem:[%s0 + $0x53] sm:$0xff]
    %v451 = vld [vmem:[%s0 + $0x5b] sm:$0xff]
    %v452 = vpack.c.bf16 %v441, %v440
    %v453 = vpack.c.bf16 %v443, %v442
    %v454 = vpack.c.bf16 %v445, %v444
    %v455 = vpack.c.bf16 %v447, %v446
    %v456 = vpack.c.bf16 %v449, %v448
    %v457 = vpack.c.bf16 %v451, %v450
    %v458 = vld [vmem:[%s1 + $0x10] sm:$0xf]
    %v459 = vld [vmem:[%s1 + $0x14] sm:$0xf]
    %v462 = vunpack.c.l.b16 %v458
    %v463 = vunpack.c.l.b16 %v459
    %v464 = vpack.c.b16 %v463, %v462
    %v467 = vsel %vm319, %v452, 0
    %v470 = vsel %vm319, %v453, 0
    %v473 = vsel %vm319, %v454, 0
    %v476 = vsel %vm319, %v455, 0
    %v479 = vsel %vm319, %v456, 0
    %v482 = vsel %vm319, %v457, 0
    %484 = vmatpush.bf16.msra.mxu0 0
    %485 = vmatpush.bf16.msra.mxu0 0
    %486 = vmatpush.bf16.msra.mxu0 0
    %487 = vmatpush.bf16.msra.mxu0 0
    %488 = vmatpush.bf16.msra.mxu0 0
    %489 = vmatpush.bf16.msra.mxu0 0
    %490 = vmatpush.bf16.msra.mxu0 0
    %491 = vmatpush.bf16.msra.mxu0 %v464
    %492 = vmatmul.bf16.gmra.mxu0 %v467
    %v493 = vpop.f32.mrf.mxu0
    %v494 = vadd.f32 0.0, %v493
    %v495 = vpop.f32.mrf.mxu0
    %v496 = vadd.f32 0.0, %v495
    %497 = vmatmul.bf16.gmra.mxu0 %v470
    %v498 = vpop.f32.mrf.mxu0
    %v499 = vadd.f32 0.0, %v498
    %v500 = vpop.f32.mrf.mxu0
    %v501 = vadd.f32 0.0, %v500
    %502 = vmatmul.bf16.gmra.mxu0 %v473
    %v503 = vpop.f32.mrf.mxu0
    %v504 = vadd.f32 0.0, %v503
    %v505 = vpop.f32.mrf.mxu0
    %v506 = vadd.f32 0.0, %v505
    %507 = vmatmul.bf16.gmra.mxu0 %v476
    %v508 = vpop.f32.mrf.mxu0
    %v509 = vadd.f32 0.0, %v508
    %v510 = vpop.f32.mrf.mxu0
    %v511 = vadd.f32 0.0, %v510
    %512 = vmatmul.bf16.gmra.mxu0 %v479
    %v513 = vpop.f32.mrf.mxu0
    %v514 = vadd.f32 0.0, %v513
    %v515 = vpop.f32.mrf.mxu0
    %v516 = vadd.f32 0.0, %v515
    %517 = vmatmul.bf16.gmra.mxu0 %v482
    %v518 = vpop.f32.mrf.mxu0
    %v519 = vadd.f32 0.0, %v518
    %v520 = vpop.f32.mrf.mxu0
    %v521 = vadd.f32 0.0, %v520
    %522 = vdwg.mxu0
    %v523 = vadd.f32 %v411, %v494
    %v524 = vadd.f32 %v413, %v496
    %v525 = vadd.f32 %v416, %v499
    %v526 = vadd.f32 %v418, %v501
    %v527 = vadd.f32 %v421, %v504
    %v528 = vadd.f32 %v423, %v506
    %v529 = vadd.f32 %v426, %v509
    %v530 = vadd.f32 %v428, %v511
    %v531 = vadd.f32 %v431, %v514
    %v532 = vadd.f32 %v433, %v516
    %v533 = vadd.f32 %v436, %v519
    %v534 = vadd.f32 %v438, %v521
    %v535 = vld [vmem:[%s0 + $0x7] sm:$0xff]
    %v536 = vld [vmem:[%s0 + $0xf] sm:$0xff]
    %v537 = vld [vmem:[%s0 + $0x17] sm:$0xff]
    %v538 = vld [vmem:[%s0 + $0x1f] sm:$0xff]
    %v539 = vld [vmem:[%s0 + $0x27] sm:$0xff]
    %v540 = vld [vmem:[%s0 + $0x2f] sm:$0xff]
    %v541 = vld [vmem:[%s0 + $0x37] sm:$0xff]
    %v542 = vld [vmem:[%s0 + $0x3f] sm:$0xff]
    %v543 = vld [vmem:[%s0 + $0x47] sm:$0xff]
    %v544 = vld [vmem:[%s0 + $0x4f] sm:$0xff]
    %v545 = vld [vmem:[%s0 + $0x57] sm:$0xff]
    %v546 = vld [vmem:[%s0 + $0x5f] sm:$0xff]
    %v547 = vpack.c.bf16 %v536, %v535
    %v548 = vpack.c.bf16 %v538, %v537
    %v549 = vpack.c.bf16 %v540, %v539
    %v550 = vpack.c.bf16 %v542, %v541
    %v551 = vpack.c.bf16 %v544, %v543
    %v552 = vpack.c.bf16 %v546, %v545
    %v553 = vld [vmem:[%s1 + $0x18] sm:$0xf]
    %v554 = vld [vmem:[%s1 + $0x1c] sm:$0xf]
    %v557 = vunpack.c.l.b16 %v553
    %v558 = vunpack.c.l.b16 %v554
    %v559 = vpack.c.b16 %v558, %v557
    %v562 = vsel %vm319, %v547, 0
    %v565 = vsel %vm319, %v548, 0
    %v568 = vsel %vm319, %v549, 0
    %v571 = vsel %vm319, %v550, 0
    %v574 = vsel %vm319, %v551, 0
    %v577 = vsel %vm319, %v552, 0
    %579 = vmatpush.bf16.msra.mxu0 0
    %580 = vmatpush.bf16.msra.mxu0 0
    %581 = vmatpush.bf16.msra.mxu0 0
    %582 = vmatpush.bf16.msra.mxu0 0
    %583 = vmatpush.bf16.msra.mxu0 0
    %584 = vmatpush.bf16.msra.mxu0 0
    %585 = vmatpush.bf16.msra.mxu0 0
    %586 = vmatpush.bf16.msra.mxu0 %v559
    %587 = vmatmul.bf16.gmra.mxu0 %v562
    %v588 = vpop.f32.mrf.mxu0
    %v589 = vadd.f32 0.0, %v588
    %v590 = vpop.f32.mrf.mxu0
    %v591 = vadd.f32 0.0, %v590
    %592 = vmatmul.bf16.gmra.mxu0 %v565
    %v593 = vpop.f32.mrf.mxu0
    %v594 = vadd.f32 0.0, %v593
    %v595 = vpop.f32.mrf.mxu0
    %v596 = vadd.f32 0.0, %v595
    %597 = vmatmul.bf16.gmra.mxu0 %v568
    %v598 = vpop.f32.mrf.mxu0
    %v599 = vadd.f32 0.0, %v598
    %v600 = vpop.f32.mrf.mxu0
    %v601 = vadd.f32 0.0, %v600
    %602 = vmatmul.bf16.gmra.mxu0 %v571
    %v603 = vpop.f32.mrf.mxu0
    %v604 = vadd.f32 0.0, %v603
    %v605 = vpop.f32.mrf.mxu0
    %v606 = vadd.f32 0.0, %v605
    %607 = vmatmul.bf16.gmra.mxu0 %v574
    %v608 = vpop.f32.mrf.mxu0
    %v609 = vadd.f32 0.0, %v608
    %v610 = vpop.f32.mrf.mxu0
    %v611 = vadd.f32 0.0, %v610
    %612 = vmatmul.bf16.gmra.mxu0 %v577
    %v613 = vpop.f32.mrf.mxu0
    %v614 = vadd.f32 0.0, %v613
    %v615 = vpop.f32.mrf.mxu0
    %v616 = vadd.f32 0.0, %v615
    %617 = vdwg.mxu0
    %v618 = vadd.f32 %v523, %v589
    %v619 = vadd.f32 %v524, %v591
    %v620 = vadd.f32 %v525, %v594
    %v621 = vadd.f32 %v526, %v596
    %v622 = vadd.f32 %v527, %v599
    %v623 = vadd.f32 %v528, %v601
    %v624 = vadd.f32 %v529, %v604
    %v625 = vadd.f32 %v530, %v606
    %v626 = vadd.f32 %v531, %v609
    %v627 = vadd.f32 %v532, %v611
    %v628 = vadd.f32 %v533, %v614
    %v629 = vadd.f32 %v534, %v616
    %v630 = vld [vmem:[%s0 + $0x8] sm:$0xff]
    %v631 = vld [vmem:[%s0 + $0x10] sm:$0xff]
    %v632 = vld [vmem:[%s0 + $0x18] sm:$0xff]
    %v633 = vld [vmem:[%s0 + $0x20] sm:$0xff]
    %v634 = vld [vmem:[%s0 + $0x28] sm:$0xff]
    %v635 = vld [vmem:[%s0 + $0x30] sm:$0xff]
    %v636 = vld [vmem:[%s0 + $0x38] sm:$0xff]
    %v637 = vld [vmem:[%s0 + $0x40] sm:$0xff]
    %v638 = vld [vmem:[%s0 + $0x48] sm:$0xff]
    %v639 = vld [vmem:[%s0 + $0x50] sm:$0xff]
    %v640 = vld [vmem:[%s0 + $0x58] sm:$0xff]
    %v641 = vld [vmem:[%s0 + $0x60] sm:$0xff]
    %v642 = vpack.c.bf16 %v631, %v630
    %v643 = vpack.c.bf16 %v633, %v632
    %v644 = vpack.c.bf16 %v635, %v634
    %v645 = vpack.c.bf16 %v637, %v636
    %v646 = vpack.c.bf16 %v639, %v638
    %v647 = vpack.c.bf16 %v641, %v640
    %v648 = vld [vmem:[%s1 + $0x20] sm:$0xf]
    %v649 = vld [vmem:[%s1 + $0x24] sm:$0xf]
    %v652 = vunpack.c.l.b16 %v648
    %v653 = vunpack.c.l.b16 %v649
    %v654 = vpack.c.b16 %v653, %v652
    %v657 = vsel %vm319, %v642, 0
    %v660 = vsel %vm319, %v643, 0
    %v663 = vsel %vm319, %v644, 0
    %v666 = vsel %vm319, %v645, 0
    %v669 = vsel %vm319, %v646, 0
    %v672 = vsel %vm319, %v647, 0
    %674 = vmatpush.bf16.msra.mxu0 0
    %675 = vmatpush.bf16.msra.mxu0 0
    %676 = vmatpush.bf16.msra.mxu0 0
    %677 = vmatpush.bf16.msra.mxu0 0
    %678 = vmatpush.bf16.msra.mxu0 0
    %679 = vmatpush.bf16.msra.mxu0 0
    %680 = vmatpush.bf16.msra.mxu0 0
    %681 = vmatpush.bf16.msra.mxu0 %v654
    %682 = vmatmul.bf16.gmra.mxu0 %v657
    %v683 = vpop.f32.mrf.mxu0
    %v684 = vadd.f32 0.0, %v683
    %v685 = vpop.f32.mrf.mxu0
    %v686 = vadd.f32 0.0, %v685
    %687 = vmatmul.bf16.gmra.mxu0 %v660
    %v688 = vpop.f32.mrf.mxu0
    %v689 = vadd.f32 0.0, %v688
    %v690 = vpop.f32.mrf.mxu0
    %v691 = vadd.f32 0.0, %v690
    %692 = vmatmul.bf16.gmra.mxu0 %v663
    %v693 = vpop.f32.mrf.mxu0
    %v694 = vadd.f32 0.0, %v693
    %v695 = vpop.f32.mrf.mxu0
    %v696 = vadd.f32 0.0, %v695
    %697 = vmatmul.bf16.gmra.mxu0 %v666
    %v698 = vpop.f32.mrf.mxu0
    %v699 = vadd.f32 0.0, %v698
    %v700 = vpop.f32.mrf.mxu0
    %v701 = vadd.f32 0.0, %v700
    %702 = vmatmul.bf16.gmra.mxu0 %v669
    %v703 = vpop.f32.mrf.mxu0
    %v704 = vadd.f32 0.0, %v703
    %v705 = vpop.f32.mrf.mxu0
    %v706 = vadd.f32 0.0, %v705
    %707 = vmatmul.bf16.gmra.mxu0 %v672
    %v708 = vpop.f32.mrf.mxu0
    %v709 = vadd.f32 0.0, %v708
    %v710 = vpop.f32.mrf.mxu0
    %v711 = vadd.f32 0.0, %v710
    %712 = vdwg.mxu0
    %v713 = vadd.f32 %v618, %v684
    %v714 = vadd.f32 %v619, %v686
    %v715 = vadd.f32 %v620, %v689
    %v716 = vadd.f32 %v621, %v691
    %v717 = vadd.f32 %v622, %v694
    %v718 = vadd.f32 %v623, %v696
    %v719 = vadd.f32 %v624, %v699
    %v720 = vadd.f32 %v625, %v701
    %v721 = vadd.f32 %v626, %v704
    %v722 = vadd.f32 %v627, %v706
    %v723 = vadd.f32 %v628, %v709
    %v724 = vadd.f32 %v629, %v711
    %v725 = vld [vmem:[%s0 + $0x9] sm:$0xff]
    %v726 = vld [vmem:[%s0 + $0x11] sm:$0xff]
    %v727 = vld [vmem:[%s0 + $0x19] sm:$0xff]
    %v728 = vld [vmem:[%s0 + $0x21] sm:$0xff]
    %v729 = vld [vmem:[%s0 + $0x29] sm:$0xff]
    %v730 = vld [vmem:[%s0 + $0x31] sm:$0xff]
    %v731 = vld [vmem:[%s0 + $0x39] sm:$0xff]
    %v732 = vld [vmem:[%s0 + $0x41] sm:$0xff]
    %v733 = vld [vmem:[%s0 + $0x49] sm:$0xff]
    %v734 = vld [vmem:[%s0 + $0x51] sm:$0xff]
    %v735 = vld [vmem:[%s0 + $0x59] sm:$0xff]
    %v736 = vld [vmem:[%s0 + $0x61] sm:$0xff]
    %v737 = vpack.c.bf16 %v726, %v725
    %v738 = vpack.c.bf16 %v728, %v727
    %v739 = vpack.c.bf16 %v730, %v729
    %v740 = vpack.c.bf16 %v732, %v731
    %v741 = vpack.c.bf16 %v734, %v733
    %v742 = vpack.c.bf16 %v736, %v735
    %v743 = vld [vmem:[%s1 + $0x28] sm:$0xf]
    %v744 = vld [vmem:[%s1 + $0x2c] sm:$0xf]
    %v747 = vunpack.c.l.b16 %v743
    %v748 = vunpack.c.l.b16 %v744
    %v749 = vpack.c.b16 %v748, %v747
    %v752 = vsel %vm319, %v737, 0
    %v755 = vsel %vm319, %v738, 0
    %v758 = vsel %vm319, %v739, 0
    %v761 = vsel %vm319, %v740, 0
    %v764 = vsel %vm319, %v741, 0
    %v767 = vsel %vm319, %v742, 0
    %769 = vmatpush.bf16.msra.mxu0 0
    %770 = vmatpush.bf16.msra.mxu0 0
    %771 = vmatpush.bf16.msra.mxu0 0
    %772 = vmatpush.bf16.msra.mxu0 0
    %773 = vmatpush.bf16.msra.mxu0 0
    %774 = vmatpush.bf16.msra.mxu0 0
    %775 = vmatpush.bf16.msra.mxu0 0
    %776 = vmatpush.bf16.msra.mxu0 %v749
    %777 = vmatmul.bf16.gmra.mxu0 %v752
    %v778 = vpop.f32.mrf.mxu0
    %v779 = vadd.f32 0.0, %v778
    %v780 = vpop.f32.mrf.mxu0
    %v781 = vadd.f32 0.0, %v780
    %782 = vmatmul.bf16.gmra.mxu0 %v755
    %v783 = vpop.f32.mrf.mxu0
    %v784 = vadd.f32 0.0, %v783
    %v785 = vpop.f32.mrf.mxu0
    %v786 = vadd.f32 0.0, %v785
    %787 = vmatmul.bf16.gmra.mxu0 %v758
    %v788 = vpop.f32.mrf.mxu0
    %v789 = vadd.f32 0.0, %v788
    %v790 = vpop.f32.mrf.mxu0
    %v791 = vadd.f32 0.0, %v790
    %792 = vmatmul.bf16.gmra.mxu0 %v761
    %v793 = vpop.f32.mrf.mxu0
    %v794 = vadd.f32 0.0, %v793
    %v795 = vpop.f32.mrf.mxu0
    %v796 = vadd.f32 0.0, %v795
    %797 = vmatmul.bf16.gmra.mxu0 %v764
    %v798 = vpop.f32.mrf.mxu0
    %v799 = vadd.f32 0.0, %v798
    %v800 = vpop.f32.mrf.mxu0
    %v801 = vadd.f32 0.0, %v800
    %802 = vmatmul.bf16.gmra.mxu0 %v767
    %v803 = vpop.f32.mrf.mxu0
    %v804 = vadd.f32 0.0, %v803
    %v805 = vpop.f32.mrf.mxu0
    %v806 = vadd.f32 0.0, %v805
    %807 = vdwg.mxu0
    %v808 = vadd.f32 %v713, %v779
    %v809 = vadd.f32 %v714, %v781
    %v810 = vadd.f32 %v715, %v784
    %v811 = vadd.f32 %v716, %v786
    %v812 = vadd.f32 %v717, %v789
    %v813 = vadd.f32 %v718, %v791
    %v814 = vadd.f32 %v719, %v794
    %v815 = vadd.f32 %v720, %v796
    %v816 = vadd.f32 %v721, %v799
    %v817 = vadd.f32 %v722, %v801
    %v818 = vadd.f32 %v723, %v804
    %v819 = vadd.f32 %v724, %v806
    %v820 = vld [vmem:[%s0 + $0xd] sm:$0xff]
    %v821 = vld [vmem:[%s0 + $0x15] sm:$0xff]
    %v822 = vld [vmem:[%s0 + $0x1d] sm:$0xff]
    %v823 = vld [vmem:[%s0 + $0x25] sm:$0xff]
    %v824 = vld [vmem:[%s0 + $0x2d] sm:$0xff]
    %v825 = vld [vmem:[%s0 + $0x35] sm:$0xff]
    %v826 = vld [vmem:[%s0 + $0x3d] sm:$0xff]
    %v827 = vld [vmem:[%s0 + $0x45] sm:$0xff]
    %v828 = vld [vmem:[%s0 + $0x4d] sm:$0xff]
    %v829 = vld [vmem:[%s0 + $0x55] sm:$0xff]
    %v830 = vld [vmem:[%s0 + $0x5d] sm:$0xff]
    %v831 = vld [vmem:[%s0 + $0x65] sm:$0xff]
    %v832 = vpack.c.bf16 %v821, %v820
    %v833 = vpack.c.bf16 %v823, %v822
    %v834 = vpack.c.bf16 %v825, %v824
    %v835 = vpack.c.bf16 %v827, %v826
    %v836 = vpack.c.bf16 %v829, %v828
    %v837 = vpack.c.bf16 %v831, %v830
    %v838 = vld [vmem:[%s1 + $0x30] sm:$0xf]
    %v839 = vld [vmem:[%s1 + $0x34] sm:$0xf]
    %v842 = vunpack.c.l.b16 %v838
    %v843 = vunpack.c.l.b16 %v839
    %v844 = vpack.c.b16 %v843, %v842
    %v847 = vsel %vm319, %v832, 0
    %v850 = vsel %vm319, %v833, 0
    %v853 = vsel %vm319, %v834, 0
    %v856 = vsel %vm319, %v835, 0
    %v859 = vsel %vm319, %v836, 0
    %v862 = vsel %vm319, %v837, 0
    %864 = vmatpush.bf16.msra.mxu0 0
    %865 = vmatpush.bf16.msra.mxu0 0
    %866 = vmatpush.bf16.msra.mxu0 0
    %867 = vmatpush.bf16.msra.mxu0 0
    %868 = vmatpush.bf16.msra.mxu0 0
    %869 = vmatpush.bf16.msra.mxu0 0
    %870 = vmatpush.bf16.msra.mxu0 0
    %871 = vmatpush.bf16.msra.mxu0 %v844
    %872 = vmatmul.bf16.gmra.mxu0 %v847
    %v873 = vpop.f32.mrf.mxu0
    %v874 = vadd.f32 0.0, %v873
    %v875 = vpop.f32.mrf.mxu0
    %v876 = vadd.f32 0.0, %v875
    %877 = vmatmul.bf16.gmra.mxu0 %v850
    %v878 = vpop.f32.mrf.mxu0
    %v879 = vadd.f32 0.0, %v878
    %v880 = vpop.f32.mrf.mxu0
    %v881 = vadd.f32 0.0, %v880
    %882 = vmatmul.bf16.gmra.mxu0 %v853
    %v883 = vpop.f32.mrf.mxu0
    %v884 = vadd.f32 0.0, %v883
    %v885 = vpop.f32.mrf.mxu0
    %v886 = vadd.f32 0.0, %v885
    %887 = vmatmul.bf16.gmra.mxu0 %v856
    %v888 = vpop.f32.mrf.mxu0
    %v889 = vadd.f32 0.0, %v888
    %v890 = vpop.f32.mrf.mxu0
    %v891 = vadd.f32 0.0, %v890
    %892 = vmatmul.bf16.gmra.mxu0 %v859
    %v893 = vpop.f32.mrf.mxu0
    %v894 = vadd.f32 0.0, %v893
    %v895 = vpop.f32.mrf.mxu0
    %v896 = vadd.f32 0.0, %v895
    %897 = vmatmul.bf16.gmra.mxu0 %v862
    %v898 = vpop.f32.mrf.mxu0
    %v899 = vadd.f32 0.0, %v898
    %v900 = vpop.f32.mrf.mxu0
    %v901 = vadd.f32 0.0, %v900
    %902 = vdwg.mxu0
    %v903 = vadd.f32 %v808, %v874
    %v904 = vadd.f32 %v809, %v876
    %v905 = vadd.f32 %v810, %v879
    %v906 = vadd.f32 %v811, %v881
    %v907 = vadd.f32 %v812, %v884
    %v908 = vadd.f32 %v813, %v886
    %v909 = vadd.f32 %v814, %v889
    %v910 = vadd.f32 %v815, %v891
    %v911 = vadd.f32 %v816, %v894
    %v912 = vadd.f32 %v817, %v896
    %v913 = vadd.f32 %v818, %v899
    %v914 = vadd.f32 %v819, %v901
    %v915 = vld [vmem:[%s0 + $0xe] sm:$0xff]
    %v916 = vld [vmem:[%s0 + $0x16] sm:$0xff]
    %v917 = vld [vmem:[%s0 + $0x1e] sm:$0xff]
    %v918 = vld [vmem:[%s0 + $0x26] sm:$0xff]
    %v919 = vld [vmem:[%s0 + $0x2e] sm:$0xff]
    %v920 = vld [vmem:[%s0 + $0x36] sm:$0xff]
    %v921 = vld [vmem:[%s0 + $0x3e] sm:$0xff]
    %v922 = vld [vmem:[%s0 + $0x46] sm:$0xff]
    %v923 = vld [vmem:[%s0 + $0x4e] sm:$0xff]
    %v924 = vld [vmem:[%s0 + $0x56] sm:$0xff]
    %v925 = vld [vmem:[%s0 + $0x5e] sm:$0xff]
    %v926 = vld [vmem:[%s0 + $0x66] sm:$0xff]
    %v927 = vpack.c.bf16 %v916, %v915
    %v928 = vpack.c.bf16 %v918, %v917
    %v929 = vpack.c.bf16 %v920, %v919
    %v930 = vpack.c.bf16 %v922, %v921
    %v931 = vpack.c.bf16 %v924, %v923
    %v932 = vpack.c.bf16 %v926, %v925
    %v933 = vld [vmem:[%s1 + $0x38] sm:$0xf]
    %v934 = vld [vmem:[%s1 + $0x3c] sm:$0xf]
    %v937 = vunpack.c.l.b16 %v933
    %v938 = vunpack.c.l.b16 %v934
    %v939 = vpack.c.b16 %v938, %v937
    %v942 = vsel %vm319, %v927, 0
    %v945 = vsel %vm319, %v928, 0
    %v948 = vsel %vm319, %v929, 0
    %v951 = vsel %vm319, %v930, 0
    %v954 = vsel %vm319, %v931, 0
    %v957 = vsel %vm319, %v932, 0
    %959 = vmatpush.bf16.msra.mxu0 0
    %960 = vmatpush.bf16.msra.mxu0 0
    %961 = vmatpush.bf16.msra.mxu0 0
    %962 = vmatpush.bf16.msra.mxu0 0
    %963 = vmatpush.bf16.msra.mxu0 0
    %964 = vmatpush.bf16.msra.mxu0 0
    %965 = vmatpush.bf16.msra.mxu0 0
    %966 = vmatpush.bf16.msra.mxu0 %v939
    %967 = vmatmul.bf16.gmra.mxu0 %v942
    %v968 = vpop.f32.mrf.mxu0
    %v969 = vadd.f32 0.0, %v968
    %v970 = vpop.f32.mrf.mxu0
    %v971 = vadd.f32 0.0, %v970
    %972 = vmatmul.bf16.gmra.mxu0 %v945
    %v973 = vpop.f32.mrf.mxu0
    %v974 = vadd.f32 0.0, %v973
    %v975 = vpop.f32.mrf.mxu0
    %v976 = vadd.f32 0.0, %v975
    %977 = vmatmul.bf16.gmra.mxu0 %v948
    %v978 = vpop.f32.mrf.mxu0
    %v979 = vadd.f32 0.0, %v978
    %v980 = vpop.f32.mrf.mxu0
    %v981 = vadd.f32 0.0, %v980
    %982 = vmatmul.bf16.gmra.mxu0 %v951
    %v983 = vpop.f32.mrf.mxu0
    %v984 = vadd.f32 0.0, %v983
    %v985 = vpop.f32.mrf.mxu0
    %v986 = vadd.f32 0.0, %v985
    %987 = vmatmul.bf16.gmra.mxu0 %v954
    %v988 = vpop.f32.mrf.mxu0
    %v989 = vadd.f32 0.0, %v988
    %v990 = vpop.f32.mrf.mxu0
    %v991 = vadd.f32 0.0, %v990
    %992 = vmatmul.bf16.gmra.mxu0 %v957
    %v993 = vpop.f32.mrf.mxu0
    %v994 = vadd.f32 0.0, %v993
    %v995 = vpop.f32.mrf.mxu0
    %v996 = vadd.f32 0.0, %v995
    %997 = vdwg.mxu0
    %v998 = vadd.f32 %v903, %v969
    %v999 = vadd.f32 %v904, %v971
    %v1000 = vadd.f32 %v905, %v974
    %v1001 = vadd.f32 %v906, %v976
    %v1002 = vadd.f32 %v907, %v979
    %v1003 = vadd.f32 %v908, %v981
    %v1004 = vadd.f32 %v909, %v984
    %v1005 = vadd.f32 %v910, %v986
    %v1006 = vadd.f32 %v911, %v989
    %v1007 = vadd.f32 %v912, %v991
    %v1008 = vadd.f32 %v913, %v994
    %v1009 = vadd.f32 %v914, %v996
    %v1010 = vld [vmem:[%s0 + $0xf] sm:$0xff]
    %v1011 = vld [vmem:[%s0 + $0x17] sm:$0xff]
    %v1012 = vld [vmem:[%s0 + $0x1f] sm:$0xff]
    %v1013 = vld [vmem:[%s0 + $0x27] sm:$0xff]
    %v1014 = vld [vmem:[%s0 + $0x2f] sm:$0xff]
    %v1015 = vld [vmem:[%s0 + $0x37] sm:$0xff]
    %v1016 = vld [vmem:[%s0 + $0x3f] sm:$0xff]
    %v1017 = vld [vmem:[%s0 + $0x47] sm:$0xff]
    %v1018 = vld [vmem:[%s0 + $0x4f] sm:$0xff]
    %v1019 = vld [vmem:[%s0 + $0x57] sm:$0xff]
    %v1020 = vld [vmem:[%s0 + $0x5f] sm:$0xff]
    %v1021 = vld [vmem:[%s0 + $0x67] sm:$0xff]
    %v1022 = vpack.c.bf16 %v1011, %v1010
    %v1023 = vpack.c.bf16 %v1013, %v1012
    %v1024 = vpack.c.bf16 %v1015, %v1014
    %v1025 = vpack.c.bf16 %v1017, %v1016
    %v1026 = vpack.c.bf16 %v1019, %v1018
    %v1027 = vpack.c.bf16 %v1021, %v1020
    %v1028 = vld [vmem:[%s1 + $0x40] sm:$0xf]
    %v1029 = vld [vmem:[%s1 + $0x44] sm:$0xf]
    %v1032 = vunpack.c.l.b16 %v1028
    %v1033 = vunpack.c.l.b16 %v1029
    %v1034 = vpack.c.b16 %v1033, %v1032
    %v1037 = vsel %vm319, %v1022, 0
    %v1040 = vsel %vm319, %v1023, 0
    %v1043 = vsel %vm319, %v1024, 0
    %v1046 = vsel %vm319, %v1025, 0
    %v1049 = vsel %vm319, %v1026, 0
    %v1052 = vsel %vm319, %v1027, 0
    %1054 = vmatpush.bf16.msra.mxu0 0
    %1055 = vmatpush.bf16.msra.mxu0 0
    %1056 = vmatpush.bf16.msra.mxu0 0
    %1057 = vmatpush.bf16.msra.mxu0 0
    %1058 = vmatpush.bf16.msra.mxu0 0
    %1059 = vmatpush.bf16.msra.mxu0 0
    %1060 = vmatpush.bf16.msra.mxu0 0
    %1061 = vmatpush.bf16.msra.mxu0 %v1034
    %1062 = vmatmul.bf16.gmra.mxu0 %v1037
    %v1063 = vpop.f32.mrf.mxu0
    %v1064 = vadd.f32 0.0, %v1063
    %v1065 = vpop.f32.mrf.mxu0
    %v1066 = vadd.f32 0.0, %v1065
    %1067 = vmatmul.bf16.gmra.mxu0 %v1040
    %v1068 = vpop.f32.mrf.mxu0
    %v1069 = vadd.f32 0.0, %v1068
    %v1070 = vpop.f32.mrf.mxu0
    %v1071 = vadd.f32 0.0, %v1070
    %1072 = vmatmul.bf16.gmra.mxu0 %v1043
    %v1073 = vpop.f32.mrf.mxu0
    %v1074 = vadd.f32 0.0, %v1073
    %v1075 = vpop.f32.mrf.mxu0
    %v1076 = vadd.f32 0.0, %v1075
    %1077 = vmatmul.bf16.gmra.mxu0 %v1046
    %v1078 = vpop.f32.mrf.mxu0
    %v1079 = vadd.f32 0.0, %v1078
    %v1080 = vpop.f32.mrf.mxu0
    %v1081 = vadd.f32 0.0, %v1080
    %1082 = vmatmul.bf16.gmra.mxu0 %v1049
    %v1083 = vpop.f32.mrf.mxu0
    %v1084 = vadd.f32 0.0, %v1083
    %v1085 = vpop.f32.mrf.mxu0
    %v1086 = vadd.f32 0.0, %v1085
    %1087 = vmatmul.bf16.gmra.mxu0 %v1052
    %v1088 = vpop.f32.mrf.mxu0
    %v1089 = vadd.f32 0.0, %v1088
    %v1090 = vpop.f32.mrf.mxu0
    %v1091 = vadd.f32 0.0, %v1090
    %1092 = vdwg.mxu0
    %v1093 = vadd.f32 %v998, %v1064
    %v1094 = vadd.f32 %v999, %v1066
    %v1095 = vadd.f32 %v1000, %v1069
    %v1096 = vadd.f32 %v1001, %v1071
    %v1097 = vadd.f32 %v1002, %v1074
    %v1098 = vadd.f32 %v1003, %v1076
    %v1099 = vadd.f32 %v1004, %v1079
    %v1100 = vadd.f32 %v1005, %v1081
    %v1101 = vadd.f32 %v1006, %v1084
    %v1102 = vadd.f32 %v1007, %v1086
    %v1103 = vadd.f32 %v1008, %v1089
    %v1104 = vadd.f32 %v1009, %v1091
    %v1105 = vld [vmem:[#allocation11] ss:$0 sm:$0xff]
    %v1106 = vadd.f32 %v1093, %v1105
    %v1107 = vadd.f32 %v1094, %v1105
    %v1108 = vadd.f32 %v1095, %v1105
    %v1109 = vadd.f32 %v1096, %v1105
    %v1110 = vadd.f32 %v1097, %v1105
    %v1111 = vadd.f32 %v1098, %v1105
    %v1112 = vadd.f32 %v1099, %v1105
    %v1113 = vadd.f32 %v1100, %v1105
    %v1114 = vadd.f32 %v1101, %v1105
    %v1115 = vadd.f32 %v1102, %v1105
    %v1116 = vadd.f32 %v1103, %v1105
    %v1117 = vadd.f32 %v1104, %v1105
    %v1118 = vmul.f32 %v1106, %v261
    %v1119 = vmul.f32 %v1107, %v262
    %v1120 = vmul.f32 %v1108, %v263
    %v1121 = vmul.f32 %v1109, %v264
    %v1122 = vmul.f32 %v1110, %v265
    %v1123 = vmul.f32 %v1111, %v266
    %v1124 = vmul.f32 %v1112, %v267
    %v1125 = vmul.f32 %v1113, %v268
    %v1126 = vmul.f32 %v1114, %v269
    %v1127 = vmul.f32 %v1115, %v270
    %v1128 = vmul.f32 %v1116, %v271
    %v1129 = vmul.f32 %v1117, %v272
    %vm1130 = vcmask 523264
    %1131 = vst.msk [vmem:[#allocation2] sm:$0xff] %vm1130, 0.0
    %1132 = vst.msk [vmem:[#allocation2 + $0x68] sm:$0xff] %vm1130, 0.0
    %1133 = vst.msk [vmem:[#allocation2 + $0x8] sm:$0xff] %vm1130, %v1118
    %1134 = vst.msk [vmem:[#allocation2 + $0x10] sm:$0xff] %vm1130, %v1119
    %1135 = vst.msk [vmem:[#allocation2 + $0x18] sm:$0xff] %vm1130, %v1120
    %1136 = vst.msk [vmem:[#allocation2 + $0x20] sm:$0xff] %vm1130, %v1121
    %1137 = vst.msk [vmem:[#allocation2 + $0x28] sm:$0xff] %vm1130, %v1122
    %1138 = vst.msk [vmem:[#allocation2 + $0x30] sm:$0xff] %vm1130, %v1123
    %1139 = vst.msk [vmem:[#allocation2 + $0x38] sm:$0xff] %vm1130, %v1124
    %1140 = vst.msk [vmem:[#allocation2 + $0x40] sm:$0xff] %vm1130, %v1125
    %1141 = vst.msk [vmem:[#allocation2 + $0x48] sm:$0xff] %vm1130, %v1126
    %1142 = vst.msk [vmem:[#allocation2 + $0x50] sm:$0xff] %vm1130, %v1127
    %1143 = vst.msk [vmem:[#allocation2 + $0x58] sm:$0xff] %vm1130, %v1128
    %1144 = vst.msk [vmem:[#allocation2 + $0x60] sm:$0xff] %vm1130, %v1129
    %v1145 = vld [vmem:[#allocation2 + $0x1] sm:$0xff]
    %v1146 = vld [vmem:[#allocation2 + $0x9] sm:$0xff]
    %v1147 = vld [vmem:[#allocation2 + $0x11] sm:$0xff]
    %v1148 = vld [vmem:[#allocation2 + $0x19] sm:$0xff]
    %v1149 = vld [vmem:[#allocation2 + $0x21] sm:$0xff]
    %v1150 = vld [vmem:[#allocation2 + $0x29] sm:$0xff]
    %v1151 = vld [vmem:[#allocation2 + $0x31] sm:$0xff]
    %v1152 = vld [vmem:[#allocation2 + $0x39] sm:$0xff]
    %v1153 = vld [vmem:[#allocation2 + $0x41] sm:$0xff]
    %v1154 = vld [vmem:[#allocation2 + $0x49] sm:$0xff]
    %v1155 = vld [vmem:[#allocation2 + $0x51] sm:$0xff]
    %v1156 = vld [vmem:[#allocation2 + $0x59] sm:$0xff]
    %v1157 = vpack.c.bf16 %v1146, %v1145
    %v1158 = vpack.c.bf16 %v1148, %v1147
    %v1159 = vpack.c.bf16 %v1150, %v1149
    %v1160 = vpack.c.bf16 %v1152, %v1151
    %v1161 = vpack.c.bf16 %v1154, %v1153
    %v1162 = vpack.c.bf16 %v1156, %v1155
    %v1163 = vld [vmem:[#allocation7] sm:$0xf]
    %v1164 = vld [vmem:[#allocation7 + $0x4] sm:$0xf]
    %v1165 = vld [vmem:[#allocation7 + $0x8] sm:$0xf]
    %v1166 = vld [vmem:[#allocation7 + $0xc] sm:$0xf]
    %v1167 = vld [vmem:[#allocation7 + $0x10] sm:$0xf]
    %v1168 = vld [vmem:[#allocation7 + $0x14] sm:$0xf]
    %v1169 = vld [vmem:[#allocation7 + $0x18] sm:$0xf]
    %v1170 = vld [vmem:[#allocation7 + $0x1c] sm:$0xf]
    %v1171 = vld [vmem:[#allocation2 + $0x2] sm:$0xff]
    %v1172 = vld [vmem:[#allocation2 + $0xa] sm:$0xff]
    %v1173 = vld [vmem:[#allocation2 + $0x12] sm:$0xff]
    %v1174 = vld [vmem:[#allocation2 + $0x1a] sm:$0xff]
    %v1175 = vld [vmem:[#allocation2 + $0x22] sm:$0xff]
    %v1176 = vld [vmem:[#allocation2 + $0x2a] sm:$0xff]
    %v1177 = vld [vmem:[#allocation2 + $0x32] sm:$0xff]
    %v1178 = vld [vmem:[#allocation2 + $0x3a] sm:$0xff]
    %v1179 = vld [vmem:[#allocation2 + $0x42] sm:$0xff]
    %v1180 = vld [vmem:[#allocation2 + $0x4a] sm:$0xff]
    %v1181 = vld [vmem:[#allocation2 + $0x52] sm:$0xff]
    %v1182 = vld [vmem:[#allocation2 + $0x5a] sm:$0xff]
    %v1183 = vpack.c.bf16 %v1172, %v1171
    %v1184 = vpack.c.bf16 %v1174, %v1173
    %v1185 = vpack.c.bf16 %v1176, %v1175
    %v1186 = vpack.c.bf16 %v1178, %v1177
    %v1187 = vpack.c.bf16 %v1180, %v1179
    %v1188 = vpack.c.bf16 %v1182, %v1181
    %v1189 = vld [vmem:[#allocation7 + $0x20] sm:$0xf]
    %v1190 = vld [vmem:[#allocation7 + $0x24] sm:$0xf]
    %v1191 = vld [vmem:[#allocation7 + $0x28] sm:$0xf]
    %v1192 = vld [vmem:[#allocation7 + $0x2c] sm:$0xf]
    %v1193 = vld [vmem:[#allocation7 + $0x30] sm:$0xf]
    %v1194 = vld [vmem:[#allocation7 + $0x34] sm:$0xf]
    %v1195 = vld [vmem:[#allocation7 + $0x38] sm:$0xf]
    %v1196 = vld [vmem:[#allocation7 + $0x3c] sm:$0xf]
    %v1205 = vunpack.c.l.b16 %v1189
    %v1206 = vunpack.c.l.b16 %v1190
    %v1207 = vunpack.c.l.b16 %v1191
    %v1208 = vunpack.c.l.b16 %v1192
    %v1209 = vunpack.c.l.b16 %v1193
    %v1210 = vunpack.c.l.b16 %v1194
    %v1211 = vunpack.c.l.b16 %v1195
    %v1212 = vunpack.c.l.b16 %v1196
    %v1213 = vpack.c.b16 %v1206, %v1205
    %v1214 = vpack.c.b16 %v1208, %v1207
    %v1215 = vpack.c.b16 %v1210, %v1209
    %v1216 = vpack.c.b16 %v1212, %v1211
    %v1222 = vsel %vm1130, %v1183, 0
    %v1225 = vsel %vm1130, %v1184, 0
    %v1228 = vsel %vm1130, %v1185, 0
    %v1231 = vsel %vm1130, %v1186, 0
    %v1234 = vsel %vm1130, %v1187, 0
    %v1237 = vsel %vm1130, %v1188, 0
    %1239 = vmatpush.bf16.msra.mxu0 0
    %1240 = vmatpush.bf16.msra.mxu0 0
    %1241 = vmatpush.bf16.msra.mxu0 0
    %1242 = vmatpush.bf16.msra.mxu0 0
    %1243 = vmatpush.bf16.msra.mxu0 %v1216
    %1244 = vmatpush.bf16.msra.mxu0 %v1215
    %1245 = vmatpush.bf16.msra.mxu0 %v1214
    %1246 = vmatpush.bf16.msra.mxu0 %v1213
    %1247 = vmatmul.bf16.gmra.mxu0 %v1222
    %v1248 = vpop.f32.mrf.mxu0
    %v1249 = vadd.f32 0.0, %v1248
    %v1250 = vpop.f32.mrf.mxu0
    %v1251 = vadd.f32 0.0, %v1250
    %1252 = vmatmul.bf16.gmra.mxu0 %v1225
    %v1253 = vpop.f32.mrf.mxu0
    %v1254 = vadd.f32 0.0, %v1253
    %v1255 = vpop.f32.mrf.mxu0
    %v1256 = vadd.f32 0.0, %v1255
    %1257 = vmatmul.bf16.gmra.mxu0 %v1228
    %v1258 = vpop.f32.mrf.mxu0
    %v1259 = vadd.f32 0.0, %v1258
    %v1260 = vpop.f32.mrf.mxu0
    %v1261 = vadd.f32 0.0, %v1260
    %1262 = vmatmul.bf16.gmra.mxu0 %v1231
    %v1263 = vpop.f32.mrf.mxu0
    %v1264 = vadd.f32 0.0, %v1263
    %v1265 = vpop.f32.mrf.mxu0
    %v1266 = vadd.f32 0.0, %v1265
    %1267 = vmatmul.bf16.gmra.mxu0 %v1234
    %v1268 = vpop.f32.mrf.mxu0
    %v1269 = vadd.f32 0.0, %v1268
    %v1270 = vpop.f32.mrf.mxu0
    %v1271 = vadd.f32 0.0, %v1270
    %1272 = vmatmul.bf16.gmra.mxu0 %v1237
    %v1273 = vpop.f32.mrf.mxu0
    %v1274 = vadd.f32 0.0, %v1273
    %v1275 = vpop.f32.mrf.mxu0
    %v1276 = vadd.f32 0.0, %v1275
    %1277 = vdwg.mxu0
    %v1286 = vunpack.c.l.b16 %v1163
    %v1287 = vunpack.c.l.b16 %v1164
    %v1288 = vunpack.c.l.b16 %v1165
    %v1289 = vunpack.c.l.b16 %v1166
    %v1290 = vunpack.c.l.b16 %v1167
    %v1291 = vunpack.c.l.b16 %v1168
    %v1292 = vunpack.c.l.b16 %v1169
    %v1293 = vunpack.c.l.b16 %v1170
    %v1294 = vpack.c.b16 %v1287, %v1286
    %v1295 = vpack.c.b16 %v1289, %v1288
    %v1296 = vpack.c.b16 %v1291, %v1290
    %v1297 = vpack.c.b16 %v1293, %v1292
    %v1303 = vsel %vm1130, %v1157, 0
    %v1306 = vsel %vm1130, %v1158, 0
    %v1309 = vsel %vm1130, %v1159, 0
    %v1312 = vsel %vm1130, %v1160, 0
    %v1315 = vsel %vm1130, %v1161, 0
    %v1318 = vsel %vm1130, %v1162, 0
    %1320 = vmatpush.bf16.msra.mxu0 0
    %1321 = vmatpush.bf16.msra.mxu0 0
    %1322 = vmatpush.bf16.msra.mxu0 0
    %1323 = vmatpush.bf16.msra.mxu0 0
    %1324 = vmatpush.bf16.msra.mxu0 %v1297
    %1325 = vmatpush.bf16.msra.mxu0 %v1296
    %1326 = vmatpush.bf16.msra.mxu0 %v1295
    %1327 = vmatpush.bf16.msra.mxu0 %v1294
    %1328 = vmatmul.bf16.gmra.mxu0 %v1303
    %v1329 = vpop.f32.mrf.mxu0
    %v1330 = vadd.f32 %v1249, %v1329
    %v1331 = vpop.f32.mrf.mxu0
    %v1332 = vadd.f32 %v1251, %v1331
    %1333 = vmatmul.bf16.gmra.mxu0 %v1306
    %v1334 = vpop.f32.mrf.mxu0
    %v1335 = vadd.f32 %v1254, %v1334
    %v1336 = vpop.f32.mrf.mxu0
    %v1337 = vadd.f32 %v1256, %v1336
    %1338 = vmatmul.bf16.gmra.mxu0 %v1309
    %v1339 = vpop.f32.mrf.mxu0
    %v1340 = vadd.f32 %v1259, %v1339
    %v1341 = vpop.f32.mrf.mxu0
    %v1342 = vadd.f32 %v1261, %v1341
    %1343 = vmatmul.bf16.gmra.mxu0 %v1312
    %v1344 = vpop.f32.mrf.mxu0
    %v1345 = vadd.f32 %v1264, %v1344
    %v1346 = vpop.f32.mrf.mxu0
    %v1347 = vadd.f32 %v1266, %v1346
    %1348 = vmatmul.bf16.gmra.mxu0 %v1315
    %v1349 = vpop.f32.mrf.mxu0
    %v1350 = vadd.f32 %v1269, %v1349
    %v1351 = vpop.f32.mrf.mxu0
    %v1352 = vadd.f32 %v1271, %v1351
    %1353 = vmatmul.bf16.gmra.mxu0 %v1318
    %v1354 = vpop.f32.mrf.mxu0
    %v1355 = vadd.f32 %v1274, %v1354
    %v1356 = vpop.f32.mrf.mxu0
    %v1357 = vadd.f32 %v1276, %v1356
    %1358 = vdwg.mxu0
    %v1359 = vld [vmem:[#allocation2 + $0x3] sm:$0xff]
    %v1360 = vld [vmem:[#allocation2 + $0xb] sm:$0xff]
    %v1361 = vld [vmem:[#allocation2 + $0x13] sm:$0xff]
    %v1362 = vld [vmem:[#allocation2 + $0x1b] sm:$0xff]
    %v1363 = vld [vmem:[#allocation2 + $0x23] sm:$0xff]
    %v1364 = vld [vmem:[#allocation2 + $0x2b] sm:$0xff]
    %v1365 = vld [vmem:[#allocation2 + $0x33] sm:$0xff]
    %v1366 = vld [vmem:[#allocation2 + $0x3b] sm:$0xff]
    %v1367 = vld [vmem:[#allocation2 + $0x43] sm:$0xff]
    %v1368 = vld [vmem:[#allocation2 + $0x4b] sm:$0xff]
    %v1369 = vld [vmem:[#allocation2 + $0x53] sm:$0xff]
    %v1370 = vld [vmem:[#allocation2 + $0x5b] sm:$0xff]
    %v1371 = vpack.c.bf16 %v1360, %v1359
    %v1372 = vpack.c.bf16 %v1362, %v1361
    %v1373 = vpack.c.bf16 %v1364, %v1363
    %v1374 = vpack.c.bf16 %v1366, %v1365
    %v1375 = vpack.c.bf16 %v1368, %v1367
    %v1376 = vpack.c.bf16 %v1370, %v1369
    %v1377 = vld [vmem:[#allocation7 + $0x40] sm:$0xf]
    %v1378 = vld [vmem:[#allocation7 + $0x44] sm:$0xf]
    %v1379 = vld [vmem:[#allocation7 + $0x48] sm:$0xf]
    %v1380 = vld [vmem:[#allocation7 + $0x4c] sm:$0xf]
    %v1381 = vld [vmem:[#allocation7 + $0x50] sm:$0xf]
    %v1382 = vld [vmem:[#allocation7 + $0x54] sm:$0xf]
    %v1383 = vld [vmem:[#allocation7 + $0x58] sm:$0xf]
    %v1384 = vld [vmem:[#allocation7 + $0x5c] sm:$0xf]
    %v1393 = vunpack.c.l.b16 %v1377
    %v1394 = vunpack.c.l.b16 %v1378
    %v1395 = vunpack.c.l.b16 %v1379
    %v1396 = vunpack.c.l.b16 %v1380
    %v1397 = vunpack.c.l.b16 %v1381
    %v1398 = vunpack.c.l.b16 %v1382
    %v1399 = vunpack.c.l.b16 %v1383
    %v1400 = vunpack.c.l.b16 %v1384
    %v1401 = vpack.c.b16 %v1394, %v1393
    %v1402 = vpack.c.b16 %v1396, %v1395
    %v1403 = vpack.c.b16 %v1398, %v1397
    %v1404 = vpack.c.b16 %v1400, %v1399
    %v1410 = vsel %vm1130, %v1371, 0
    %v1413 = vsel %vm1130, %v1372, 0
    %v1416 = vsel %vm1130, %v1373, 0
    %v1419 = vsel %vm1130, %v1374, 0
    %v1422 = vsel %vm1130, %v1375, 0
    %v1425 = vsel %vm1130, %v1376, 0
    %1427 = vmatpush.bf16.msra.mxu0 0
    %1428 = vmatpush.bf16.msra.mxu0 0
    %1429 = vmatpush.bf16.msra.mxu0 0
    %1430 = vmatpush.bf16.msra.mxu0 0
    %1431 = vmatpush.bf16.msra.mxu0 %v1404
    %1432 = vmatpush.bf16.msra.mxu0 %v1403
    %1433 = vmatpush.bf16.msra.mxu0 %v1402
    %1434 = vmatpush.bf16.msra.mxu0 %v1401
    %1435 = vmatmul.bf16.gmra.mxu0 %v1410
    %v1436 = vpop.f32.mrf.mxu0
    %v1437 = vadd.f32 0.0, %v1436
    %v1438 = vpop.f32.mrf.mxu0
    %v1439 = vadd.f32 0.0, %v1438
    %1440 = vmatmul.bf16.gmra.mxu0 %v1413
    %v1441 = vpop.f32.mrf.mxu0
    %v1442 = vadd.f32 0.0, %v1441
    %v1443 = vpop.f32.mrf.mxu0
    %v1444 = vadd.f32 0.0, %v1443
    %1445 = vmatmul.bf16.gmra.mxu0 %v1416
    %v1446 = vpop.f32.mrf.mxu0
    %v1447 = vadd.f32 0.0, %v1446
    %v1448 = vpop.f32.mrf.mxu0
    %v1449 = vadd.f32 0.0, %v1448
    %1450 = vmatmul.bf16.gmra.mxu0 %v1419
    %v1451 = vpop.f32.mrf.mxu0
    %v1452 = vadd.f32 0.0, %v1451
    %v1453 = vpop.f32.mrf.mxu0
    %v1454 = vadd.f32 0.0, %v1453
    %1455 = vmatmul.bf16.gmra.mxu0 %v1422
    %v1456 = vpop.f32.mrf.mxu0
    %v1457 = vadd.f32 0.0, %v1456
    %v1458 = vpop.f32.mrf.mxu0
    %v1459 = vadd.f32 0.0, %v1458
    %1460 = vmatmul.bf16.gmra.mxu0 %v1425
    %v1461 = vpop.f32.mrf.mxu0
    %v1462 = vadd.f32 0.0, %v1461
    %v1463 = vpop.f32.mrf.mxu0
    %v1464 = vadd.f32 0.0, %v1463
    %1465 = vdwg.mxu0
    %v1466 = vadd.f32 %v1330, %v1437
    %v1467 = vadd.f32 %v1332, %v1439
    %v1468 = vadd.f32 %v1335, %v1442
    %v1469 = vadd.f32 %v1337, %v1444
    %v1470 = vadd.f32 %v1340, %v1447
    %v1471 = vadd.f32 %v1342, %v1449
    %v1472 = vadd.f32 %v1345, %v1452
    %v1473 = vadd.f32 %v1347, %v1454
    %v1474 = vadd.f32 %v1350, %v1457
    %v1475 = vadd.f32 %v1352, %v1459
    %v1476 = vadd.f32 %v1355, %v1462
    %v1477 = vadd.f32 %v1357, %v1464
    %v1478 = vld [vmem:[#allocation2 + $0x7] sm:$0xff]
    %v1479 = vld [vmem:[#allocation2 + $0xf] sm:$0xff]
    %v1480 = vld [vmem:[#allocation2 + $0x17] sm:$0xff]
    %v1481 = vld [vmem:[#allocation2 + $0x1f] sm:$0xff]
    %v1482 = vld [vmem:[#allocation2 + $0x27] sm:$0xff]
    %v1483 = vld [vmem:[#allocation2 + $0x2f] sm:$0xff]
    %v1484 = vld [vmem:[#allocation2 + $0x37] sm:$0xff]
    %v1485 = vld [vmem:[#allocation2 + $0x3f] sm:$0xff]
    %v1486 = vld [vmem:[#allocation2 + $0x47] sm:$0xff]
    %v1487 = vld [vmem:[#allocation2 + $0x4f] sm:$0xff]
    %v1488 = vld [vmem:[#allocation2 + $0x57] sm:$0xff]
    %v1489 = vld [vmem:[#allocation2 + $0x5f] sm:$0xff]
    %v1490 = vpack.c.bf16 %v1479, %v1478
    %v1491 = vpack.c.bf16 %v1481, %v1480
    %v1492 = vpack.c.bf16 %v1483, %v1482
    %v1493 = vpack.c.bf16 %v1485, %v1484
    %v1494 = vpack.c.bf16 %v1487, %v1486
    %v1495 = vpack.c.bf16 %v1489, %v1488
    %v1496 = vld [vmem:[#allocation7 + $0x60] sm:$0xf]
    %v1497 = vld [vmem:[#allocation7 + $0x64] sm:$0xf]
    %v1498 = vld [vmem:[#allocation7 + $0x68] sm:$0xf]
    %v1499 = vld [vmem:[#allocation7 + $0x6c] sm:$0xf]
    %v1500 = vld [vmem:[#allocation7 + $0x70] sm:$0xf]
    %v1501 = vld [vmem:[#allocation7 + $0x74] sm:$0xf]
    %v1502 = vld [vmem:[#allocation7 + $0x78] sm:$0xf]
    %v1503 = vld [vmem:[#allocation7 + $0x7c] sm:$0xf]
    %v1512 = vunpack.c.l.b16 %v1496
    %v1513 = vunpack.c.l.b16 %v1497
    %v1514 = vunpack.c.l.b16 %v1498
    %v1515 = vunpack.c.l.b16 %v1499
    %v1516 = vunpack.c.l.b16 %v1500
    %v1517 = vunpack.c.l.b16 %v1501
    %v1518 = vunpack.c.l.b16 %v1502
    %v1519 = vunpack.c.l.b16 %v1503
    %v1520 = vpack.c.b16 %v1513, %v1512
    %v1521 = vpack.c.b16 %v1515, %v1514
    %v1522 = vpack.c.b16 %v1517, %v1516
    %v1523 = vpack.c.b16 %v1519, %v1518
    %v1529 = vsel %vm1130, %v1490, 0
    %v1532 = vsel %vm1130, %v1491, 0
    %v1535 = vsel %vm1130, %v1492, 0
    %v1538 = vsel %vm1130, %v1493, 0
    %v1541 = vsel %vm1130, %v1494, 0
    %v1544 = vsel %vm1130, %v1495, 0
    %1546 = vmatpush.bf16.msra.mxu0 0
    %1547 = vmatpush.bf16.msra.mxu0 0
    %1548 = vmatpush.bf16.msra.mxu0 0
    %1549 = vmatpush.bf16.msra.mxu0 0
    %1550 = vmatpush.bf16.msra.mxu0 %v1523
    %1551 = vmatpush.bf16.msra.mxu0 %v1522
    %1552 = vmatpush.bf16.msra.mxu0 %v1521
    %1553 = vmatpush.bf16.msra.mxu0 %v1520
    %1554 = vmatmul.bf16.gmra.mxu0 %v1529
    %v1555 = vpop.f32.mrf.mxu0
    %v1556 = vadd.f32 0.0, %v1555
    %v1557 = vpop.f32.mrf.mxu0
    %v1558 = vadd.f32 0.0, %v1557
    %1559 = vmatmul.bf16.gmra.mxu0 %v1532
    %v1560 = vpop.f32.mrf.mxu0
    %v1561 = vadd.f32 0.0, %v1560
    %v1562 = vpop.f32.mrf.mxu0
    %v1563 = vadd.f32 0.0, %v1562
    %1564 = vmatmul.bf16.gmra.mxu0 %v1535
    %v1565 = vpop.f32.mrf.mxu0
    %v1566 = vadd.f32 0.0, %v1565
    %v1567 = vpop.f32.mrf.mxu0
    %v1568 = vadd.f32 0.0, %v1567
    %1569 = vmatmul.bf16.gmra.mxu0 %v1538
    %v1570 = vpop.f32.mrf.mxu0
    %v1571 = vadd.f32 0.0, %v1570
    %v1572 = vpop.f32.mrf.mxu0
    %v1573 = vadd.f32 0.0, %v1572
    %1574 = vmatmul.bf16.gmra.mxu0 %v1541
    %v1575 = vpop.f32.mrf.mxu0
    %v1576 = vadd.f32 0.0, %v1575
    %v1577 = vpop.f32.mrf.mxu0
    %v1578 = vadd.f32 0.0, %v1577
    %1579 = vmatmul.bf16.gmra.mxu0 %v1544
    %v1580 = vpop.f32.mrf.mxu0
    %v1581 = vadd.f32 0.0, %v1580
    %v1582 = vpop.f32.mrf.mxu0
    %v1583 = vadd.f32 0.0, %v1582
    %1584 = vdwg.mxu0
    %v1585 = vadd.f32 %v1466, %v1556
    %v1586 = vadd.f32 %v1467, %v1558
    %v1587 = vadd.f32 %v1468, %v1561
    %v1588 = vadd.f32 %v1469, %v1563
    %v1589 = vadd.f32 %v1470, %v1566
    %v1590 = vadd.f32 %v1471, %v1568
    %v1591 = vadd.f32 %v1472, %v1571
    %v1592 = vadd.f32 %v1473, %v1573
    %v1593 = vadd.f32 %v1474, %v1576
    %v1594 = vadd.f32 %v1475, %v1578
    %v1595 = vadd.f32 %v1476, %v1581
    %v1596 = vadd.f32 %v1477, %v1583
    %v1597 = vld [vmem:[#allocation2 + $0x8] sm:$0xff]
    %v1598 = vld [vmem:[#allocation2 + $0x10] sm:$0xff]
    %v1599 = vld [vmem:[#allocation2 + $0x18] sm:$0xff]
    %v1600 = vld [vmem:[#allocation2 + $0x20] sm:$0xff]
    %v1601 = vld [vmem:[#allocation2 + $0x28] sm:$0xff]
    %v1602 = vld [vmem:[#allocation2 + $0x30] sm:$0xff]
    %v1603 = vld [vmem:[#allocation2 + $0x38] sm:$0xff]
    %v1604 = vld [vmem:[#allocation2 + $0x40] sm:$0xff]
    %v1605 = vld [vmem:[#allocation2 + $0x48] sm:$0xff]
    %v1606 = vld [vmem:[#allocation2 + $0x50] sm:$0xff]
    %v1607 = vld [vmem:[#allocation2 + $0x58] sm:$0xff]
    %v1608 = vld [vmem:[#allocation2 + $0x60] sm:$0xff]
    %v1609 = vpack.c.bf16 %v1598, %v1597
    %v1610 = vpack.c.bf16 %v1600, %v1599
    %v1611 = vpack.c.bf16 %v1602, %v1601
    %v1612 = vpack.c.bf16 %v1604, %v1603
    %v1613 = vpack.c.bf16 %v1606, %v1605
    %v1614 = vpack.c.bf16 %v1608, %v1607
    %v1615 = vld [vmem:[#allocation7 + $0x80] sm:$0xf]
    %v1616 = vld [vmem:[#allocation7 + $0x84] sm:$0xf]
    %v1617 = vld [vmem:[#allocation7 + $0x88] sm:$0xf]
    %v1618 = vld [vmem:[#allocation7 + $0x8c] sm:$0xf]
    %v1619 = vld [vmem:[#allocation7 + $0x90] sm:$0xf]
    %v1620 = vld [vmem:[#allocation7 + $0x94] sm:$0xf]
    %v1621 = vld [vmem:[#allocation7 + $0x98] sm:$0xf]
    %v1622 = vld [vmem:[#allocation7 + $0x9c] sm:$0xf]
    %v1631 = vunpack.c.l.b16 %v1615
    %v1632 = vunpack.c.l.b16 %v1616
    %v1633 = vunpack.c.l.b16 %v1617
    %v1634 = vunpack.c.l.b16 %v1618
    %v1635 = vunpack.c.l.b16 %v1619
    %v1636 = vunpack.c.l.b16 %v1620
    %v1637 = vunpack.c.l.b16 %v1621
    %v1638 = vunpack.c.l.b16 %v1622
    %v1639 = vpack.c.b16 %v1632, %v1631
    %v1640 = vpack.c.b16 %v1634, %v1633
    %v1641 = vpack.c.b16 %v1636, %v1635
    %v1642 = vpack.c.b16 %v1638, %v1637
    %v1648 = vsel %vm1130, %v1609, 0
    %v1651 = vsel %vm1130, %v1610, 0
    %v1654 = vsel %vm1130, %v1611, 0
    %v1657 = vsel %vm1130, %v1612, 0
    %v1660 = vsel %vm1130, %v1613, 0
    %v1663 = vsel %vm1130, %v1614, 0
    %1665 = vmatpush.bf16.msra.mxu0 0
    %1666 = vmatpush.bf16.msra.mxu0 0
    %1667 = vmatpush.bf16.msra.mxu0 0
    %1668 = vmatpush.bf16.msra.mxu0 0
    %1669 = vmatpush.bf16.msra.mxu0 %v1642
    %1670 = vmatpush.bf16.msra.mxu0 %v1641
    %1671 = vmatpush.bf16.msra.mxu0 %v1640
    %1672 = vmatpush.bf16.msra.mxu0 %v1639
    %1673 = vmatmul.bf16.gmra.mxu0 %v1648
    %v1674 = vpop.f32.mrf.mxu0
    %v1675 = vadd.f32 0.0, %v1674
    %v1676 = vpop.f32.mrf.mxu0
    %v1677 = vadd.f32 0.0, %v1676
    %1678 = vmatmul.bf16.gmra.mxu0 %v1651
    %v1679 = vpop.f32.mrf.mxu0
    %v1680 = vadd.f32 0.0, %v1679
    %v1681 = vpop.f32.mrf.mxu0
    %v1682 = vadd.f32 0.0, %v1681
    %1683 = vmatmul.bf16.gmra.mxu0 %v1654
    %v1684 = vpop.f32.mrf.mxu0
    %v1685 = vadd.f32 0.0, %v1684
    %v1686 = vpop.f32.mrf.mxu0
    %v1687 = vadd.f32 0.0, %v1686
    %1688 = vmatmul.bf16.gmra.mxu0 %v1657
    %v1689 = vpop.f32.mrf.mxu0
    %v1690 = vadd.f32 0.0, %v1689
    %v1691 = vpop.f32.mrf.mxu0
    %v1692 = vadd.f32 0.0, %v1691
    %1693 = vmatmul.bf16.gmra.mxu0 %v1660
    %v1694 = vpop.f32.mrf.mxu0
    %v1695 = vadd.f32 0.0, %v1694
    %v1696 = vpop.f32.mrf.mxu0
    %v1697 = vadd.f32 0.0, %v1696
    %1698 = vmatmul.bf16.gmra.mxu0 %v1663
    %v1699 = vpop.f32.mrf.mxu0
    %v1700 = vadd.f32 0.0, %v1699
    %v1701 = vpop.f32.mrf.mxu0
    %v1702 = vadd.f32 0.0, %v1701
    %1703 = vdwg.mxu0
    %v1704 = vadd.f32 %v1585, %v1675
    %v1705 = vadd.f32 %v1586, %v1677
    %v1706 = vadd.f32 %v1587, %v1680
    %v1707 = vadd.f32 %v1588, %v1682
    %v1708 = vadd.f32 %v1589, %v1685
    %v1709 = vadd.f32 %v1590, %v1687
    %v1710 = vadd.f32 %v1591, %v1690
    %v1711 = vadd.f32 %v1592, %v1692
    %v1712 = vadd.f32 %v1593, %v1695
    %v1713 = vadd.f32 %v1594, %v1697
    %v1714 = vadd.f32 %v1595, %v1700
    %v1715 = vadd.f32 %v1596, %v1702
    %v1716 = vld [vmem:[#allocation2 + $0x9] sm:$0xff]
    %v1717 = vld [vmem:[#allocation2 + $0x11] sm:$0xff]
    %v1718 = vld [vmem:[#allocation2 + $0x19] sm:$0xff]
    %v1719 = vld [vmem:[#allocation2 + $0x21] sm:$0xff]
    %v1720 = vld [vmem:[#allocation2 + $0x29] sm:$0xff]
    %v1721 = vld [vmem:[#allocation2 + $0x31] sm:$0xff]
    %v1722 = vld [vmem:[#allocation2 + $0x39] sm:$0xff]
    %v1723 = vld [vmem:[#allocation2 + $0x41] sm:$0xff]
    %v1724 = vld [vmem:[#allocation2 + $0x49] sm:$0xff]
    %v1725 = vld [vmem:[#allocation2 + $0x51] sm:$0xff]
    %v1726 = vld [vmem:[#allocation2 + $0x59] sm:$0xff]
    %v1727 = vld [vmem:[#allocation2 + $0x61] sm:$0xff]
    %v1728 = vpack.c.bf16 %v1717, %v1716
    %v1729 = vpack.c.bf16 %v1719, %v1718
    %v1730 = vpack.c.bf16 %v1721, %v1720
    %v1731 = vpack.c.bf16 %v1723, %v1722
    %v1732 = vpack.c.bf16 %v1725, %v1724
    %v1733 = vpack.c.bf16 %v1727, %v1726
    %v1734 = vld [vmem:[#allocation7 + $0xa0] sm:$0xf]
    %v1735 = vld [vmem:[#allocation7 + $0xa4] sm:$0xf]
    %v1736 = vld [vmem:[#allocation7 + $0xa8] sm:$0xf]
    %v1737 = vld [vmem:[#allocation7 + $0xac] sm:$0xf]
    %v1738 = vld [vmem:[#allocation7 + $0xb0] sm:$0xf]
    %v1739 = vld [vmem:[#allocation7 + $0xb4] sm:$0xf]
    %v1740 = vld [vmem:[#allocation7 + $0xb8] sm:$0xf]
    %v1741 = vld [vmem:[#allocation7 + $0xbc] sm:$0xf]
    %v1750 = vunpack.c.l.b16 %v1734
    %v1751 = vunpack.c.l.b16 %v1735
    %v1752 = vunpack.c.l.b16 %v1736
    %v1753 = vunpack.c.l.b16 %v1737
    %v1754 = vunpack.c.l.b16 %v1738
    %v1755 = vunpack.c.l.b16 %v1739
    %v1756 = vunpack.c.l.b16 %v1740
    %v1757 = vunpack.c.l.b16 %v1741
    %v1758 = vpack.c.b16 %v1751, %v1750
    %v1759 = vpack.c.b16 %v1753, %v1752
    %v1760 = vpack.c.b16 %v1755, %v1754
    %v1761 = vpack.c.b16 %v1757, %v1756
    %v1767 = vsel %vm1130, %v1728, 0
    %v1770 = vsel %vm1130, %v1729, 0
    %v1773 = vsel %vm1130, %v1730, 0
    %v1776 = vsel %vm1130, %v1731, 0
    %v1779 = vsel %vm1130, %v1732, 0
    %v1782 = vsel %vm1130, %v1733, 0
    %1784 = vmatpush.bf16.msra.mxu0 0
    %1785 = vmatpush.bf16.msra.mxu0 0
    %1786 = vmatpush.bf16.msra.mxu0 0
    %1787 = vmatpush.bf16.msra.mxu0 0
    %1788 = vmatpush.bf16.msra.mxu0 %v1761
    %1789 = vmatpush.bf16.msra.mxu0 %v1760
    %1790 = vmatpush.bf16.msra.mxu0 %v1759
    %1791 = vmatpush.bf16.msra.mxu0 %v1758
    %1792 = vmatmul.bf16.gmra.mxu0 %v1767
    %v1793 = vpop.f32.mrf.mxu0
    %v1794 = vadd.f32 0.0, %v1793
    %v1795 = vpop.f32.mrf.mxu0
    %v1796 = vadd.f32 0.0, %v1795
    %1797 = vmatmul.bf16.gmra.mxu0 %v1770
    %v1798 = vpop.f32.mrf.mxu0
    %v1799 = vadd.f32 0.0, %v1798
    %v1800 = vpop.f32.mrf.mxu0
    %v1801 = vadd.f32 0.0, %v1800
    %1802 = vmatmul.bf16.gmra.mxu0 %v1773
    %v1803 = vpop.f32.mrf.mxu0
    %v1804 = vadd.f32 0.0, %v1803
    %v1805 = vpop.f32.mrf.mxu0
    %v1806 = vadd.f32 0.0, %v1805
    %1807 = vmatmul.bf16.gmra.mxu0 %v1776
    %v1808 = vpop.f32.mrf.mxu0
    %v1809 = vadd.f32 0.0, %v1808
    %v1810 = vpop.f32.mrf.mxu0
    %v1811 = vadd.f32 0.0, %v1810
    %1812 = vmatmul.bf16.gmra.mxu0 %v1779
    %v1813 = vpop.f32.mrf.mxu0
    %v1814 = vadd.f32 0.0, %v1813
    %v1815 = vpop.f32.mrf.mxu0
    %v1816 = vadd.f32 0.0, %v1815
    %1817 = vmatmul.bf16.gmra.mxu0 %v1782
    %v1818 = vpop.f32.mrf.mxu0
    %v1819 = vadd.f32 0.0, %v1818
    %v1820 = vpop.f32.mrf.mxu0
    %v1821 = vadd.f32 0.0, %v1820
    %1822 = vdwg.mxu0
    %v1823 = vadd.f32 %v1704, %v1794
    %v1824 = vadd.f32 %v1705, %v1796
    %v1825 = vadd.f32 %v1706, %v1799
    %v1826 = vadd.f32 %v1707, %v1801
    %v1827 = vadd.f32 %v1708, %v1804
    %v1828 = vadd.f32 %v1709, %v1806
    %v1829 = vadd.f32 %v1710, %v1809
    %v1830 = vadd.f32 %v1711, %v1811
    %v1831 = vadd.f32 %v1712, %v1814
    %v1832 = vadd.f32 %v1713, %v1816
    %v1833 = vadd.f32 %v1714, %v1819
    %v1834 = vadd.f32 %v1715, %v1821
    %v1835 = vld [vmem:[#allocation2 + $0xd] sm:$0xff]
    %v1836 = vld [vmem:[#allocation2 + $0x15] sm:$0xff]
    %v1837 = vld [vmem:[#allocation2 + $0x1d] sm:$0xff]
    %v1838 = vld [vmem:[#allocation2 + $0x25] sm:$0xff]
    %v1839 = vld [vmem:[#allocation2 + $0x2d] sm:$0xff]
    %v1840 = vld [vmem:[#allocation2 + $0x35] sm:$0xff]
    %v1841 = vld [vmem:[#allocation2 + $0x3d] sm:$0xff]
    %v1842 = vld [vmem:[#allocation2 + $0x45] sm:$0xff]
    %v1843 = vld [vmem:[#allocation2 + $0x4d] sm:$0xff]
    %v1844 = vld [vmem:[#allocation2 + $0x55] sm:$0xff]
    %v1845 = vld [vmem:[#allocation2 + $0x5d] sm:$0xff]
    %v1846 = vld [vmem:[#allocation2 + $0x65] sm:$0xff]
    %v1847 = vpack.c.bf16 %v1836, %v1835
    %v1848 = vpack.c.bf16 %v1838, %v1837
    %v1849 = vpack.c.bf16 %v1840, %v1839
    %v1850 = vpack.c.bf16 %v1842, %v1841
    %v1851 = vpack.c.bf16 %v1844, %v1843
    %v1852 = vpack.c.bf16 %v1846, %v1845
    %v1853 = vld [vmem:[#allocation7 + $0xc0] sm:$0xf]
    %v1854 = vld [vmem:[#allocation7 + $0xc4] sm:$0xf]
    %v1855 = vld [vmem:[#allocation7 + $0xc8] sm:$0xf]
    %v1856 = vld [vmem:[#allocation7 + $0xcc] sm:$0xf]
    %v1857 = vld [vmem:[#allocation7 + $0xd0] sm:$0xf]
    %v1858 = vld [vmem:[#allocation7 + $0xd4] sm:$0xf]
    %v1859 = vld [vmem:[#allocation7 + $0xd8] sm:$0xf]
    %v1860 = vld [vmem:[#allocation7 + $0xdc] sm:$0xf]
    %v1869 = vunpack.c.l.b16 %v1853
    %v1870 = vunpack.c.l.b16 %v1854
    %v1871 = vunpack.c.l.b16 %v1855
    %v1872 = vunpack.c.l.b16 %v1856
    %v1873 = vunpack.c.l.b16 %v1857
    %v1874 = vunpack.c.l.b16 %v1858
    %v1875 = vunpack.c.l.b16 %v1859
    %v1876 = vunpack.c.l.b16 %v1860
    %v1877 = vpack.c.b16 %v1870, %v1869
    %v1878 = vpack.c.b16 %v1872, %v1871
    %v1879 = vpack.c.b16 %v1874, %v1873
    %v1880 = vpack.c.b16 %v1876, %v1875
    %v1886 = vsel %vm1130, %v1847, 0
    %v1889 = vsel %vm1130, %v1848, 0
    %v1892 = vsel %vm1130, %v1849, 0
    %v1895 = vsel %vm1130, %v1850, 0
    %v1898 = vsel %vm1130, %v1851, 0
    %v1901 = vsel %vm1130, %v1852, 0
    %1903 = vmatpush.bf16.msra.mxu0 0
    %1904 = vmatpush.bf16.msra.mxu0 0
    %1905 = vmatpush.bf16.msra.mxu0 0
    %1906 = vmatpush.bf16.msra.mxu0 0
    %1907 = vmatpush.bf16.msra.mxu0 %v1880
    %1908 = vmatpush.bf16.msra.mxu0 %v1879
    %1909 = vmatpush.bf16.msra.mxu0 %v1878
    %1910 = vmatpush.bf16.msra.mxu0 %v1877
    %1911 = vmatmul.bf16.gmra.mxu0 %v1886
    %v1912 = vpop.f32.mrf.mxu0
    %v1913 = vadd.f32 0.0, %v1912
    %v1914 = vpop.f32.mrf.mxu0
    %v1915 = vadd.f32 0.0, %v1914
    %1916 = vmatmul.bf16.gmra.mxu0 %v1889
    %v1917 = vpop.f32.mrf.mxu0
    %v1918 = vadd.f32 0.0, %v1917
    %v1919 = vpop.f32.mrf.mxu0
    %v1920 = vadd.f32 0.0, %v1919
    %1921 = vmatmul.bf16.gmra.mxu0 %v1892
    %v1922 = vpop.f32.mrf.mxu0
    %v1923 = vadd.f32 0.0, %v1922
    %v1924 = vpop.f32.mrf.mxu0
    %v1925 = vadd.f32 0.0, %v1924
    %1926 = vmatmul.bf16.gmra.mxu0 %v1895
    %v1927 = vpop.f32.mrf.mxu0
    %v1928 = vadd.f32 0.0, %v1927
    %v1929 = vpop.f32.mrf.mxu0
    %v1930 = vadd.f32 0.0, %v1929
    %1931 = vmatmul.bf16.gmra.mxu0 %v1898
    %v1932 = vpop.f32.mrf.mxu0
    %v1933 = vadd.f32 0.0, %v1932
    %v1934 = vpop.f32.mrf.mxu0
    %v1935 = vadd.f32 0.0, %v1934
    %1936 = vmatmul.bf16.gmra.mxu0 %v1901
    %v1937 = vpop.f32.mrf.mxu0
    %v1938 = vadd.f32 0.0, %v1937
    %v1939 = vpop.f32.mrf.mxu0
    %v1940 = vadd.f32 0.0, %v1939
    %1941 = vdwg.mxu0
    %v1942 = vadd.f32 %v1823, %v1913
    %v1943 = vadd.f32 %v1824, %v1915
    %v1944 = vadd.f32 %v1825, %v1918
    %v1945 = vadd.f32 %v1826, %v1920
    %v1946 = vadd.f32 %v1827, %v1923
    %v1947 = vadd.f32 %v1828, %v1925
    %v1948 = vadd.f32 %v1829, %v1928
    %v1949 = vadd.f32 %v1830, %v1930
    %v1950 = vadd.f32 %v1831, %v1933
    %v1951 = vadd.f32 %v1832, %v1935
    %v1952 = vadd.f32 %v1833, %v1938
    %v1953 = vadd.f32 %v1834, %v1940
    %v1954 = vld [vmem:[#allocation2 + $0xe] sm:$0xff]
    %v1955 = vld [vmem:[#allocation2 + $0x16] sm:$0xff]
    %v1956 = vld [vmem:[#allocation2 + $0x1e] sm:$0xff]
    %v1957 = vld [vmem:[#allocation2 + $0x26] sm:$0xff]
    %v1958 = vld [vmem:[#allocation2 + $0x2e] sm:$0xff]
    %v1959 = vld [vmem:[#allocation2 + $0x36] sm:$0xff]
    %v1960 = vld [vmem:[#allocation2 + $0x3e] sm:$0xff]
    %v1961 = vld [vmem:[#allocation2 + $0x46] sm:$0xff]
    %v1962 = vld [vmem:[#allocation2 + $0x4e] sm:$0xff]
    %v1963 = vld [vmem:[#allocation2 + $0x56] sm:$0xff]
    %v1964 = vld [vmem:[#allocation2 + $0x5e] sm:$0xff]
    %v1965 = vld [vmem:[#allocation2 + $0x66] sm:$0xff]
    %v1966 = vpack.c.bf16 %v1955, %v1954
    %v1967 = vpack.c.bf16 %v1957, %v1956
    %v1968 = vpack.c.bf16 %v1959, %v1958
    %v1969 = vpack.c.bf16 %v1961, %v1960
    %v1970 = vpack.c.bf16 %v1963, %v1962
    %v1971 = vpack.c.bf16 %v1965, %v1964
    %v1972 = vld [vmem:[#allocation7 + $0xe0] sm:$0xf]
    %v1973 = vld [vmem:[#allocation7 + $0xe4] sm:$0xf]
    %v1974 = vld [vmem:[#allocation7 + $0xe8] sm:$0xf]
    %v1975 = vld [vmem:[#allocation7 + $0xec] sm:$0xf]
    %v1976 = vld [vmem:[#allocation7 + $0xf0] sm:$0xf]
    %v1977 = vld [vmem:[#allocation7 + $0xf4] sm:$0xf]
    %v1978 = vld [vmem:[#allocation7 + $0xf8] sm:$0xf]
    %v1979 = vld [vmem:[#allocation7 + $0xfc] sm:$0xf]
    %v1988 = vunpack.c.l.b16 %v1972
    %v1989 = vunpack.c.l.b16 %v1973
    %v1990 = vunpack.c.l.b16 %v1974
    %v1991 = vunpack.c.l.b16 %v1975
    %v1992 = vunpack.c.l.b16 %v1976
    %v1993 = vunpack.c.l.b16 %v1977
    %v1994 = vunpack.c.l.b16 %v1978
    %v1995 = vunpack.c.l.b16 %v1979
    %v1996 = vpack.c.b16 %v1989, %v1988
    %v1997 = vpack.c.b16 %v1991, %v1990
    %v1998 = vpack.c.b16 %v1993, %v1992
    %v1999 = vpack.c.b16 %v1995, %v1994
    %v2005 = vsel %vm1130, %v1966, 0
    %v2008 = vsel %vm1130, %v1967, 0
    %v2011 = vsel %vm1130, %v1968, 0
    %v2014 = vsel %vm1130, %v1969, 0
    %v2017 = vsel %vm1130, %v1970, 0
    %v2020 = vsel %vm1130, %v1971, 0
    %2022 = vmatpush.bf16.msra.mxu0 0
    %2023 = vmatpush.bf16.msra.mxu0 0
    %2024 = vmatpush.bf16.msra.mxu0 0
    %2025 = vmatpush.bf16.msra.mxu0 0
    %2026 = vmatpush.bf16.msra.mxu0 %v1999
    %2027 = vmatpush.bf16.msra.mxu0 %v1998
    %2028 = vmatpush.bf16.msra.mxu0 %v1997
    %2029 = vmatpush.bf16.msra.mxu0 %v1996
    %2030 = vmatmul.bf16.gmra.mxu0 %v2005
    %v2031 = vpop.f32.mrf.mxu0
    %v2032 = vadd.f32 0.0, %v2031
    %v2033 = vpop.f32.mrf.mxu0
    %v2034 = vadd.f32 0.0, %v2033
    %2035 = vmatmul.bf16.gmra.mxu0 %v2008
    %v2036 = vpop.f32.mrf.mxu0
    %v2037 = vadd.f32 0.0, %v2036
    %v2038 = vpop.f32.mrf.mxu0
    %v2039 = vadd.f32 0.0, %v2038
    %2040 = vmatmul.bf16.gmra.mxu0 %v2011
    %v2041 = vpop.f32.mrf.mxu0
    %v2042 = vadd.f32 0.0, %v2041
    %v2043 = vpop.f32.mrf.mxu0
    %v2044 = vadd.f32 0.0, %v2043
    %2045 = vmatmul.bf16.gmra.mxu0 %v2014
    %v2046 = vpop.f32.mrf.mxu0
    %v2047 = vadd.f32 0.0, %v2046
    %v2048 = vpop.f32.mrf.mxu0
    %v2049 = vadd.f32 0.0, %v2048
    %2050 = vmatmul.bf16.gmra.mxu0 %v2017
    %v2051 = vpop.f32.mrf.mxu0
    %v2052 = vadd.f32 0.0, %v2051
    %v2053 = vpop.f32.mrf.mxu0
    %v2054 = vadd.f32 0.0, %v2053
    %2055 = vmatmul.bf16.gmra.mxu0 %v2020
    %v2056 = vpop.f32.mrf.mxu0
    %v2057 = vadd.f32 0.0, %v2056
    %v2058 = vpop.f32.mrf.mxu0
    %v2059 = vadd.f32 0.0, %v2058
    %2060 = vdwg.mxu0
    %v2061 = vadd.f32 %v1942, %v2032
    %v2062 = vadd.f32 %v1943, %v2034
    %v2063 = vadd.f32 %v1944, %v2037
    %v2064 = vadd.f32 %v1945, %v2039
    %v2065 = vadd.f32 %v1946, %v2042
    %v2066 = vadd.f32 %v1947, %v2044
    %v2067 = vadd.f32 %v1948, %v2047
    %v2068 = vadd.f32 %v1949, %v2049
    %v2069 = vadd.f32 %v1950, %v2052
    %v2070 = vadd.f32 %v1951, %v2054
    %v2071 = vadd.f32 %v1952, %v2057
    %v2072 = vadd.f32 %v1953, %v2059
    %v2073 = vld [vmem:[#allocation2 + $0xf] sm:$0xff]
    %v2074 = vld [vmem:[#allocation2 + $0x17] sm:$0xff]
    %v2075 = vld [vmem:[#allocation2 + $0x1f] sm:$0xff]
    %v2076 = vld [vmem:[#allocation2 + $0x27] sm:$0xff]
    %v2077 = vld [vmem:[#allocation2 + $0x2f] sm:$0xff]
    %v2078 = vld [vmem:[#allocation2 + $0x37] sm:$0xff]
    %v2079 = vld [vmem:[#allocation2 + $0x3f] sm:$0xff]
    %v2080 = vld [vmem:[#allocation2 + $0x47] sm:$0xff]
    %v2081 = vld [vmem:[#allocation2 + $0x4f] sm:$0xff]
    %v2082 = vld [vmem:[#allocation2 + $0x57] sm:$0xff]
    %v2083 = vld [vmem:[#allocation2 + $0x5f] sm:$0xff]
    %v2084 = vld [vmem:[#allocation2 + $0x67] sm:$0xff]
    %v2085 = vpack.c.bf16 %v2074, %v2073
    %v2086 = vpack.c.bf16 %v2076, %v2075
    %v2087 = vpack.c.bf16 %v2078, %v2077
    %v2088 = vpack.c.bf16 %v2080, %v2079
    %v2089 = vpack.c.bf16 %v2082, %v2081
    %v2090 = vpack.c.bf16 %v2084, %v2083
    %v2091 = vld [vmem:[#allocation7 + $0x100] sm:$0xf]
    %v2092 = vld [vmem:[#allocation7 + $0x104] sm:$0xf]
    %v2093 = vld [vmem:[#allocation7 + $0x108] sm:$0xf]
    %v2094 = vld [vmem:[#allocation7 + $0x10c] sm:$0xf]
    %v2095 = vld [vmem:[#allocation7 + $0x110] sm:$0xf]
    %v2096 = vld [vmem:[#allocation7 + $0x114] sm:$0xf]
    %v2097 = vld [vmem:[#allocation7 + $0x118] sm:$0xf]
    %v2098 = vld [vmem:[#allocation7 + $0x11c] sm:$0xf]
    %v2107 = vunpack.c.l.b16 %v2091
    %v2108 = vunpack.c.l.b16 %v2092
    %v2109 = vunpack.c.l.b16 %v2093
    %v2110 = vunpack.c.l.b16 %v2094
    %v2111 = vunpack.c.l.b16 %v2095
    %v2112 = vunpack.c.l.b16 %v2096
    %v2113 = vunpack.c.l.b16 %v2097
    %v2114 = vunpack.c.l.b16 %v2098
    %v2115 = vpack.c.b16 %v2108, %v2107
    %v2116 = vpack.c.b16 %v2110, %v2109
    %v2117 = vpack.c.b16 %v2112, %v2111
    %v2118 = vpack.c.b16 %v2114, %v2113
    %v2124 = vsel %vm1130, %v2085, 0
    %v2127 = vsel %vm1130, %v2086, 0
    %v2130 = vsel %vm1130, %v2087, 0
    %v2133 = vsel %vm1130, %v2088, 0
    %v2136 = vsel %vm1130, %v2089, 0
    %v2139 = vsel %vm1130, %v2090, 0
    %2141 = vmatpush.bf16.msra.mxu0 0
    %2142 = vmatpush.bf16.msra.mxu0 0
    %2143 = vmatpush.bf16.msra.mxu0 0
    %2144 = vmatpush.bf16.msra.mxu0 0
    %2145 = vmatpush.bf16.msra.mxu0 %v2118
    %2146 = vmatpush.bf16.msra.mxu0 %v2117
    %2147 = vmatpush.bf16.msra.mxu0 %v2116
    %2148 = vmatpush.bf16.msra.mxu0 %v2115
    %2149 = vmatmul.bf16.gmra.mxu0 %v2124
    %v2150 = vpop.f32.mrf.mxu0
    %v2151 = vadd.f32 0.0, %v2150
    %v2152 = vpop.f32.mrf.mxu0
    %v2153 = vadd.f32 0.0, %v2152
    %2154 = vmatmul.bf16.gmra.mxu0 %v2127
    %v2155 = vpop.f32.mrf.mxu0
    %v2156 = vadd.f32 0.0, %v2155
    %v2157 = vpop.f32.mrf.mxu0
    %v2158 = vadd.f32 0.0, %v2157
    %2159 = vmatmul.bf16.gmra.mxu0 %v2130
    %v2160 = vpop.f32.mrf.mxu0
    %v2161 = vadd.f32 0.0, %v2160
    %v2162 = vpop.f32.mrf.mxu0
    %v2163 = vadd.f32 0.0, %v2162
    %2164 = vmatmul.bf16.gmra.mxu0 %v2133
    %v2165 = vpop.f32.mrf.mxu0
    %v2166 = vadd.f32 0.0, %v2165
    %v2167 = vpop.f32.mrf.mxu0
    %v2168 = vadd.f32 0.0, %v2167
    %2169 = vmatmul.bf16.gmra.mxu0 %v2136
    %v2170 = vpop.f32.mrf.mxu0
    %v2171 = vadd.f32 0.0, %v2170
    %v2172 = vpop.f32.mrf.mxu0
    %v2173 = vadd.f32 0.0, %v2172
    %2174 = vmatmul.bf16.gmra.mxu0 %v2139
    %v2175 = vpop.f32.mrf.mxu0
    %v2176 = vadd.f32 0.0, %v2175
    %v2177 = vpop.f32.mrf.mxu0
    %v2178 = vadd.f32 0.0, %v2177
    %2179 = vdwg.mxu0
    %v2180 = vadd.f32 %v2061, %v2151
    %v2181 = vadd.f32 %v2062, %v2153
    %v2182 = vadd.f32 %v2063, %v2156
    %v2183 = vadd.f32 %v2064, %v2158
    %v2184 = vadd.f32 %v2065, %v2161
    %v2185 = vadd.f32 %v2066, %v2163
    %v2186 = vadd.f32 %v2067, %v2166
    %v2187 = vadd.f32 %v2068, %v2168
    %v2188 = vadd.f32 %v2069, %v2171
    %v2189 = vadd.f32 %v2070, %v2173
    %v2190 = vadd.f32 %v2071, %v2176
    %v2191 = vadd.f32 %v2072, %v2178
    %v2192 = vld [vmem:[#allocation11 + $0x1] ss:$0 sm:$0xff]
    %v2193 = vadd.f32 %v2180, %v2192
    %v2194 = vadd.f32 %v2181, %v2192
    %v2195 = vadd.f32 %v2182, %v2192
    %v2196 = vadd.f32 %v2183, %v2192
    %v2197 = vadd.f32 %v2184, %v2192
    %v2198 = vadd.f32 %v2185, %v2192
    %v2199 = vadd.f32 %v2186, %v2192
    %v2200 = vadd.f32 %v2187, %v2192
    %v2201 = vadd.f32 %v2188, %v2192
    %v2202 = vadd.f32 %v2189, %v2192
    %v2203 = vadd.f32 %v2190, %v2192
    %v2204 = vadd.f32 %v2191, %v2192
    %v2205 = vmul.f32 %v2193, %v261
    %v2206 = vmul.f32 %v2194, %v262
    %v2207 = vmul.f32 %v2195, %v263
    %v2208 = vmul.f32 %v2196, %v264
    %v2209 = vmul.f32 %v2197, %v265
    %v2210 = vmul.f32 %v2198, %v266
    %v2211 = vmul.f32 %v2199, %v267
    %v2212 = vmul.f32 %v2200, %v268
    %v2213 = vmul.f32 %v2201, %v269
    %v2214 = vmul.f32 %v2202, %v270
    %v2215 = vmul.f32 %v2203, %v271
    %v2216 = vmul.f32 %v2204, %v272
    %2217 = vst [vmem:[#allocation3] sm:$0xff] 0.0
    %2218 = vst [vmem:[#allocation3 + $0x68] sm:$0xff] 0.0
    %2219 = vst [vmem:[#allocation3 + $0x8] sm:$0xff] %v2205
    %2220 = vst [vmem:[#allocation3 + $0x10] sm:$0xff] %v2206
    %2221 = vst [vmem:[#allocation3 + $0x18] sm:$0xff] %v2207
    %2222 = vst [vmem:[#allocation3 + $0x20] sm:$0xff] %v2208
    %2223 = vst [vmem:[#allocation3 + $0x28] sm:$0xff] %v2209
    %2224 = vst [vmem:[#allocation3 + $0x30] sm:$0xff] %v2210
    %2225 = vst [vmem:[#allocation3 + $0x38] sm:$0xff] %v2211
    %2226 = vst [vmem:[#allocation3 + $0x40] sm:$0xff] %v2212
    %2227 = vst [vmem:[#allocation3 + $0x48] sm:$0xff] %v2213
    %2228 = vst [vmem:[#allocation3 + $0x50] sm:$0xff] %v2214
    %2229 = vst [vmem:[#allocation3 + $0x58] sm:$0xff] %v2215
    %2230 = vst [vmem:[#allocation3 + $0x60] sm:$0xff] %v2216
    %v2231 = vld [vmem:[#allocation3 + $0x1] sm:$0xff]
    %v2232 = vld [vmem:[#allocation3 + $0x9] sm:$0xff]
    %v2233 = vld [vmem:[#allocation3 + $0x11] sm:$0xff]
    %v2234 = vld [vmem:[#allocation3 + $0x19] sm:$0xff]
    %v2235 = vld [vmem:[#allocation3 + $0x21] sm:$0xff]
    %v2236 = vld [vmem:[#allocation3 + $0x29] sm:$0xff]
    %v2237 = vld [vmem:[#allocation3 + $0x31] sm:$0xff]
    %v2238 = vld [vmem:[#allocation3 + $0x39] sm:$0xff]
    %v2239 = vld [vmem:[#allocation3 + $0x41] sm:$0xff]
    %v2240 = vld [vmem:[#allocation3 + $0x49] sm:$0xff]
    %v2241 = vld [vmem:[#allocation3 + $0x51] sm:$0xff]
    %v2242 = vld [vmem:[#allocation3 + $0x59] sm:$0xff]
    %v2243 = vpack.c.bf16 %v2232, %v2231
    %v2244 = vpack.c.bf16 %v2234, %v2233
    %v2245 = vpack.c.bf16 %v2236, %v2235
    %v2246 = vpack.c.bf16 %v2238, %v2237
    %v2247 = vpack.c.bf16 %v2240, %v2239
    %v2248 = vpack.c.bf16 %v2242, %v2241
    %v2249 = vld [vmem:[#allocation9] sm:$0xff]
    %v2250 = vld [vmem:[#allocation9 + $0x8] sm:$0xff]
    %v2251 = vld [vmem:[#allocation9 + $0x10] sm:$0xff]
    %v2252 = vld [vmem:[#allocation9 + $0x18] sm:$0xff]
    %v2253 = vld [vmem:[#allocation9 + $0x20] sm:$0xff]
    %v2254 = vld [vmem:[#allocation9 + $0x28] sm:$0xff]
    %v2255 = vld [vmem:[#allocation9 + $0x30] sm:$0xff]
    %v2256 = vld [vmem:[#allocation9 + $0x38] sm:$0xff]
    %v2257 = vld [vmem:[#allocation9 + $0x40] sm:$0xff]
    %v2258 = vld [vmem:[#allocation9 + $0x48] sm:$0xff]
    %v2259 = vld [vmem:[#allocation9 + $0x50] sm:$0xff]
    %v2260 = vld [vmem:[#allocation9 + $0x58] sm:$0xff]
    %v2261 = vld [vmem:[#allocation9 + $0x60] sm:$0xff]
    %v2262 = vld [vmem:[#allocation9 + $0x68] sm:$0xff]
    %v2263 = vld [vmem:[#allocation9 + $0x70] sm:$0xff]
    %v2264 = vld [vmem:[#allocation9 + $0x78] sm:$0xff]
    %v2265 = vld [vmem:[#allocation3 + $0x2] sm:$0xff]
    %v2266 = vld [vmem:[#allocation3 + $0xa] sm:$0xff]
    %v2267 = vld [vmem:[#allocation3 + $0x12] sm:$0xff]
    %v2268 = vld [vmem:[#allocation3 + $0x1a] sm:$0xff]
    %v2269 = vld [vmem:[#allocation3 + $0x22] sm:$0xff]
    %v2270 = vld [vmem:[#allocation3 + $0x2a] sm:$0xff]
    %v2271 = vld [vmem:[#allocation3 + $0x32] sm:$0xff]
    %v2272 = vld [vmem:[#allocation3 + $0x3a] sm:$0xff]
    %v2273 = vld [vmem:[#allocation3 + $0x42] sm:$0xff]
    %v2274 = vld [vmem:[#allocation3 + $0x4a] sm:$0xff]
    %v2275 = vld [vmem:[#allocation3 + $0x52] sm:$0xff]
    %v2276 = vld [vmem:[#allocation3 + $0x5a] sm:$0xff]
    %v2277 = vpack.c.bf16 %v2266, %v2265
    %v2278 = vpack.c.bf16 %v2268, %v2267
    %v2279 = vpack.c.bf16 %v2270, %v2269
    %v2280 = vpack.c.bf16 %v2272, %v2271
    %v2281 = vpack.c.bf16 %v2274, %v2273
    %v2282 = vpack.c.bf16 %v2276, %v2275
    %v2283 = vld [vmem:[#allocation9 + $0x80] sm:$0xff]
    %v2284 = vld [vmem:[#allocation9 + $0x88] sm:$0xff]
    %v2285 = vld [vmem:[#allocation9 + $0x90] sm:$0xff]
    %v2286 = vld [vmem:[#allocation9 + $0x98] sm:$0xff]
    %v2287 = vld [vmem:[#allocation9 + $0xa0] sm:$0xff]
    %v2288 = vld [vmem:[#allocation9 + $0xa8] sm:$0xff]
    %v2289 = vld [vmem:[#allocation9 + $0xb0] sm:$0xff]
    %v2290 = vld [vmem:[#allocation9 + $0xb8] sm:$0xff]
    %v2291 = vld [vmem:[#allocation9 + $0xc0] sm:$0xff]
    %v2292 = vld [vmem:[#allocation9 + $0xc8] sm:$0xff]
    %v2293 = vld [vmem:[#allocation9 + $0xd0] sm:$0xff]
    %v2294 = vld [vmem:[#allocation9 + $0xd8] sm:$0xff]
    %v2295 = vld [vmem:[#allocation9 + $0xe0] sm:$0xff]
    %v2296 = vld [vmem:[#allocation9 + $0xe8] sm:$0xff]
    %v2297 = vld [vmem:[#allocation9 + $0xf0] sm:$0xff]
    %v2298 = vld [vmem:[#allocation9 + $0xf8] sm:$0xff]
    %v2315 = vunpack.c.l.b16 %v2283
    %v2316 = vunpack.c.h.b16 %v2283
    %v2317 = vunpack.c.l.b16 %v2284
    %v2318 = vunpack.c.h.b16 %v2284
    %v2319 = vunpack.c.l.b16 %v2285
    %v2320 = vunpack.c.h.b16 %v2285
    %v2321 = vunpack.c.l.b16 %v2286
    %v2322 = vunpack.c.h.b16 %v2286
    %v2323 = vunpack.c.l.b16 %v2287
    %v2324 = vunpack.c.h.b16 %v2287
    %v2325 = vunpack.c.l.b16 %v2288
    %v2326 = vunpack.c.h.b16 %v2288
    %v2327 = vunpack.c.l.b16 %v2289
    %v2328 = vunpack.c.h.b16 %v2289
    %v2329 = vunpack.c.l.b16 %v2290
    %v2330 = vunpack.c.h.b16 %v2290
    %v2331 = vunpack.c.l.b16 %v2291
    %v2332 = vunpack.c.h.b16 %v2291
    %v2333 = vunpack.c.l.b16 %v2292
    %v2334 = vunpack.c.h.b16 %v2292
    %v2335 = vunpack.c.l.b16 %v2293
    %v2336 = vunpack.c.h.b16 %v2293
    %v2337 = vunpack.c.l.b16 %v2294
    %v2338 = vunpack.c.h.b16 %v2294
    %v2339 = vunpack.c.l.b16 %v2295
    %v2340 = vunpack.c.h.b16 %v2295
    %v2341 = vunpack.c.l.b16 %v2296
    %v2342 = vunpack.c.h.b16 %v2296
    %v2343 = vunpack.c.l.b16 %v2297
    %v2344 = vunpack.c.h.b16 %v2297
    %v2345 = vunpack.c.l.b16 %v2298
    %v2346 = vunpack.c.h.b16 %v2298
    %v2347 = vpack.c.b16 %v2317, %v2315
    %v2348 = vpack.c.b16 %v2318, %v2316
    %v2349 = vpack.c.b16 %v2321, %v2319
    %v2350 = vpack.c.b16 %v2322, %v2320
    %v2351 = vpack.c.b16 %v2325, %v2323
    %v2352 = vpack.c.b16 %v2326, %v2324
    %v2353 = vpack.c.b16 %v2329, %v2327
    %v2354 = vpack.c.b16 %v2330, %v2328
    %v2355 = vpack.c.b16 %v2333, %v2331
    %v2356 = vpack.c.b16 %v2334, %v2332
    %v2357 = vpack.c.b16 %v2337, %v2335
    %v2358 = vpack.c.b16 %v2338, %v2336
    %v2359 = vpack.c.b16 %v2341, %v2339
    %v2360 = vpack.c.b16 %v2342, %v2340
    %v2361 = vpack.c.b16 %v2345, %v2343
    %v2362 = vpack.c.b16 %v2346, %v2344
    %2379 = vmatpush.bf16.msra.mxu0 %v2361
    %2380 = vmatpush.bf16.msra.mxu0 %v2359
    %2381 = vmatpush.bf16.msra.mxu0 %v2357
    %2382 = vmatpush.bf16.msra.mxu0 %v2355
    %2383 = vmatpush.bf16.msra.mxu0 %v2353
    %2384 = vmatpush.bf16.msra.mxu0 %v2351
    %2385 = vmatpush.bf16.msra.mxu0 %v2349
    %2386 = vmatpush.bf16.msra.mxu0 %v2347
    %2387 = vmatmul.bf16.gmra.mxu0 %v2277
    %v2388 = vpop.f32.mrf.mxu0
    %v2389 = vadd.f32 0.0, %v2388
    %v2390 = vpop.f32.mrf.mxu0
    %v2391 = vadd.f32 0.0, %v2390
    %2392 = vmatmul.bf16.gmra.mxu0 %v2278
    %v2393 = vpop.f32.mrf.mxu0
    %v2394 = vadd.f32 0.0, %v2393
    %v2395 = vpop.f32.mrf.mxu0
    %v2396 = vadd.f32 0.0, %v2395
    %2397 = vmatmul.bf16.gmra.mxu0 %v2279
    %v2398 = vpop.f32.mrf.mxu0
    %v2399 = vadd.f32 0.0, %v2398
    %v2400 = vpop.f32.mrf.mxu0
    %v2401 = vadd.f32 0.0, %v2400
    %2402 = vmatmul.bf16.gmra.mxu0 %v2280
    %v2403 = vpop.f32.mrf.mxu0
    %v2404 = vadd.f32 0.0, %v2403
    %v2405 = vpop.f32.mrf.mxu0
    %v2406 = vadd.f32 0.0, %v2405
    %2407 = vmatmul.bf16.gmra.mxu0 %v2281
    %v2408 = vpop.f32.mrf.mxu0
    %v2409 = vadd.f32 0.0, %v2408
    %v2410 = vpop.f32.mrf.mxu0
    %v2411 = vadd.f32 0.0, %v2410
    %2412 = vmatmul.bf16.gmra.mxu0 %v2282
    %v2413 = vpop.f32.mrf.mxu0
    %v2414 = vadd.f32 0.0, %v2413
    %v2415 = vpop.f32.mrf.mxu0
    %v2416 = vadd.f32 0.0, %v2415
    %2417 = vdwg.mxu0
    %2418 = vmatpush.bf16.msra.mxu0 %v2362
    %2419 = vmatpush.bf16.msra.mxu0 %v2360
    %2420 = vmatpush.bf16.msra.mxu0 %v2358
    %2421 = vmatpush.bf16.msra.mxu0 %v2356
    %2422 = vmatpush.bf16.msra.mxu0 %v2354
    %2423 = vmatpush.bf16.msra.mxu0 %v2352
    %2424 = vmatpush.bf16.msra.mxu0 %v2350
    %2425 = vmatpush.bf16.msra.mxu0 %v2348
    %2426 = vmatmul.bf16.gmra.mxu0 %v2277
    %v2427 = vpop.f32.mrf.mxu0
    %v2428 = vadd.f32 0.0, %v2427
    %v2429 = vpop.f32.mrf.mxu0
    %v2430 = vadd.f32 0.0, %v2429
    %2431 = vmatmul.bf16.gmra.mxu0 %v2278
    %v2432 = vpop.f32.mrf.mxu0
    %v2433 = vadd.f32 0.0, %v2432
    %v2434 = vpop.f32.mrf.mxu0
    %v2435 = vadd.f32 0.0, %v2434
    %2436 = vmatmul.bf16.gmra.mxu0 %v2279
    %v2437 = vpop.f32.mrf.mxu0
    %v2438 = vadd.f32 0.0, %v2437
    %v2439 = vpop.f32.mrf.mxu0
    %v2440 = vadd.f32 0.0, %v2439
    %2441 = vmatmul.bf16.gmra.mxu0 %v2280
    %v2442 = vpop.f32.mrf.mxu0
    %v2443 = vadd.f32 0.0, %v2442
    %v2444 = vpop.f32.mrf.mxu0
    %v2445 = vadd.f32 0.0, %v2444
    %2446 = vmatmul.bf16.gmra.mxu0 %v2281
    %v2447 = vpop.f32.mrf.mxu0
    %v2448 = vadd.f32 0.0, %v2447
    %v2449 = vpop.f32.mrf.mxu0
    %v2450 = vadd.f32 0.0, %v2449
    %2451 = vmatmul.bf16.gmra.mxu0 %v2282
    %v2452 = vpop.f32.mrf.mxu0
    %v2453 = vadd.f32 0.0, %v2452
    %v2454 = vpop.f32.mrf.mxu0
    %v2455 = vadd.f32 0.0, %v2454
    %2456 = vdwg.mxu0
    %v2473 = vunpack.c.l.b16 %v2249
    %v2474 = vunpack.c.h.b16 %v2249
    %v2475 = vunpack.c.l.b16 %v2250
    %v2476 = vunpack.c.h.b16 %v2250
    %v2477 = vunpack.c.l.b16 %v2251
    %v2478 = vunpack.c.h.b16 %v2251
    %v2479 = vunpack.c.l.b16 %v2252
    %v2480 = vunpack.c.h.b16 %v2252
    %v2481 = vunpack.c.l.b16 %v2253
    %v2482 = vunpack.c.h.b16 %v2253
    %v2483 = vunpack.c.l.b16 %v2254
    %v2484 = vunpack.c.h.b16 %v2254
    %v2485 = vunpack.c.l.b16 %v2255
    %v2486 = vunpack.c.h.b16 %v2255
    %v2487 = vunpack.c.l.b16 %v2256
    %v2488 = vunpack.c.h.b16 %v2256
    %v2489 = vunpack.c.l.b16 %v2257
    %v2490 = vunpack.c.h.b16 %v2257
    %v2491 = vunpack.c.l.b16 %v2258
    %v2492 = vunpack.c.h.b16 %v2258
    %v2493 = vunpack.c.l.b16 %v2259
    %v2494 = vunpack.c.h.b16 %v2259
    %v2495 = vunpack.c.l.b16 %v2260
    %v2496 = vunpack.c.h.b16 %v2260
    %v2497 = vunpack.c.l.b16 %v2261
    %v2498 = vunpack.c.h.b16 %v2261
    %v2499 = vunpack.c.l.b16 %v2262
    %v2500 = vunpack.c.h.b16 %v2262
    %v2501 = vunpack.c.l.b16 %v2263
    %v2502 = vunpack.c.h.b16 %v2263
    %v2503 = vunpack.c.l.b16 %v2264
    %v2504 = vunpack.c.h.b16 %v2264
    %v2505 = vpack.c.b16 %v2475, %v2473
    %v2506 = vpack.c.b16 %v2476, %v2474
    %v2507 = vpack.c.b16 %v2479, %v2477
    %v2508 = vpack.c.b16 %v2480, %v2478
    %v2509 = vpack.c.b16 %v2483, %v2481
    %v2510 = vpack.c.b16 %v2484, %v2482
    %v2511 = vpack.c.b16 %v2487, %v2485
    %v2512 = vpack.c.b16 %v2488, %v2486
    %v2513 = vpack.c.b16 %v2491, %v2489
    %v2514 = vpack.c.b16 %v2492, %v2490
    %v2515 = vpack.c.b16 %v2495, %v2493
    %v2516 = vpack.c.b16 %v2496, %v2494
    %v2517 = vpack.c.b16 %v2499, %v2497
    %v2518 = vpack.c.b16 %v2500, %v2498
    %v2519 = vpack.c.b16 %v2503, %v2501
    %v2520 = vpack.c.b16 %v2504, %v2502
    %2537 = vmatpush.bf16.msra.mxu0 %v2519
    %2538 = vmatpush.bf16.msra.mxu0 %v2517
    %2539 = vmatpush.bf16.msra.mxu0 %v2515
    %2540 = vmatpush.bf16.msra.mxu0 %v2513
    %2541 = vmatpush.bf16.msra.mxu0 %v2511
    %2542 = vmatpush.bf16.msra.mxu0 %v2509
    %2543 = vmatpush.bf16.msra.mxu0 %v2507
    %2544 = vmatpush.bf16.msra.mxu0 %v2505
    %2545 = vmatmul.bf16.gmra.mxu0 %v2243
    %v2546 = vpop.f32.mrf.mxu0
    %v2547 = vadd.f32 %v2389, %v2546
    %v2548 = vpop.f32.mrf.mxu0
    %v2549 = vadd.f32 %v2391, %v2548
    %2550 = vmatmul.bf16.gmra.mxu0 %v2244
    %v2551 = vpop.f32.mrf.mxu0
    %v2552 = vadd.f32 %v2394, %v2551
    %v2553 = vpop.f32.mrf.mxu0
    %v2554 = vadd.f32 %v2396, %v2553
    %2555 = vmatmul.bf16.gmra.mxu0 %v2245
    %v2556 = vpop.f32.mrf.mxu0
    %v2557 = vadd.f32 %v2399, %v2556
    %v2558 = vpop.f32.mrf.mxu0
    %v2559 = vadd.f32 %v2401, %v2558
    %2560 = vmatmul.bf16.gmra.mxu0 %v2246
    %v2561 = vpop.f32.mrf.mxu0
    %v2562 = vadd.f32 %v2404, %v2561
    %v2563 = vpop.f32.mrf.mxu0
    %v2564 = vadd.f32 %v2406, %v2563
    %2565 = vmatmul.bf16.gmra.mxu0 %v2247
    %v2566 = vpop.f32.mrf.mxu0
    %v2567 = vadd.f32 %v2409, %v2566
    %v2568 = vpop.f32.mrf.mxu0
    %v2569 = vadd.f32 %v2411, %v2568
    %2570 = vmatmul.bf16.gmra.mxu0 %v2248
    %v2571 = vpop.f32.mrf.mxu0
    %v2572 = vadd.f32 %v2414, %v2571
    %v2573 = vpop.f32.mrf.mxu0
    %v2574 = vadd.f32 %v2416, %v2573
    %2575 = vdwg.mxu0
    %2576 = vmatpush.bf16.msra.mxu0 %v2520
    %2577 = vmatpush.bf16.msra.mxu0 %v2518
    %2578 = vmatpush.bf16.msra.mxu0 %v2516
    %2579 = vmatpush.bf16.msra.mxu0 %v2514
    %2580 = vmatpush.bf16.msra.mxu0 %v2512
    %2581 = vmatpush.bf16.msra.mxu0 %v2510
    %2582 = vmatpush.bf16.msra.mxu0 %v2508
    %2583 = vmatpush.bf16.msra.mxu0 %v2506
    %2584 = vmatmul.bf16.gmra.mxu0 %v2243
    %v2585 = vpop.f32.mrf.mxu0
    %v2586 = vadd.f32 %v2428, %v2585
    %v2587 = vpop.f32.mrf.mxu0
    %v2588 = vadd.f32 %v2430, %v2587
    %2589 = vmatmul.bf16.gmra.mxu0 %v2244
    %v2590 = vpop.f32.mrf.mxu0
    %v2591 = vadd.f32 %v2433, %v2590
    %v2592 = vpop.f32.mrf.mxu0
    %v2593 = vadd.f32 %v2435, %v2592
    %2594 = vmatmul.bf16.gmra.mxu0 %v2245
    %v2595 = vpop.f32.mrf.mxu0
    %v2596 = vadd.f32 %v2438, %v2595
    %v2597 = vpop.f32.mrf.mxu0
    %v2598 = vadd.f32 %v2440, %v2597
    %2599 = vmatmul.bf16.gmra.mxu0 %v2246
    %v2600 = vpop.f32.mrf.mxu0
    %v2601 = vadd.f32 %v2443, %v2600
    %v2602 = vpop.f32.mrf.mxu0
    %v2603 = vadd.f32 %v2445, %v2602
    %2604 = vmatmul.bf16.gmra.mxu0 %v2247
    %v2605 = vpop.f32.mrf.mxu0
    %v2606 = vadd.f32 %v2448, %v2605
    %v2607 = vpop.f32.mrf.mxu0
    %v2608 = vadd.f32 %v2450, %v2607
    %2609 = vmatmul.bf16.gmra.mxu0 %v2248
    %v2610 = vpop.f32.mrf.mxu0
    %v2611 = vadd.f32 %v2453, %v2610
    %v2612 = vpop.f32.mrf.mxu0
    %v2613 = vadd.f32 %v2455, %v2612
    %2614 = vdwg.mxu0
    %v2615 = vld [vmem:[#allocation3 + $0x3] sm:$0xff]
    %v2616 = vld [vmem:[#allocation3 + $0xb] sm:$0xff]
    %v2617 = vld [vmem:[#allocation3 + $0x13] sm:$0xff]
    %v2618 = vld [vmem:[#allocation3 + $0x1b] sm:$0xff]
    %v2619 = vld [vmem:[#allocation3 + $0x23] sm:$0xff]
    %v2620 = vld [vmem:[#allocation3 + $0x2b] sm:$0xff]
    %v2621 = vld [vmem:[#allocation3 + $0x33] sm:$0xff]
    %v2622 = vld [vmem:[#allocation3 + $0x3b] sm:$0xff]
    %v2623 = vld [vmem:[#allocation3 + $0x43] sm:$0xff]
    %v2624 = vld [vmem:[#allocation3 + $0x4b] sm:$0xff]
    %v2625 = vld [vmem:[#allocation3 + $0x53] sm:$0xff]
    %v2626 = vld [vmem:[#allocation3 + $0x5b] sm:$0xff]
    %v2627 = vpack.c.bf16 %v2616, %v2615
    %v2628 = vpack.c.bf16 %v2618, %v2617
    %v2629 = vpack.c.bf16 %v2620, %v2619
    %v2630 = vpack.c.bf16 %v2622, %v2621
    %v2631 = vpack.c.bf16 %v2624, %v2623
    %v2632 = vpack.c.bf16 %v2626, %v2625
    %v2633 = vld [vmem:[#allocation9 + $0x100] sm:$0xff]
    %v2634 = vld [vmem:[#allocation9 + $0x108] sm:$0xff]
    %v2635 = vld [vmem:[#allocation9 + $0x110] sm:$0xff]
    %v2636 = vld [vmem:[#allocation9 + $0x118] sm:$0xff]
    %v2637 = vld [vmem:[#allocation9 + $0x120] sm:$0xff]
    %v2638 = vld [vmem:[#allocation9 + $0x128] sm:$0xff]
    %v2639 = vld [vmem:[#allocation9 + $0x130] sm:$0xff]
    %v2640 = vld [vmem:[#allocation9 + $0x138] sm:$0xff]
    %v2641 = vld [vmem:[#allocation9 + $0x140] sm:$0xff]
    %v2642 = vld [vmem:[#allocation9 + $0x148] sm:$0xff]
    %v2643 = vld [vmem:[#allocation9 + $0x150] sm:$0xff]
    %v2644 = vld [vmem:[#allocation9 + $0x158] sm:$0xff]
    %v2645 = vld [vmem:[#allocation9 + $0x160] sm:$0xff]
    %v2646 = vld [vmem:[#allocation9 + $0x168] sm:$0xff]
    %v2647 = vld [vmem:[#allocation9 + $0x170] sm:$0xff]
    %v2648 = vld [vmem:[#allocation9 + $0x178] sm:$0xff]
    %v2665 = vunpack.c.l.b16 %v2633
    %v2666 = vunpack.c.h.b16 %v2633
    %v2667 = vunpack.c.l.b16 %v2634
    %v2668 = vunpack.c.h.b16 %v2634
    %v2669 = vunpack.c.l.b16 %v2635
    %v2670 = vunpack.c.h.b16 %v2635
    %v2671 = vunpack.c.l.b16 %v2636
    %v2672 = vunpack.c.h.b16 %v2636
    %v2673 = vunpack.c.l.b16 %v2637
    %v2674 = vunpack.c.h.b16 %v2637
    %v2675 = vunpack.c.l.b16 %v2638
    %v2676 = vunpack.c.h.b16 %v2638
    %v2677 = vunpack.c.l.b16 %v2639
    %v2678 = vunpack.c.h.b16 %v2639
    %v2679 = vunpack.c.l.b16 %v2640
    %v2680 = vunpack.c.h.b16 %v2640
    %v2681 = vunpack.c.l.b16 %v2641
    %v2682 = vunpack.c.h.b16 %v2641
    %v2683 = vunpack.c.l.b16 %v2642
    %v2684 = vunpack.c.h.b16 %v2642
    %v2685 = vunpack.c.l.b16 %v2643
    %v2686 = vunpack.c.h.b16 %v2643
    %v2687 = vunpack.c.l.b16 %v2644
    %v2688 = vunpack.c.h.b16 %v2644
    %v2689 = vunpack.c.l.b16 %v2645
    %v2690 = vunpack.c.h.b16 %v2645
    %v2691 = vunpack.c.l.b16 %v2646
    %v2692 = vunpack.c.h.b16 %v2646
    %v2693 = vunpack.c.l.b16 %v2647
    %v2694 = vunpack.c.h.b16 %v2647
    %v2695 = vunpack.c.l.b16 %v2648
    %v2696 = vunpack.c.h.b16 %v2648
    %v2697 = vpack.c.b16 %v2667, %v2665
    %v2698 = vpack.c.b16 %v2668, %v2666
    %v2699 = vpack.c.b16 %v2671, %v2669
    %v2700 = vpack.c.b16 %v2672, %v2670
    %v2701 = vpack.c.b16 %v2675, %v2673
    %v2702 = vpack.c.b16 %v2676, %v2674
    %v2703 = vpack.c.b16 %v2679, %v2677
    %v2704 = vpack.c.b16 %v2680, %v2678
    %v2705 = vpack.c.b16 %v2683, %v2681
    %v2706 = vpack.c.b16 %v2684, %v2682
    %v2707 = vpack.c.b16 %v2687, %v2685
    %v2708 = vpack.c.b16 %v2688, %v2686
    %v2709 = vpack.c.b16 %v2691, %v2689
    %v2710 = vpack.c.b16 %v2692, %v2690
    %v2711 = vpack.c.b16 %v2695, %v2693
    %v2712 = vpack.c.b16 %v2696, %v2694
    %2729 = vmatpush.bf16.msra.mxu0 %v2711
    %2730 = vmatpush.bf16.msra.mxu0 %v2709
    %2731 = vmatpush.bf16.msra.mxu0 %v2707
    %2732 = vmatpush.bf16.msra.mxu0 %v2705
    %2733 = vmatpush.bf16.msra.mxu0 %v2703
    %2734 = vmatpush.bf16.msra.mxu0 %v2701
    %2735 = vmatpush.bf16.msra.mxu0 %v2699
    %2736 = vmatpush.bf16.msra.mxu0 %v2697
    %2737 = vmatmul.bf16.gmra.mxu0 %v2627
    %v2738 = vpop.f32.mrf.mxu0
    %v2739 = vadd.f32 0.0, %v2738
    %v2740 = vpop.f32.mrf.mxu0
    %v2741 = vadd.f32 0.0, %v2740
    %2742 = vmatmul.bf16.gmra.mxu0 %v2628
    %v2743 = vpop.f32.mrf.mxu0
    %v2744 = vadd.f32 0.0, %v2743
    %v2745 = vpop.f32.mrf.mxu0
    %v2746 = vadd.f32 0.0, %v2745
    %2747 = vmatmul.bf16.gmra.mxu0 %v2629
    %v2748 = vpop.f32.mrf.mxu0
    %v2749 = vadd.f32 0.0, %v2748
    %v2750 = vpop.f32.mrf.mxu0
    %v2751 = vadd.f32 0.0, %v2750
    %2752 = vmatmul.bf16.gmra.mxu0 %v2630
    %v2753 = vpop.f32.mrf.mxu0
    %v2754 = vadd.f32 0.0, %v2753
    %v2755 = vpop.f32.mrf.mxu0
    %v2756 = vadd.f32 0.0, %v2755
    %2757 = vmatmul.bf16.gmra.mxu0 %v2631
    %v2758 = vpop.f32.mrf.mxu0
    %v2759 = vadd.f32 0.0, %v2758
    %v2760 = vpop.f32.mrf.mxu0
    %v2761 = vadd.f32 0.0, %v2760
    %2762 = vmatmul.bf16.gmra.mxu0 %v2632
    %v2763 = vpop.f32.mrf.mxu0
    %v2764 = vadd.f32 0.0, %v2763
    %v2765 = vpop.f32.mrf.mxu0
    %v2766 = vadd.f32 0.0, %v2765
    %2767 = vdwg.mxu0
    %2768 = vmatpush.bf16.msra.mxu0 %v2712
    %2769 = vmatpush.bf16.msra.mxu0 %v2710
    %2770 = vmatpush.bf16.msra.mxu0 %v2708
    %2771 = vmatpush.bf16.msra.mxu0 %v2706
    %2772 = vmatpush.bf16.msra.mxu0 %v2704
    %2773 = vmatpush.bf16.msra.mxu0 %v2702
    %2774 = vmatpush.bf16.msra.mxu0 %v2700
    %2775 = vmatpush.bf16.msra.mxu0 %v2698
    %2776 = vmatmul.bf16.gmra.mxu0 %v2627
    %v2777 = vpop.f32.mrf.mxu0
    %v2778 = vadd.f32 0.0, %v2777
    %v2779 = vpop.f32.mrf.mxu0
    %v2780 = vadd.f32 0.0, %v2779
    %2781 = vmatmul.bf16.gmra.mxu0 %v2628
    %v2782 = vpop.f32.mrf.mxu0
    %v2783 = vadd.f32 0.0, %v2782
    %v2784 = vpop.f32.mrf.mxu0
    %v2785 = vadd.f32 0.0, %v2784
    %2786 = vmatmul.bf16.gmra.mxu0 %v2629
    %v2787 = vpop.f32.mrf.mxu0
    %v2788 = vadd.f32 0.0, %v2787
    %v2789 = vpop.f32.mrf.mxu0
    %v2790 = vadd.f32 0.0, %v2789
    %2791 = vmatmul.bf16.gmra.mxu0 %v2630
    %v2792 = vpop.f32.mrf.mxu0
    %v2793 = vadd.f32 0.0, %v2792
    %v2794 = vpop.f32.mrf.mxu0
    %v2795 = vadd.f32 0.0, %v2794
    %2796 = vmatmul.bf16.gmra.mxu0 %v2631
    %v2797 = vpop.f32.mrf.mxu0
    %v2798 = vadd.f32 0.0, %v2797
    %v2799 = vpop.f32.mrf.mxu0
    %v2800 = vadd.f32 0.0, %v2799
    %2801 = vmatmul.bf16.gmra.mxu0 %v2632
    %v2802 = vpop.f32.mrf.mxu0
    %v2803 = vadd.f32 0.0, %v2802
    %v2804 = vpop.f32.mrf.mxu0
    %v2805 = vadd.f32 0.0, %v2804
    %2806 = vdwg.mxu0
    %v2807 = vadd.f32 %v2547, %v2739
    %v2808 = vadd.f32 %v2586, %v2778
    %v2809 = vadd.f32 %v2549, %v2741
    %v2810 = vadd.f32 %v2588, %v2780
    %v2811 = vadd.f32 %v2552, %v2744
    %v2812 = vadd.f32 %v2591, %v2783
    %v2813 = vadd.f32 %v2554, %v2746
    %v2814 = vadd.f32 %v2593, %v2785
    %v2815 = vadd.f32 %v2557, %v2749
    %v2816 = vadd.f32 %v2596, %v2788
    %v2817 = vadd.f32 %v2559, %v2751
    %v2818 = vadd.f32 %v2598, %v2790
    %v2819 = vadd.f32 %v2562, %v2754
    %v2820 = vadd.f32 %v2601, %v2793
    %v2821 = vadd.f32 %v2564, %v2756
    %v2822 = vadd.f32 %v2603, %v2795
    %v2823 = vadd.f32 %v2567, %v2759
    %v2824 = vadd.f32 %v2606, %v2798
    %v2825 = vadd.f32 %v2569, %v2761
    %v2826 = vadd.f32 %v2608, %v2800
    %v2827 = vadd.f32 %v2572, %v2764
    %v2828 = vadd.f32 %v2611, %v2803
    %v2829 = vadd.f32 %v2574, %v2766
    %v2830 = vadd.f32 %v2613, %v2805
    %v2831 = vld [vmem:[#allocation3 + $0x7] sm:$0xff]
    %v2832 = vld [vmem:[#allocation3 + $0xf] sm:$0xff]
    %v2833 = vld [vmem:[#allocation3 + $0x17] sm:$0xff]
    %v2834 = vld [vmem:[#allocation3 + $0x1f] sm:$0xff]
    %v2835 = vld [vmem:[#allocation3 + $0x27] sm:$0xff]
    %v2836 = vld [vmem:[#allocation3 + $0x2f] sm:$0xff]
    %v2837 = vld [vmem:[#allocation3 + $0x37] sm:$0xff]
    %v2838 = vld [vmem:[#allocation3 + $0x3f] sm:$0xff]
    %v2839 = vld [vmem:[#allocation3 + $0x47] sm:$0xff]
    %v2840 = vld [vmem:[#allocation3 + $0x4f] sm:$0xff]
    %v2841 = vld [vmem:[#allocation3 + $0x57] sm:$0xff]
    %v2842 = vld [vmem:[#allocation3 + $0x5f] sm:$0xff]
    %v2843 = vpack.c.bf16 %v2832, %v2831
    %v2844 = vpack.c.bf16 %v2834, %v2833
    %v2845 = vpack.c.bf16 %v2836, %v2835
    %v2846 = vpack.c.bf16 %v2838, %v2837
    %v2847 = vpack.c.bf16 %v2840, %v2839
    %v2848 = vpack.c.bf16 %v2842, %v2841
    %v2849 = vld [vmem:[#allocation9 + $0x180] sm:$0xff]
    %v2850 = vld [vmem:[#allocation9 + $0x188] sm:$0xff]
    %v2851 = vld [vmem:[#allocation9 + $0x190] sm:$0xff]
    %v2852 = vld [vmem:[#allocation9 + $0x198] sm:$0xff]
    %v2853 = vld [vmem:[#allocation9 + $0x1a0] sm:$0xff]
    %v2854 = vld [vmem:[#allocation9 + $0x1a8] sm:$0xff]
    %v2855 = vld [vmem:[#allocation9 + $0x1b0] sm:$0xff]
    %v2856 = vld [vmem:[#allocation9 + $0x1b8] sm:$0xff]
    %v2857 = vld [vmem:[#allocation9 + $0x1c0] sm:$0xff]
    %v2858 = vld [vmem:[#allocation9 + $0x1c8] sm:$0xff]
    %v2859 = vld [vmem:[#allocation9 + $0x1d0] sm:$0xff]
    %v2860 = vld [vmem:[#allocation9 + $0x1d8] sm:$0xff]
    %v2861 = vld [vmem:[#allocation9 + $0x1e0] sm:$0xff]
    %v2862 = vld [vmem:[#allocation9 + $0x1e8] sm:$0xff]
    %v2863 = vld [vmem:[#allocation9 + $0x1f0] sm:$0xff]
    %v2864 = vld [vmem:[#allocation9 + $0x1f8] sm:$0xff]
    %v2881 = vunpack.c.l.b16 %v2849
    %v2882 = vunpack.c.h.b16 %v2849
    %v2883 = vunpack.c.l.b16 %v2850
    %v2884 = vunpack.c.h.b16 %v2850
    %v2885 = vunpack.c.l.b16 %v2851
    %v2886 = vunpack.c.h.b16 %v2851
    %v2887 = vunpack.c.l.b16 %v2852
    %v2888 = vunpack.c.h.b16 %v2852
    %v2889 = vunpack.c.l.b16 %v2853
    %v2890 = vunpack.c.h.b16 %v2853
    %v2891 = vunpack.c.l.b16 %v2854
    %v2892 = vunpack.c.h.b16 %v2854
    %v2893 = vunpack.c.l.b16 %v2855
    %v2894 = vunpack.c.h.b16 %v2855
    %v2895 = vunpack.c.l.b16 %v2856
    %v2896 = vunpack.c.h.b16 %v2856
    %v2897 = vunpack.c.l.b16 %v2857
    %v2898 = vunpack.c.h.b16 %v2857
    %v2899 = vunpack.c.l.b16 %v2858
    %v2900 = vunpack.c.h.b16 %v2858
    %v2901 = vunpack.c.l.b16 %v2859
    %v2902 = vunpack.c.h.b16 %v2859
    %v2903 = vunpack.c.l.b16 %v2860
    %v2904 = vunpack.c.h.b16 %v2860
    %v2905 = vunpack.c.l.b16 %v2861
    %v2906 = vunpack.c.h.b16 %v2861
    %v2907 = vunpack.c.l.b16 %v2862
    %v2908 = vunpack.c.h.b16 %v2862
    %v2909 = vunpack.c.l.b16 %v2863
    %v2910 = vunpack.c.h.b16 %v2863
    %v2911 = vunpack.c.l.b16 %v2864
    %v2912 = vunpack.c.h.b16 %v2864
    %v2913 = vpack.c.b16 %v2883, %v2881
    %v2914 = vpack.c.b16 %v2884, %v2882
    %v2915 = vpack.c.b16 %v2887, %v2885
    %v2916 = vpack.c.b16 %v2888, %v2886
    %v2917 = vpack.c.b16 %v2891, %v2889
    %v2918 = vpack.c.b16 %v2892, %v2890
    %v2919 = vpack.c.b16 %v2895, %v2893
    %v2920 = vpack.c.b16 %v2896, %v2894
    %v2921 = vpack.c.b16 %v2899, %v2897
    %v2922 = vpack.c.b16 %v2900, %v2898
    %v2923 = vpack.c.b16 %v2903, %v2901
    %v2924 = vpack.c.b16 %v2904, %v2902
    %v2925 = vpack.c.b16 %v2907, %v2905
    %v2926 = vpack.c.b16 %v2908, %v2906
    %v2927 = vpack.c.b16 %v2911, %v2909
    %v2928 = vpack.c.b16 %v2912, %v2910
    %2945 = vmatpush.bf16.msra.mxu0 %v2927
    %2946 = vmatpush.bf16.msra.mxu0 %v2925
    %2947 = vmatpush.bf16.msra.mxu0 %v2923
    %2948 = vmatpush.bf16.msra.mxu0 %v2921
    %2949 = vmatpush.bf16.msra.mxu0 %v2919
    %2950 = vmatpush.bf16.msra.mxu0 %v2917
    %2951 = vmatpush.bf16.msra.mxu0 %v2915
    %2952 = vmatpush.bf16.msra.mxu0 %v2913
    %2953 = vmatmul.bf16.gmra.mxu0 %v2843
    %v2954 = vpop.f32.mrf.mxu0
    %v2955 = vadd.f32 0.0, %v2954
    %v2956 = vpop.f32.mrf.mxu0
    %v2957 = vadd.f32 0.0, %v2956
    %2958 = vmatmul.bf16.gmra.mxu0 %v2844
    %v2959 = vpop.f32.mrf.mxu0
    %v2960 = vadd.f32 0.0, %v2959
    %v2961 = vpop.f32.mrf.mxu0
    %v2962 = vadd.f32 0.0, %v2961
    %2963 = vmatmul.bf16.gmra.mxu0 %v2845
    %v2964 = vpop.f32.mrf.mxu0
    %v2965 = vadd.f32 0.0, %v2964
    %v2966 = vpop.f32.mrf.mxu0
    %v2967 = vadd.f32 0.0, %v2966
    %2968 = vmatmul.bf16.gmra.mxu0 %v2846
    %v2969 = vpop.f32.mrf.mxu0
    %v2970 = vadd.f32 0.0, %v2969
    %v2971 = vpop.f32.mrf.mxu0
    %v2972 = vadd.f32 0.0, %v2971
    %2973 = vmatmul.bf16.gmra.mxu0 %v2847
    %v2974 = vpop.f32.mrf.mxu0
    %v2975 = vadd.f32 0.0, %v2974
    %v2976 = vpop.f32.mrf.mxu0
    %v2977 = vadd.f32 0.0, %v2976
    %2978 = vmatmul.bf16.gmra.mxu0 %v2848
    %v2979 = vpop.f32.mrf.mxu0
    %v2980 = vadd.f32 0.0, %v2979
    %v2981 = vpop.f32.mrf.mxu0
    %v2982 = vadd.f32 0.0, %v2981
    %2983 = vdwg.mxu0
    %2984 = vmatpush.bf16.msra.mxu0 %v2928
    %2985 = vmatpush.bf16.msra.mxu0 %v2926
    %2986 = vmatpush.bf16.msra.mxu0 %v2924
    %2987 = vmatpush.bf16.msra.mxu0 %v2922
    %2988 = vmatpush.bf16.msra.mxu0 %v2920
    %2989 = vmatpush.bf16.msra.mxu0 %v2918
    %2990 = vmatpush.bf16.msra.mxu0 %v2916
    %2991 = vmatpush.bf16.msra.mxu0 %v2914
    %2992 = vmatmul.bf16.gmra.mxu0 %v2843
    %v2993 = vpop.f32.mrf.mxu0
    %v2994 = vadd.f32 0.0, %v2993
    %v2995 = vpop.f32.mrf.mxu0
    %v2996 = vadd.f32 0.0, %v2995
    %2997 = vmatmul.bf16.gmra.mxu0 %v2844
    %v2998 = vpop.f32.mrf.mxu0
    %v2999 = vadd.f32 0.0, %v2998
    %v3000 = vpop.f32.mrf.mxu0
    %v3001 = vadd.f32 0.0, %v3000
    %3002 = vmatmul.bf16.gmra.mxu0 %v2845
    %v3003 = vpop.f32.mrf.mxu0
    %v3004 = vadd.f32 0.0, %v3003
    %v3005 = vpop.f32.mrf.mxu0
    %v3006 = vadd.f32 0.0, %v3005
    %3007 = vmatmul.bf16.gmra.mxu0 %v2846
    %v3008 = vpop.f32.mrf.mxu0
    %v3009 = vadd.f32 0.0, %v3008
    %v3010 = vpop.f32.mrf.mxu0
    %v3011 = vadd.f32 0.0, %v3010
    %3012 = vmatmul.bf16.gmra.mxu0 %v2847
    %v3013 = vpop.f32.mrf.mxu0
    %v3014 = vadd.f32 0.0, %v3013
    %v3015 = vpop.f32.mrf.mxu0
    %v3016 = vadd.f32 0.0, %v3015
    %3017 = vmatmul.bf16.gmra.mxu0 %v2848
    %v3018 = vpop.f32.mrf.mxu0
    %v3019 = vadd.f32 0.0, %v3018
    %v3020 = vpop.f32.mrf.mxu0
    %v3021 = vadd.f32 0.0, %v3020
    %3022 = vdwg.mxu0
    %v3023 = vadd.f32 %v2807, %v2955
    %v3024 = vadd.f32 %v2808, %v2994
    %v3025 = vadd.f32 %v2809, %v2957
    %v3026 = vadd.f32 %v2810, %v2996
    %v3027 = vadd.f32 %v2811, %v2960
    %v3028 = vadd.f32 %v2812, %v2999
    %v3029 = vadd.f32 %v2813, %v2962
    %v3030 = vadd.f32 %v2814, %v3001
    %v3031 = vadd.f32 %v2815, %v2965
    %v3032 = vadd.f32 %v2816, %v3004
    %v3033 = vadd.f32 %v2817, %v2967
    %v3034 = vadd.f32 %v2818, %v3006
    %v3035 = vadd.f32 %v2819, %v2970
    %v3036 = vadd.f32 %v2820, %v3009
    %v3037 = vadd.f32 %v2821, %v2972
    %v3038 = vadd.f32 %v2822, %v3011
    %v3039 = vadd.f32 %v2823, %v2975
    %v3040 = vadd.f32 %v2824, %v3014
    %v3041 = vadd.f32 %v2825, %v2977
    %v3042 = vadd.f32 %v2826, %v3016
    %v3043 = vadd.f32 %v2827, %v2980
    %v3044 = vadd.f32 %v2828, %v3019
    %v3045 = vadd.f32 %v2829, %v2982
    %v3046 = vadd.f32 %v2830, %v3021
    %v3047 = vld [vmem:[#allocation3 + $0x8] sm:$0xff]
    %v3048 = vld [vmem:[#allocation3 + $0x10] sm:$0xff]
    %v3049 = vld [vmem:[#allocation3 + $0x18] sm:$0xff]
    %v3050 = vld [vmem:[#allocation3 + $0x20] sm:$0xff]
    %v3051 = vld [vmem:[#allocation3 + $0x28] sm:$0xff]
    %v3052 = vld [vmem:[#allocation3 + $0x30] sm:$0xff]
    %v3053 = vld [vmem:[#allocation3 + $0x38] sm:$0xff]
    %v3054 = vld [vmem:[#allocation3 + $0x40] sm:$0xff]
    %v3055 = vld [vmem:[#allocation3 + $0x48] sm:$0xff]
    %v3056 = vld [vmem:[#allocation3 + $0x50] sm:$0xff]
    %v3057 = vld [vmem:[#allocation3 + $0x58] sm:$0xff]
    %v3058 = vld [vmem:[#allocation3 + $0x60] sm:$0xff]
    %v3059 = vpack.c.bf16 %v3048, %v3047
    %v3060 = vpack.c.bf16 %v3050, %v3049
    %v3061 = vpack.c.bf16 %v3052, %v3051
    %v3062 = vpack.c.bf16 %v3054, %v3053
    %v3063 = vpack.c.bf16 %v3056, %v3055
    %v3064 = vpack.c.bf16 %v3058, %v3057
    %v3065 = vld [vmem:[#allocation9 + $0x200] sm:$0xff]
    %v3066 = vld [vmem:[#allocation9 + $0x208] sm:$0xff]
    %v3067 = vld [vmem:[#allocation9 + $0x210] sm:$0xff]
    %v3068 = vld [vmem:[#allocation9 + $0x218] sm:$0xff]
    %v3069 = vld [vmem:[#allocation9 + $0x220] sm:$0xff]
    %v3070 = vld [vmem:[#allocation9 + $0x228] sm:$0xff]
    %v3071 = vld [vmem:[#allocation9 + $0x230] sm:$0xff]
    %v3072 = vld [vmem:[#allocation9 + $0x238] sm:$0xff]
    %v3073 = vld [vmem:[#allocation9 + $0x240] sm:$0xff]
    %v3074 = vld [vmem:[#allocation9 + $0x248] sm:$0xff]
    %v3075 = vld [vmem:[#allocation9 + $0x250] sm:$0xff]
    %v3076 = vld [vmem:[#allocation9 + $0x258] sm:$0xff]
    %v3077 = vld [vmem:[#allocation9 + $0x260] sm:$0xff]
    %v3078 = vld [vmem:[#allocation9 + $0x268] sm:$0xff]
    %v3079 = vld [vmem:[#allocation9 + $0x270] sm:$0xff]
    %v3080 = vld [vmem:[#allocation9 + $0x278] sm:$0xff]
    %v3097 = vunpack.c.l.b16 %v3065
    %v3098 = vunpack.c.h.b16 %v3065
    %v3099 = vunpack.c.l.b16 %v3066
    %v3100 = vunpack.c.h.b16 %v3066
    %v3101 = vunpack.c.l.b16 %v3067
    %v3102 = vunpack.c.h.b16 %v3067
    %v3103 = vunpack.c.l.b16 %v3068
    %v3104 = vunpack.c.h.b16 %v3068
    %v3105 = vunpack.c.l.b16 %v3069
    %v3106 = vunpack.c.h.b16 %v3069
    %v3107 = vunpack.c.l.b16 %v3070
    %v3108 = vunpack.c.h.b16 %v3070
    %v3109 = vunpack.c.l.b16 %v3071
    %v3110 = vunpack.c.h.b16 %v3071
    %v3111 = vunpack.c.l.b16 %v3072
    %v3112 = vunpack.c.h.b16 %v3072
    %v3113 = vunpack.c.l.b16 %v3073
    %v3114 = vunpack.c.h.b16 %v3073
    %v3115 = vunpack.c.l.b16 %v3074
    %v3116 = vunpack.c.h.b16 %v3074
    %v3117 = vunpack.c.l.b16 %v3075
    %v3118 = vunpack.c.h.b16 %v3075
    %v3119 = vunpack.c.l.b16 %v3076
    %v3120 = vunpack.c.h.b16 %v3076
    %v3121 = vunpack.c.l.b16 %v3077
    %v3122 = vunpack.c.h.b16 %v3077
    %v3123 = vunpack.c.l.b16 %v3078
    %v3124 = vunpack.c.h.b16 %v3078
    %v3125 = vunpack.c.l.b16 %v3079
    %v3126 = vunpack.c.h.b16 %v3079
    %v3127 = vunpack.c.l.b16 %v3080
    %v3128 = vunpack.c.h.b16 %v3080
    %v3129 = vpack.c.b16 %v3099, %v3097
    %v3130 = vpack.c.b16 %v3100, %v3098
    %v3131 = vpack.c.b16 %v3103, %v3101
    %v3132 = vpack.c.b16 %v3104, %v3102
    %v3133 = vpack.c.b16 %v3107, %v3105
    %v3134 = vpack.c.b16 %v3108, %v3106
    %v3135 = vpack.c.b16 %v3111, %v3109
    %v3136 = vpack.c.b16 %v3112, %v3110
    %v3137 = vpack.c.b16 %v3115, %v3113
    %v3138 = vpack.c.b16 %v3116, %v3114
    %v3139 = vpack.c.b16 %v3119, %v3117
    %v3140 = vpack.c.b16 %v3120, %v3118
    %v3141 = vpack.c.b16 %v3123, %v3121
    %v3142 = vpack.c.b16 %v3124, %v3122
    %v3143 = vpack.c.b16 %v3127, %v3125
    %v3144 = vpack.c.b16 %v3128, %v3126
    %3161 = vmatpush.bf16.msra.mxu0 %v3143
    %3162 = vmatpush.bf16.msra.mxu0 %v3141
    %3163 = vmatpush.bf16.msra.mxu0 %v3139
    %3164 = vmatpush.bf16.msra.mxu0 %v3137
    %3165 = vmatpush.bf16.msra.mxu0 %v3135
    %3166 = vmatpush.bf16.msra.mxu0 %v3133
    %3167 = vmatpush.bf16.msra.mxu0 %v3131
    %3168 = vmatpush.bf16.msra.mxu0 %v3129
    %3169 = vmatmul.bf16.gmra.mxu0 %v3059
    %v3170 = vpop.f32.mrf.mxu0
    %v3171 = vadd.f32 0.0, %v3170
    %v3172 = vpop.f32.mrf.mxu0
    %v3173 = vadd.f32 0.0, %v3172
    %3174 = vmatmul.bf16.gmra.mxu0 %v3060
    %v3175 = vpop.f32.mrf.mxu0
    %v3176 = vadd.f32 0.0, %v3175
    %v3177 = vpop.f32.mrf.mxu0
    %v3178 = vadd.f32 0.0, %v3177
    %3179 = vmatmul.bf16.gmra.mxu0 %v3061
    %v3180 = vpop.f32.mrf.mxu0
    %v3181 = vadd.f32 0.0, %v3180
    %v3182 = vpop.f32.mrf.mxu0
    %v3183 = vadd.f32 0.0, %v3182
    %3184 = vmatmul.bf16.gmra.mxu0 %v3062
    %v3185 = vpop.f32.mrf.mxu0
    %v3186 = vadd.f32 0.0, %v3185
    %v3187 = vpop.f32.mrf.mxu0
    %v3188 = vadd.f32 0.0, %v3187
    %3189 = vmatmul.bf16.gmra.mxu0 %v3063
    %v3190 = vpop.f32.mrf.mxu0
    %v3191 = vadd.f32 0.0, %v3190
    %v3192 = vpop.f32.mrf.mxu0
    %v3193 = vadd.f32 0.0, %v3192
    %3194 = vmatmul.bf16.gmra.mxu0 %v3064
    %v3195 = vpop.f32.mrf.mxu0
    %v3196 = vadd.f32 0.0, %v3195
    %v3197 = vpop.f32.mrf.mxu0
    %v3198 = vadd.f32 0.0, %v3197
    %3199 = vdwg.mxu0
    %3200 = vmatpush.bf16.msra.mxu0 %v3144
    %3201 = vmatpush.bf16.msra.mxu0 %v3142
    %3202 = vmatpush.bf16.msra.mxu0 %v3140
    %3203 = vmatpush.bf16.msra.mxu0 %v3138
    %3204 = vmatpush.bf16.msra.mxu0 %v3136
    %3205 = vmatpush.bf16.msra.mxu0 %v3134
    %3206 = vmatpush.bf16.msra.mxu0 %v3132
    %3207 = vmatpush.bf16.msra.mxu0 %v3130
    %3208 = vmatmul.bf16.gmra.mxu0 %v3059
    %v3209 = vpop.f32.mrf.mxu0
    %v3210 = vadd.f32 0.0, %v3209
    %v3211 = vpop.f32.mrf.mxu0
    %v3212 = vadd.f32 0.0, %v3211
    %3213 = vmatmul.bf16.gmra.mxu0 %v3060
    %v3214 = vpop.f32.mrf.mxu0
    %v3215 = vadd.f32 0.0, %v3214
    %v3216 = vpop.f32.mrf.mxu0
    %v3217 = vadd.f32 0.0, %v3216
    %3218 = vmatmul.bf16.gmra.mxu0 %v3061
    %v3219 = vpop.f32.mrf.mxu0
    %v3220 = vadd.f32 0.0, %v3219
    %v3221 = vpop.f32.mrf.mxu0
    %v3222 = vadd.f32 0.0, %v3221
    %3223 = vmatmul.bf16.gmra.mxu0 %v3062
    %v3224 = vpop.f32.mrf.mxu0
    %v3225 = vadd.f32 0.0, %v3224
    %v3226 = vpop.f32.mrf.mxu0
    %v3227 = vadd.f32 0.0, %v3226
    %3228 = vmatmul.bf16.gmra.mxu0 %v3063
    %v3229 = vpop.f32.mrf.mxu0
    %v3230 = vadd.f32 0.0, %v3229
    %v3231 = vpop.f32.mrf.mxu0
    %v3232 = vadd.f32 0.0, %v3231
    %3233 = vmatmul.bf16.gmra.mxu0 %v3064
    %v3234 = vpop.f32.mrf.mxu0
    %v3235 = vadd.f32 0.0, %v3234
    %v3236 = vpop.f32.mrf.mxu0
    %v3237 = vadd.f32 0.0, %v3236
    %3238 = vdwg.mxu0
    %v3239 = vadd.f32 %v3023, %v3171
    %v3240 = vadd.f32 %v3024, %v3210
    %v3241 = vadd.f32 %v3025, %v3173
    %v3242 = vadd.f32 %v3026, %v3212
    %v3243 = vadd.f32 %v3027, %v3176
    %v3244 = vadd.f32 %v3028, %v3215
    %v3245 = vadd.f32 %v3029, %v3178
    %v3246 = vadd.f32 %v3030, %v3217
    %v3247 = vadd.f32 %v3031, %v3181
    %v3248 = vadd.f32 %v3032, %v3220
    %v3249 = vadd.f32 %v3033, %v3183
    %v3250 = vadd.f32 %v3034, %v3222
    %v3251 = vadd.f32 %v3035, %v3186
    %v3252 = vadd.f32 %v3036, %v3225
    %v3253 = vadd.f32 %v3037, %v3188
    %v3254 = vadd.f32 %v3038, %v3227
    %v3255 = vadd.f32 %v3039, %v3191
    %v3256 = vadd.f32 %v3040, %v3230
    %v3257 = vadd.f32 %v3041, %v3193
    %v3258 = vadd.f32 %v3042, %v3232
    %v3259 = vadd.f32 %v3043, %v3196
    %v3260 = vadd.f32 %v3044, %v3235
    %v3261 = vadd.f32 %v3045, %v3198
    %v3262 = vadd.f32 %v3046, %v3237
    %v3263 = vld [vmem:[#allocation3 + $0x9] sm:$0xff]
    %v3264 = vld [vmem:[#allocation3 + $0x11] sm:$0xff]
    %v3265 = vld [vmem:[#allocation3 + $0x19] sm:$0xff]
    %v3266 = vld [vmem:[#allocation3 + $0x21] sm:$0xff]
    %v3267 = vld [vmem:[#allocation3 + $0x29] sm:$0xff]
    %v3268 = vld [vmem:[#allocation3 + $0x31] sm:$0xff]
    %v3269 = vld [vmem:[#allocation3 + $0x39] sm:$0xff]
    %v3270 = vld [vmem:[#allocation3 + $0x41] sm:$0xff]
    %v3271 = vld [vmem:[#allocation3 + $0x49] sm:$0xff]
    %v3272 = vld [vmem:[#allocation3 + $0x51] sm:$0xff]
    %v3273 = vld [vmem:[#allocation3 + $0x59] sm:$0xff]
    %v3274 = vld [vmem:[#allocation3 + $0x61] sm:$0xff]
    %v3275 = vpack.c.bf16 %v3264, %v3263
    %v3276 = vpack.c.bf16 %v3266, %v3265
    %v3277 = vpack.c.bf16 %v3268, %v3267
    %v3278 = vpack.c.bf16 %v3270, %v3269
    %v3279 = vpack.c.bf16 %v3272, %v3271
    %v3280 = vpack.c.bf16 %v3274, %v3273
    %v3281 = vld [vmem:[#allocation9 + $0x280] sm:$0xff]
    %v3282 = vld [vmem:[#allocation9 + $0x288] sm:$0xff]
    %v3283 = vld [vmem:[#allocation9 + $0x290] sm:$0xff]
    %v3284 = vld [vmem:[#allocation9 + $0x298] sm:$0xff]
    %v3285 = vld [vmem:[#allocation9 + $0x2a0] sm:$0xff]
    %v3286 = vld [vmem:[#allocation9 + $0x2a8] sm:$0xff]
    %v3287 = vld [vmem:[#allocation9 + $0x2b0] sm:$0xff]
    %v3288 = vld [vmem:[#allocation9 + $0x2b8] sm:$0xff]
    %v3289 = vld [vmem:[#allocation9 + $0x2c0] sm:$0xff]
    %v3290 = vld [vmem:[#allocation9 + $0x2c8] sm:$0xff]
    %v3291 = vld [vmem:[#allocation9 + $0x2d0] sm:$0xff]
    %v3292 = vld [vmem:[#allocation9 + $0x2d8] sm:$0xff]
    %v3293 = vld [vmem:[#allocation9 + $0x2e0] sm:$0xff]
    %v3294 = vld [vmem:[#allocation9 + $0x2e8] sm:$0xff]
    %v3295 = vld [vmem:[#allocation9 + $0x2f0] sm:$0xff]
    %v3296 = vld [vmem:[#allocation9 + $0x2f8] sm:$0xff]
    %v3313 = vunpack.c.l.b16 %v3281
    %v3314 = vunpack.c.h.b16 %v3281
    %v3315 = vunpack.c.l.b16 %v3282
    %v3316 = vunpack.c.h.b16 %v3282
    %v3317 = vunpack.c.l.b16 %v3283
    %v3318 = vunpack.c.h.b16 %v3283
    %v3319 = vunpack.c.l.b16 %v3284
    %v3320 = vunpack.c.h.b16 %v3284
    %v3321 = vunpack.c.l.b16 %v3285
    %v3322 = vunpack.c.h.b16 %v3285
    %v3323 = vunpack.c.l.b16 %v3286
    %v3324 = vunpack.c.h.b16 %v3286
    %v3325 = vunpack.c.l.b16 %v3287
    %v3326 = vunpack.c.h.b16 %v3287
    %v3327 = vunpack.c.l.b16 %v3288
    %v3328 = vunpack.c.h.b16 %v3288
    %v3329 = vunpack.c.l.b16 %v3289
    %v3330 = vunpack.c.h.b16 %v3289
    %v3331 = vunpack.c.l.b16 %v3290
    %v3332 = vunpack.c.h.b16 %v3290
    %v3333 = vunpack.c.l.b16 %v3291
    %v3334 = vunpack.c.h.b16 %v3291
    %v3335 = vunpack.c.l.b16 %v3292
    %v3336 = vunpack.c.h.b16 %v3292
    %v3337 = vunpack.c.l.b16 %v3293
    %v3338 = vunpack.c.h.b16 %v3293
    %v3339 = vunpack.c.l.b16 %v3294
    %v3340 = vunpack.c.h.b16 %v3294
    %v3341 = vunpack.c.l.b16 %v3295
    %v3342 = vunpack.c.h.b16 %v3295
    %v3343 = vunpack.c.l.b16 %v3296
    %v3344 = vunpack.c.h.b16 %v3296
    %v3345 = vpack.c.b16 %v3315, %v3313
    %v3346 = vpack.c.b16 %v3316, %v3314
    %v3347 = vpack.c.b16 %v3319, %v3317
    %v3348 = vpack.c.b16 %v3320, %v3318
    %v3349 = vpack.c.b16 %v3323, %v3321
    %v3350 = vpack.c.b16 %v3324, %v3322
    %v3351 = vpack.c.b16 %v3327, %v3325
    %v3352 = vpack.c.b16 %v3328, %v3326
    %v3353 = vpack.c.b16 %v3331, %v3329
    %v3354 = vpack.c.b16 %v3332, %v3330
    %v3355 = vpack.c.b16 %v3335, %v3333
    %v3356 = vpack.c.b16 %v3336, %v3334
    %v3357 = vpack.c.b16 %v3339, %v3337
    %v3358 = vpack.c.b16 %v3340, %v3338
    %v3359 = vpack.c.b16 %v3343, %v3341
    %v3360 = vpack.c.b16 %v3344, %v3342
    %3377 = vmatpush.bf16.msra.mxu0 %v3359
    %3378 = vmatpush.bf16.msra.mxu0 %v3357
    %3379 = vmatpush.bf16.msra.mxu0 %v3355
    %3380 = vmatpush.bf16.msra.mxu0 %v3353
    %3381 = vmatpush.bf16.msra.mxu0 %v3351
    %3382 = vmatpush.bf16.msra.mxu0 %v3349
    %3383 = vmatpush.bf16.msra.mxu0 %v3347
    %3384 = vmatpush.bf16.msra.mxu0 %v3345
    %3385 = vmatmul.bf16.gmra.mxu0 %v3275
    %v3386 = vpop.f32.mrf.mxu0
    %v3387 = vadd.f32 0.0, %v3386
    %v3388 = vpop.f32.mrf.mxu0
    %v3389 = vadd.f32 0.0, %v3388
    %3390 = vmatmul.bf16.gmra.mxu0 %v3276
    %v3391 = vpop.f32.mrf.mxu0
    %v3392 = vadd.f32 0.0, %v3391
    %v3393 = vpop.f32.mrf.mxu0
    %v3394 = vadd.f32 0.0, %v3393
    %3395 = vmatmul.bf16.gmra.mxu0 %v3277
    %v3396 = vpop.f32.mrf.mxu0
    %v3397 = vadd.f32 0.0, %v3396
    %v3398 = vpop.f32.mrf.mxu0
    %v3399 = vadd.f32 0.0, %v3398
    %3400 = vmatmul.bf16.gmra.mxu0 %v3278
    %v3401 = vpop.f32.mrf.mxu0
    %v3402 = vadd.f32 0.0, %v3401
    %v3403 = vpop.f32.mrf.mxu0
    %v3404 = vadd.f32 0.0, %v3403
    %3405 = vmatmul.bf16.gmra.mxu0 %v3279
    %v3406 = vpop.f32.mrf.mxu0
    %v3407 = vadd.f32 0.0, %v3406
    %v3408 = vpop.f32.mrf.mxu0
    %v3409 = vadd.f32 0.0, %v3408
    %3410 = vmatmul.bf16.gmra.mxu0 %v3280
    %v3411 = vpop.f32.mrf.mxu0
    %v3412 = vadd.f32 0.0, %v3411
    %v3413 = vpop.f32.mrf.mxu0
    %v3414 = vadd.f32 0.0, %v3413
    %3415 = vdwg.mxu0
    %3416 = vmatpush.bf16.msra.mxu0 %v3360
    %3417 = vmatpush.bf16.msra.mxu0 %v3358
    %3418 = vmatpush.bf16.msra.mxu0 %v3356
    %3419 = vmatpush.bf16.msra.mxu0 %v3354
    %3420 = vmatpush.bf16.msra.mxu0 %v3352
    %3421 = vmatpush.bf16.msra.mxu0 %v3350
    %3422 = vmatpush.bf16.msra.mxu0 %v3348
    %3423 = vmatpush.bf16.msra.mxu0 %v3346
    %3424 = vmatmul.bf16.gmra.mxu0 %v3275
    %v3425 = vpop.f32.mrf.mxu0
    %v3426 = vadd.f32 0.0, %v3425
    %v3427 = vpop.f32.mrf.mxu0
    %v3428 = vadd.f32 0.0, %v3427
    %3429 = vmatmul.bf16.gmra.mxu0 %v3276
    %v3430 = vpop.f32.mrf.mxu0
    %v3431 = vadd.f32 0.0, %v3430
    %v3432 = vpop.f32.mrf.mxu0
    %v3433 = vadd.f32 0.0, %v3432
    %3434 = vmatmul.bf16.gmra.mxu0 %v3277
    %v3435 = vpop.f32.mrf.mxu0
    %v3436 = vadd.f32 0.0, %v3435
    %v3437 = vpop.f32.mrf.mxu0
    %v3438 = vadd.f32 0.0, %v3437
    %3439 = vmatmul.bf16.gmra.mxu0 %v3278
    %v3440 = vpop.f32.mrf.mxu0
    %v3441 = vadd.f32 0.0, %v3440
    %v3442 = vpop.f32.mrf.mxu0
    %v3443 = vadd.f32 0.0, %v3442
    %3444 = vmatmul.bf16.gmra.mxu0 %v3279
    %v3445 = vpop.f32.mrf.mxu0
    %v3446 = vadd.f32 0.0, %v3445
    %v3447 = vpop.f32.mrf.mxu0
    %v3448 = vadd.f32 0.0, %v3447
    %3449 = vmatmul.bf16.gmra.mxu0 %v3280
    %v3450 = vpop.f32.mrf.mxu0
    %v3451 = vadd.f32 0.0, %v3450
    %v3452 = vpop.f32.mrf.mxu0
    %v3453 = vadd.f32 0.0, %v3452
    %3454 = vdwg.mxu0
    %v3455 = vadd.f32 %v3239, %v3387
    %v3456 = vadd.f32 %v3240, %v3426
    %v3457 = vadd.f32 %v3241, %v3389
    %v3458 = vadd.f32 %v3242, %v3428
    %v3459 = vadd.f32 %v3243, %v3392
    %v3460 = vadd.f32 %v3244, %v3431
    %v3461 = vadd.f32 %v3245, %v3394
    %v3462 = vadd.f32 %v3246, %v3433
    %v3463 = vadd.f32 %v3247, %v3397
    %v3464 = vadd.f32 %v3248, %v3436
    %v3465 = vadd.f32 %v3249, %v3399
    %v3466 = vadd.f32 %v3250, %v3438
    %v3467 = vadd.f32 %v3251, %v3402
    %v3468 = vadd.f32 %v3252, %v3441
    %v3469 = vadd.f32 %v3253, %v3404
    %v3470 = vadd.f32 %v3254, %v3443
    %v3471 = vadd.f32 %v3255, %v3407
    %v3472 = vadd.f32 %v3256, %v3446
    %v3473 = vadd.f32 %v3257, %v3409
    %v3474 = vadd.f32 %v3258, %v3448
    %v3475 = vadd.f32 %v3259, %v3412
    %v3476 = vadd.f32 %v3260, %v3451
    %v3477 = vadd.f32 %v3261, %v3414
    %v3478 = vadd.f32 %v3262, %v3453
    %v3479 = vld [vmem:[#allocation3 + $0xd] sm:$0xff]
    %v3480 = vld [vmem:[#allocation3 + $0x15] sm:$0xff]
    %v3481 = vld [vmem:[#allocation3 + $0x1d] sm:$0xff]
    %v3482 = vld [vmem:[#allocation3 + $0x25] sm:$0xff]
    %v3483 = vld [vmem:[#allocation3 + $0x2d] sm:$0xff]
    %v3484 = vld [vmem:[#allocation3 + $0x35] sm:$0xff]
    %v3485 = vld [vmem:[#allocation3 + $0x3d] sm:$0xff]
    %v3486 = vld [vmem:[#allocation3 + $0x45] sm:$0xff]
    %v3487 = vld [vmem:[#allocation3 + $0x4d] sm:$0xff]
    %v3488 = vld [vmem:[#allocation3 + $0x55] sm:$0xff]
    %v3489 = vld [vmem:[#allocation3 + $0x5d] sm:$0xff]
    %v3490 = vld [vmem:[#allocation3 + $0x65] sm:$0xff]
    %v3491 = vpack.c.bf16 %v3480, %v3479
    %v3492 = vpack.c.bf16 %v3482, %v3481
    %v3493 = vpack.c.bf16 %v3484, %v3483
    %v3494 = vpack.c.bf16 %v3486, %v3485
    %v3495 = vpack.c.bf16 %v3488, %v3487
    %v3496 = vpack.c.bf16 %v3490, %v3489
    %v3497 = vld [vmem:[#allocation9 + $0x300] sm:$0xff]
    %v3498 = vld [vmem:[#allocation9 + $0x308] sm:$0xff]
    %v3499 = vld [vmem:[#allocation9 + $0x310] sm:$0xff]
    %v3500 = vld [vmem:[#allocation9 + $0x318] sm:$0xff]
    %v3501 = vld [vmem:[#allocation9 + $0x320] sm:$0xff]
    %v3502 = vld [vmem:[#allocation9 + $0x328] sm:$0xff]
    %v3503 = vld [vmem:[#allocation9 + $0x330] sm:$0xff]
    %v3504 = vld [vmem:[#allocation9 + $0x338] sm:$0xff]
    %v3505 = vld [vmem:[#allocation9 + $0x340] sm:$0xff]
    %v3506 = vld [vmem:[#allocation9 + $0x348] sm:$0xff]
    %v3507 = vld [vmem:[#allocation9 + $0x350] sm:$0xff]
    %v3508 = vld [vmem:[#allocation9 + $0x358] sm:$0xff]
    %v3509 = vld [vmem:[#allocation9 + $0x360] sm:$0xff]
    %v3510 = vld [vmem:[#allocation9 + $0x368] sm:$0xff]
    %v3511 = vld [vmem:[#allocation9 + $0x370] sm:$0xff]
    %v3512 = vld [vmem:[#allocation9 + $0x378] sm:$0xff]
    %v3529 = vunpack.c.l.b16 %v3497
    %v3530 = vunpack.c.h.b16 %v3497
    %v3531 = vunpack.c.l.b16 %v3498
    %v3532 = vunpack.c.h.b16 %v3498
    %v3533 = vunpack.c.l.b16 %v3499
    %v3534 = vunpack.c.h.b16 %v3499
    %v3535 = vunpack.c.l.b16 %v3500
    %v3536 = vunpack.c.h.b16 %v3500
    %v3537 = vunpack.c.l.b16 %v3501
    %v3538 = vunpack.c.h.b16 %v3501
    %v3539 = vunpack.c.l.b16 %v3502
    %v3540 = vunpack.c.h.b16 %v3502
    %v3541 = vunpack.c.l.b16 %v3503
    %v3542 = vunpack.c.h.b16 %v3503
    %v3543 = vunpack.c.l.b16 %v3504
    %v3544 = vunpack.c.h.b16 %v3504
    %v3545 = vunpack.c.l.b16 %v3505
    %v3546 = vunpack.c.h.b16 %v3505
    %v3547 = vunpack.c.l.b16 %v3506
    %v3548 = vunpack.c.h.b16 %v3506
    %v3549 = vunpack.c.l.b16 %v3507
    %v3550 = vunpack.c.h.b16 %v3507
    %v3551 = vunpack.c.l.b16 %v3508
    %v3552 = vunpack.c.h.b16 %v3508
    %v3553 = vunpack.c.l.b16 %v3509
    %v3554 = vunpack.c.h.b16 %v3509
    %v3555 = vunpack.c.l.b16 %v3510
    %v3556 = vunpack.c.h.b16 %v3510
    %v3557 = vunpack.c.l.b16 %v3511
    %v3558 = vunpack.c.h.b16 %v3511
    %v3559 = vunpack.c.l.b16 %v3512
    %v3560 = vunpack.c.h.b16 %v3512
    %v3561 = vpack.c.b16 %v3531, %v3529
    %v3562 = vpack.c.b16 %v3532, %v3530
    %v3563 = vpack.c.b16 %v3535, %v3533
    %v3564 = vpack.c.b16 %v3536, %v3534
    %v3565 = vpack.c.b16 %v3539, %v3537
    %v3566 = vpack.c.b16 %v3540, %v3538
    %v3567 = vpack.c.b16 %v3543, %v3541
    %v3568 = vpack.c.b16 %v3544, %v3542
    %v3569 = vpack.c.b16 %v3547, %v3545
    %v3570 = vpack.c.b16 %v3548, %v3546
    %v3571 = vpack.c.b16 %v3551, %v3549
    %v3572 = vpack.c.b16 %v3552, %v3550
    %v3573 = vpack.c.b16 %v3555, %v3553
    %v3574 = vpack.c.b16 %v3556, %v3554
    %v3575 = vpack.c.b16 %v3559, %v3557
    %v3576 = vpack.c.b16 %v3560, %v3558
    %3593 = vmatpush.bf16.msra.mxu0 %v3575
    %3594 = vmatpush.bf16.msra.mxu0 %v3573
    %3595 = vmatpush.bf16.msra.mxu0 %v3571
    %3596 = vmatpush.bf16.msra.mxu0 %v3569
    %3597 = vmatpush.bf16.msra.mxu0 %v3567
    %3598 = vmatpush.bf16.msra.mxu0 %v3565
    %3599 = vmatpush.bf16.msra.mxu0 %v3563
    %3600 = vmatpush.bf16.msra.mxu0 %v3561
    %3601 = vmatmul.bf16.gmra.mxu0 %v3491
    %v3602 = vpop.f32.mrf.mxu0
    %v3603 = vadd.f32 0.0, %v3602
    %v3604 = vpop.f32.mrf.mxu0
    %v3605 = vadd.f32 0.0, %v3604
    %3606 = vmatmul.bf16.gmra.mxu0 %v3492
    %v3607 = vpop.f32.mrf.mxu0
    %v3608 = vadd.f32 0.0, %v3607
    %v3609 = vpop.f32.mrf.mxu0
    %v3610 = vadd.f32 0.0, %v3609
    %3611 = vmatmul.bf16.gmra.mxu0 %v3493
    %v3612 = vpop.f32.mrf.mxu0
    %v3613 = vadd.f32 0.0, %v3612
    %v3614 = vpop.f32.mrf.mxu0
    %v3615 = vadd.f32 0.0, %v3614
    %3616 = vmatmul.bf16.gmra.mxu0 %v3494
    %v3617 = vpop.f32.mrf.mxu0
    %v3618 = vadd.f32 0.0, %v3617
    %v3619 = vpop.f32.mrf.mxu0
    %v3620 = vadd.f32 0.0, %v3619
    %3621 = vmatmul.bf16.gmra.mxu0 %v3495
    %v3622 = vpop.f32.mrf.mxu0
    %v3623 = vadd.f32 0.0, %v3622
    %v3624 = vpop.f32.mrf.mxu0
    %v3625 = vadd.f32 0.0, %v3624
    %3626 = vmatmul.bf16.gmra.mxu0 %v3496
    %v3627 = vpop.f32.mrf.mxu0
    %v3628 = vadd.f32 0.0, %v3627
    %v3629 = vpop.f32.mrf.mxu0
    %v3630 = vadd.f32 0.0, %v3629
    %3631 = vdwg.mxu0
    %3632 = vmatpush.bf16.msra.mxu0 %v3576
    %3633 = vmatpush.bf16.msra.mxu0 %v3574
    %3634 = vmatpush.bf16.msra.mxu0 %v3572
    %3635 = vmatpush.bf16.msra.mxu0 %v3570
    %3636 = vmatpush.bf16.msra.mxu0 %v3568
    %3637 = vmatpush.bf16.msra.mxu0 %v3566
    %3638 = vmatpush.bf16.msra.mxu0 %v3564
    %3639 = vmatpush.bf16.msra.mxu0 %v3562
    %3640 = vmatmul.bf16.gmra.mxu0 %v3491
    %v3641 = vpop.f32.mrf.mxu0
    %v3642 = vadd.f32 0.0, %v3641
    %v3643 = vpop.f32.mrf.mxu0
    %v3644 = vadd.f32 0.0, %v3643
    %3645 = vmatmul.bf16.gmra.mxu0 %v3492
    %v3646 = vpop.f32.mrf.mxu0
    %v3647 = vadd.f32 0.0, %v3646
    %v3648 = vpop.f32.mrf.mxu0
    %v3649 = vadd.f32 0.0, %v3648
    %3650 = vmatmul.bf16.gmra.mxu0 %v3493
    %v3651 = vpop.f32.mrf.mxu0
    %v3652 = vadd.f32 0.0, %v3651
    %v3653 = vpop.f32.mrf.mxu0
    %v3654 = vadd.f32 0.0, %v3653
    %3655 = vmatmul.bf16.gmra.mxu0 %v3494
    %v3656 = vpop.f32.mrf.mxu0
    %v3657 = vadd.f32 0.0, %v3656
    %v3658 = vpop.f32.mrf.mxu0
    %v3659 = vadd.f32 0.0, %v3658
    %3660 = vmatmul.bf16.gmra.mxu0 %v3495
    %v3661 = vpop.f32.mrf.mxu0
    %v3662 = vadd.f32 0.0, %v3661
    %v3663 = vpop.f32.mrf.mxu0
    %v3664 = vadd.f32 0.0, %v3663
    %3665 = vmatmul.bf16.gmra.mxu0 %v3496
    %v3666 = vpop.f32.mrf.mxu0
    %v3667 = vadd.f32 0.0, %v3666
    %v3668 = vpop.f32.mrf.mxu0
    %v3669 = vadd.f32 0.0, %v3668
    %3670 = vdwg.mxu0
    %v3671 = vadd.f32 %v3455, %v3603
    %v3672 = vadd.f32 %v3456, %v3642
    %v3673 = vadd.f32 %v3457, %v3605
    %v3674 = vadd.f32 %v3458, %v3644
    %v3675 = vadd.f32 %v3459, %v3608
    %v3676 = vadd.f32 %v3460, %v3647
    %v3677 = vadd.f32 %v3461, %v3610
    %v3678 = vadd.f32 %v3462, %v3649
    %v3679 = vadd.f32 %v3463, %v3613
    %v3680 = vadd.f32 %v3464, %v3652
    %v3681 = vadd.f32 %v3465, %v3615
    %v3682 = vadd.f32 %v3466, %v3654
    %v3683 = vadd.f32 %v3467, %v3618
    %v3684 = vadd.f32 %v3468, %v3657
    %v3685 = vadd.f32 %v3469, %v3620
    %v3686 = vadd.f32 %v3470, %v3659
    %v3687 = vadd.f32 %v3471, %v3623
    %v3688 = vadd.f32 %v3472, %v3662
    %v3689 = vadd.f32 %v3473, %v3625
    %v3690 = vadd.f32 %v3474, %v3664
    %v3691 = vadd.f32 %v3475, %v3628
    %v3692 = vadd.f32 %v3476, %v3667
    %v3693 = vadd.f32 %v3477, %v3630
    %v3694 = vadd.f32 %v3478, %v3669
    %v3695 = vld [vmem:[#allocation3 + $0xe] sm:$0xff]
    %v3696 = vld [vmem:[#allocation3 + $0x16] sm:$0xff]
    %v3697 = vld [vmem:[#allocation3 + $0x1e] sm:$0xff]
    %v3698 = vld [vmem:[#allocation3 + $0x26] sm:$0xff]
    %v3699 = vld [vmem:[#allocation3 + $0x2e] sm:$0xff]
    %v3700 = vld [vmem:[#allocation3 + $0x36] sm:$0xff]
    %v3701 = vld [vmem:[#allocation3 + $0x3e] sm:$0xff]
    %v3702 = vld [vmem:[#allocation3 + $0x46] sm:$0xff]
    %v3703 = vld [vmem:[#allocation3 + $0x4e] sm:$0xff]
    %v3704 = vld [vmem:[#allocation3 + $0x56] sm:$0xff]
    %v3705 = vld [vmem:[#allocation3 + $0x5e] sm:$0xff]
    %v3706 = vld [vmem:[#allocation3 + $0x66] sm:$0xff]
    %v3707 = vpack.c.bf16 %v3696, %v3695
    %v3708 = vpack.c.bf16 %v3698, %v3697
    %v3709 = vpack.c.bf16 %v3700, %v3699
    %v3710 = vpack.c.bf16 %v3702, %v3701
    %v3711 = vpack.c.bf16 %v3704, %v3703
    %v3712 = vpack.c.bf16 %v3706, %v3705
    %v3713 = vld [vmem:[#allocation9 + $0x380] sm:$0xff]
    %v3714 = vld [vmem:[#allocation9 + $0x388] sm:$0xff]
    %v3715 = vld [vmem:[#allocation9 + $0x390] sm:$0xff]
    %v3716 = vld [vmem:[#allocation9 + $0x398] sm:$0xff]
    %v3717 = vld [vmem:[#allocation9 + $0x3a0] sm:$0xff]
    %v3718 = vld [vmem:[#allocation9 + $0x3a8] sm:$0xff]
    %v3719 = vld [vmem:[#allocation9 + $0x3b0] sm:$0xff]
    %v3720 = vld [vmem:[#allocation9 + $0x3b8] sm:$0xff]
    %v3721 = vld [vmem:[#allocation9 + $0x3c0] sm:$0xff]
    %v3722 = vld [vmem:[#allocation9 + $0x3c8] sm:$0xff]
    %v3723 = vld [vmem:[#allocation9 + $0x3d0] sm:$0xff]
    %v3724 = vld [vmem:[#allocation9 + $0x3d8] sm:$0xff]
    %v3725 = vld [vmem:[#allocation9 + $0x3e0] sm:$0xff]
    %v3726 = vld [vmem:[#allocation9 + $0x3e8] sm:$0xff]
    %v3727 = vld [vmem:[#allocation9 + $0x3f0] sm:$0xff]
    %v3728 = vld [vmem:[#allocation9 + $0x3f8] sm:$0xff]
    %v3745 = vunpack.c.l.b16 %v3713
    %v3746 = vunpack.c.h.b16 %v3713
    %v3747 = vunpack.c.l.b16 %v3714
    %v3748 = vunpack.c.h.b16 %v3714
    %v3749 = vunpack.c.l.b16 %v3715
    %v3750 = vunpack.c.h.b16 %v3715
    %v3751 = vunpack.c.l.b16 %v3716
    %v3752 = vunpack.c.h.b16 %v3716
    %v3753 = vunpack.c.l.b16 %v3717
    %v3754 = vunpack.c.h.b16 %v3717
    %v3755 = vunpack.c.l.b16 %v3718
    %v3756 = vunpack.c.h.b16 %v3718
    %v3757 = vunpack.c.l.b16 %v3719
    %v3758 = vunpack.c.h.b16 %v3719
    %v3759 = vunpack.c.l.b16 %v3720
    %v3760 = vunpack.c.h.b16 %v3720
    %v3761 = vunpack.c.l.b16 %v3721
    %v3762 = vunpack.c.h.b16 %v3721
    %v3763 = vunpack.c.l.b16 %v3722
    %v3764 = vunpack.c.h.b16 %v3722
    %v3765 = vunpack.c.l.b16 %v3723
    %v3766 = vunpack.c.h.b16 %v3723
    %v3767 = vunpack.c.l.b16 %v3724
    %v3768 = vunpack.c.h.b16 %v3724
    %v3769 = vunpack.c.l.b16 %v3725
    %v3770 = vunpack.c.h.b16 %v3725
    %v3771 = vunpack.c.l.b16 %v3726
    %v3772 = vunpack.c.h.b16 %v3726
    %v3773 = vunpack.c.l.b16 %v3727
    %v3774 = vunpack.c.h.b16 %v3727
    %v3775 = vunpack.c.l.b16 %v3728
    %v3776 = vunpack.c.h.b16 %v3728
    %v3777 = vpack.c.b16 %v3747, %v3745
    %v3778 = vpack.c.b16 %v3748, %v3746
    %v3779 = vpack.c.b16 %v3751, %v3749
    %v3780 = vpack.c.b16 %v3752, %v3750
    %v3781 = vpack.c.b16 %v3755, %v3753
    %v3782 = vpack.c.b16 %v3756, %v3754
    %v3783 = vpack.c.b16 %v3759, %v3757
    %v3784 = vpack.c.b16 %v3760, %v3758
    %v3785 = vpack.c.b16 %v3763, %v3761
    %v3786 = vpack.c.b16 %v3764, %v3762
    %v3787 = vpack.c.b16 %v3767, %v3765
    %v3788 = vpack.c.b16 %v3768, %v3766
    %v3789 = vpack.c.b16 %v3771, %v3769
    %v3790 = vpack.c.b16 %v3772, %v3770
    %v3791 = vpack.c.b16 %v3775, %v3773
    %v3792 = vpack.c.b16 %v3776, %v3774
    %3809 = vmatpush.bf16.msra.mxu0 %v3791
    %3810 = vmatpush.bf16.msra.mxu0 %v3789
    %3811 = vmatpush.bf16.msra.mxu0 %v3787
    %3812 = vmatpush.bf16.msra.mxu0 %v3785
    %3813 = vmatpush.bf16.msra.mxu0 %v3783
    %3814 = vmatpush.bf16.msra.mxu0 %v3781
    %3815 = vmatpush.bf16.msra.mxu0 %v3779
    %3816 = vmatpush.bf16.msra.mxu0 %v3777
    %3817 = vmatmul.bf16.gmra.mxu0 %v3707
    %v3818 = vpop.f32.mrf.mxu0
    %v3819 = vadd.f32 0.0, %v3818
    %v3820 = vpop.f32.mrf.mxu0
    %v3821 = vadd.f32 0.0, %v3820
    %3822 = vmatmul.bf16.gmra.mxu0 %v3708
    %v3823 = vpop.f32.mrf.mxu0
    %v3824 = vadd.f32 0.0, %v3823
    %v3825 = vpop.f32.mrf.mxu0
    %v3826 = vadd.f32 0.0, %v3825
    %3827 = vmatmul.bf16.gmra.mxu0 %v3709
    %v3828 = vpop.f32.mrf.mxu0
    %v3829 = vadd.f32 0.0, %v3828
    %v3830 = vpop.f32.mrf.mxu0
    %v3831 = vadd.f32 0.0, %v3830
    %3832 = vmatmul.bf16.gmra.mxu0 %v3710
    %v3833 = vpop.f32.mrf.mxu0
    %v3834 = vadd.f32 0.0, %v3833
    %v3835 = vpop.f32.mrf.mxu0
    %v3836 = vadd.f32 0.0, %v3835
    %3837 = vmatmul.bf16.gmra.mxu0 %v3711
    %v3838 = vpop.f32.mrf.mxu0
    %v3839 = vadd.f32 0.0, %v3838
    %v3840 = vpop.f32.mrf.mxu0
    %v3841 = vadd.f32 0.0, %v3840
    %3842 = vmatmul.bf16.gmra.mxu0 %v3712
    %v3843 = vpop.f32.mrf.mxu0
    %v3844 = vadd.f32 0.0, %v3843
    %v3845 = vpop.f32.mrf.mxu0
    %v3846 = vadd.f32 0.0, %v3845
    %3847 = vdwg.mxu0
    %3848 = vmatpush.bf16.msra.mxu0 %v3792
    %3849 = vmatpush.bf16.msra.mxu0 %v3790
    %3850 = vmatpush.bf16.msra.mxu0 %v3788
    %3851 = vmatpush.bf16.msra.mxu0 %v3786
    %3852 = vmatpush.bf16.msra.mxu0 %v3784
    %3853 = vmatpush.bf16.msra.mxu0 %v3782
    %3854 = vmatpush.bf16.msra.mxu0 %v3780
    %3855 = vmatpush.bf16.msra.mxu0 %v3778
    %3856 = vmatmul.bf16.gmra.mxu0 %v3707
    %v3857 = vpop.f32.mrf.mxu0
    %v3858 = vadd.f32 0.0, %v3857
    %v3859 = vpop.f32.mrf.mxu0
    %v3860 = vadd.f32 0.0, %v3859
    %3861 = vmatmul.bf16.gmra.mxu0 %v3708
    %v3862 = vpop.f32.mrf.mxu0
    %v3863 = vadd.f32 0.0, %v3862
    %v3864 = vpop.f32.mrf.mxu0
    %v3865 = vadd.f32 0.0, %v3864
    %3866 = vmatmul.bf16.gmra.mxu0 %v3709
    %v3867 = vpop.f32.mrf.mxu0
    %v3868 = vadd.f32 0.0, %v3867
    %v3869 = vpop.f32.mrf.mxu0
    %v3870 = vadd.f32 0.0, %v3869
    %3871 = vmatmul.bf16.gmra.mxu0 %v3710
    %v3872 = vpop.f32.mrf.mxu0
    %v3873 = vadd.f32 0.0, %v3872
    %v3874 = vpop.f32.mrf.mxu0
    %v3875 = vadd.f32 0.0, %v3874
    %3876 = vmatmul.bf16.gmra.mxu0 %v3711
    %v3877 = vpop.f32.mrf.mxu0
    %v3878 = vadd.f32 0.0, %v3877
    %v3879 = vpop.f32.mrf.mxu0
    %v3880 = vadd.f32 0.0, %v3879
    %3881 = vmatmul.bf16.gmra.mxu0 %v3712
    %v3882 = vpop.f32.mrf.mxu0
    %v3883 = vadd.f32 0.0, %v3882
    %v3884 = vpop.f32.mrf.mxu0
    %v3885 = vadd.f32 0.0, %v3884
    %3886 = vdwg.mxu0
    %v3887 = vadd.f32 %v3671, %v3819
    %v3888 = vadd.f32 %v3672, %v3858
    %v3889 = vadd.f32 %v3673, %v3821
    %v3890 = vadd.f32 %v3674, %v3860
    %v3891 = vadd.f32 %v3675, %v3824
    %v3892 = vadd.f32 %v3676, %v3863
    %v3893 = vadd.f32 %v3677, %v3826
    %v3894 = vadd.f32 %v3678, %v3865
    %v3895 = vadd.f32 %v3679, %v3829
    %v3896 = vadd.f32 %v3680, %v3868
    %v3897 = vadd.f32 %v3681, %v3831
    %v3898 = vadd.f32 %v3682, %v3870
    %v3899 = vadd.f32 %v3683, %v3834
    %v3900 = vadd.f32 %v3684, %v3873
    %v3901 = vadd.f32 %v3685, %v3836
    %v3902 = vadd.f32 %v3686, %v3875
    %v3903 = vadd.f32 %v3687, %v3839
    %v3904 = vadd.f32 %v3688, %v3878
    %v3905 = vadd.f32 %v3689, %v3841
    %v3906 = vadd.f32 %v3690, %v3880
    %v3907 = vadd.f32 %v3691, %v3844
    %v3908 = vadd.f32 %v3692, %v3883
    %v3909 = vadd.f32 %v3693, %v3846
    %v3910 = vadd.f32 %v3694, %v3885
    %v3911 = vld [vmem:[#allocation3 + $0xf] sm:$0xff]
    %v3912 = vld [vmem:[#allocation3 + $0x17] sm:$0xff]
    %v3913 = vld [vmem:[#allocation3 + $0x1f] sm:$0xff]
    %v3914 = vld [vmem:[#allocation3 + $0x27] sm:$0xff]
    %v3915 = vld [vmem:[#allocation3 + $0x2f] sm:$0xff]
    %v3916 = vld [vmem:[#allocation3 + $0x37] sm:$0xff]
    %v3917 = vld [vmem:[#allocation3 + $0x3f] sm:$0xff]
    %v3918 = vld [vmem:[#allocation3 + $0x47] sm:$0xff]
    %v3919 = vld [vmem:[#allocation3 + $0x4f] sm:$0xff]
    %v3920 = vld [vmem:[#allocation3 + $0x57] sm:$0xff]
    %v3921 = vld [vmem:[#allocation3 + $0x5f] sm:$0xff]
    %v3922 = vld [vmem:[#allocation3 + $0x67] sm:$0xff]
    %v3923 = vpack.c.bf16 %v3912, %v3911
    %v3924 = vpack.c.bf16 %v3914, %v3913
    %v3925 = vpack.c.bf16 %v3916, %v3915
    %v3926 = vpack.c.bf16 %v3918, %v3917
    %v3927 = vpack.c.bf16 %v3920, %v3919
    %v3928 = vpack.c.bf16 %v3922, %v3921
    %v3929 = vld [vmem:[#allocation9 + $0x400] sm:$0xff]
    %v3930 = vld [vmem:[#allocation9 + $0x408] sm:$0xff]
    %v3931 = vld [vmem:[#allocation9 + $0x410] sm:$0xff]
    %v3932 = vld [vmem:[#allocation9 + $0x418] sm:$0xff]
    %v3933 = vld [vmem:[#allocation9 + $0x420] sm:$0xff]
    %v3934 = vld [vmem:[#allocation9 + $0x428] sm:$0xff]
    %v3935 = vld [vmem:[#allocation9 + $0x430] sm:$0xff]
    %v3936 = vld [vmem:[#allocation9 + $0x438] sm:$0xff]
    %v3937 = vld [vmem:[#allocation9 + $0x440] sm:$0xff]
    %v3938 = vld [vmem:[#allocation9 + $0x448] sm:$0xff]
    %v3939 = vld [vmem:[#allocation9 + $0x450] sm:$0xff]
    %v3940 = vld [vmem:[#allocation9 + $0x458] sm:$0xff]
    %v3941 = vld [vmem:[#allocation9 + $0x460] sm:$0xff]
    %v3942 = vld [vmem:[#allocation9 + $0x468] sm:$0xff]
    %v3943 = vld [vmem:[#allocation9 + $0x470] sm:$0xff]
    %v3944 = vld [vmem:[#allocation9 + $0x478] sm:$0xff]
    %v3961 = vunpack.c.l.b16 %v3929
    %v3962 = vunpack.c.h.b16 %v3929
    %v3963 = vunpack.c.l.b16 %v3930
    %v3964 = vunpack.c.h.b16 %v3930
    %v3965 = vunpack.c.l.b16 %v3931
    %v3966 = vunpack.c.h.b16 %v3931
    %v3967 = vunpack.c.l.b16 %v3932
    %v3968 = vunpack.c.h.b16 %v3932
    %v3969 = vunpack.c.l.b16 %v3933
    %v3970 = vunpack.c.h.b16 %v3933
    %v3971 = vunpack.c.l.b16 %v3934
    %v3972 = vunpack.c.h.b16 %v3934
    %v3973 = vunpack.c.l.b16 %v3935
    %v3974 = vunpack.c.h.b16 %v3935
    %v3975 = vunpack.c.l.b16 %v3936
    %v3976 = vunpack.c.h.b16 %v3936
    %v3977 = vunpack.c.l.b16 %v3937
    %v3978 = vunpack.c.h.b16 %v3937
    %v3979 = vunpack.c.l.b16 %v3938
    %v3980 = vunpack.c.h.b16 %v3938
    %v3981 = vunpack.c.l.b16 %v3939
    %v3982 = vunpack.c.h.b16 %v3939
    %v3983 = vunpack.c.l.b16 %v3940
    %v3984 = vunpack.c.h.b16 %v3940
    %v3985 = vunpack.c.l.b16 %v3941
    %v3986 = vunpack.c.h.b16 %v3941
    %v3987 = vunpack.c.l.b16 %v3942
    %v3988 = vunpack.c.h.b16 %v3942
    %v3989 = vunpack.c.l.b16 %v3943
    %v3990 = vunpack.c.h.b16 %v3943
    %v3991 = vunpack.c.l.b16 %v3944
    %v3992 = vunpack.c.h.b16 %v3944
    %v3993 = vpack.c.b16 %v3963, %v3961
    %v3994 = vpack.c.b16 %v3964, %v3962
    %v3995 = vpack.c.b16 %v3967, %v3965
    %v3996 = vpack.c.b16 %v3968, %v3966
    %v3997 = vpack.c.b16 %v3971, %v3969
    %v3998 = vpack.c.b16 %v3972, %v3970
    %v3999 = vpack.c.b16 %v3975, %v3973
    %v4000 = vpack.c.b16 %v3976, %v3974
    %v4001 = vpack.c.b16 %v3979, %v3977
    %v4002 = vpack.c.b16 %v3980, %v3978
    %v4003 = vpack.c.b16 %v3983, %v3981
    %v4004 = vpack.c.b16 %v3984, %v3982
    %v4005 = vpack.c.b16 %v3987, %v3985
    %v4006 = vpack.c.b16 %v3988, %v3986
    %v4007 = vpack.c.b16 %v3991, %v3989
    %v4008 = vpack.c.b16 %v3992, %v3990
    %4025 = vmatpush.bf16.msra.mxu0 %v4007
    %4026 = vmatpush.bf16.msra.mxu0 %v4005
    %4027 = vmatpush.bf16.msra.mxu0 %v4003
    %4028 = vmatpush.bf16.msra.mxu0 %v4001
    %4029 = vmatpush.bf16.msra.mxu0 %v3999
    %4030 = vmatpush.bf16.msra.mxu0 %v3997
    %4031 = vmatpush.bf16.msra.mxu0 %v3995
    %4032 = vmatpush.bf16.msra.mxu0 %v3993
    %4033 = vmatmul.bf16.gmra.mxu0 %v3923
    %v4034 = vpop.f32.mrf.mxu0
    %v4035 = vadd.f32 0.0, %v4034
    %v4036 = vpop.f32.mrf.mxu0
    %v4037 = vadd.f32 0.0, %v4036
    %4038 = vmatmul.bf16.gmra.mxu0 %v3924
    %v4039 = vpop.f32.mrf.mxu0
    %v4040 = vadd.f32 0.0, %v4039
    %v4041 = vpop.f32.mrf.mxu0
    %v4042 = vadd.f32 0.0, %v4041
    %4043 = vmatmul.bf16.gmra.mxu0 %v3925
    %v4044 = vpop.f32.mrf.mxu0
    %v4045 = vadd.f32 0.0, %v4044
    %v4046 = vpop.f32.mrf.mxu0
    %v4047 = vadd.f32 0.0, %v4046
    %4048 = vmatmul.bf16.gmra.mxu0 %v3926
    %v4049 = vpop.f32.mrf.mxu0
    %v4050 = vadd.f32 0.0, %v4049
    %v4051 = vpop.f32.mrf.mxu0
    %v4052 = vadd.f32 0.0, %v4051
    %4053 = vmatmul.bf16.gmra.mxu0 %v3927
    %v4054 = vpop.f32.mrf.mxu0
    %v4055 = vadd.f32 0.0, %v4054
    %v4056 = vpop.f32.mrf.mxu0
    %v4057 = vadd.f32 0.0, %v4056
    %4058 = vmatmul.bf16.gmra.mxu0 %v3928
    %v4059 = vpop.f32.mrf.mxu0
    %v4060 = vadd.f32 0.0, %v4059
    %v4061 = vpop.f32.mrf.mxu0
    %v4062 = vadd.f32 0.0, %v4061
    %4063 = vdwg.mxu0
    %4064 = vmatpush.bf16.msra.mxu0 %v4008
    %4065 = vmatpush.bf16.msra.mxu0 %v4006
    %4066 = vmatpush.bf16.msra.mxu0 %v4004
    %4067 = vmatpush.bf16.msra.mxu0 %v4002
    %4068 = vmatpush.bf16.msra.mxu0 %v4000
    %4069 = vmatpush.bf16.msra.mxu0 %v3998
    %4070 = vmatpush.bf16.msra.mxu0 %v3996
    %4071 = vmatpush.bf16.msra.mxu0 %v3994
    %4072 = vmatmul.bf16.gmra.mxu0 %v3923
    %v4073 = vpop.f32.mrf.mxu0
    %v4074 = vadd.f32 0.0, %v4073
    %v4075 = vpop.f32.mrf.mxu0
    %v4076 = vadd.f32 0.0, %v4075
    %4077 = vmatmul.bf16.gmra.mxu0 %v3924
    %v4078 = vpop.f32.mrf.mxu0
    %v4079 = vadd.f32 0.0, %v4078
    %v4080 = vpop.f32.mrf.mxu0
    %v4081 = vadd.f32 0.0, %v4080
    %4082 = vmatmul.bf16.gmra.mxu0 %v3925
    %v4083 = vpop.f32.mrf.mxu0
    %v4084 = vadd.f32 0.0, %v4083
    %v4085 = vpop.f32.mrf.mxu0
    %v4086 = vadd.f32 0.0, %v4085
    %4087 = vmatmul.bf16.gmra.mxu0 %v3926
    %v4088 = vpop.f32.mrf.mxu0
    %v4089 = vadd.f32 0.0, %v4088
    %v4090 = vpop.f32.mrf.mxu0
    %v4091 = vadd.f32 0.0, %v4090
    %4092 = vmatmul.bf16.gmra.mxu0 %v3927
    %v4093 = vpop.f32.mrf.mxu0
    %v4094 = vadd.f32 0.0, %v4093
    %v4095 = vpop.f32.mrf.mxu0
    %v4096 = vadd.f32 0.0, %v4095
    %4097 = vmatmul.bf16.gmra.mxu0 %v3928
    %v4098 = vpop.f32.mrf.mxu0
    %v4099 = vadd.f32 0.0, %v4098
    %v4100 = vpop.f32.mrf.mxu0
    %v4101 = vadd.f32 0.0, %v4100
    %4102 = vdwg.mxu0
    %v4103 = vadd.f32 %v3887, %v4035
    %v4104 = vadd.f32 %v3888, %v4074
    %v4105 = vadd.f32 %v3889, %v4037
    %v4106 = vadd.f32 %v3890, %v4076
    %v4107 = vadd.f32 %v3891, %v4040
    %v4108 = vadd.f32 %v3892, %v4079
    %v4109 = vadd.f32 %v3893, %v4042
    %v4110 = vadd.f32 %v3894, %v4081
    %v4111 = vadd.f32 %v3895, %v4045
    %v4112 = vadd.f32 %v3896, %v4084
    %v4113 = vadd.f32 %v3897, %v4047
    %v4114 = vadd.f32 %v3898, %v4086
    %v4115 = vadd.f32 %v3899, %v4050
    %v4116 = vadd.f32 %v3900, %v4089
    %v4117 = vadd.f32 %v3901, %v4052
    %v4118 = vadd.f32 %v3902, %v4091
    %v4119 = vadd.f32 %v3903, %v4055
    %v4120 = vadd.f32 %v3904, %v4094
    %v4121 = vadd.f32 %v3905, %v4057
    %v4122 = vadd.f32 %v3906, %v4096
    %v4123 = vadd.f32 %v3907, %v4060
    %v4124 = vadd.f32 %v3908, %v4099
    %v4125 = vadd.f32 %v3909, %v4062
    %v4126 = vadd.f32 %v3910, %v4101
    %s4127 = scalar_lea.vmem [#allocation11], 2
    %v4128 = vld [vmem:[%s4127] ss:$8 sm:$0x3]
    %v4130 = vperm.slane %v4128, 0
    %v4131 = vperm.slane %v4128, 1
    %v4134 = vadd.f32 %v4103, %v4130
    %v4135 = vadd.f32 %v4104, %v4131
    %v4136 = vadd.f32 %v4105, %v4130
    %v4137 = vadd.f32 %v4106, %v4131
    %v4138 = vadd.f32 %v4107, %v4130
    %v4139 = vadd.f32 %v4108, %v4131
    %v4140 = vadd.f32 %v4109, %v4130
    %v4141 = vadd.f32 %v4110, %v4131
    %v4142 = vadd.f32 %v4111, %v4130
    %v4143 = vadd.f32 %v4112, %v4131
    %v4144 = vadd.f32 %v4113, %v4130
    %v4145 = vadd.f32 %v4114, %v4131
    %v4146 = vadd.f32 %v4115, %v4130
    %v4147 = vadd.f32 %v4116, %v4131
    %v4148 = vadd.f32 %v4117, %v4130
    %v4149 = vadd.f32 %v4118, %v4131
    %v4150 = vadd.f32 %v4119, %v4130
    %v4151 = vadd.f32 %v4120, %v4131
    %v4152 = vadd.f32 %v4121, %v4130
    %v4153 = vadd.f32 %v4122, %v4131
    %v4154 = vadd.f32 %v4123, %v4130
    %v4155 = vadd.f32 %v4124, %v4131
    %v4156 = vadd.f32 %v4125, %v4130
    %v4157 = vadd.f32 %v4126, %v4131
    %v4158 = vmul.f32 %v4134, %v261
    %v4159 = vmul.f32 %v4135, %v261
    %v4160 = vmul.f32 %v4136, %v262
    %v4161 = vmul.f32 %v4137, %v262
    %v4162 = vmul.f32 %v4138, %v263
    %v4163 = vmul.f32 %v4139, %v263
    %v4164 = vmul.f32 %v4140, %v264
    %v4165 = vmul.f32 %v4141, %v264
    %v4166 = vmul.f32 %v4142, %v265
    %v4167 = vmul.f32 %v4143, %v265
    %v4168 = vmul.f32 %v4144, %v266
    %v4169 = vmul.f32 %v4145, %v266
    %v4170 = vmul.f32 %v4146, %v267
    %v4171 = vmul.f32 %v4147, %v267
    %v4172 = vmul.f32 %v4148, %v268
    %v4173 = vmul.f32 %v4149, %v268
    %v4174 = vmul.f32 %v4150, %v269
    %v4175 = vmul.f32 %v4151, %v269
    %v4176 = vmul.f32 %v4152, %v270
    %v4177 = vmul.f32 %v4153, %v270
    %v4178 = vmul.f32 %v4154, %v271
    %v4179 = vmul.f32 %v4155, %v271
    %v4180 = vmul.f32 %v4156, %v272
    %v4181 = vmul.f32 %v4157, %v272
    %4182 = vst [vmem:[#allocation4] sm:$0xff] 0.0
    %4183 = vst [vmem:[#allocation4 + $0x8] sm:$0xff] 0.0
    %4184 = vst [vmem:[#allocation4 + $0xd0] sm:$0xff] 0.0
    %4185 = vst [vmem:[#allocation4 + $0xd8] sm:$0xff] 0.0
    %4186 = vst [vmem:[#allocation4 + $0x10] sm:$0xff] %v4158
    %4187 = vst [vmem:[#allocation4 + $0x18] sm:$0xff] %v4159
    %4188 = vst [vmem:[#allocation4 + $0x20] sm:$0xff] %v4160
    %4189 = vst [vmem:[#allocation4 + $0x28] sm:$0xff] %v4161
    %4190 = vst [vmem:[#allocation4 + $0x30] sm:$0xff] %v4162
    %4191 = vst [vmem:[#allocation4 + $0x38] sm:$0xff] %v4163
    %4192 = vst [vmem:[#allocation4 + $0x40] sm:$0xff] %v4164
    %4193 = vst [vmem:[#allocation4 + $0x48] sm:$0xff] %v4165
    %4194 = vst [vmem:[#allocation4 + $0x50] sm:$0xff] %v4166
    %4195 = vst [vmem:[#allocation4 + $0x58] sm:$0xff] %v4167
    %4196 = vst [vmem:[#allocation4 + $0x60] sm:$0xff] %v4168
    %4197 = vst [vmem:[#allocation4 + $0x68] sm:$0xff] %v4169
    %4198 = vst [vmem:[#allocation4 + $0x70] sm:$0xff] %v4170
    %4199 = vst [vmem:[#allocation4 + $0x78] sm:$0xff] %v4171
    %4200 = vst [vmem:[#allocation4 + $0x80] sm:$0xff] %v4172
    %4201 = vst [vmem:[#allocation4 + $0x88] sm:$0xff] %v4173
    %4202 = vst [vmem:[#allocation4 + $0x90] sm:$0xff] %v4174
    %4203 = vst [vmem:[#allocation4 + $0x98] sm:$0xff] %v4175
    %4204 = vst [vmem:[#allocation4 + $0xa0] sm:$0xff] %v4176
    %4205 = vst [vmem:[#allocation4 + $0xa8] sm:$0xff] %v4177
    %4206 = vst [vmem:[#allocation4 + $0xb0] sm:$0xff] %v4178
    %4207 = vst [vmem:[#allocation4 + $0xb8] sm:$0xff] %v4179
    %4208 = vst [vmem:[#allocation4 + $0xc0] sm:$0xff] %v4180
    %4209 = vst [vmem:[#allocation4 + $0xc8] sm:$0xff] %v4181
    %s4210 = smul.u32 4, 288
    %s4211 = smul.u32 %s4210, 2
    %s4212 = sshll.u32 %s4211, 4
    %4213 = dma.done [#allocation6], %s4212
    %v4214 = vld [vmem:[#allocation4] sm:$0xfe]
    %v4215 = vld [vmem:[#allocation4 + $0x8] sm:$0xfe]
    %v4216 = vld [vmem:[#allocation4 + $0x10] sm:$0xff]
    %v4217 = vld [vmem:[#allocation4 + $0x18] sm:$0xff]
    %v4218 = vld [vmem:[#allocation4 + $0x20] sm:$0xff]
    %v4219 = vld [vmem:[#allocation4 + $0x28] sm:$0xff]
    %v4220 = vld [vmem:[#allocation4 + $0x30] sm:$0xff]
    %v4221 = vld [vmem:[#allocation4 + $0x38] sm:$0xff]
    %v4222 = vld [vmem:[#allocation4 + $0x40] sm:$0xff]
    %v4223 = vld [vmem:[#allocation4 + $0x48] sm:$0xff]
    %v4224 = vld [vmem:[#allocation4 + $0x50] sm:$0xff]
    %v4225 = vld [vmem:[#allocation4 + $0x58] sm:$0xff]
    %v4226 = vld [vmem:[#allocation4 + $0x60] sm:$0xff]
    %v4227 = vld [vmem:[#allocation4 + $0x68] sm:$0xff]
    %v4228 = vld [vmem:[#allocation4 + $0x70] sm:$0xff]
    %v4229 = vld [vmem:[#allocation4 + $0x78] sm:$0xff]
    %v4230 = vld [vmem:[#allocation4 + $0x80] sm:$0xff]
    %v4231 = vld [vmem:[#allocation4 + $0x88] sm:$0xff]
    %v4232 = vld [vmem:[#allocation4 + $0x90] sm:$0xff]
    %v4233 = vld [vmem:[#allocation4 + $0x98] sm:$0xff]
    %v4234 = vld [vmem:[#allocation4 + $0xa0] sm:$0xff]
    %v4235 = vld [vmem:[#allocation4 + $0xa8] sm:$0xff]
    %v4236 = vld [vmem:[#allocation4 + $0xb0] sm:$0xff]
    %v4237 = vld [vmem:[#allocation4 + $0xb8] sm:$0xff]
    %v4238 = vld [vmem:[#allocation4 + $0xc0] sm:$0x1]
    %v4239 = vld [vmem:[#allocation4 + $0xc8] sm:$0x1]
    %v4240 = vpack.c.bf16 %v4216, %v4214
    %v4241 = vpack.c.bf16 %v4217, %v4215
    %v4242 = vpack.c.bf16 %v4220, %v4218
    %v4243 = vpack.c.bf16 %v4221, %v4219
    %v4244 = vpack.c.bf16 %v4224, %v4222
    %v4245 = vpack.c.bf16 %v4225, %v4223
    %v4246 = vpack.c.bf16 %v4228, %v4226
    %v4247 = vpack.c.bf16 %v4229, %v4227
    %v4248 = vpack.c.bf16 %v4232, %v4230
    %v4249 = vpack.c.bf16 %v4233, %v4231
    %v4250 = vpack.c.bf16 %v4236, %v4234
    %v4251 = vpack.c.bf16 %v4237, %v4235
    %v4252 = vpack.c.bf16 %v4238, %v4238
    %v4253 = vpack.c.bf16 %v4239, %v4239
    %v4254 = vld [vmem:[#allocation5] sm:$0xff]
    %v4255 = vld [vmem:[#allocation5 + $0x8] sm:$0xff]
    %v4256 = vld [vmem:[#allocation5 + $0x10] sm:$0xff]
    %v4257 = vld [vmem:[#allocation5 + $0x18] sm:$0xff]
    %v4258 = vld [vmem:[#allocation5 + $0x20] sm:$0xff]
    %v4259 = vld [vmem:[#allocation5 + $0x28] sm:$0xff]
    %v4260 = vld [vmem:[#allocation5 + $0x30] sm:$0xff]
    %v4261 = vld [vmem:[#allocation5 + $0x38] sm:$0xff]
    %v4262 = vld [vmem:[#allocation5 + $0x40] sm:$0xff]
    %v4263 = vld [vmem:[#allocation5 + $0x48] sm:$0xff]
    %v4264 = vld [vmem:[#allocation5 + $0x50] sm:$0xff]
    %v4265 = vld [vmem:[#allocation5 + $0x58] sm:$0xff]
    %v4266 = vld [vmem:[#allocation5 + $0x60] sm:$0xff]
    %v4267 = vld [vmem:[#allocation5 + $0x68] sm:$0xff]
    %v4268 = vld [vmem:[#allocation5 + $0x70] sm:$0xff]
    %v4269 = vld [vmem:[#allocation5 + $0x78] sm:$0xff]
    %v4270 = vld [vmem:[#allocation5 + $0x80] sm:$0xff]
    %v4271 = vld [vmem:[#allocation5 + $0x88] sm:$0xff]
    %v4272 = vld [vmem:[#allocation5 + $0x90] sm:$0xff]
    %v4273 = vld [vmem:[#allocation5 + $0x98] sm:$0xff]
    %v4274 = vld [vmem:[#allocation5 + $0xa0] sm:$0xff]
    %v4275 = vld [vmem:[#allocation5 + $0xa8] sm:$0xff]
    %v4276 = vld [vmem:[#allocation5 + $0xb0] sm:$0xff]
    %v4277 = vld [vmem:[#allocation5 + $0xb8] sm:$0xff]
    %v4278 = vld [vmem:[#allocation5 + $0xc0] sm:$0xff]
    %v4279 = vld [vmem:[#allocation5 + $0xc8] sm:$0xff]
    %v4280 = vld [vmem:[#allocation5 + $0xd0] sm:$0xff]
    %v4281 = vld [vmem:[#allocation5 + $0xd8] sm:$0xff]
    %v4282 = vld [vmem:[#allocation5 + $0xe0] sm:$0xff]
    %v4283 = vld [vmem:[#allocation5 + $0xe8] sm:$0xff]
    %v4284 = vld [vmem:[#allocation5 + $0xf0] sm:$0xff]
    %v4285 = vld [vmem:[#allocation5 + $0xf8] sm:$0xff]
    %v4286 = vld [vmem:[#allocation4] sm:$0xfc]
    %v4287 = vld [vmem:[#allocation4 + $0x8] sm:$0xfc]
    %v4288 = vld [vmem:[#allocation4 + $0xc0] sm:$0x3]
    %v4289 = vld [vmem:[#allocation4 + $0xc8] sm:$0x3]
    %v4290 = vpack.c.bf16 %v4216, %v4286
    %v4291 = vpack.c.bf16 %v4217, %v4287
    %v4292 = vpack.c.bf16 %v4288, %v4288
    %v4293 = vpack.c.bf16 %v4289, %v4289
    %v4294 = vld [vmem:[#allocation5 + $0x100] sm:$0xff]
    %v4295 = vld [vmem:[#allocation5 + $0x108] sm:$0xff]
    %v4296 = vld [vmem:[#allocation5 + $0x110] sm:$0xff]
    %v4297 = vld [vmem:[#allocation5 + $0x118] sm:$0xff]
    %v4298 = vld [vmem:[#allocation5 + $0x120] sm:$0xff]
    %v4299 = vld [vmem:[#allocation5 + $0x128] sm:$0xff]
    %v4300 = vld [vmem:[#allocation5 + $0x130] sm:$0xff]
    %v4301 = vld [vmem:[#allocation5 + $0x138] sm:$0xff]
    %v4302 = vld [vmem:[#allocation5 + $0x140] sm:$0xff]
    %v4303 = vld [vmem:[#allocation5 + $0x148] sm:$0xff]
    %v4304 = vld [vmem:[#allocation5 + $0x150] sm:$0xff]
    %v4305 = vld [vmem:[#allocation5 + $0x158] sm:$0xff]
    %v4306 = vld [vmem:[#allocation5 + $0x160] sm:$0xff]
    %v4307 = vld [vmem:[#allocation5 + $0x168] sm:$0xff]
    %v4308 = vld [vmem:[#allocation5 + $0x170] sm:$0xff]
    %v4309 = vld [vmem:[#allocation5 + $0x178] sm:$0xff]
    %v4310 = vld [vmem:[#allocation5 + $0x180] sm:$0xff]
    %v4311 = vld [vmem:[#allocation5 + $0x188] sm:$0xff]
    %v4312 = vld [vmem:[#allocation5 + $0x190] sm:$0xff]
    %v4313 = vld [vmem:[#allocation5 + $0x198] sm:$0xff]
    %v4314 = vld [vmem:[#allocation5 + $0x1a0] sm:$0xff]
    %v4315 = vld [vmem:[#allocation5 + $0x1a8] sm:$0xff]
    %v4316 = vld [vmem:[#allocation5 + $0x1b0] sm:$0xff]
    %v4317 = vld [vmem:[#allocation5 + $0x1b8] sm:$0xff]
    %v4318 = vld [vmem:[#allocation5 + $0x1c0] sm:$0xff]
    %v4319 = vld [vmem:[#allocation5 + $0x1c8] sm:$0xff]
    %v4320 = vld [vmem:[#allocation5 + $0x1d0] sm:$0xff]
    %v4321 = vld [vmem:[#allocation5 + $0x1d8] sm:$0xff]
    %v4322 = vld [vmem:[#allocation5 + $0x1e0] sm:$0xff]
    %v4323 = vld [vmem:[#allocation5 + $0x1e8] sm:$0xff]
    %v4324 = vld [vmem:[#allocation5 + $0x1f0] sm:$0xff]
    %v4325 = vld [vmem:[#allocation5 + $0x1f8] sm:$0xff]
    %vm4340 = vcmask 1046528
    %v4341 = vrot.slane %v4290, 1
    %v4342 = vrot.slane %v4242, 1
    %v4343 = vsel %vm4340, %v4341, %v4342
    %v4344 = vrot.slane %v4291, 1
    %v4345 = vrot.slane %v4243, 1
    %v4346 = vsel %vm4340, %v4344, %v4345
    %v4347 = vrot.slane %v4244, 1
    %v4348 = vsel %vm4340, %v4342, %v4347
    %v4349 = vrot.slane %v4245, 1
    %v4350 = vsel %vm4340, %v4345, %v4349
    %v4351 = vrot.slane %v4246, 1
    %v4352 = vsel %vm4340, %v4347, %v4351
    %v4353 = vrot.slane %v4247, 1
    %v4354 = vsel %vm4340, %v4349, %v4353
    %v4355 = vrot.slane %v4248, 1
    %v4356 = vsel %vm4340, %v4351, %v4355
    %v4357 = vrot.slane %v4249, 1
    %v4358 = vsel %vm4340, %v4353, %v4357
    %v4359 = vrot.slane %v4250, 1
    %v4360 = vsel %vm4340, %v4355, %v4359
    %v4361 = vrot.slane %v4251, 1
    %v4362 = vsel %vm4340, %v4357, %v4361
    %v4363 = vrot.slane %v4292, 1
    %v4364 = vsel %vm4340, %v4359, %v4363
    %v4365 = vrot.slane %v4293, 1
    %v4366 = vsel %vm4340, %v4361, %v4365
    %v4411 = vunpack.c.l.b16 %v4294
    %v4412 = vunpack.c.h.b16 %v4294
    %v4413 = vunpack.c.l.b16 %v4295
    %v4414 = vunpack.c.h.b16 %v4295
    %v4415 = vunpack.c.l.b16 %v4296
    %v4416 = vunpack.c.h.b16 %v4296
    %v4417 = vunpack.c.l.b16 %v4297
    %v4418 = vunpack.c.h.b16 %v4297
    %v4419 = vunpack.c.l.b16 %v4298
    %v4420 = vunpack.c.h.b16 %v4298
    %v4421 = vunpack.c.l.b16 %v4299
    %v4422 = vunpack.c.h.b16 %v4299
    %v4423 = vunpack.c.l.b16 %v4300
    %v4424 = vunpack.c.h.b16 %v4300
    %v4425 = vunpack.c.l.b16 %v4301
    %v4426 = vunpack.c.h.b16 %v4301
    %v4427 = vunpack.c.l.b16 %v4302
    %v4428 = vunpack.c.h.b16 %v4302
    %v4429 = vunpack.c.l.b16 %v4303
    %v4430 = vunpack.c.h.b16 %v4303
    %v4431 = vunpack.c.l.b16 %v4304
    %v4432 = vunpack.c.h.b16 %v4304
    %v4433 = vunpack.c.l.b16 %v4305
    %v4434 = vunpack.c.h.b16 %v4305
    %v4435 = vunpack.c.l.b16 %v4306
    %v4436 = vunpack.c.h.b16 %v4306
    %v4437 = vunpack.c.l.b16 %v4307
    %v4438 = vunpack.c.h.b16 %v4307
    %v4439 = vunpack.c.l.b16 %v4308
    %v4440 = vunpack.c.h.b16 %v4308
    %v4441 = vunpack.c.l.b16 %v4309
    %v4442 = vunpack.c.h.b16 %v4309
    %v4443 = vunpack.c.l.b16 %v4310
    %v4444 = vunpack.c.h.b16 %v4310
    %v4445 = vunpack.c.l.b16 %v4311
    %v4446 = vunpack.c.h.b16 %v4311
    %v4447 = vunpack.c.l.b16 %v4312
    %v4448 = vunpack.c.h.b16 %v4312
    %v4449 = vunpack.c.l.b16 %v4313
    %v4450 = vunpack.c.h.b16 %v4313
    %v4451 = vunpack.c.l.b16 %v4314
    %v4452 = vunpack.c.h.b16 %v4314
    %v4453 = vunpack.c.l.b16 %v4315
    %v4454 = vunpack.c.h.b16 %v4315
    %v4455 = vunpack.c.l.b16 %v4316
    %v4456 = vunpack.c.h.b16 %v4316
    %v4457 = vunpack.c.l.b16 %v4317
    %v4458 = vunpack.c.h.b16 %v4317
    %v4459 = vunpack.c.l.b16 %v4318
    %v4460 = vunpack.c.h.b16 %v4318
    %v4461 = vunpack.c.l.b16 %v4319
    %v4462 = vunpack.c.h.b16 %v4319
    %v4463 = vunpack.c.l.b16 %v4320
    %v4464 = vunpack.c.h.b16 %v4320
    %v4465 = vunpack.c.l.b16 %v4321
    %v4466 = vunpack.c.h.b16 %v4321
    %v4467 = vunpack.c.l.b16 %v4322
    %v4468 = vunpack.c.h.b16 %v4322
    %v4469 = vunpack.c.l.b16 %v4323
    %v4470 = vunpack.c.h.b16 %v4323
    %v4471 = vunpack.c.l.b16 %v4324
    %v4472 = vunpack.c.h.b16 %v4324
    %v4473 = vunpack.c.l.b16 %v4325
    %v4474 = vunpack.c.h.b16 %v4325
    %v4475 = vpack.c.b16 %v4413, %v4411
    %v4476 = vpack.c.b16 %v4414, %v4412
    %v4477 = vpack.c.b16 %v4417, %v4415
    %v4478 = vpack.c.b16 %v4418, %v4416
    %v4479 = vpack.c.b16 %v4421, %v4419
    %v4480 = vpack.c.b16 %v4422, %v4420
    %v4481 = vpack.c.b16 %v4425, %v4423
    %v4482 = vpack.c.b16 %v4426, %v4424
    %v4483 = vpack.c.b16 %v4429, %v4427
    %v4484 = vpack.c.b16 %v4430, %v4428
    %v4485 = vpack.c.b16 %v4433, %v4431
    %v4486 = vpack.c.b16 %v4434, %v4432
    %v4487 = vpack.c.b16 %v4437, %v4435
    %v4488 = vpack.c.b16 %v4438, %v4436
    %v4489 = vpack.c.b16 %v4441, %v4439
    %v4490 = vpack.c.b16 %v4442, %v4440
    %v4491 = vpack.c.b16 %v4445, %v4443
    %v4492 = vpack.c.b16 %v4446, %v4444
    %v4493 = vpack.c.b16 %v4449, %v4447
    %v4494 = vpack.c.b16 %v4450, %v4448
    %v4495 = vpack.c.b16 %v4453, %v4451
    %v4496 = vpack.c.b16 %v4454, %v4452
    %v4497 = vpack.c.b16 %v4457, %v4455
    %v4498 = vpack.c.b16 %v4458, %v4456
    %v4499 = vpack.c.b16 %v4461, %v4459
    %v4500 = vpack.c.b16 %v4462, %v4460
    %v4501 = vpack.c.b16 %v4465, %v4463
    %v4502 = vpack.c.b16 %v4466, %v4464
    %v4503 = vpack.c.b16 %v4469, %v4467
    %v4504 = vpack.c.b16 %v4470, %v4468
    %v4505 = vpack.c.b16 %v4473, %v4471
    %v4506 = vpack.c.b16 %v4474, %v4472
    %4539 = vmatpush.bf16.msra.mxu0 %v4489
    %4540 = vmatpush.bf16.msra.mxu0 %v4487
    %4541 = vmatpush.bf16.msra.mxu0 %v4485
    %4542 = vmatpush.bf16.msra.mxu0 %v4483
    %4543 = vmatpush.bf16.msra.mxu0 %v4481
    %4544 = vmatpush.bf16.msra.mxu0 %v4479
    %4545 = vmatpush.bf16.msra.mxu0 %v4477
    %4546 = vmatpush.bf16.msra.mxu0 %v4475
    %4547 = vmatmul.bf16.gmra.mxu0 %v4343
    %v4548 = vpop.f32.mrf.mxu0
    %v4549 = vadd.f32 0.0, %v4548
    %v4550 = vpop.f32.mrf.mxu0
    %v4551 = vadd.f32 0.0, %v4550
    %4552 = vmatmul.bf16.gmra.mxu0 %v4348
    %v4553 = vpop.f32.mrf.mxu0
    %v4554 = vadd.f32 0.0, %v4553
    %v4555 = vpop.f32.mrf.mxu0
    %v4556 = vadd.f32 0.0, %v4555
    %4557 = vmatmul.bf16.gmra.mxu0 %v4352
    %v4558 = vpop.f32.mrf.mxu0
    %v4559 = vadd.f32 0.0, %v4558
    %v4560 = vpop.f32.mrf.mxu0
    %v4561 = vadd.f32 0.0, %v4560
    %4562 = vmatmul.bf16.gmra.mxu0 %v4356
    %v4563 = vpop.f32.mrf.mxu0
    %v4564 = vadd.f32 0.0, %v4563
    %v4565 = vpop.f32.mrf.mxu0
    %v4566 = vadd.f32 0.0, %v4565
    %4567 = vmatmul.bf16.gmra.mxu0 %v4360
    %v4568 = vpop.f32.mrf.mxu0
    %v4569 = vadd.f32 0.0, %v4568
    %v4570 = vpop.f32.mrf.mxu0
    %v4571 = vadd.f32 0.0, %v4570
    %4572 = vmatmul.bf16.gmra.mxu0 %v4364
    %v4573 = vpop.f32.mrf.mxu0
    %v4574 = vadd.f32 0.0, %v4573
    %v4575 = vpop.f32.mrf.mxu0
    %v4576 = vadd.f32 0.0, %v4575
    %4577 = vdwg.mxu0
    %4578 = vmatpush.bf16.msra.mxu0 %v4505
    %4579 = vmatpush.bf16.msra.mxu0 %v4503
    %4580 = vmatpush.bf16.msra.mxu0 %v4501
    %4581 = vmatpush.bf16.msra.mxu0 %v4499
    %4582 = vmatpush.bf16.msra.mxu0 %v4497
    %4583 = vmatpush.bf16.msra.mxu0 %v4495
    %4584 = vmatpush.bf16.msra.mxu0 %v4493
    %4585 = vmatpush.bf16.msra.mxu0 %v4491
    %4586 = vmatmul.bf16.gmra.mxu0 %v4346
    %v4587 = vpop.f32.mrf.mxu0
    %v4588 = vadd.f32 %v4549, %v4587
    %v4589 = vpop.f32.mrf.mxu0
    %v4590 = vadd.f32 %v4551, %v4589
    %4591 = vmatmul.bf16.gmra.mxu0 %v4350
    %v4592 = vpop.f32.mrf.mxu0
    %v4593 = vadd.f32 %v4554, %v4592
    %v4594 = vpop.f32.mrf.mxu0
    %v4595 = vadd.f32 %v4556, %v4594
    %4596 = vmatmul.bf16.gmra.mxu0 %v4354
    %v4597 = vpop.f32.mrf.mxu0
    %v4598 = vadd.f32 %v4559, %v4597
    %v4599 = vpop.f32.mrf.mxu0
    %v4600 = vadd.f32 %v4561, %v4599
    %4601 = vmatmul.bf16.gmra.mxu0 %v4358
    %v4602 = vpop.f32.mrf.mxu0
    %v4603 = vadd.f32 %v4564, %v4602
    %v4604 = vpop.f32.mrf.mxu0
    %v4605 = vadd.f32 %v4566, %v4604
    %4606 = vmatmul.bf16.gmra.mxu0 %v4362
    %v4607 = vpop.f32.mrf.mxu0
    %v4608 = vadd.f32 %v4569, %v4607
    %v4609 = vpop.f32.mrf.mxu0
    %v4610 = vadd.f32 %v4571, %v4609
    %4611 = vmatmul.bf16.gmra.mxu0 %v4366
    %v4612 = vpop.f32.mrf.mxu0
    %v4613 = vadd.f32 %v4574, %v4612
    %v4614 = vpop.f32.mrf.mxu0
    %v4615 = vadd.f32 %v4576, %v4614
    %4616 = vdwg.mxu0
    %4617 = vmatpush.bf16.msra.mxu0 %v4490
    %4618 = vmatpush.bf16.msra.mxu0 %v4488
    %4619 = vmatpush.bf16.msra.mxu0 %v4486
    %4620 = vmatpush.bf16.msra.mxu0 %v4484
    %4621 = vmatpush.bf16.msra.mxu0 %v4482
    %4622 = vmatpush.bf16.msra.mxu0 %v4480
    %4623 = vmatpush.bf16.msra.mxu0 %v4478
    %4624 = vmatpush.bf16.msra.mxu0 %v4476
    %4625 = vmatmul.bf16.gmra.mxu0 %v4343
    %v4626 = vpop.f32.mrf.mxu0
    %v4627 = vadd.f32 0.0, %v4626
    %v4628 = vpop.f32.mrf.mxu0
    %v4629 = vadd.f32 0.0, %v4628
    %4630 = vmatmul.bf16.gmra.mxu0 %v4348
    %v4631 = vpop.f32.mrf.mxu0
    %v4632 = vadd.f32 0.0, %v4631
    %v4633 = vpop.f32.mrf.mxu0
    %v4634 = vadd.f32 0.0, %v4633
    %4635 = vmatmul.bf16.gmra.mxu0 %v4352
    %v4636 = vpop.f32.mrf.mxu0
    %v4637 = vadd.f32 0.0, %v4636
    %v4638 = vpop.f32.mrf.mxu0
    %v4639 = vadd.f32 0.0, %v4638
    %4640 = vmatmul.bf16.gmra.mxu0 %v4356
    %v4641 = vpop.f32.mrf.mxu0
    %v4642 = vadd.f32 0.0, %v4641
    %v4643 = vpop.f32.mrf.mxu0
    %v4644 = vadd.f32 0.0, %v4643
    %4645 = vmatmul.bf16.gmra.mxu0 %v4360
    %v4646 = vpop.f32.mrf.mxu0
    %v4647 = vadd.f32 0.0, %v4646
    %v4648 = vpop.f32.mrf.mxu0
    %v4649 = vadd.f32 0.0, %v4648
    %4650 = vmatmul.bf16.gmra.mxu0 %v4364
    %v4651 = vpop.f32.mrf.mxu0
    %v4652 = vadd.f32 0.0, %v4651
    %v4653 = vpop.f32.mrf.mxu0
    %v4654 = vadd.f32 0.0, %v4653
    %4655 = vdwg.mxu0
    %4656 = vmatpush.bf16.msra.mxu0 %v4506
    %4657 = vmatpush.bf16.msra.mxu0 %v4504
    %4658 = vmatpush.bf16.msra.mxu0 %v4502
    %4659 = vmatpush.bf16.msra.mxu0 %v4500
    %4660 = vmatpush.bf16.msra.mxu0 %v4498
    %4661 = vmatpush.bf16.msra.mxu0 %v4496
    %4662 = vmatpush.bf16.msra.mxu0 %v4494
    %4663 = vmatpush.bf16.msra.mxu0 %v4492
    %4664 = vmatmul.bf16.gmra.mxu0 %v4346
    %v4665 = vpop.f32.mrf.mxu0
    %v4666 = vadd.f32 %v4627, %v4665
    %v4667 = vpop.f32.mrf.mxu0
    %v4668 = vadd.f32 %v4629, %v4667
    %4669 = vmatmul.bf16.gmra.mxu0 %v4350
    %v4670 = vpop.f32.mrf.mxu0
    %v4671 = vadd.f32 %v4632, %v4670
    %v4672 = vpop.f32.mrf.mxu0
    %v4673 = vadd.f32 %v4634, %v4672
    %4674 = vmatmul.bf16.gmra.mxu0 %v4354
    %v4675 = vpop.f32.mrf.mxu0
    %v4676 = vadd.f32 %v4637, %v4675
    %v4677 = vpop.f32.mrf.mxu0
    %v4678 = vadd.f32 %v4639, %v4677
    %4679 = vmatmul.bf16.gmra.mxu0 %v4358
    %v4680 = vpop.f32.mrf.mxu0
    %v4681 = vadd.f32 %v4642, %v4680
    %v4682 = vpop.f32.mrf.mxu0
    %v4683 = vadd.f32 %v4644, %v4682
    %4684 = vmatmul.bf16.gmra.mxu0 %v4362
    %v4685 = vpop.f32.mrf.mxu0
    %v4686 = vadd.f32 %v4647, %v4685
    %v4687 = vpop.f32.mrf.mxu0
    %v4688 = vadd.f32 %v4649, %v4687
    %4689 = vmatmul.bf16.gmra.mxu0 %v4366
    %v4690 = vpop.f32.mrf.mxu0
    %v4691 = vadd.f32 %v4652, %v4690
    %v4692 = vpop.f32.mrf.mxu0
    %v4693 = vadd.f32 %v4654, %v4692
    %4694 = vdwg.mxu0
    %vm4695 = vsmask.f32 7424
    %v4697 = vshrl.u32 %v4240, 16
    %v4699 = vshll.u32 %v4240, 16
    %v4701 = vrot.slane %v4699, 1
    %v4702 = vor.u32 %v4697, %v4701
    %v4704 = vshll.u32 %v4242, 16
    %v4706 = vrot.slane %v4704, 1
    %v4707 = vsel %vm4695, %v4702, %v4706
    %v4709 = vshrl.u32 %v4241, 16
    %v4711 = vshll.u32 %v4241, 16
    %v4713 = vrot.slane %v4711, 1
    %v4714 = vor.u32 %v4709, %v4713
    %v4716 = vshll.u32 %v4243, 16
    %v4718 = vrot.slane %v4716, 1
    %v4719 = vsel %vm4695, %v4714, %v4718
    %v4720 = vshrl.u32 %v4242, 16
    %v4722 = vor.u32 %v4720, %v4706
    %v4724 = vshll.u32 %v4244, 16
    %v4726 = vrot.slane %v4724, 1
    %v4727 = vsel %vm4695, %v4722, %v4726
    %v4728 = vshrl.u32 %v4243, 16
    %v4730 = vor.u32 %v4728, %v4718
    %v4732 = vshll.u32 %v4245, 16
    %v4734 = vrot.slane %v4732, 1
    %v4735 = vsel %vm4695, %v4730, %v4734
    %v4736 = vshrl.u32 %v4244, 16
    %v4738 = vor.u32 %v4736, %v4726
    %v4740 = vshll.u32 %v4246, 16
    %v4742 = vrot.slane %v4740, 1
    %v4743 = vsel %vm4695, %v4738, %v4742
    %v4744 = vshrl.u32 %v4245, 16
    %v4746 = vor.u32 %v4744, %v4734
    %v4748 = vshll.u32 %v4247, 16
    %v4750 = vrot.slane %v4748, 1
    %v4751 = vsel %vm4695, %v4746, %v4750
    %v4752 = vshrl.u32 %v4246, 16
    %v4754 = vor.u32 %v4752, %v4742
    %v4756 = vshll.u32 %v4248, 16
    %v4758 = vrot.slane %v4756, 1
    %v4759 = vsel %vm4695, %v4754, %v4758
    %v4760 = vshrl.u32 %v4247, 16
    %v4762 = vor.u32 %v4760, %v4750
    %v4764 = vshll.u32 %v4249, 16
    %v4766 = vrot.slane %v4764, 1
    %v4767 = vsel %vm4695, %v4762, %v4766
    %v4768 = vshrl.u32 %v4248, 16
    %v4770 = vor.u32 %v4768, %v4758
    %v4772 = vshll.u32 %v4250, 16
    %v4774 = vrot.slane %v4772, 1
    %v4775 = vsel %vm4695, %v4770, %v4774
    %v4776 = vshrl.u32 %v4249, 16
    %v4778 = vor.u32 %v4776, %v4766
    %v4780 = vshll.u32 %v4251, 16
    %v4782 = vrot.slane %v4780, 1
    %v4783 = vsel %vm4695, %v4778, %v4782
    %v4784 = vshrl.u32 %v4250, 16
    %v4786 = vor.u32 %v4784, %v4774
    %v4788 = vshll.u32 %v4252, 16
    %v4790 = vrot.slane %v4788, 1
    %v4791 = vsel %vm4695, %v4786, %v4790
    %v4792 = vshrl.u32 %v4251, 16
    %v4794 = vor.u32 %v4792, %v4782
    %v4796 = vshll.u32 %v4253, 16
    %v4798 = vrot.slane %v4796, 1
    %v4799 = vsel %vm4695, %v4794, %v4798
    %v4844 = vunpack.c.l.b16 %v4254
    %v4845 = vunpack.c.h.b16 %v4254
    %v4846 = vunpack.c.l.b16 %v4255
    %v4847 = vunpack.c.h.b16 %v4255
    %v4848 = vunpack.c.l.b16 %v4256
    %v4849 = vunpack.c.h.b16 %v4256
    %v4850 = vunpack.c.l.b16 %v4257
    %v4851 = vunpack.c.h.b16 %v4257
    %v4852 = vunpack.c.l.b16 %v4258
    %v4853 = vunpack.c.h.b16 %v4258
    %v4854 = vunpack.c.l.b16 %v4259
    %v4855 = vunpack.c.h.b16 %v4259
    %v4856 = vunpack.c.l.b16 %v4260
    %v4857 = vunpack.c.h.b16 %v4260
    %v4858 = vunpack.c.l.b16 %v4261
    %v4859 = vunpack.c.h.b16 %v4261
    %v4860 = vunpack.c.l.b16 %v4262
    %v4861 = vunpack.c.h.b16 %v4262
    %v4862 = vunpack.c.l.b16 %v4263
    %v4863 = vunpack.c.h.b16 %v4263
    %v4864 = vunpack.c.l.b16 %v4264
    %v4865 = vunpack.c.h.b16 %v4264
    %v4866 = vunpack.c.l.b16 %v4265
    %v4867 = vunpack.c.h.b16 %v4265
    %v4868 = vunpack.c.l.b16 %v4266
    %v4869 = vunpack.c.h.b16 %v4266
    %v4870 = vunpack.c.l.b16 %v4267
    %v4871 = vunpack.c.h.b16 %v4267
    %v4872 = vunpack.c.l.b16 %v4268
    %v4873 = vunpack.c.h.b16 %v4268
    %v4874 = vunpack.c.l.b16 %v4269
    %v4875 = vunpack.c.h.b16 %v4269
    %v4876 = vunpack.c.l.b16 %v4270
    %v4877 = vunpack.c.h.b16 %v4270
    %v4878 = vunpack.c.l.b16 %v4271
    %v4879 = vunpack.c.h.b16 %v4271
    %v4880 = vunpack.c.l.b16 %v4272
    %v4881 = vunpack.c.h.b16 %v4272
    %v4882 = vunpack.c.l.b16 %v4273
    %v4883 = vunpack.c.h.b16 %v4273
    %v4884 = vunpack.c.l.b16 %v4274
    %v4885 = vunpack.c.h.b16 %v4274
    %v4886 = vunpack.c.l.b16 %v4275
    %v4887 = vunpack.c.h.b16 %v4275
    %v4888 = vunpack.c.l.b16 %v4276
    %v4889 = vunpack.c.h.b16 %v4276
    %v4890 = vunpack.c.l.b16 %v4277
    %v4891 = vunpack.c.h.b16 %v4277
    %v4892 = vunpack.c.l.b16 %v4278
    %v4893 = vunpack.c.h.b16 %v4278
    %v4894 = vunpack.c.l.b16 %v4279
    %v4895 = vunpack.c.h.b16 %v4279
    %v4896 = vunpack.c.l.b16 %v4280
    %v4897 = vunpack.c.h.b16 %v4280
    %v4898 = vunpack.c.l.b16 %v4281
    %v4899 = vunpack.c.h.b16 %v4281
    %v4900 = vunpack.c.l.b16 %v4282
    %v4901 = vunpack.c.h.b16 %v4282
    %v4902 = vunpack.c.l.b16 %v4283
    %v4903 = vunpack.c.h.b16 %v4283
    %v4904 = vunpack.c.l.b16 %v4284
    %v4905 = vunpack.c.h.b16 %v4284
    %v4906 = vunpack.c.l.b16 %v4285
    %v4907 = vunpack.c.h.b16 %v4285
    %v4908 = vpack.c.b16 %v4846, %v4844
    %v4909 = vpack.c.b16 %v4847, %v4845
    %v4910 = vpack.c.b16 %v4850, %v4848
    %v4911 = vpack.c.b16 %v4851, %v4849
    %v4912 = vpack.c.b16 %v4854, %v4852
    %v4913 = vpack.c.b16 %v4855, %v4853
    %v4914 = vpack.c.b16 %v4858, %v4856
    %v4915 = vpack.c.b16 %v4859, %v4857
    %v4916 = vpack.c.b16 %v4862, %v4860
    %v4917 = vpack.c.b16 %v4863, %v4861
    %v4918 = vpack.c.b16 %v4866, %v4864
    %v4919 = vpack.c.b16 %v4867, %v4865
    %v4920 = vpack.c.b16 %v4870, %v4868
    %v4921 = vpack.c.b16 %v4871, %v4869
    %v4922 = vpack.c.b16 %v4874, %v4872
    %v4923 = vpack.c.b16 %v4875, %v4873
    %v4924 = vpack.c.b16 %v4878, %v4876
    %v4925 = vpack.c.b16 %v4879, %v4877
    %v4926 = vpack.c.b16 %v4882, %v4880
    %v4927 = vpack.c.b16 %v4883, %v4881
    %v4928 = vpack.c.b16 %v4886, %v4884
    %v4929 = vpack.c.b16 %v4887, %v4885
    %v4930 = vpack.c.b16 %v4890, %v4888
    %v4931 = vpack.c.b16 %v4891, %v4889
    %v4932 = vpack.c.b16 %v4894, %v4892
    %v4933 = vpack.c.b16 %v4895, %v4893
    %v4934 = vpack.c.b16 %v4898, %v4896
    %v4935 = vpack.c.b16 %v4899, %v4897
    %v4936 = vpack.c.b16 %v4902, %v4900
    %v4937 = vpack.c.b16 %v4903, %v4901
    %v4938 = vpack.c.b16 %v4906, %v4904
    %v4939 = vpack.c.b16 %v4907, %v4905
    %4972 = vmatpush.bf16.msra.mxu0 %v4922
    %4973 = vmatpush.bf16.msra.mxu0 %v4920
    %4974 = vmatpush.bf16.msra.mxu0 %v4918
    %4975 = vmatpush.bf16.msra.mxu0 %v4916
    %4976 = vmatpush.bf16.msra.mxu0 %v4914
    %4977 = vmatpush.bf16.msra.mxu0 %v4912
    %4978 = vmatpush.bf16.msra.mxu0 %v4910
    %4979 = vmatpush.bf16.msra.mxu0 %v4908
    %4980 = vmatmul.bf16.gmra.mxu0 %v4707
    %v4981 = vpop.f32.mrf.mxu0
    %v4982 = vadd.f32 %v4588, %v4981
    %v4983 = vpop.f32.mrf.mxu0
    %v4984 = vadd.f32 %v4590, %v4983
    %4985 = vmatmul.bf16.gmra.mxu0 %v4727
    %v4986 = vpop.f32.mrf.mxu0
    %v4987 = vadd.f32 %v4593, %v4986
    %v4988 = vpop.f32.mrf.mxu0
    %v4989 = vadd.f32 %v4595, %v4988
    %4990 = vmatmul.bf16.gmra.mxu0 %v4743
    %v4991 = vpop.f32.mrf.mxu0
    %v4992 = vadd.f32 %v4598, %v4991
    %v4993 = vpop.f32.mrf.mxu0
    %v4994 = vadd.f32 %v4600, %v4993
    %4995 = vmatmul.bf16.gmra.mxu0 %v4759
    %v4996 = vpop.f32.mrf.mxu0
    %v4997 = vadd.f32 %v4603, %v4996
    %v4998 = vpop.f32.mrf.mxu0
    %v4999 = vadd.f32 %v4605, %v4998
    %5000 = vmatmul.bf16.gmra.mxu0 %v4775
    %v5001 = vpop.f32.mrf.mxu0
    %v5002 = vadd.f32 %v4608, %v5001
    %v5003 = vpop.f32.mrf.mxu0
    %v5004 = vadd.f32 %v4610, %v5003
    %5005 = vmatmul.bf16.gmra.mxu0 %v4791
    %v5006 = vpop.f32.mrf.mxu0
    %v5007 = vadd.f32 %v4613, %v5006
    %v5008 = vpop.f32.mrf.mxu0
    %v5009 = vadd.f32 %v4615, %v5008
    %5010 = vdwg.mxu0
    %5011 = vmatpush.bf16.msra.mxu0 %v4938
    %5012 = vmatpush.bf16.msra.mxu0 %v4936
    %5013 = vmatpush.bf16.msra.mxu0 %v4934
    %5014 = vmatpush.bf16.msra.mxu0 %v4932
    %5015 = vmatpush.bf16.msra.mxu0 %v4930
    %5016 = vmatpush.bf16.msra.mxu0 %v4928
    %5017 = vmatpush.bf16.msra.mxu0 %v4926
    %5018 = vmatpush.bf16.msra.mxu0 %v4924
    %5019 = vmatmul.bf16.gmra.mxu0 %v4719
    %v5020 = vpop.f32.mrf.mxu0
    %v5021 = vadd.f32 %v4982, %v5020
    %v5022 = vpop.f32.mrf.mxu0
    %v5023 = vadd.f32 %v4984, %v5022
    %5024 = vmatmul.bf16.gmra.mxu0 %v4735
    %v5025 = vpop.f32.mrf.mxu0
    %v5026 = vadd.f32 %v4987, %v5025
    %v5027 = vpop.f32.mrf.mxu0
    %v5028 = vadd.f32 %v4989, %v5027
    %5029 = vmatmul.bf16.gmra.mxu0 %v4751
    %v5030 = vpop.f32.mrf.mxu0
    %v5031 = vadd.f32 %v4992, %v5030
    %v5032 = vpop.f32.mrf.mxu0
    %v5033 = vadd.f32 %v4994, %v5032
    %5034 = vmatmul.bf16.gmra.mxu0 %v4767
    %v5035 = vpop.f32.mrf.mxu0
    %v5036 = vadd.f32 %v4997, %v5035
    %v5037 = vpop.f32.mrf.mxu0
    %v5038 = vadd.f32 %v4999, %v5037
    %5039 = vmatmul.bf16.gmra.mxu0 %v4783
    %v5040 = vpop.f32.mrf.mxu0
    %v5041 = vadd.f32 %v5002, %v5040
    %v5042 = vpop.f32.mrf.mxu0
    %v5043 = vadd.f32 %v5004, %v5042
    %5044 = vmatmul.bf16.gmra.mxu0 %v4799
    %v5045 = vpop.f32.mrf.mxu0
    %v5046 = vadd.f32 %v5007, %v5045
    %v5047 = vpop.f32.mrf.mxu0
    %v5048 = vadd.f32 %v5009, %v5047
    %5049 = vdwg.mxu0
    %5050 = vmatpush.bf16.msra.mxu0 %v4923
    %5051 = vmatpush.bf16.msra.mxu0 %v4921
    %5052 = vmatpush.bf16.msra.mxu0 %v4919
    %5053 = vmatpush.bf16.msra.mxu0 %v4917
    %5054 = vmatpush.bf16.msra.mxu0 %v4915
    %5055 = vmatpush.bf16.msra.mxu0 %v4913
    %5056 = vmatpush.bf16.msra.mxu0 %v4911
    %5057 = vmatpush.bf16.msra.mxu0 %v4909
    %5058 = vmatmul.bf16.gmra.mxu0 %v4707
    %v5059 = vpop.f32.mrf.mxu0
    %v5060 = vadd.f32 %v4666, %v5059
    %v5061 = vpop.f32.mrf.mxu0
    %v5062 = vadd.f32 %v4668, %v5061
    %5063 = vmatmul.bf16.gmra.mxu0 %v4727
    %v5064 = vpop.f32.mrf.mxu0
    %v5065 = vadd.f32 %v4671, %v5064
    %v5066 = vpop.f32.mrf.mxu0
    %v5067 = vadd.f32 %v4673, %v5066
    %5068 = vmatmul.bf16.gmra.mxu0 %v4743
    %v5069 = vpop.f32.mrf.mxu0
    %v5070 = vadd.f32 %v4676, %v5069
    %v5071 = vpop.f32.mrf.mxu0
    %v5072 = vadd.f32 %v4678, %v5071
    %5073 = vmatmul.bf16.gmra.mxu0 %v4759
    %v5074 = vpop.f32.mrf.mxu0
    %v5075 = vadd.f32 %v4681, %v5074
    %v5076 = vpop.f32.mrf.mxu0
    %v5077 = vadd.f32 %v4683, %v5076
    %5078 = vmatmul.bf16.gmra.mxu0 %v4775
    %v5079 = vpop.f32.mrf.mxu0
    %v5080 = vadd.f32 %v4686, %v5079
    %v5081 = vpop.f32.mrf.mxu0
    %v5082 = vadd.f32 %v4688, %v5081
    %5083 = vmatmul.bf16.gmra.mxu0 %v4791
    %v5084 = vpop.f32.mrf.mxu0
    %v5085 = vadd.f32 %v4691, %v5084
    %v5086 = vpop.f32.mrf.mxu0
    %v5087 = vadd.f32 %v4693, %v5086
    %5088 = vdwg.mxu0
    %5089 = vmatpush.bf16.msra.mxu0 %v4939
    %5090 = vmatpush.bf16.msra.mxu0 %v4937
    %5091 = vmatpush.bf16.msra.mxu0 %v4935
    %5092 = vmatpush.bf16.msra.mxu0 %v4933
    %5093 = vmatpush.bf16.msra.mxu0 %v4931
    %5094 = vmatpush.bf16.msra.mxu0 %v4929
    %5095 = vmatpush.bf16.msra.mxu0 %v4927
    %5096 = vmatpush.bf16.msra.mxu0 %v4925
    %5097 = vmatmul.bf16.gmra.mxu0 %v4719
    %v5098 = vpop.f32.mrf.mxu0
    %v5099 = vadd.f32 %v5060, %v5098
    %v5100 = vpop.f32.mrf.mxu0
    %v5101 = vadd.f32 %v5062, %v5100
    %5102 = vmatmul.bf16.gmra.mxu0 %v4735
    %v5103 = vpop.f32.mrf.mxu0
    %v5104 = vadd.f32 %v5065, %v5103
    %v5105 = vpop.f32.mrf.mxu0
    %v5106 = vadd.f32 %v5067, %v5105
    %5107 = vmatmul.bf16.gmra.mxu0 %v4751
    %v5108 = vpop.f32.mrf.mxu0
    %v5109 = vadd.f32 %v5070, %v5108
    %v5110 = vpop.f32.mrf.mxu0
    %v5111 = vadd.f32 %v5072, %v5110
    %5112 = vmatmul.bf16.gmra.mxu0 %v4767
    %v5113 = vpop.f32.mrf.mxu0
    %v5114 = vadd.f32 %v5075, %v5113
    %v5115 = vpop.f32.mrf.mxu0
    %v5116 = vadd.f32 %v5077, %v5115
    %5117 = vmatmul.bf16.gmra.mxu0 %v4783
    %v5118 = vpop.f32.mrf.mxu0
    %v5119 = vadd.f32 %v5080, %v5118
    %v5120 = vpop.f32.mrf.mxu0
    %v5121 = vadd.f32 %v5082, %v5120
    %5122 = vmatmul.bf16.gmra.mxu0 %v4799
    %v5123 = vpop.f32.mrf.mxu0
    %v5124 = vadd.f32 %v5085, %v5123
    %v5125 = vpop.f32.mrf.mxu0
    %v5126 = vadd.f32 %v5087, %v5125
    %5127 = vdwg.mxu0
    %v5128 = vld [vmem:[#allocation4] sm:$0xf8]
    %v5129 = vld [vmem:[#allocation4 + $0x8] sm:$0xf8]
    %v5130 = vld [vmem:[#allocation4 + $0xc0] sm:$0x7]
    %v5131 = vld [vmem:[#allocation4 + $0xc8] sm:$0x7]
    %v5132 = vpack.c.bf16 %v4216, %v5128
    %v5133 = vpack.c.bf16 %v4217, %v5129
    %v5134 = vpack.c.bf16 %v5130, %v5130
    %v5135 = vpack.c.bf16 %v5131, %v5131
    %v5136 = vld [vmem:[#allocation5 + $0x200] sm:$0xff]
    %v5137 = vld [vmem:[#allocation5 + $0x208] sm:$0xff]
    %v5138 = vld [vmem:[#allocation5 + $0x210] sm:$0xff]
    %v5139 = vld [vmem:[#allocation5 + $0x218] sm:$0xff]
    %v5140 = vld [vmem:[#allocation5 + $0x220] sm:$0xff]
    %v5141 = vld [vmem:[#allocation5 + $0x228] sm:$0xff]
    %v5142 = vld [vmem:[#allocation5 + $0x230] sm:$0xff]
    %v5143 = vld [vmem:[#allocation5 + $0x238] sm:$0xff]
    %v5144 = vld [vmem:[#allocation5 + $0x240] sm:$0xff]
    %v5145 = vld [vmem:[#allocation5 + $0x248] sm:$0xff]
    %v5146 = vld [vmem:[#allocation5 + $0x250] sm:$0xff]
    %v5147 = vld [vmem:[#allocation5 + $0x258] sm:$0xff]
    %v5148 = vld [vmem:[#allocation5 + $0x260] sm:$0xff]
    %v5149 = vld [vmem:[#allocation5 + $0x268] sm:$0xff]
    %v5150 = vld [vmem:[#allocation5 + $0x270] sm:$0xff]
    %v5151 = vld [vmem:[#allocation5 + $0x278] sm:$0xff]
    %v5152 = vld [vmem:[#allocation5 + $0x280] sm:$0xff]
    %v5153 = vld [vmem:[#allocation5 + $0x288] sm:$0xff]
    %v5154 = vld [vmem:[#allocation5 + $0x290] sm:$0xff]
    %v5155 = vld [vmem:[#allocation5 + $0x298] sm:$0xff]
    %v5156 = vld [vmem:[#allocation5 + $0x2a0] sm:$0xff]
    %v5157 = vld [vmem:[#allocation5 + $0x2a8] sm:$0xff]
    %v5158 = vld [vmem:[#allocation5 + $0x2b0] sm:$0xff]
    %v5159 = vld [vmem:[#allocation5 + $0x2b8] sm:$0xff]
    %v5160 = vld [vmem:[#allocation5 + $0x2c0] sm:$0xff]
    %v5161 = vld [vmem:[#allocation5 + $0x2c8] sm:$0xff]
    %v5162 = vld [vmem:[#allocation5 + $0x2d0] sm:$0xff]
    %v5163 = vld [vmem:[#allocation5 + $0x2d8] sm:$0xff]
    %v5164 = vld [vmem:[#allocation5 + $0x2e0] sm:$0xff]
    %v5165 = vld [vmem:[#allocation5 + $0x2e8] sm:$0xff]
    %v5166 = vld [vmem:[#allocation5 + $0x2f0] sm:$0xff]
    %v5167 = vld [vmem:[#allocation5 + $0x2f8] sm:$0xff]
    %vm5168 = vsmask.f32 6400
    %v5170 = vshrl.u32 %v5132, 16
    %v5172 = vrot.slane %v5170, 1
    %v5173 = vshll.u32 %v5132, 16
    %v5175 = vrot.slane %v5173, 2
    %v5176 = vor.u32 %v5172, %v5175
    %v5177 = vrot.slane %v4720, 1
    %v5178 = vrot.slane %v4704, 2
    %v5179 = vor.u32 %v5177, %v5178
    %v5180 = vsel %vm5168, %v5176, %v5179
    %v5182 = vshrl.u32 %v5133, 16
    %v5184 = vrot.slane %v5182, 1
    %v5185 = vshll.u32 %v5133, 16
    %v5187 = vrot.slane %v5185, 2
    %v5188 = vor.u32 %v5184, %v5187
    %v5189 = vrot.slane %v4728, 1
    %v5190 = vrot.slane %v4716, 2
    %v5191 = vor.u32 %v5189, %v5190
    %v5192 = vsel %vm5168, %v5188, %v5191
    %v5193 = vrot.slane %v4736, 1
    %v5194 = vrot.slane %v4724, 2
    %v5195 = vor.u32 %v5193, %v5194
    %v5196 = vsel %vm5168, %v5179, %v5195
    %v5197 = vrot.slane %v4744, 1
    %v5198 = vrot.slane %v4732, 2
    %v5199 = vor.u32 %v5197, %v5198
    %v5200 = vsel %vm5168, %v5191, %v5199
    %v5201 = vrot.slane %v4752, 1
    %v5202 = vrot.slane %v4740, 2
    %v5203 = vor.u32 %v5201, %v5202
    %v5204 = vsel %vm5168, %v5195, %v5203
    %v5205 = vrot.slane %v4760, 1
    %v5206 = vrot.slane %v4748, 2
    %v5207 = vor.u32 %v5205, %v5206
    %v5208 = vsel %vm5168, %v5199, %v5207
    %v5209 = vrot.slane %v4768, 1
    %v5210 = vrot.slane %v4756, 2
    %v5211 = vor.u32 %v5209, %v5210
    %v5212 = vsel %vm5168, %v5203, %v5211
    %v5213 = vrot.slane %v4776, 1
    %v5214 = vrot.slane %v4764, 2
    %v5215 = vor.u32 %v5213, %v5214
    %v5216 = vsel %vm5168, %v5207, %v5215
    %v5217 = vrot.slane %v4784, 1
    %v5218 = vrot.slane %v4772, 2
    %v5219 = vor.u32 %v5217, %v5218
    %v5220 = vsel %vm5168, %v5211, %v5219
    %v5221 = vrot.slane %v4792, 1
    %v5222 = vrot.slane %v4780, 2
    %v5223 = vor.u32 %v5221, %v5222
    %v5224 = vsel %vm5168, %v5215, %v5223
    %v5226 = vshrl.u32 %v5134, 16
    %v5228 = vrot.slane %v5226, 1
    %v5229 = vshll.u32 %v5134, 16
    %v5231 = vrot.slane %v5229, 2
    %v5232 = vor.u32 %v5228, %v5231
    %v5233 = vsel %vm5168, %v5219, %v5232
    %v5235 = vshrl.u32 %v5135, 16
    %v5237 = vrot.slane %v5235, 1
    %v5238 = vshll.u32 %v5135, 16
    %v5240 = vrot.slane %v5238, 2
    %v5241 = vor.u32 %v5237, %v5240
    %v5242 = vsel %vm5168, %v5223, %v5241
    %v5287 = vunpack.c.l.b16 %v5136
    %v5288 = vunpack.c.h.b16 %v5136
    %v5289 = vunpack.c.l.b16 %v5137
    %v5290 = vunpack.c.h.b16 %v5137
    %v5291 = vunpack.c.l.b16 %v5138
    %v5292 = vunpack.c.h.b16 %v5138
    %v5293 = vunpack.c.l.b16 %v5139
    %v5294 = vunpack.c.h.b16 %v5139
    %v5295 = vunpack.c.l.b16 %v5140
    %v5296 = vunpack.c.h.b16 %v5140
    %v5297 = vunpack.c.l.b16 %v5141
    %v5298 = vunpack.c.h.b16 %v5141
    %v5299 = vunpack.c.l.b16 %v5142
    %v5300 = vunpack.c.h.b16 %v5142
    %v5301 = vunpack.c.l.b16 %v5143
    %v5302 = vunpack.c.h.b16 %v5143
    %v5303 = vunpack.c.l.b16 %v5144
    %v5304 = vunpack.c.h.b16 %v5144
    %v5305 = vunpack.c.l.b16 %v5145
    %v5306 = vunpack.c.h.b16 %v5145
    %v5307 = vunpack.c.l.b16 %v5146
    %v5308 = vunpack.c.h.b16 %v5146
    %v5309 = vunpack.c.l.b16 %v5147
    %v5310 = vunpack.c.h.b16 %v5147
    %v5311 = vunpack.c.l.b16 %v5148
    %v5312 = vunpack.c.h.b16 %v5148
    %v5313 = vunpack.c.l.b16 %v5149
    %v5314 = vunpack.c.h.b16 %v5149
    %v5315 = vunpack.c.l.b16 %v5150
    %v5316 = vunpack.c.h.b16 %v5150
    %v5317 = vunpack.c.l.b16 %v5151
    %v5318 = vunpack.c.h.b16 %v5151
    %v5319 = vunpack.c.l.b16 %v5152
    %v5320 = vunpack.c.h.b16 %v5152
    %v5321 = vunpack.c.l.b16 %v5153
    %v5322 = vunpack.c.h.b16 %v5153
    %v5323 = vunpack.c.l.b16 %v5154
    %v5324 = vunpack.c.h.b16 %v5154
    %v5325 = vunpack.c.l.b16 %v5155
    %v5326 = vunpack.c.h.b16 %v5155
    %v5327 = vunpack.c.l.b16 %v5156
    %v5328 = vunpack.c.h.b16 %v5156
    %v5329 = vunpack.c.l.b16 %v5157
    %v5330 = vunpack.c.h.b16 %v5157
    %v5331 = vunpack.c.l.b16 %v5158
    %v5332 = vunpack.c.h.b16 %v5158
    %v5333 = vunpack.c.l.b16 %v5159
    %v5334 = vunpack.c.h.b16 %v5159
    %v5335 = vunpack.c.l.b16 %v5160
    %v5336 = vunpack.c.h.b16 %v5160
    %v5337 = vunpack.c.l.b16 %v5161
    %v5338 = vunpack.c.h.b16 %v5161
    %v5339 = vunpack.c.l.b16 %v5162
    %v5340 = vunpack.c.h.b16 %v5162
    %v5341 = vunpack.c.l.b16 %v5163
    %v5342 = vunpack.c.h.b16 %v5163
    %v5343 = vunpack.c.l.b16 %v5164
    %v5344 = vunpack.c.h.b16 %v5164
    %v5345 = vunpack.c.l.b16 %v5165
    %v5346 = vunpack.c.h.b16 %v5165
    %v5347 = vunpack.c.l.b16 %v5166
    %v5348 = vunpack.c.h.b16 %v5166
    %v5349 = vunpack.c.l.b16 %v5167
    %v5350 = vunpack.c.h.b16 %v5167
    %v5351 = vpack.c.b16 %v5289, %v5287
    %v5352 = vpack.c.b16 %v5290, %v5288
    %v5353 = vpack.c.b16 %v5293, %v5291
    %v5354 = vpack.c.b16 %v5294, %v5292
    %v5355 = vpack.c.b16 %v5297, %v5295
    %v5356 = vpack.c.b16 %v5298, %v5296
    %v5357 = vpack.c.b16 %v5301, %v5299
    %v5358 = vpack.c.b16 %v5302, %v5300
    %v5359 = vpack.c.b16 %v5305, %v5303
    %v5360 = vpack.c.b16 %v5306, %v5304
    %v5361 = vpack.c.b16 %v5309, %v5307
    %v5362 = vpack.c.b16 %v5310, %v5308
    %v5363 = vpack.c.b16 %v5313, %v5311
    %v5364 = vpack.c.b16 %v5314, %v5312
    %v5365 = vpack.c.b16 %v5317, %v5315
    %v5366 = vpack.c.b16 %v5318, %v5316
    %v5367 = vpack.c.b16 %v5321, %v5319
    %v5368 = vpack.c.b16 %v5322, %v5320
    %v5369 = vpack.c.b16 %v5325, %v5323
    %v5370 = vpack.c.b16 %v5326, %v5324
    %v5371 = vpack.c.b16 %v5329, %v5327
    %v5372 = vpack.c.b16 %v5330, %v5328
    %v5373 = vpack.c.b16 %v5333, %v5331
    %v5374 = vpack.c.b16 %v5334, %v5332
    %v5375 = vpack.c.b16 %v5337, %v5335
    %v5376 = vpack.c.b16 %v5338, %v5336
    %v5377 = vpack.c.b16 %v5341, %v5339
    %v5378 = vpack.c.b16 %v5342, %v5340
    %v5379 = vpack.c.b16 %v5345, %v5343
    %v5380 = vpack.c.b16 %v5346, %v5344
    %v5381 = vpack.c.b16 %v5349, %v5347
    %v5382 = vpack.c.b16 %v5350, %v5348
    %5415 = vmatpush.bf16.msra.mxu0 %v5365
    %5416 = vmatpush.bf16.msra.mxu0 %v5363
    %5417 = vmatpush.bf16.msra.mxu0 %v5361
    %5418 = vmatpush.bf16.msra.mxu0 %v5359
    %5419 = vmatpush.bf16.msra.mxu0 %v5357
    %5420 = vmatpush.bf16.msra.mxu0 %v5355
    %5421 = vmatpush.bf16.msra.mxu0 %v5353
    %5422 = vmatpush.bf16.msra.mxu0 %v5351
    %5423 = vmatmul.bf16.gmra.mxu0 %v5180
    %v5424 = vpop.f32.mrf.mxu0
    %v5425 = vadd.f32 0.0, %v5424
    %v5426 = vpop.f32.mrf.mxu0
    %v5427 = vadd.f32 0.0, %v5426
    %5428 = vmatmul.bf16.gmra.mxu0 %v5196
    %v5429 = vpop.f32.mrf.mxu0
    %v5430 = vadd.f32 0.0, %v5429
    %v5431 = vpop.f32.mrf.mxu0
    %v5432 = vadd.f32 0.0, %v5431
    %5433 = vmatmul.bf16.gmra.mxu0 %v5204
    %v5434 = vpop.f32.mrf.mxu0
    %v5435 = vadd.f32 0.0, %v5434
    %v5436 = vpop.f32.mrf.mxu0
    %v5437 = vadd.f32 0.0, %v5436
    %5438 = vmatmul.bf16.gmra.mxu0 %v5212
    %v5439 = vpop.f32.mrf.mxu0
    %v5440 = vadd.f32 0.0, %v5439
    %v5441 = vpop.f32.mrf.mxu0
    %v5442 = vadd.f32 0.0, %v5441
    %5443 = vmatmul.bf16.gmra.mxu0 %v5220
    %v5444 = vpop.f32.mrf.mxu0
    %v5445 = vadd.f32 0.0, %v5444
    %v5446 = vpop.f32.mrf.mxu0
    %v5447 = vadd.f32 0.0, %v5446
    %5448 = vmatmul.bf16.gmra.mxu0 %v5233
    %v5449 = vpop.f32.mrf.mxu0
    %v5450 = vadd.f32 0.0, %v5449
    %v5451 = vpop.f32.mrf.mxu0
    %v5452 = vadd.f32 0.0, %v5451
    %5453 = vdwg.mxu0
    %5454 = vmatpush.bf16.msra.mxu0 %v5381
    %5455 = vmatpush.bf16.msra.mxu0 %v5379
    %5456 = vmatpush.bf16.msra.mxu0 %v5377
    %5457 = vmatpush.bf16.msra.mxu0 %v5375
    %5458 = vmatpush.bf16.msra.mxu0 %v5373
    %5459 = vmatpush.bf16.msra.mxu0 %v5371
    %5460 = vmatpush.bf16.msra.mxu0 %v5369
    %5461 = vmatpush.bf16.msra.mxu0 %v5367
    %5462 = vmatmul.bf16.gmra.mxu0 %v5192
    %v5463 = vpop.f32.mrf.mxu0
    %v5464 = vadd.f32 %v5425, %v5463
    %v5465 = vpop.f32.mrf.mxu0
    %v5466 = vadd.f32 %v5427, %v5465
    %5467 = vmatmul.bf16.gmra.mxu0 %v5200
    %v5468 = vpop.f32.mrf.mxu0
    %v5469 = vadd.f32 %v5430, %v5468
    %v5470 = vpop.f32.mrf.mxu0
    %v5471 = vadd.f32 %v5432, %v5470
    %5472 = vmatmul.bf16.gmra.mxu0 %v5208
    %v5473 = vpop.f32.mrf.mxu0
    %v5474 = vadd.f32 %v5435, %v5473
    %v5475 = vpop.f32.mrf.mxu0
    %v5476 = vadd.f32 %v5437, %v5475
    %5477 = vmatmul.bf16.gmra.mxu0 %v5216
    %v5478 = vpop.f32.mrf.mxu0
    %v5479 = vadd.f32 %v5440, %v5478
    %v5480 = vpop.f32.mrf.mxu0
    %v5481 = vadd.f32 %v5442, %v5480
    %5482 = vmatmul.bf16.gmra.mxu0 %v5224
    %v5483 = vpop.f32.mrf.mxu0
    %v5484 = vadd.f32 %v5445, %v5483
    %v5485 = vpop.f32.mrf.mxu0
    %v5486 = vadd.f32 %v5447, %v5485
    %5487 = vmatmul.bf16.gmra.mxu0 %v5242
    %v5488 = vpop.f32.mrf.mxu0
    %v5489 = vadd.f32 %v5450, %v5488
    %v5490 = vpop.f32.mrf.mxu0
    %v5491 = vadd.f32 %v5452, %v5490
    %5492 = vdwg.mxu0
    %5493 = vmatpush.bf16.msra.mxu0 %v5366
    %5494 = vmatpush.bf16.msra.mxu0 %v5364
    %5495 = vmatpush.bf16.msra.mxu0 %v5362
    %5496 = vmatpush.bf16.msra.mxu0 %v5360
    %5497 = vmatpush.bf16.msra.mxu0 %v5358
    %5498 = vmatpush.bf16.msra.mxu0 %v5356
    %5499 = vmatpush.bf16.msra.mxu0 %v5354
    %5500 = vmatpush.bf16.msra.mxu0 %v5352
    %5501 = vmatmul.bf16.gmra.mxu0 %v5180
    %v5502 = vpop.f32.mrf.mxu0
    %v5503 = vadd.f32 0.0, %v5502
    %v5504 = vpop.f32.mrf.mxu0
    %v5505 = vadd.f32 0.0, %v5504
    %5506 = vmatmul.bf16.gmra.mxu0 %v5196
    %v5507 = vpop.f32.mrf.mxu0
    %v5508 = vadd.f32 0.0, %v5507
    %v5509 = vpop.f32.mrf.mxu0
    %v5510 = vadd.f32 0.0, %v5509
    %5511 = vmatmul.bf16.gmra.mxu0 %v5204
    %v5512 = vpop.f32.mrf.mxu0
    %v5513 = vadd.f32 0.0, %v5512
    %v5514 = vpop.f32.mrf.mxu0
    %v5515 = vadd.f32 0.0, %v5514
    %5516 = vmatmul.bf16.gmra.mxu0 %v5212
    %v5517 = vpop.f32.mrf.mxu0
    %v5518 = vadd.f32 0.0, %v5517
    %v5519 = vpop.f32.mrf.mxu0
    %v5520 = vadd.f32 0.0, %v5519
    %5521 = vmatmul.bf16.gmra.mxu0 %v5220
    %v5522 = vpop.f32.mrf.mxu0
    %v5523 = vadd.f32 0.0, %v5522
    %v5524 = vpop.f32.mrf.mxu0
    %v5525 = vadd.f32 0.0, %v5524
    %5526 = vmatmul.bf16.gmra.mxu0 %v5233
    %v5527 = vpop.f32.mrf.mxu0
    %v5528 = vadd.f32 0.0, %v5527
    %v5529 = vpop.f32.mrf.mxu0
    %v5530 = vadd.f32 0.0, %v5529
    %5531 = vdwg.mxu0
    %5532 = vmatpush.bf16.msra.mxu0 %v5382
    %5533 = vmatpush.bf16.msra.mxu0 %v5380
    %5534 = vmatpush.bf16.msra.mxu0 %v5378
    %5535 = vmatpush.bf16.msra.mxu0 %v5376
    %5536 = vmatpush.bf16.msra.mxu0 %v5374
    %5537 = vmatpush.bf16.msra.mxu0 %v5372
    %5538 = vmatpush.bf16.msra.mxu0 %v5370
    %5539 = vmatpush.bf16.msra.mxu0 %v5368
    %5540 = vmatmul.bf16.gmra.mxu0 %v5192
    %v5541 = vpop.f32.mrf.mxu0
    %v5542 = vadd.f32 %v5503, %v5541
    %v5543 = vpop.f32.mrf.mxu0
    %v5544 = vadd.f32 %v5505, %v5543
    %5545 = vmatmul.bf16.gmra.mxu0 %v5200
    %v5546 = vpop.f32.mrf.mxu0
    %v5547 = vadd.f32 %v5508, %v5546
    %v5548 = vpop.f32.mrf.mxu0
    %v5549 = vadd.f32 %v5510, %v5548
    %5550 = vmatmul.bf16.gmra.mxu0 %v5208
    %v5551 = vpop.f32.mrf.mxu0
    %v5552 = vadd.f32 %v5513, %v5551
    %v5553 = vpop.f32.mrf.mxu0
    %v5554 = vadd.f32 %v5515, %v5553
    %5555 = vmatmul.bf16.gmra.mxu0 %v5216
    %v5556 = vpop.f32.mrf.mxu0
    %v5557 = vadd.f32 %v5518, %v5556
    %v5558 = vpop.f32.mrf.mxu0
    %v5559 = vadd.f32 %v5520, %v5558
    %5560 = vmatmul.bf16.gmra.mxu0 %v5224
    %v5561 = vpop.f32.mrf.mxu0
    %v5562 = vadd.f32 %v5523, %v5561
    %v5563 = vpop.f32.mrf.mxu0
    %v5564 = vadd.f32 %v5525, %v5563
    %5565 = vmatmul.bf16.gmra.mxu0 %v5242
    %v5566 = vpop.f32.mrf.mxu0
    %v5567 = vadd.f32 %v5528, %v5566
    %v5568 = vpop.f32.mrf.mxu0
    %v5569 = vadd.f32 %v5530, %v5568
    %5570 = vdwg.mxu0
    %v5571 = vadd.f32 %v5021, %v5464
    %v5572 = vadd.f32 %v5099, %v5542
    %v5573 = vadd.f32 %v5023, %v5466
    %v5574 = vadd.f32 %v5101, %v5544
    %v5575 = vadd.f32 %v5026, %v5469
    %v5576 = vadd.f32 %v5104, %v5547
    %v5577 = vadd.f32 %v5028, %v5471
    %v5578 = vadd.f32 %v5106, %v5549
    %v5579 = vadd.f32 %v5031, %v5474
    %v5580 = vadd.f32 %v5109, %v5552
    %v5581 = vadd.f32 %v5033, %v5476
    %v5582 = vadd.f32 %v5111, %v5554
    %v5583 = vadd.f32 %v5036, %v5479
    %v5584 = vadd.f32 %v5114, %v5557
    %v5585 = vadd.f32 %v5038, %v5481
    %v5586 = vadd.f32 %v5116, %v5559
    %v5587 = vadd.f32 %v5041, %v5484
    %v5588 = vadd.f32 %v5119, %v5562
    %v5589 = vadd.f32 %v5043, %v5486
    %v5590 = vadd.f32 %v5121, %v5564
    %v5591 = vadd.f32 %v5046, %v5489
    %v5592 = vadd.f32 %v5124, %v5567
    %v5593 = vadd.f32 %v5048, %v5491
    %v5594 = vadd.f32 %v5126, %v5569
    %v5595 = vld [vmem:[#allocation4] sm:$0x80]
    %v5596 = vld [vmem:[#allocation4 + $0x8] sm:$0x80]
    %v5597 = vld [vmem:[#allocation4 + $0xc0] sm:$0x7f]
    %v5598 = vld [vmem:[#allocation4 + $0xc8] sm:$0x7f]
    %v5599 = vpack.c.bf16 %v4216, %v5595
    %v5600 = vpack.c.bf16 %v4217, %v5596
    %v5601 = vpack.c.bf16 %v5597, %v5597
    %v5602 = vpack.c.bf16 %v5598, %v5598
    %v5603 = vld [vmem:[#allocation5 + $0x300] sm:$0xff]
    %v5604 = vld [vmem:[#allocation5 + $0x308] sm:$0xff]
    %v5605 = vld [vmem:[#allocation5 + $0x310] sm:$0xff]
    %v5606 = vld [vmem:[#allocation5 + $0x318] sm:$0xff]
    %v5607 = vld [vmem:[#allocation5 + $0x320] sm:$0xff]
    %v5608 = vld [vmem:[#allocation5 + $0x328] sm:$0xff]
    %v5609 = vld [vmem:[#allocation5 + $0x330] sm:$0xff]
    %v5610 = vld [vmem:[#allocation5 + $0x338] sm:$0xff]
    %v5611 = vld [vmem:[#allocation5 + $0x340] sm:$0xff]
    %v5612 = vld [vmem:[#allocation5 + $0x348] sm:$0xff]
    %v5613 = vld [vmem:[#allocation5 + $0x350] sm:$0xff]
    %v5614 = vld [vmem:[#allocation5 + $0x358] sm:$0xff]
    %v5615 = vld [vmem:[#allocation5 + $0x360] sm:$0xff]
    %v5616 = vld [vmem:[#allocation5 + $0x368] sm:$0xff]
    %v5617 = vld [vmem:[#allocation5 + $0x370] sm:$0xff]
    %v5618 = vld [vmem:[#allocation5 + $0x378] sm:$0xff]
    %v5619 = vld [vmem:[#allocation5 + $0x380] sm:$0xff]
    %v5620 = vld [vmem:[#allocation5 + $0x388] sm:$0xff]
    %v5621 = vld [vmem:[#allocation5 + $0x390] sm:$0xff]
    %v5622 = vld [vmem:[#allocation5 + $0x398] sm:$0xff]
    %v5623 = vld [vmem:[#allocation5 + $0x3a0] sm:$0xff]
    %v5624 = vld [vmem:[#allocation5 + $0x3a8] sm:$0xff]
    %v5625 = vld [vmem:[#allocation5 + $0x3b0] sm:$0xff]
    %v5626 = vld [vmem:[#allocation5 + $0x3b8] sm:$0xff]
    %v5627 = vld [vmem:[#allocation5 + $0x3c0] sm:$0xff]
    %v5628 = vld [vmem:[#allocation5 + $0x3c8] sm:$0xff]
    %v5629 = vld [vmem:[#allocation5 + $0x3d0] sm:$0xff]
    %v5630 = vld [vmem:[#allocation5 + $0x3d8] sm:$0xff]
    %v5631 = vld [vmem:[#allocation5 + $0x3e0] sm:$0xff]
    %v5632 = vld [vmem:[#allocation5 + $0x3e8] sm:$0xff]
    %v5633 = vld [vmem:[#allocation5 + $0x3f0] sm:$0xff]
    %v5634 = vld [vmem:[#allocation5 + $0x3f8] sm:$0xff]
    %vm5635 = vsmask.f32 4352
    %v5637 = vshrl.u32 %v5599, 16
    %v5639 = vrot.slane %v5637, 3
    %v5640 = vshll.u32 %v5599, 16
    %v5642 = vrot.slane %v5640, 4
    %v5643 = vor.u32 %v5639, %v5642
    %v5644 = vrot.slane %v4720, 3
    %v5645 = vrot.slane %v4704, 4
    %v5646 = vor.u32 %v5644, %v5645
    %v5647 = vsel %vm5635, %v5643, %v5646
    %v5649 = vshrl.u32 %v5600, 16
    %v5651 = vrot.slane %v5649, 3
    %v5652 = vshll.u32 %v5600, 16
    %v5654 = vrot.slane %v5652, 4
    %v5655 = vor.u32 %v5651, %v5654
    %v5656 = vrot.slane %v4728, 3
    %v5657 = vrot.slane %v4716, 4
    %v5658 = vor.u32 %v5656, %v5657
    %v5659 = vsel %vm5635, %v5655, %v5658
    %v5660 = vrot.slane %v4736, 3
    %v5661 = vrot.slane %v4724, 4
    %v5662 = vor.u32 %v5660, %v5661
    %v5663 = vsel %vm5635, %v5646, %v5662
    %v5664 = vrot.slane %v4744, 3
    %v5665 = vrot.slane %v4732, 4
    %v5666 = vor.u32 %v5664, %v5665
    %v5667 = vsel %vm5635, %v5658, %v5666
    %v5668 = vrot.slane %v4752, 3
    %v5669 = vrot.slane %v4740, 4
    %v5670 = vor.u32 %v5668, %v5669
    %v5671 = vsel %vm5635, %v5662, %v5670
    %v5672 = vrot.slane %v4760, 3
    %v5673 = vrot.slane %v4748, 4
    %v5674 = vor.u32 %v5672, %v5673
    %v5675 = vsel %vm5635, %v5666, %v5674
    %v5676 = vrot.slane %v4768, 3
    %v5677 = vrot.slane %v4756, 4
    %v5678 = vor.u32 %v5676, %v5677
    %v5679 = vsel %vm5635, %v5670, %v5678
    %v5680 = vrot.slane %v4776, 3
    %v5681 = vrot.slane %v4764, 4
    %v5682 = vor.u32 %v5680, %v5681
    %v5683 = vsel %vm5635, %v5674, %v5682
    %v5684 = vrot.slane %v4784, 3
    %v5685 = vrot.slane %v4772, 4
    %v5686 = vor.u32 %v5684, %v5685
    %v5687 = vsel %vm5635, %v5678, %v5686
    %v5688 = vrot.slane %v4792, 3
    %v5689 = vrot.slane %v4780, 4
    %v5690 = vor.u32 %v5688, %v5689
    %v5691 = vsel %vm5635, %v5682, %v5690
    %v5693 = vshrl.u32 %v5601, 16
    %v5695 = vrot.slane %v5693, 3
    %v5696 = vshll.u32 %v5601, 16
    %v5698 = vrot.slane %v5696, 4
    %v5699 = vor.u32 %v5695, %v5698
    %v5700 = vsel %vm5635, %v5686, %v5699
    %v5702 = vshrl.u32 %v5602, 16
    %v5704 = vrot.slane %v5702, 3
    %v5705 = vshll.u32 %v5602, 16
    %v5707 = vrot.slane %v5705, 4
    %v5708 = vor.u32 %v5704, %v5707
    %v5709 = vsel %vm5635, %v5690, %v5708
    %v5754 = vunpack.c.l.b16 %v5603
    %v5755 = vunpack.c.h.b16 %v5603
    %v5756 = vunpack.c.l.b16 %v5604
    %v5757 = vunpack.c.h.b16 %v5604
    %v5758 = vunpack.c.l.b16 %v5605
    %v5759 = vunpack.c.h.b16 %v5605
    %v5760 = vunpack.c.l.b16 %v5606
    %v5761 = vunpack.c.h.b16 %v5606
    %v5762 = vunpack.c.l.b16 %v5607
    %v5763 = vunpack.c.h.b16 %v5607
    %v5764 = vunpack.c.l.b16 %v5608
    %v5765 = vunpack.c.h.b16 %v5608
    %v5766 = vunpack.c.l.b16 %v5609
    %v5767 = vunpack.c.h.b16 %v5609
    %v5768 = vunpack.c.l.b16 %v5610
    %v5769 = vunpack.c.h.b16 %v5610
    %v5770 = vunpack.c.l.b16 %v5611
    %v5771 = vunpack.c.h.b16 %v5611
    %v5772 = vunpack.c.l.b16 %v5612
    %v5773 = vunpack.c.h.b16 %v5612
    %v5774 = vunpack.c.l.b16 %v5613
    %v5775 = vunpack.c.h.b16 %v5613
    %v5776 = vunpack.c.l.b16 %v5614
    %v5777 = vunpack.c.h.b16 %v5614
    %v5778 = vunpack.c.l.b16 %v5615
    %v5779 = vunpack.c.h.b16 %v5615
    %v5780 = vunpack.c.l.b16 %v5616
    %v5781 = vunpack.c.h.b16 %v5616
    %v5782 = vunpack.c.l.b16 %v5617
    %v5783 = vunpack.c.h.b16 %v5617
    %v5784 = vunpack.c.l.b16 %v5618
    %v5785 = vunpack.c.h.b16 %v5618
    %v5786 = vunpack.c.l.b16 %v5619
    %v5787 = vunpack.c.h.b16 %v5619
    %v5788 = vunpack.c.l.b16 %v5620
    %v5789 = vunpack.c.h.b16 %v5620
    %v5790 = vunpack.c.l.b16 %v5621
    %v5791 = vunpack.c.h.b16 %v5621
    %v5792 = vunpack.c.l.b16 %v5622
    %v5793 = vunpack.c.h.b16 %v5622
    %v5794 = vunpack.c.l.b16 %v5623
    %v5795 = vunpack.c.h.b16 %v5623
    %v5796 = vunpack.c.l.b16 %v5624
    %v5797 = vunpack.c.h.b16 %v5624
    %v5798 = vunpack.c.l.b16 %v5625
    %v5799 = vunpack.c.h.b16 %v5625
    %v5800 = vunpack.c.l.b16 %v5626
    %v5801 = vunpack.c.h.b16 %v5626
    %v5802 = vunpack.c.l.b16 %v5627
    %v5803 = vunpack.c.h.b16 %v5627
    %v5804 = vunpack.c.l.b16 %v5628
    %v5805 = vunpack.c.h.b16 %v5628
    %v5806 = vunpack.c.l.b16 %v5629
    %v5807 = vunpack.c.h.b16 %v5629
    %v5808 = vunpack.c.l.b16 %v5630
    %v5809 = vunpack.c.h.b16 %v5630
    %v5810 = vunpack.c.l.b16 %v5631
    %v5811 = vunpack.c.h.b16 %v5631
    %v5812 = vunpack.c.l.b16 %v5632
    %v5813 = vunpack.c.h.b16 %v5632
    %v5814 = vunpack.c.l.b16 %v5633
    %v5815 = vunpack.c.h.b16 %v5633
    %v5816 = vunpack.c.l.b16 %v5634
    %v5817 = vunpack.c.h.b16 %v5634
    %v5818 = vpack.c.b16 %v5756, %v5754
    %v5819 = vpack.c.b16 %v5757, %v5755
    %v5820 = vpack.c.b16 %v5760, %v5758
    %v5821 = vpack.c.b16 %v5761, %v5759
    %v5822 = vpack.c.b16 %v5764, %v5762
    %v5823 = vpack.c.b16 %v5765, %v5763
    %v5824 = vpack.c.b16 %v5768, %v5766
    %v5825 = vpack.c.b16 %v5769, %v5767
    %v5826 = vpack.c.b16 %v5772, %v5770
    %v5827 = vpack.c.b16 %v5773, %v5771
    %v5828 = vpack.c.b16 %v5776, %v5774
    %v5829 = vpack.c.b16 %v5777, %v5775
    %v5830 = vpack.c.b16 %v5780, %v5778
    %v5831 = vpack.c.b16 %v5781, %v5779
    %v5832 = vpack.c.b16 %v5784, %v5782
    %v5833 = vpack.c.b16 %v5785, %v5783
    %v5834 = vpack.c.b16 %v5788, %v5786
    %v5835 = vpack.c.b16 %v5789, %v5787
    %v5836 = vpack.c.b16 %v5792, %v5790
    %v5837 = vpack.c.b16 %v5793, %v5791
    %v5838 = vpack.c.b16 %v5796, %v5794
    %v5839 = vpack.c.b16 %v5797, %v5795
    %v5840 = vpack.c.b16 %v5800, %v5798
    %v5841 = vpack.c.b16 %v5801, %v5799
    %v5842 = vpack.c.b16 %v5804, %v5802
    %v5843 = vpack.c.b16 %v5805, %v5803
    %v5844 = vpack.c.b16 %v5808, %v5806
    %v5845 = vpack.c.b16 %v5809, %v5807
    %v5846 = vpack.c.b16 %v5812, %v5810
    %v5847 = vpack.c.b16 %v5813, %v5811
    %v5848 = vpack.c.b16 %v5816, %v5814
    %v5849 = vpack.c.b16 %v5817, %v5815
    %5882 = vmatpush.bf16.msra.mxu0 %v5832
    %5883 = vmatpush.bf16.msra.mxu0 %v5830
    %5884 = vmatpush.bf16.msra.mxu0 %v5828
    %5885 = vmatpush.bf16.msra.mxu0 %v5826
    %5886 = vmatpush.bf16.msra.mxu0 %v5824
    %5887 = vmatpush.bf16.msra.mxu0 %v5822
    %5888 = vmatpush.bf16.msra.mxu0 %v5820
    %5889 = vmatpush.bf16.msra.mxu0 %v5818
    %5890 = vmatmul.bf16.gmra.mxu0 %v5647
    %v5891 = vpop.f32.mrf.mxu0
    %v5892 = vadd.f32 0.0, %v5891
    %v5893 = vpop.f32.mrf.mxu0
    %v5894 = vadd.f32 0.0, %v5893
    %5895 = vmatmul.bf16.gmra.mxu0 %v5663
    %v5896 = vpop.f32.mrf.mxu0
    %v5897 = vadd.f32 0.0, %v5896
    %v5898 = vpop.f32.mrf.mxu0
    %v5899 = vadd.f32 0.0, %v5898
    %5900 = vmatmul.bf16.gmra.mxu0 %v5671
    %v5901 = vpop.f32.mrf.mxu0
    %v5902 = vadd.f32 0.0, %v5901
    %v5903 = vpop.f32.mrf.mxu0
    %v5904 = vadd.f32 0.0, %v5903
    %5905 = vmatmul.bf16.gmra.mxu0 %v5679
    %v5906 = vpop.f32.mrf.mxu0
    %v5907 = vadd.f32 0.0, %v5906
    %v5908 = vpop.f32.mrf.mxu0
    %v5909 = vadd.f32 0.0, %v5908
    %5910 = vmatmul.bf16.gmra.mxu0 %v5687
    %v5911 = vpop.f32.mrf.mxu0
    %v5912 = vadd.f32 0.0, %v5911
    %v5913 = vpop.f32.mrf.mxu0
    %v5914 = vadd.f32 0.0, %v5913
    %5915 = vmatmul.bf16.gmra.mxu0 %v5700
    %v5916 = vpop.f32.mrf.mxu0
    %v5917 = vadd.f32 0.0, %v5916
    %v5918 = vpop.f32.mrf.mxu0
    %v5919 = vadd.f32 0.0, %v5918
    %5920 = vdwg.mxu0
    %5921 = vmatpush.bf16.msra.mxu0 %v5848
    %5922 = vmatpush.bf16.msra.mxu0 %v5846
    %5923 = vmatpush.bf16.msra.mxu0 %v5844
    %5924 = vmatpush.bf16.msra.mxu0 %v5842
    %5925 = vmatpush.bf16.msra.mxu0 %v5840
    %5926 = vmatpush.bf16.msra.mxu0 %v5838
    %5927 = vmatpush.bf16.msra.mxu0 %v5836
    %5928 = vmatpush.bf16.msra.mxu0 %v5834
    %5929 = vmatmul.bf16.gmra.mxu0 %v5659
    %v5930 = vpop.f32.mrf.mxu0
    %v5931 = vadd.f32 %v5892, %v5930
    %v5932 = vpop.f32.mrf.mxu0
    %v5933 = vadd.f32 %v5894, %v5932
    %5934 = vmatmul.bf16.gmra.mxu0 %v5667
    %v5935 = vpop.f32.mrf.mxu0
    %v5936 = vadd.f32 %v5897, %v5935
    %v5937 = vpop.f32.mrf.mxu0
    %v5938 = vadd.f32 %v5899, %v5937
    %5939 = vmatmul.bf16.gmra.mxu0 %v5675
    %v5940 = vpop.f32.mrf.mxu0
    %v5941 = vadd.f32 %v5902, %v5940
    %v5942 = vpop.f32.mrf.mxu0
    %v5943 = vadd.f32 %v5904, %v5942
    %5944 = vmatmul.bf16.gmra.mxu0 %v5683
    %v5945 = vpop.f32.mrf.mxu0
    %v5946 = vadd.f32 %v5907, %v5945
    %v5947 = vpop.f32.mrf.mxu0
    %v5948 = vadd.f32 %v5909, %v5947
    %5949 = vmatmul.bf16.gmra.mxu0 %v5691
    %v5950 = vpop.f32.mrf.mxu0
    %v5951 = vadd.f32 %v5912, %v5950
    %v5952 = vpop.f32.mrf.mxu0
    %v5953 = vadd.f32 %v5914, %v5952
    %5954 = vmatmul.bf16.gmra.mxu0 %v5709
    %v5955 = vpop.f32.mrf.mxu0
    %v5956 = vadd.f32 %v5917, %v5955
    %v5957 = vpop.f32.mrf.mxu0
    %v5958 = vadd.f32 %v5919, %v5957
    %5959 = vdwg.mxu0
    %5960 = vmatpush.bf16.msra.mxu0 %v5833
    %5961 = vmatpush.bf16.msra.mxu0 %v5831
    %5962 = vmatpush.bf16.msra.mxu0 %v5829
    %5963 = vmatpush.bf16.msra.mxu0 %v5827
    %5964 = vmatpush.bf16.msra.mxu0 %v5825
    %5965 = vmatpush.bf16.msra.mxu0 %v5823
    %5966 = vmatpush.bf16.msra.mxu0 %v5821
    %5967 = vmatpush.bf16.msra.mxu0 %v5819
    %5968 = vmatmul.bf16.gmra.mxu0 %v5647
    %v5969 = vpop.f32.mrf.mxu0
    %v5970 = vadd.f32 0.0, %v5969
    %v5971 = vpop.f32.mrf.mxu0
    %v5972 = vadd.f32 0.0, %v5971
    %5973 = vmatmul.bf16.gmra.mxu0 %v5663
    %v5974 = vpop.f32.mrf.mxu0
    %v5975 = vadd.f32 0.0, %v5974
    %v5976 = vpop.f32.mrf.mxu0
    %v5977 = vadd.f32 0.0, %v5976
    %5978 = vmatmul.bf16.gmra.mxu0 %v5671
    %v5979 = vpop.f32.mrf.mxu0
    %v5980 = vadd.f32 0.0, %v5979
    %v5981 = vpop.f32.mrf.mxu0
    %v5982 = vadd.f32 0.0, %v5981
    %5983 = vmatmul.bf16.gmra.mxu0 %v5679
    %v5984 = vpop.f32.mrf.mxu0
    %v5985 = vadd.f32 0.0, %v5984
    %v5986 = vpop.f32.mrf.mxu0
    %v5987 = vadd.f32 0.0, %v5986
    %5988 = vmatmul.bf16.gmra.mxu0 %v5687
    %v5989 = vpop.f32.mrf.mxu0
    %v5990 = vadd.f32 0.0, %v5989
    %v5991 = vpop.f32.mrf.mxu0
    %v5992 = vadd.f32 0.0, %v5991
    %5993 = vmatmul.bf16.gmra.mxu0 %v5700
    %v5994 = vpop.f32.mrf.mxu0
    %v5995 = vadd.f32 0.0, %v5994
    %v5996 = vpop.f32.mrf.mxu0
    %v5997 = vadd.f32 0.0, %v5996
    %5998 = vdwg.mxu0
    %5999 = vmatpush.bf16.msra.mxu0 %v5849
    %6000 = vmatpush.bf16.msra.mxu0 %v5847
    %6001 = vmatpush.bf16.msra.mxu0 %v5845
    %6002 = vmatpush.bf16.msra.mxu0 %v5843
    %6003 = vmatpush.bf16.msra.mxu0 %v5841
    %6004 = vmatpush.bf16.msra.mxu0 %v5839
    %6005 = vmatpush.bf16.msra.mxu0 %v5837
    %6006 = vmatpush.bf16.msra.mxu0 %v5835
    %6007 = vmatmul.bf16.gmra.mxu0 %v5659
    %v6008 = vpop.f32.mrf.mxu0
    %v6009 = vadd.f32 %v5970, %v6008
    %v6010 = vpop.f32.mrf.mxu0
    %v6011 = vadd.f32 %v5972, %v6010
    %6012 = vmatmul.bf16.gmra.mxu0 %v5667
    %v6013 = vpop.f32.mrf.mxu0
    %v6014 = vadd.f32 %v5975, %v6013
    %v6015 = vpop.f32.mrf.mxu0
    %v6016 = vadd.f32 %v5977, %v6015
    %6017 = vmatmul.bf16.gmra.mxu0 %v5675
    %v6018 = vpop.f32.mrf.mxu0
    %v6019 = vadd.f32 %v5980, %v6018
    %v6020 = vpop.f32.mrf.mxu0
    %v6021 = vadd.f32 %v5982, %v6020
    %6022 = vmatmul.bf16.gmra.mxu0 %v5683
    %v6023 = vpop.f32.mrf.mxu0
    %v6024 = vadd.f32 %v5985, %v6023
    %v6025 = vpop.f32.mrf.mxu0
    %v6026 = vadd.f32 %v5987, %v6025
    %6027 = vmatmul.bf16.gmra.mxu0 %v5691
    %v6028 = vpop.f32.mrf.mxu0
    %v6029 = vadd.f32 %v5990, %v6028
    %v6030 = vpop.f32.mrf.mxu0
    %v6031 = vadd.f32 %v5992, %v6030
    %6032 = vmatmul.bf16.gmra.mxu0 %v5709
    %v6033 = vpop.f32.mrf.mxu0
    %v6034 = vadd.f32 %v5995, %v6033
    %v6035 = vpop.f32.mrf.mxu0
    %v6036 = vadd.f32 %v5997, %v6035
    %6037 = vdwg.mxu0
    %v6038 = vadd.f32 %v5571, %v5931
    %v6039 = vadd.f32 %v5572, %v6009
    %v6040 = vadd.f32 %v5573, %v5933
    %v6041 = vadd.f32 %v5574, %v6011
    %v6042 = vadd.f32 %v5575, %v5936
    %v6043 = vadd.f32 %v5576, %v6014
    %v6044 = vadd.f32 %v5577, %v5938
    %v6045 = vadd.f32 %v5578, %v6016
    %v6046 = vadd.f32 %v5579, %v5941
    %v6047 = vadd.f32 %v5580, %v6019
    %v6048 = vadd.f32 %v5581, %v5943
    %v6049 = vadd.f32 %v5582, %v6021
    %v6050 = vadd.f32 %v5583, %v5946
    %v6051 = vadd.f32 %v5584, %v6024
    %v6052 = vadd.f32 %v5585, %v5948
    %v6053 = vadd.f32 %v5586, %v6026
    %v6054 = vadd.f32 %v5587, %v5951
    %v6055 = vadd.f32 %v5588, %v6029
    %v6056 = vadd.f32 %v5589, %v5953
    %v6057 = vadd.f32 %v5590, %v6031
    %v6058 = vadd.f32 %v5591, %v5956
    %v6059 = vadd.f32 %v5592, %v6034
    %v6060 = vadd.f32 %v5593, %v5958
    %v6061 = vadd.f32 %v5594, %v6036
    %v6062 = vld [vmem:[#allocation4 + $0xc0] sm:$0xff]
    %v6063 = vld [vmem:[#allocation4 + $0xc8] sm:$0xff]
    %v6064 = vpack.c.bf16 %v4218, %v4216
    %v6065 = vpack.c.bf16 %v4219, %v4217
    %v6066 = vpack.c.bf16 %v4222, %v4220
    %v6067 = vpack.c.bf16 %v4223, %v4221
    %v6068 = vpack.c.bf16 %v4226, %v4224
    %v6069 = vpack.c.bf16 %v4227, %v4225
    %v6070 = vpack.c.bf16 %v4230, %v4228
    %v6071 = vpack.c.bf16 %v4231, %v4229
    %v6072 = vpack.c.bf16 %v4234, %v4232
    %v6073 = vpack.c.bf16 %v4235, %v4233
    %v6074 = vpack.c.bf16 %v6062, %v4236
    %v6075 = vpack.c.bf16 %v6063, %v4237
    %v6076 = vld [vmem:[#allocation5 + $0x400] sm:$0xff]
    %v6077 = vld [vmem:[#allocation5 + $0x408] sm:$0xff]
    %v6078 = vld [vmem:[#allocation5 + $0x410] sm:$0xff]
    %v6079 = vld [vmem:[#allocation5 + $0x418] sm:$0xff]
    %v6080 = vld [vmem:[#allocation5 + $0x420] sm:$0xff]
    %v6081 = vld [vmem:[#allocation5 + $0x428] sm:$0xff]
    %v6082 = vld [vmem:[#allocation5 + $0x430] sm:$0xff]
    %v6083 = vld [vmem:[#allocation5 + $0x438] sm:$0xff]
    %v6084 = vld [vmem:[#allocation5 + $0x440] sm:$0xff]
    %v6085 = vld [vmem:[#allocation5 + $0x448] sm:$0xff]
    %v6086 = vld [vmem:[#allocation5 + $0x450] sm:$0xff]
    %v6087 = vld [vmem:[#allocation5 + $0x458] sm:$0xff]
    %v6088 = vld [vmem:[#allocation5 + $0x460] sm:$0xff]
    %v6089 = vld [vmem:[#allocation5 + $0x468] sm:$0xff]
    %v6090 = vld [vmem:[#allocation5 + $0x470] sm:$0xff]
    %v6091 = vld [vmem:[#allocation5 + $0x478] sm:$0xff]
    %v6092 = vld [vmem:[#allocation5 + $0x480] sm:$0xff]
    %v6093 = vld [vmem:[#allocation5 + $0x488] sm:$0xff]
    %v6094 = vld [vmem:[#allocation5 + $0x490] sm:$0xff]
    %v6095 = vld [vmem:[#allocation5 + $0x498] sm:$0xff]
    %v6096 = vld [vmem:[#allocation5 + $0x4a0] sm:$0xff]
    %v6097 = vld [vmem:[#allocation5 + $0x4a8] sm:$0xff]
    %v6098 = vld [vmem:[#allocation5 + $0x4b0] sm:$0xff]
    %v6099 = vld [vmem:[#allocation5 + $0x4b8] sm:$0xff]
    %v6100 = vld [vmem:[#allocation5 + $0x4c0] sm:$0xff]
    %v6101 = vld [vmem:[#allocation5 + $0x4c8] sm:$0xff]
    %v6102 = vld [vmem:[#allocation5 + $0x4d0] sm:$0xff]
    %v6103 = vld [vmem:[#allocation5 + $0x4d8] sm:$0xff]
    %v6104 = vld [vmem:[#allocation5 + $0x4e0] sm:$0xff]
    %v6105 = vld [vmem:[#allocation5 + $0x4e8] sm:$0xff]
    %v6106 = vld [vmem:[#allocation5 + $0x4f0] sm:$0xff]
    %v6107 = vld [vmem:[#allocation5 + $0x4f8] sm:$0xff]
    %v6140 = vunpack.c.l.b16 %v6076
    %v6141 = vunpack.c.h.b16 %v6076
    %v6142 = vunpack.c.l.b16 %v6077
    %v6143 = vunpack.c.h.b16 %v6077
    %v6144 = vunpack.c.l.b16 %v6078
    %v6145 = vunpack.c.h.b16 %v6078
    %v6146 = vunpack.c.l.b16 %v6079
    %v6147 = vunpack.c.h.b16 %v6079
    %v6148 = vunpack.c.l.b16 %v6080
    %v6149 = vunpack.c.h.b16 %v6080
    %v6150 = vunpack.c.l.b16 %v6081
    %v6151 = vunpack.c.h.b16 %v6081
    %v6152 = vunpack.c.l.b16 %v6082
    %v6153 = vunpack.c.h.b16 %v6082
    %v6154 = vunpack.c.l.b16 %v6083
    %v6155 = vunpack.c.h.b16 %v6083
    %v6156 = vunpack.c.l.b16 %v6084
    %v6157 = vunpack.c.h.b16 %v6084
    %v6158 = vunpack.c.l.b16 %v6085
    %v6159 = vunpack.c.h.b16 %v6085
    %v6160 = vunpack.c.l.b16 %v6086
    %v6161 = vunpack.c.h.b16 %v6086
    %v6162 = vunpack.c.l.b16 %v6087
    %v6163 = vunpack.c.h.b16 %v6087
    %v6164 = vunpack.c.l.b16 %v6088
    %v6165 = vunpack.c.h.b16 %v6088
    %v6166 = vunpack.c.l.b16 %v6089
    %v6167 = vunpack.c.h.b16 %v6089
    %v6168 = vunpack.c.l.b16 %v6090
    %v6169 = vunpack.c.h.b16 %v6090
    %v6170 = vunpack.c.l.b16 %v6091
    %v6171 = vunpack.c.h.b16 %v6091
    %v6172 = vunpack.c.l.b16 %v6092
    %v6173 = vunpack.c.h.b16 %v6092
    %v6174 = vunpack.c.l.b16 %v6093
    %v6175 = vunpack.c.h.b16 %v6093
    %v6176 = vunpack.c.l.b16 %v6094
    %v6177 = vunpack.c.h.b16 %v6094
    %v6178 = vunpack.c.l.b16 %v6095
    %v6179 = vunpack.c.h.b16 %v6095
    %v6180 = vunpack.c.l.b16 %v6096
    %v6181 = vunpack.c.h.b16 %v6096
    %v6182 = vunpack.c.l.b16 %v6097
    %v6183 = vunpack.c.h.b16 %v6097
    %v6184 = vunpack.c.l.b16 %v6098
    %v6185 = vunpack.c.h.b16 %v6098
    %v6186 = vunpack.c.l.b16 %v6099
    %v6187 = vunpack.c.h.b16 %v6099
    %v6188 = vunpack.c.l.b16 %v6100
    %v6189 = vunpack.c.h.b16 %v6100
    %v6190 = vunpack.c.l.b16 %v6101
    %v6191 = vunpack.c.h.b16 %v6101
    %v6192 = vunpack.c.l.b16 %v6102
    %v6193 = vunpack.c.h.b16 %v6102
    %v6194 = vunpack.c.l.b16 %v6103
    %v6195 = vunpack.c.h.b16 %v6103
    %v6196 = vunpack.c.l.b16 %v6104
    %v6197 = vunpack.c.h.b16 %v6104
    %v6198 = vunpack.c.l.b16 %v6105
    %v6199 = vunpack.c.h.b16 %v6105
    %v6200 = vunpack.c.l.b16 %v6106
    %v6201 = vunpack.c.h.b16 %v6106
    %v6202 = vunpack.c.l.b16 %v6107
    %v6203 = vunpack.c.h.b16 %v6107
    %v6204 = vpack.c.b16 %v6142, %v6140
    %v6205 = vpack.c.b16 %v6143, %v6141
    %v6206 = vpack.c.b16 %v6146, %v6144
    %v6207 = vpack.c.b16 %v6147, %v6145
    %v6208 = vpack.c.b16 %v6150, %v6148
    %v6209 = vpack.c.b16 %v6151, %v6149
    %v6210 = vpack.c.b16 %v6154, %v6152
    %v6211 = vpack.c.b16 %v6155, %v6153
    %v6212 = vpack.c.b16 %v6158, %v6156
    %v6213 = vpack.c.b16 %v6159, %v6157
    %v6214 = vpack.c.b16 %v6162, %v6160
    %v6215 = vpack.c.b16 %v6163, %v6161
    %v6216 = vpack.c.b16 %v6166, %v6164
    %v6217 = vpack.c.b16 %v6167, %v6165
    %v6218 = vpack.c.b16 %v6170, %v6168
    %v6219 = vpack.c.b16 %v6171, %v6169
    %v6220 = vpack.c.b16 %v6174, %v6172
    %v6221 = vpack.c.b16 %v6175, %v6173
    %v6222 = vpack.c.b16 %v6178, %v6176
    %v6223 = vpack.c.b16 %v6179, %v6177
    %v6224 = vpack.c.b16 %v6182, %v6180
    %v6225 = vpack.c.b16 %v6183, %v6181
    %v6226 = vpack.c.b16 %v6186, %v6184
    %v6227 = vpack.c.b16 %v6187, %v6185
    %v6228 = vpack.c.b16 %v6190, %v6188
    %v6229 = vpack.c.b16 %v6191, %v6189
    %v6230 = vpack.c.b16 %v6194, %v6192
    %v6231 = vpack.c.b16 %v6195, %v6193
    %v6232 = vpack.c.b16 %v6198, %v6196
    %v6233 = vpack.c.b16 %v6199, %v6197
    %v6234 = vpack.c.b16 %v6202, %v6200
    %v6235 = vpack.c.b16 %v6203, %v6201
    %6268 = vmatpush.bf16.msra.mxu0 %v6218
    %6269 = vmatpush.bf16.msra.mxu0 %v6216
    %6270 = vmatpush.bf16.msra.mxu0 %v6214
    %6271 = vmatpush.bf16.msra.mxu0 %v6212
    %6272 = vmatpush.bf16.msra.mxu0 %v6210
    %6273 = vmatpush.bf16.msra.mxu0 %v6208
    %6274 = vmatpush.bf16.msra.mxu0 %v6206
    %6275 = vmatpush.bf16.msra.mxu0 %v6204
    %6276 = vmatmul.bf16.gmra.mxu0 %v6064
    %v6277 = vpop.f32.mrf.mxu0
    %v6278 = vadd.f32 0.0, %v6277
    %v6279 = vpop.f32.mrf.mxu0
    %v6280 = vadd.f32 0.0, %v6279
    %6281 = vmatmul.bf16.gmra.mxu0 %v6066
    %v6282 = vpop.f32.mrf.mxu0
    %v6283 = vadd.f32 0.0, %v6282
    %v6284 = vpop.f32.mrf.mxu0
    %v6285 = vadd.f32 0.0, %v6284
    %6286 = vmatmul.bf16.gmra.mxu0 %v6068
    %v6287 = vpop.f32.mrf.mxu0
    %v6288 = vadd.f32 0.0, %v6287
    %v6289 = vpop.f32.mrf.mxu0
    %v6290 = vadd.f32 0.0, %v6289
    %6291 = vmatmul.bf16.gmra.mxu0 %v6070
    %v6292 = vpop.f32.mrf.mxu0
    %v6293 = vadd.f32 0.0, %v6292
    %v6294 = vpop.f32.mrf.mxu0
    %v6295 = vadd.f32 0.0, %v6294
    %6296 = vmatmul.bf16.gmra.mxu0 %v6072
    %v6297 = vpop.f32.mrf.mxu0
    %v6298 = vadd.f32 0.0, %v6297
    %v6299 = vpop.f32.mrf.mxu0
    %v6300 = vadd.f32 0.0, %v6299
    %6301 = vmatmul.bf16.gmra.mxu0 %v6074
    %v6302 = vpop.f32.mrf.mxu0
    %v6303 = vadd.f32 0.0, %v6302
    %v6304 = vpop.f32.mrf.mxu0
    %v6305 = vadd.f32 0.0, %v6304
    %6306 = vdwg.mxu0
    %6307 = vmatpush.bf16.msra.mxu0 %v6234
    %6308 = vmatpush.bf16.msra.mxu0 %v6232
    %6309 = vmatpush.bf16.msra.mxu0 %v6230
    %6310 = vmatpush.bf16.msra.mxu0 %v6228
    %6311 = vmatpush.bf16.msra.mxu0 %v6226
    %6312 = vmatpush.bf16.msra.mxu0 %v6224
    %6313 = vmatpush.bf16.msra.mxu0 %v6222
    %6314 = vmatpush.bf16.msra.mxu0 %v6220
    %6315 = vmatmul.bf16.gmra.mxu0 %v6065
    %v6316 = vpop.f32.mrf.mxu0
    %v6317 = vadd.f32 %v6278, %v6316
    %v6318 = vpop.f32.mrf.mxu0
    %v6319 = vadd.f32 %v6280, %v6318
    %6320 = vmatmul.bf16.gmra.mxu0 %v6067
    %v6321 = vpop.f32.mrf.mxu0
    %v6322 = vadd.f32 %v6283, %v6321
    %v6323 = vpop.f32.mrf.mxu0
    %v6324 = vadd.f32 %v6285, %v6323
    %6325 = vmatmul.bf16.gmra.mxu0 %v6069
    %v6326 = vpop.f32.mrf.mxu0
    %v6327 = vadd.f32 %v6288, %v6326
    %v6328 = vpop.f32.mrf.mxu0
    %v6329 = vadd.f32 %v6290, %v6328
    %6330 = vmatmul.bf16.gmra.mxu0 %v6071
    %v6331 = vpop.f32.mrf.mxu0
    %v6332 = vadd.f32 %v6293, %v6331
    %v6333 = vpop.f32.mrf.mxu0
    %v6334 = vadd.f32 %v6295, %v6333
    %6335 = vmatmul.bf16.gmra.mxu0 %v6073
    %v6336 = vpop.f32.mrf.mxu0
    %v6337 = vadd.f32 %v6298, %v6336
    %v6338 = vpop.f32.mrf.mxu0
    %v6339 = vadd.f32 %v6300, %v6338
    %6340 = vmatmul.bf16.gmra.mxu0 %v6075
    %v6341 = vpop.f32.mrf.mxu0
    %v6342 = vadd.f32 %v6303, %v6341
    %v6343 = vpop.f32.mrf.mxu0
    %v6344 = vadd.f32 %v6305, %v6343
    %6345 = vdwg.mxu0
    %6346 = vmatpush.bf16.msra.mxu0 %v6219
    %6347 = vmatpush.bf16.msra.mxu0 %v6217
    %6348 = vmatpush.bf16.msra.mxu0 %v6215
    %6349 = vmatpush.bf16.msra.mxu0 %v6213
    %6350 = vmatpush.bf16.msra.mxu0 %v6211
    %6351 = vmatpush.bf16.msra.mxu0 %v6209
    %6352 = vmatpush.bf16.msra.mxu0 %v6207
    %6353 = vmatpush.bf16.msra.mxu0 %v6205
    %6354 = vmatmul.bf16.gmra.mxu0 %v6064
    %v6355 = vpop.f32.mrf.mxu0
    %v6356 = vadd.f32 0.0, %v6355
    %v6357 = vpop.f32.mrf.mxu0
    %v6358 = vadd.f32 0.0, %v6357
    %6359 = vmatmul.bf16.gmra.mxu0 %v6066
    %v6360 = vpop.f32.mrf.mxu0
    %v6361 = vadd.f32 0.0, %v6360
    %v6362 = vpop.f32.mrf.mxu0
    %v6363 = vadd.f32 0.0, %v6362
    %6364 = vmatmul.bf16.gmra.mxu0 %v6068
    %v6365 = vpop.f32.mrf.mxu0
    %v6366 = vadd.f32 0.0, %v6365
    %v6367 = vpop.f32.mrf.mxu0
    %v6368 = vadd.f32 0.0, %v6367
    %6369 = vmatmul.bf16.gmra.mxu0 %v6070
    %v6370 = vpop.f32.mrf.mxu0
    %v6371 = vadd.f32 0.0, %v6370
    %v6372 = vpop.f32.mrf.mxu0
    %v6373 = vadd.f32 0.0, %v6372
    %6374 = vmatmul.bf16.gmra.mxu0 %v6072
    %v6375 = vpop.f32.mrf.mxu0
    %v6376 = vadd.f32 0.0, %v6375
    %v6377 = vpop.f32.mrf.mxu0
    %v6378 = vadd.f32 0.0, %v6377
    %6379 = vmatmul.bf16.gmra.mxu0 %v6074
    %v6380 = vpop.f32.mrf.mxu0
    %v6381 = vadd.f32 0.0, %v6380
    %v6382 = vpop.f32.mrf.mxu0
    %v6383 = vadd.f32 0.0, %v6382
    %6384 = vdwg.mxu0
    %6385 = vmatpush.bf16.msra.mxu0 %v6235
    %6386 = vmatpush.bf16.msra.mxu0 %v6233
    %6387 = vmatpush.bf16.msra.mxu0 %v6231
    %6388 = vmatpush.bf16.msra.mxu0 %v6229
    %6389 = vmatpush.bf16.msra.mxu0 %v6227
    %6390 = vmatpush.bf16.msra.mxu0 %v6225
    %6391 = vmatpush.bf16.msra.mxu0 %v6223
    %6392 = vmatpush.bf16.msra.mxu0 %v6221
    %6393 = vmatmul.bf16.gmra.mxu0 %v6065
    %v6394 = vpop.f32.mrf.mxu0
    %v6395 = vadd.f32 %v6356, %v6394
    %v6396 = vpop.f32.mrf.mxu0
    %v6397 = vadd.f32 %v6358, %v6396
    %6398 = vmatmul.bf16.gmra.mxu0 %v6067
    %v6399 = vpop.f32.mrf.mxu0
    %v6400 = vadd.f32 %v6361, %v6399
    %v6401 = vpop.f32.mrf.mxu0
    %v6402 = vadd.f32 %v6363, %v6401
    %6403 = vmatmul.bf16.gmra.mxu0 %v6069
    %v6404 = vpop.f32.mrf.mxu0
    %v6405 = vadd.f32 %v6366, %v6404
    %v6406 = vpop.f32.mrf.mxu0
    %v6407 = vadd.f32 %v6368, %v6406
    %6408 = vmatmul.bf16.gmra.mxu0 %v6071
    %v6409 = vpop.f32.mrf.mxu0
    %v6410 = vadd.f32 %v6371, %v6409
    %v6411 = vpop.f32.mrf.mxu0
    %v6412 = vadd.f32 %v6373, %v6411
    %6413 = vmatmul.bf16.gmra.mxu0 %v6073
    %v6414 = vpop.f32.mrf.mxu0
    %v6415 = vadd.f32 %v6376, %v6414
    %v6416 = vpop.f32.mrf.mxu0
    %v6417 = vadd.f32 %v6378, %v6416
    %6418 = vmatmul.bf16.gmra.mxu0 %v6075
    %v6419 = vpop.f32.mrf.mxu0
    %v6420 = vadd.f32 %v6381, %v6419
    %v6421 = vpop.f32.mrf.mxu0
    %v6422 = vadd.f32 %v6383, %v6421
    %6423 = vdwg.mxu0
    %v6424 = vadd.f32 %v6038, %v6317
    %v6425 = vadd.f32 %v6039, %v6395
    %v6426 = vadd.f32 %v6040, %v6319
    %v6427 = vadd.f32 %v6041, %v6397
    %v6428 = vadd.f32 %v6042, %v6322
    %v6429 = vadd.f32 %v6043, %v6400
    %v6430 = vadd.f32 %v6044, %v6324
    %v6431 = vadd.f32 %v6045, %v6402
    %v6432 = vadd.f32 %v6046, %v6327
    %v6433 = vadd.f32 %v6047, %v6405
    %v6434 = vadd.f32 %v6048, %v6329
    %v6435 = vadd.f32 %v6049, %v6407
    %v6436 = vadd.f32 %v6050, %v6332
    %v6437 = vadd.f32 %v6051, %v6410
    %v6438 = vadd.f32 %v6052, %v6334
    %v6439 = vadd.f32 %v6053, %v6412
    %v6440 = vadd.f32 %v6054, %v6337
    %v6441 = vadd.f32 %v6055, %v6415
    %v6442 = vadd.f32 %v6056, %v6339
    %v6443 = vadd.f32 %v6057, %v6417
    %v6444 = vadd.f32 %v6058, %v6342
    %v6445 = vadd.f32 %v6059, %v6420
    %v6446 = vadd.f32 %v6060, %v6344
    %v6447 = vadd.f32 %v6061, %v6422
    %v6448 = vld [vmem:[#allocation4 + $0x10] sm:$0xfe]
    %v6449 = vld [vmem:[#allocation4 + $0x18] sm:$0xfe]
    %v6450 = vld [vmem:[#allocation4 + $0x20] sm:$0xff]
    %v6451 = vld [vmem:[#allocation4 + $0x28] sm:$0xff]
    %v6452 = vld [vmem:[#allocation4 + $0x30] sm:$0xff]
    %v6453 = vld [vmem:[#allocation4 + $0x38] sm:$0xff]
    %v6454 = vld [vmem:[#allocation4 + $0x40] sm:$0xff]
    %v6455 = vld [vmem:[#allocation4 + $0x48] sm:$0xff]
    %v6456 = vld [vmem:[#allocation4 + $0x50] sm:$0xff]
    %v6457 = vld [vmem:[#allocation4 + $0x58] sm:$0xff]
    %v6458 = vld [vmem:[#allocation4 + $0x60] sm:$0xff]
    %v6459 = vld [vmem:[#allocation4 + $0x68] sm:$0xff]
    %v6460 = vld [vmem:[#allocation4 + $0x70] sm:$0xff]
    %v6461 = vld [vmem:[#allocation4 + $0x78] sm:$0xff]
    %v6462 = vld [vmem:[#allocation4 + $0x80] sm:$0xff]
    %v6463 = vld [vmem:[#allocation4 + $0x88] sm:$0xff]
    %v6464 = vld [vmem:[#allocation4 + $0x90] sm:$0xff]
    %v6465 = vld [vmem:[#allocation4 + $0x98] sm:$0xff]
    %v6466 = vld [vmem:[#allocation4 + $0xa0] sm:$0xff]
    %v6467 = vld [vmem:[#allocation4 + $0xa8] sm:$0xff]
    %v6468 = vld [vmem:[#allocation4 + $0xb0] sm:$0xff]
    %v6469 = vld [vmem:[#allocation4 + $0xb8] sm:$0xff]
    %v6470 = vld [vmem:[#allocation4 + $0xc0] sm:$0xff]
    %v6471 = vld [vmem:[#allocation4 + $0xc8] sm:$0xff]
    %v6472 = vld [vmem:[#allocation4 + $0xd0] sm:$0x1]
    %v6473 = vld [vmem:[#allocation4 + $0xd8] sm:$0x1]
    %v6474 = vpack.c.bf16 %v6450, %v6448
    %v6475 = vpack.c.bf16 %v6451, %v6449
    %v6476 = vpack.c.bf16 %v6454, %v6452
    %v6477 = vpack.c.bf16 %v6455, %v6453
    %v6478 = vpack.c.bf16 %v6458, %v6456
    %v6479 = vpack.c.bf16 %v6459, %v6457
    %v6480 = vpack.c.bf16 %v6462, %v6460
    %v6481 = vpack.c.bf16 %v6463, %v6461
    %v6482 = vpack.c.bf16 %v6466, %v6464
    %v6483 = vpack.c.bf16 %v6467, %v6465
    %v6484 = vpack.c.bf16 %v6470, %v6468
    %v6485 = vpack.c.bf16 %v6471, %v6469
    %v6486 = vpack.c.bf16 %v6472, %v6472
    %v6487 = vpack.c.bf16 %v6473, %v6473
    %v6488 = vld [vmem:[#allocation5 + $0x500] sm:$0xff]
    %v6489 = vld [vmem:[#allocation5 + $0x508] sm:$0xff]
    %v6490 = vld [vmem:[#allocation5 + $0x510] sm:$0xff]
    %v6491 = vld [vmem:[#allocation5 + $0x518] sm:$0xff]
    %v6492 = vld [vmem:[#allocation5 + $0x520] sm:$0xff]
    %v6493 = vld [vmem:[#allocation5 + $0x528] sm:$0xff]
    %v6494 = vld [vmem:[#allocation5 + $0x530] sm:$0xff]
    %v6495 = vld [vmem:[#allocation5 + $0x538] sm:$0xff]
    %v6496 = vld [vmem:[#allocation5 + $0x540] sm:$0xff]
    %v6497 = vld [vmem:[#allocation5 + $0x548] sm:$0xff]
    %v6498 = vld [vmem:[#allocation5 + $0x550] sm:$0xff]
    %v6499 = vld [vmem:[#allocation5 + $0x558] sm:$0xff]
    %v6500 = vld [vmem:[#allocation5 + $0x560] sm:$0xff]
    %v6501 = vld [vmem:[#allocation5 + $0x568] sm:$0xff]
    %v6502 = vld [vmem:[#allocation5 + $0x570] sm:$0xff]
    %v6503 = vld [vmem:[#allocation5 + $0x578] sm:$0xff]
    %v6504 = vld [vmem:[#allocation5 + $0x580] sm:$0xff]
    %v6505 = vld [vmem:[#allocation5 + $0x588] sm:$0xff]
    %v6506 = vld [vmem:[#allocation5 + $0x590] sm:$0xff]
    %v6507 = vld [vmem:[#allocation5 + $0x598] sm:$0xff]
    %v6508 = vld [vmem:[#allocation5 + $0x5a0] sm:$0xff]
    %v6509 = vld [vmem:[#allocation5 + $0x5a8] sm:$0xff]
    %v6510 = vld [vmem:[#allocation5 + $0x5b0] sm:$0xff]
    %v6511 = vld [vmem:[#allocation5 + $0x5b8] sm:$0xff]
    %v6512 = vld [vmem:[#allocation5 + $0x5c0] sm:$0xff]
    %v6513 = vld [vmem:[#allocation5 + $0x5c8] sm:$0xff]
    %v6514 = vld [vmem:[#allocation5 + $0x5d0] sm:$0xff]
    %v6515 = vld [vmem:[#allocation5 + $0x5d8] sm:$0xff]
    %v6516 = vld [vmem:[#allocation5 + $0x5e0] sm:$0xff]
    %v6517 = vld [vmem:[#allocation5 + $0x5e8] sm:$0xff]
    %v6518 = vld [vmem:[#allocation5 + $0x5f0] sm:$0xff]
    %v6519 = vld [vmem:[#allocation5 + $0x5f8] sm:$0xff]
    %v6521 = vshrl.u32 %v6474, 16
    %v6523 = vshll.u32 %v6474, 16
    %v6525 = vrot.slane %v6523, 1
    %v6526 = vor.u32 %v6521, %v6525
    %v6528 = vshll.u32 %v6476, 16
    %v6530 = vrot.slane %v6528, 1
    %v6531 = vsel %vm4695, %v6526, %v6530
    %v6533 = vshrl.u32 %v6475, 16
    %v6535 = vshll.u32 %v6475, 16
    %v6537 = vrot.slane %v6535, 1
    %v6538 = vor.u32 %v6533, %v6537
    %v6540 = vshll.u32 %v6477, 16
    %v6542 = vrot.slane %v6540, 1
    %v6543 = vsel %vm4695, %v6538, %v6542
    %v6544 = vshrl.u32 %v6476, 16
    %v6546 = vor.u32 %v6544, %v6530
    %v6548 = vshll.u32 %v6478, 16
    %v6550 = vrot.slane %v6548, 1
    %v6551 = vsel %vm4695, %v6546, %v6550
    %v6552 = vshrl.u32 %v6477, 16
    %v6554 = vor.u32 %v6552, %v6542
    %v6556 = vshll.u32 %v6479, 16
    %v6558 = vrot.slane %v6556, 1
    %v6559 = vsel %vm4695, %v6554, %v6558
    %v6560 = vshrl.u32 %v6478, 16
    %v6562 = vor.u32 %v6560, %v6550
    %v6564 = vshll.u32 %v6480, 16
    %v6566 = vrot.slane %v6564, 1
    %v6567 = vsel %vm4695, %v6562, %v6566
    %v6568 = vshrl.u32 %v6479, 16
    %v6570 = vor.u32 %v6568, %v6558
    %v6572 = vshll.u32 %v6481, 16
    %v6574 = vrot.slane %v6572, 1
    %v6575 = vsel %vm4695, %v6570, %v6574
    %v6576 = vshrl.u32 %v6480, 16
    %v6578 = vor.u32 %v6576, %v6566
    %v6580 = vshll.u32 %v6482, 16
    %v6582 = vrot.slane %v6580, 1
    %v6583 = vsel %vm4695, %v6578, %v6582
    %v6584 = vshrl.u32 %v6481, 16
    %v6586 = vor.u32 %v6584, %v6574
    %v6588 = vshll.u32 %v6483, 16
    %v6590 = vrot.slane %v6588, 1
    %v6591 = vsel %vm4695, %v6586, %v6590
    %v6592 = vshrl.u32 %v6482, 16
    %v6594 = vor.u32 %v6592, %v6582
    %v6596 = vshll.u32 %v6484, 16
    %v6598 = vrot.slane %v6596, 1
    %v6599 = vsel %vm4695, %v6594, %v6598
    %v6600 = vshrl.u32 %v6483, 16
    %v6602 = vor.u32 %v6600, %v6590
    %v6604 = vshll.u32 %v6485, 16
    %v6606 = vrot.slane %v6604, 1
    %v6607 = vsel %vm4695, %v6602, %v6606
    %v6608 = vshrl.u32 %v6484, 16
    %v6610 = vor.u32 %v6608, %v6598
    %v6612 = vshll.u32 %v6486, 16
    %v6614 = vrot.slane %v6612, 1
    %v6615 = vsel %vm4695, %v6610, %v6614
    %v6616 = vshrl.u32 %v6485, 16
    %v6618 = vor.u32 %v6616, %v6606
    %v6620 = vshll.u32 %v6487, 16
    %v6622 = vrot.slane %v6620, 1
    %v6623 = vsel %vm4695, %v6618, %v6622
    %v6668 = vunpack.c.l.b16 %v6488
    %v6669 = vunpack.c.h.b16 %v6488
    %v6670 = vunpack.c.l.b16 %v6489
    %v6671 = vunpack.c.h.b16 %v6489
    %v6672 = vunpack.c.l.b16 %v6490
    %v6673 = vunpack.c.h.b16 %v6490
    %v6674 = vunpack.c.l.b16 %v6491
    %v6675 = vunpack.c.h.b16 %v6491
    %v6676 = vunpack.c.l.b16 %v6492
    %v6677 = vunpack.c.h.b16 %v6492
    %v6678 = vunpack.c.l.b16 %v6493
    %v6679 = vunpack.c.h.b16 %v6493
    %v6680 = vunpack.c.l.b16 %v6494
    %v6681 = vunpack.c.h.b16 %v6494
    %v6682 = vunpack.c.l.b16 %v6495
    %v6683 = vunpack.c.h.b16 %v6495
    %v6684 = vunpack.c.l.b16 %v6496
    %v6685 = vunpack.c.h.b16 %v6496
    %v6686 = vunpack.c.l.b16 %v6497
    %v6687 = vunpack.c.h.b16 %v6497
    %v6688 = vunpack.c.l.b16 %v6498
    %v6689 = vunpack.c.h.b16 %v6498
    %v6690 = vunpack.c.l.b16 %v6499
    %v6691 = vunpack.c.h.b16 %v6499
    %v6692 = vunpack.c.l.b16 %v6500
    %v6693 = vunpack.c.h.b16 %v6500
    %v6694 = vunpack.c.l.b16 %v6501
    %v6695 = vunpack.c.h.b16 %v6501
    %v6696 = vunpack.c.l.b16 %v6502
    %v6697 = vunpack.c.h.b16 %v6502
    %v6698 = vunpack.c.l.b16 %v6503
    %v6699 = vunpack.c.h.b16 %v6503
    %v6700 = vunpack.c.l.b16 %v6504
    %v6701 = vunpack.c.h.b16 %v6504
    %v6702 = vunpack.c.l.b16 %v6505
    %v6703 = vunpack.c.h.b16 %v6505
    %v6704 = vunpack.c.l.b16 %v6506
    %v6705 = vunpack.c.h.b16 %v6506
    %v6706 = vunpack.c.l.b16 %v6507
    %v6707 = vunpack.c.h.b16 %v6507
    %v6708 = vunpack.c.l.b16 %v6508
    %v6709 = vunpack.c.h.b16 %v6508
    %v6710 = vunpack.c.l.b16 %v6509
    %v6711 = vunpack.c.h.b16 %v6509
    %v6712 = vunpack.c.l.b16 %v6510
    %v6713 = vunpack.c.h.b16 %v6510
    %v6714 = vunpack.c.l.b16 %v6511
    %v6715 = vunpack.c.h.b16 %v6511
    %v6716 = vunpack.c.l.b16 %v6512
    %v6717 = vunpack.c.h.b16 %v6512
    %v6718 = vunpack.c.l.b16 %v6513
    %v6719 = vunpack.c.h.b16 %v6513
    %v6720 = vunpack.c.l.b16 %v6514
    %v6721 = vunpack.c.h.b16 %v6514
    %v6722 = vunpack.c.l.b16 %v6515
    %v6723 = vunpack.c.h.b16 %v6515
    %v6724 = vunpack.c.l.b16 %v6516
    %v6725 = vunpack.c.h.b16 %v6516
    %v6726 = vunpack.c.l.b16 %v6517
    %v6727 = vunpack.c.h.b16 %v6517
    %v6728 = vunpack.c.l.b16 %v6518
    %v6729 = vunpack.c.h.b16 %v6518
    %v6730 = vunpack.c.l.b16 %v6519
    %v6731 = vunpack.c.h.b16 %v6519
    %v6732 = vpack.c.b16 %v6670, %v6668
    %v6733 = vpack.c.b16 %v6671, %v6669
    %v6734 = vpack.c.b16 %v6674, %v6672
    %v6735 = vpack.c.b16 %v6675, %v6673
    %v6736 = vpack.c.b16 %v6678, %v6676
    %v6737 = vpack.c.b16 %v6679, %v6677
    %v6738 = vpack.c.b16 %v6682, %v6680
    %v6739 = vpack.c.b16 %v6683, %v6681
    %v6740 = vpack.c.b16 %v6686, %v6684
    %v6741 = vpack.c.b16 %v6687, %v6685
    %v6742 = vpack.c.b16 %v6690, %v6688
    %v6743 = vpack.c.b16 %v6691, %v6689
    %v6744 = vpack.c.b16 %v6694, %v6692
    %v6745 = vpack.c.b16 %v6695, %v6693
    %v6746 = vpack.c.b16 %v6698, %v6696
    %v6747 = vpack.c.b16 %v6699, %v6697
    %v6748 = vpack.c.b16 %v6702, %v6700
    %v6749 = vpack.c.b16 %v6703, %v6701
    %v6750 = vpack.c.b16 %v6706, %v6704
    %v6751 = vpack.c.b16 %v6707, %v6705
    %v6752 = vpack.c.b16 %v6710, %v6708
    %v6753 = vpack.c.b16 %v6711, %v6709
    %v6754 = vpack.c.b16 %v6714, %v6712
    %v6755 = vpack.c.b16 %v6715, %v6713
    %v6756 = vpack.c.b16 %v6718, %v6716
    %v6757 = vpack.c.b16 %v6719, %v6717
    %v6758 = vpack.c.b16 %v6722, %v6720
    %v6759 = vpack.c.b16 %v6723, %v6721
    %v6760 = vpack.c.b16 %v6726, %v6724
    %v6761 = vpack.c.b16 %v6727, %v6725
    %v6762 = vpack.c.b16 %v6730, %v6728
    %v6763 = vpack.c.b16 %v6731, %v6729
    %6796 = vmatpush.bf16.msra.mxu0 %v6746
    %6797 = vmatpush.bf16.msra.mxu0 %v6744
    %6798 = vmatpush.bf16.msra.mxu0 %v6742
    %6799 = vmatpush.bf16.msra.mxu0 %v6740
    %6800 = vmatpush.bf16.msra.mxu0 %v6738
    %6801 = vmatpush.bf16.msra.mxu0 %v6736
    %6802 = vmatpush.bf16.msra.mxu0 %v6734
    %6803 = vmatpush.bf16.msra.mxu0 %v6732
    %6804 = vmatmul.bf16.gmra.mxu0 %v6531
    %v6805 = vpop.f32.mrf.mxu0
    %v6806 = vadd.f32 0.0, %v6805
    %v6807 = vpop.f32.mrf.mxu0
    %v6808 = vadd.f32 0.0, %v6807
    %6809 = vmatmul.bf16.gmra.mxu0 %v6551
    %v6810 = vpop.f32.mrf.mxu0
    %v6811 = vadd.f32 0.0, %v6810
    %v6812 = vpop.f32.mrf.mxu0
    %v6813 = vadd.f32 0.0, %v6812
    %6814 = vmatmul.bf16.gmra.mxu0 %v6567
    %v6815 = vpop.f32.mrf.mxu0
    %v6816 = vadd.f32 0.0, %v6815
    %v6817 = vpop.f32.mrf.mxu0
    %v6818 = vadd.f32 0.0, %v6817
    %6819 = vmatmul.bf16.gmra.mxu0 %v6583
    %v6820 = vpop.f32.mrf.mxu0
    %v6821 = vadd.f32 0.0, %v6820
    %v6822 = vpop.f32.mrf.mxu0
    %v6823 = vadd.f32 0.0, %v6822
    %6824 = vmatmul.bf16.gmra.mxu0 %v6599
    %v6825 = vpop.f32.mrf.mxu0
    %v6826 = vadd.f32 0.0, %v6825
    %v6827 = vpop.f32.mrf.mxu0
    %v6828 = vadd.f32 0.0, %v6827
    %6829 = vmatmul.bf16.gmra.mxu0 %v6615
    %v6830 = vpop.f32.mrf.mxu0
    %v6831 = vadd.f32 0.0, %v6830
    %v6832 = vpop.f32.mrf.mxu0
    %v6833 = vadd.f32 0.0, %v6832
    %6834 = vdwg.mxu0
    %6835 = vmatpush.bf16.msra.mxu0 %v6762
    %6836 = vmatpush.bf16.msra.mxu0 %v6760
    %6837 = vmatpush.bf16.msra.mxu0 %v6758
    %6838 = vmatpush.bf16.msra.mxu0 %v6756
    %6839 = vmatpush.bf16.msra.mxu0 %v6754
    %6840 = vmatpush.bf16.msra.mxu0 %v6752
    %6841 = vmatpush.bf16.msra.mxu0 %v6750
    %6842 = vmatpush.bf16.msra.mxu0 %v6748
    %6843 = vmatmul.bf16.gmra.mxu0 %v6543
    %v6844 = vpop.f32.mrf.mxu0
    %v6845 = vadd.f32 %v6806, %v6844
    %v6846 = vpop.f32.mrf.mxu0
    %v6847 = vadd.f32 %v6808, %v6846
    %6848 = vmatmul.bf16.gmra.mxu0 %v6559
    %v6849 = vpop.f32.mrf.mxu0
    %v6850 = vadd.f32 %v6811, %v6849
    %v6851 = vpop.f32.mrf.mxu0
    %v6852 = vadd.f32 %v6813, %v6851
    %6853 = vmatmul.bf16.gmra.mxu0 %v6575
    %v6854 = vpop.f32.mrf.mxu0
    %v6855 = vadd.f32 %v6816, %v6854
    %v6856 = vpop.f32.mrf.mxu0
    %v6857 = vadd.f32 %v6818, %v6856
    %6858 = vmatmul.bf16.gmra.mxu0 %v6591
    %v6859 = vpop.f32.mrf.mxu0
    %v6860 = vadd.f32 %v6821, %v6859
    %v6861 = vpop.f32.mrf.mxu0
    %v6862 = vadd.f32 %v6823, %v6861
    %6863 = vmatmul.bf16.gmra.mxu0 %v6607
    %v6864 = vpop.f32.mrf.mxu0
    %v6865 = vadd.f32 %v6826, %v6864
    %v6866 = vpop.f32.mrf.mxu0
    %v6867 = vadd.f32 %v6828, %v6866
    %6868 = vmatmul.bf16.gmra.mxu0 %v6623
    %v6869 = vpop.f32.mrf.mxu0
    %v6870 = vadd.f32 %v6831, %v6869
    %v6871 = vpop.f32.mrf.mxu0
    %v6872 = vadd.f32 %v6833, %v6871
    %6873 = vdwg.mxu0
    %6874 = vmatpush.bf16.msra.mxu0 %v6747
    %6875 = vmatpush.bf16.msra.mxu0 %v6745
    %6876 = vmatpush.bf16.msra.mxu0 %v6743
    %6877 = vmatpush.bf16.msra.mxu0 %v6741
    %6878 = vmatpush.bf16.msra.mxu0 %v6739
    %6879 = vmatpush.bf16.msra.mxu0 %v6737
    %6880 = vmatpush.bf16.msra.mxu0 %v6735
    %6881 = vmatpush.bf16.msra.mxu0 %v6733
    %6882 = vmatmul.bf16.gmra.mxu0 %v6531
    %v6883 = vpop.f32.mrf.mxu0
    %v6884 = vadd.f32 0.0, %v6883
    %v6885 = vpop.f32.mrf.mxu0
    %v6886 = vadd.f32 0.0, %v6885
    %6887 = vmatmul.bf16.gmra.mxu0 %v6551
    %v6888 = vpop.f32.mrf.mxu0
    %v6889 = vadd.f32 0.0, %v6888
    %v6890 = vpop.f32.mrf.mxu0
    %v6891 = vadd.f32 0.0, %v6890
    %6892 = vmatmul.bf16.gmra.mxu0 %v6567
    %v6893 = vpop.f32.mrf.mxu0
    %v6894 = vadd.f32 0.0, %v6893
    %v6895 = vpop.f32.mrf.mxu0
    %v6896 = vadd.f32 0.0, %v6895
    %6897 = vmatmul.bf16.gmra.mxu0 %v6583
    %v6898 = vpop.f32.mrf.mxu0
    %v6899 = vadd.f32 0.0, %v6898
    %v6900 = vpop.f32.mrf.mxu0
    %v6901 = vadd.f32 0.0, %v6900
    %6902 = vmatmul.bf16.gmra.mxu0 %v6599
    %v6903 = vpop.f32.mrf.mxu0
    %v6904 = vadd.f32 0.0, %v6903
    %v6905 = vpop.f32.mrf.mxu0
    %v6906 = vadd.f32 0.0, %v6905
    %6907 = vmatmul.bf16.gmra.mxu0 %v6615
    %v6908 = vpop.f32.mrf.mxu0
    %v6909 = vadd.f32 0.0, %v6908
    %v6910 = vpop.f32.mrf.mxu0
    %v6911 = vadd.f32 0.0, %v6910
    %6912 = vdwg.mxu0
    %6913 = vmatpush.bf16.msra.mxu0 %v6763
    %6914 = vmatpush.bf16.msra.mxu0 %v6761
    %6915 = vmatpush.bf16.msra.mxu0 %v6759
    %6916 = vmatpush.bf16.msra.mxu0 %v6757
    %6917 = vmatpush.bf16.msra.mxu0 %v6755
    %6918 = vmatpush.bf16.msra.mxu0 %v6753
    %6919 = vmatpush.bf16.msra.mxu0 %v6751
    %6920 = vmatpush.bf16.msra.mxu0 %v6749
    %6921 = vmatmul.bf16.gmra.mxu0 %v6543
    %v6922 = vpop.f32.mrf.mxu0
    %v6923 = vadd.f32 %v6884, %v6922
    %v6924 = vpop.f32.mrf.mxu0
    %v6925 = vadd.f32 %v6886, %v6924
    %6926 = vmatmul.bf16.gmra.mxu0 %v6559
    %v6927 = vpop.f32.mrf.mxu0
    %v6928 = vadd.f32 %v6889, %v6927
    %v6929 = vpop.f32.mrf.mxu0
    %v6930 = vadd.f32 %v6891, %v6929
    %6931 = vmatmul.bf16.gmra.mxu0 %v6575
    %v6932 = vpop.f32.mrf.mxu0
    %v6933 = vadd.f32 %v6894, %v6932
    %v6934 = vpop.f32.mrf.mxu0
    %v6935 = vadd.f32 %v6896, %v6934
    %6936 = vmatmul.bf16.gmra.mxu0 %v6591
    %v6937 = vpop.f32.mrf.mxu0
    %v6938 = vadd.f32 %v6899, %v6937
    %v6939 = vpop.f32.mrf.mxu0
    %v6940 = vadd.f32 %v6901, %v6939
    %6941 = vmatmul.bf16.gmra.mxu0 %v6607
    %v6942 = vpop.f32.mrf.mxu0
    %v6943 = vadd.f32 %v6904, %v6942
    %v6944 = vpop.f32.mrf.mxu0
    %v6945 = vadd.f32 %v6906, %v6944
    %6946 = vmatmul.bf16.gmra.mxu0 %v6623
    %v6947 = vpop.f32.mrf.mxu0
    %v6948 = vadd.f32 %v6909, %v6947
    %v6949 = vpop.f32.mrf.mxu0
    %v6950 = vadd.f32 %v6911, %v6949
    %6951 = vdwg.mxu0
    %v6952 = vadd.f32 %v6424, %v6845
    %v6953 = vadd.f32 %v6425, %v6923
    %v6954 = vadd.f32 %v6426, %v6847
    %v6955 = vadd.f32 %v6427, %v6925
    %v6956 = vadd.f32 %v6428, %v6850
    %v6957 = vadd.f32 %v6429, %v6928
    %v6958 = vadd.f32 %v6430, %v6852
    %v6959 = vadd.f32 %v6431, %v6930
    %v6960 = vadd.f32 %v6432, %v6855
    %v6961 = vadd.f32 %v6433, %v6933
    %v6962 = vadd.f32 %v6434, %v6857
    %v6963 = vadd.f32 %v6435, %v6935
    %v6964 = vadd.f32 %v6436, %v6860
    %v6965 = vadd.f32 %v6437, %v6938
    %v6966 = vadd.f32 %v6438, %v6862
    %v6967 = vadd.f32 %v6439, %v6940
    %v6968 = vadd.f32 %v6440, %v6865
    %v6969 = vadd.f32 %v6441, %v6943
    %v6970 = vadd.f32 %v6442, %v6867
    %v6971 = vadd.f32 %v6443, %v6945
    %v6972 = vadd.f32 %v6444, %v6870
    %v6973 = vadd.f32 %v6445, %v6948
    %v6974 = vadd.f32 %v6446, %v6872
    %v6975 = vadd.f32 %v6447, %v6950
    %v6976 = vld [vmem:[#allocation4 + $0x10] sm:$0xe0]
    %v6977 = vld [vmem:[#allocation4 + $0x18] sm:$0xe0]
    %v6978 = vld [vmem:[#allocation4 + $0xd0] sm:$0x1f]
    %v6979 = vld [vmem:[#allocation4 + $0xd8] sm:$0x1f]
    %v6980 = vpack.c.bf16 %v6450, %v6976
    %v6981 = vpack.c.bf16 %v6451, %v6977
    %v6982 = vpack.c.bf16 %v6978, %v6978
    %v6983 = vpack.c.bf16 %v6979, %v6979
    %v6984 = vld [vmem:[#allocation5 + $0x600] sm:$0xff]
    %v6985 = vld [vmem:[#allocation5 + $0x608] sm:$0xff]
    %v6986 = vld [vmem:[#allocation5 + $0x610] sm:$0xff]
    %v6987 = vld [vmem:[#allocation5 + $0x618] sm:$0xff]
    %v6988 = vld [vmem:[#allocation5 + $0x620] sm:$0xff]
    %v6989 = vld [vmem:[#allocation5 + $0x628] sm:$0xff]
    %v6990 = vld [vmem:[#allocation5 + $0x630] sm:$0xff]
    %v6991 = vld [vmem:[#allocation5 + $0x638] sm:$0xff]
    %v6992 = vld [vmem:[#allocation5 + $0x640] sm:$0xff]
    %v6993 = vld [vmem:[#allocation5 + $0x648] sm:$0xff]
    %v6994 = vld [vmem:[#allocation5 + $0x650] sm:$0xff]
    %v6995 = vld [vmem:[#allocation5 + $0x658] sm:$0xff]
    %v6996 = vld [vmem:[#allocation5 + $0x660] sm:$0xff]
    %v6997 = vld [vmem:[#allocation5 + $0x668] sm:$0xff]
    %v6998 = vld [vmem:[#allocation5 + $0x670] sm:$0xff]
    %v6999 = vld [vmem:[#allocation5 + $0x678] sm:$0xff]
    %v7000 = vld [vmem:[#allocation5 + $0x680] sm:$0xff]
    %v7001 = vld [vmem:[#allocation5 + $0x688] sm:$0xff]
    %v7002 = vld [vmem:[#allocation5 + $0x690] sm:$0xff]
    %v7003 = vld [vmem:[#allocation5 + $0x698] sm:$0xff]
    %v7004 = vld [vmem:[#allocation5 + $0x6a0] sm:$0xff]
    %v7005 = vld [vmem:[#allocation5 + $0x6a8] sm:$0xff]
    %v7006 = vld [vmem:[#allocation5 + $0x6b0] sm:$0xff]
    %v7007 = vld [vmem:[#allocation5 + $0x6b8] sm:$0xff]
    %v7008 = vld [vmem:[#allocation5 + $0x6c0] sm:$0xff]
    %v7009 = vld [vmem:[#allocation5 + $0x6c8] sm:$0xff]
    %v7010 = vld [vmem:[#allocation5 + $0x6d0] sm:$0xff]
    %v7011 = vld [vmem:[#allocation5 + $0x6d8] sm:$0xff]
    %v7012 = vld [vmem:[#allocation5 + $0x6e0] sm:$0xff]
    %v7013 = vld [vmem:[#allocation5 + $0x6e8] sm:$0xff]
    %v7014 = vld [vmem:[#allocation5 + $0x6f0] sm:$0xff]
    %v7015 = vld [vmem:[#allocation5 + $0x6f8] sm:$0xff]
    %vm7016 = vsmask.f32 5376
    %v7018 = vshrl.u32 %v6980, 16
    %v7020 = vrot.slane %v7018, 2
    %v7021 = vshll.u32 %v6980, 16
    %v7023 = vrot.slane %v7021, 3
    %v7024 = vor.u32 %v7020, %v7023
    %v7025 = vrot.slane %v6544, 2
    %v7026 = vrot.slane %v6528, 3
    %v7027 = vor.u32 %v7025, %v7026
    %v7028 = vsel %vm7016, %v7024, %v7027
    %v7030 = vshrl.u32 %v6981, 16
    %v7032 = vrot.slane %v7030, 2
    %v7033 = vshll.u32 %v6981, 16
    %v7035 = vrot.slane %v7033, 3
    %v7036 = vor.u32 %v7032, %v7035
    %v7037 = vrot.slane %v6552, 2
    %v7038 = vrot.slane %v6540, 3
    %v7039 = vor.u32 %v7037, %v7038
    %v7040 = vsel %vm7016, %v7036, %v7039
    %v7041 = vrot.slane %v6560, 2
    %v7042 = vrot.slane %v6548, 3
    %v7043 = vor.u32 %v7041, %v7042
    %v7044 = vsel %vm7016, %v7027, %v7043
    %v7045 = vrot.slane %v6568, 2
    %v7046 = vrot.slane %v6556, 3
    %v7047 = vor.u32 %v7045, %v7046
    %v7048 = vsel %vm7016, %v7039, %v7047
    %v7049 = vrot.slane %v6576, 2
    %v7050 = vrot.slane %v6564, 3
    %v7051 = vor.u32 %v7049, %v7050
    %v7052 = vsel %vm7016, %v7043, %v7051
    %v7053 = vrot.slane %v6584, 2
    %v7054 = vrot.slane %v6572, 3
    %v7055 = vor.u32 %v7053, %v7054
    %v7056 = vsel %vm7016, %v7047, %v7055
    %v7057 = vrot.slane %v6592, 2
    %v7058 = vrot.slane %v6580, 3
    %v7059 = vor.u32 %v7057, %v7058
    %v7060 = vsel %vm7016, %v7051, %v7059
    %v7061 = vrot.slane %v6600, 2
    %v7062 = vrot.slane %v6588, 3
    %v7063 = vor.u32 %v7061, %v7062
    %v7064 = vsel %vm7016, %v7055, %v7063
    %v7065 = vrot.slane %v6608, 2
    %v7066 = vrot.slane %v6596, 3
    %v7067 = vor.u32 %v7065, %v7066
    %v7068 = vsel %vm7016, %v7059, %v7067
    %v7069 = vrot.slane %v6616, 2
    %v7070 = vrot.slane %v6604, 3
    %v7071 = vor.u32 %v7069, %v7070
    %v7072 = vsel %vm7016, %v7063, %v7071
    %v7074 = vshrl.u32 %v6982, 16
    %v7076 = vrot.slane %v7074, 2
    %v7077 = vshll.u32 %v6982, 16
    %v7079 = vrot.slane %v7077, 3
    %v7080 = vor.u32 %v7076, %v7079
    %v7081 = vsel %vm7016, %v7067, %v7080
    %v7083 = vshrl.u32 %v6983, 16
    %v7085 = vrot.slane %v7083, 2
    %v7086 = vshll.u32 %v6983, 16
    %v7088 = vrot.slane %v7086, 3
    %v7089 = vor.u32 %v7085, %v7088
    %v7090 = vsel %vm7016, %v7071, %v7089
    %v7135 = vunpack.c.l.b16 %v6984
    %v7136 = vunpack.c.h.b16 %v6984
    %v7137 = vunpack.c.l.b16 %v6985
    %v7138 = vunpack.c.h.b16 %v6985
    %v7139 = vunpack.c.l.b16 %v6986
    %v7140 = vunpack.c.h.b16 %v6986
    %v7141 = vunpack.c.l.b16 %v6987
    %v7142 = vunpack.c.h.b16 %v6987
    %v7143 = vunpack.c.l.b16 %v6988
    %v7144 = vunpack.c.h.b16 %v6988
    %v7145 = vunpack.c.l.b16 %v6989
    %v7146 = vunpack.c.h.b16 %v6989
    %v7147 = vunpack.c.l.b16 %v6990
    %v7148 = vunpack.c.h.b16 %v6990
    %v7149 = vunpack.c.l.b16 %v6991
    %v7150 = vunpack.c.h.b16 %v6991
    %v7151 = vunpack.c.l.b16 %v6992
    %v7152 = vunpack.c.h.b16 %v6992
    %v7153 = vunpack.c.l.b16 %v6993
    %v7154 = vunpack.c.h.b16 %v6993
    %v7155 = vunpack.c.l.b16 %v6994
    %v7156 = vunpack.c.h.b16 %v6994
    %v7157 = vunpack.c.l.b16 %v6995
    %v7158 = vunpack.c.h.b16 %v6995
    %v7159 = vunpack.c.l.b16 %v6996
    %v7160 = vunpack.c.h.b16 %v6996
    %v7161 = vunpack.c.l.b16 %v6997
    %v7162 = vunpack.c.h.b16 %v6997
    %v7163 = vunpack.c.l.b16 %v6998
    %v7164 = vunpack.c.h.b16 %v6998
    %v7165 = vunpack.c.l.b16 %v6999
    %v7166 = vunpack.c.h.b16 %v6999
    %v7167 = vunpack.c.l.b16 %v7000
    %v7168 = vunpack.c.h.b16 %v7000
    %v7169 = vunpack.c.l.b16 %v7001
    %v7170 = vunpack.c.h.b16 %v7001
    %v7171 = vunpack.c.l.b16 %v7002
    %v7172 = vunpack.c.h.b16 %v7002
    %v7173 = vunpack.c.l.b16 %v7003
    %v7174 = vunpack.c.h.b16 %v7003
    %v7175 = vunpack.c.l.b16 %v7004
    %v7176 = vunpack.c.h.b16 %v7004
    %v7177 = vunpack.c.l.b16 %v7005
    %v7178 = vunpack.c.h.b16 %v7005
    %v7179 = vunpack.c.l.b16 %v7006
    %v7180 = vunpack.c.h.b16 %v7006
    %v7181 = vunpack.c.l.b16 %v7007
    %v7182 = vunpack.c.h.b16 %v7007
    %v7183 = vunpack.c.l.b16 %v7008
    %v7184 = vunpack.c.h.b16 %v7008
    %v7185 = vunpack.c.l.b16 %v7009
    %v7186 = vunpack.c.h.b16 %v7009
    %v7187 = vunpack.c.l.b16 %v7010
    %v7188 = vunpack.c.h.b16 %v7010
    %v7189 = vunpack.c.l.b16 %v7011
    %v7190 = vunpack.c.h.b16 %v7011
    %v7191 = vunpack.c.l.b16 %v7012
    %v7192 = vunpack.c.h.b16 %v7012
    %v7193 = vunpack.c.l.b16 %v7013
    %v7194 = vunpack.c.h.b16 %v7013
    %v7195 = vunpack.c.l.b16 %v7014
    %v7196 = vunpack.c.h.b16 %v7014
    %v7197 = vunpack.c.l.b16 %v7015
    %v7198 = vunpack.c.h.b16 %v7015
    %v7199 = vpack.c.b16 %v7137, %v7135
    %v7200 = vpack.c.b16 %v7138, %v7136
    %v7201 = vpack.c.b16 %v7141, %v7139
    %v7202 = vpack.c.b16 %v7142, %v7140
    %v7203 = vpack.c.b16 %v7145, %v7143
    %v7204 = vpack.c.b16 %v7146, %v7144
    %v7205 = vpack.c.b16 %v7149, %v7147
    %v7206 = vpack.c.b16 %v7150, %v7148
    %v7207 = vpack.c.b16 %v7153, %v7151
    %v7208 = vpack.c.b16 %v7154, %v7152
    %v7209 = vpack.c.b16 %v7157, %v7155
    %v7210 = vpack.c.b16 %v7158, %v7156
    %v7211 = vpack.c.b16 %v7161, %v7159
    %v7212 = vpack.c.b16 %v7162, %v7160
    %v7213 = vpack.c.b16 %v7165, %v7163
    %v7214 = vpack.c.b16 %v7166, %v7164
    %v7215 = vpack.c.b16 %v7169, %v7167
    %v7216 = vpack.c.b16 %v7170, %v7168
    %v7217 = vpack.c.b16 %v7173, %v7171
    %v7218 = vpack.c.b16 %v7174, %v7172
    %v7219 = vpack.c.b16 %v7177, %v7175
    %v7220 = vpack.c.b16 %v7178, %v7176
    %v7221 = vpack.c.b16 %v7181, %v7179
    %v7222 = vpack.c.b16 %v7182, %v7180
    %v7223 = vpack.c.b16 %v7185, %v7183
    %v7224 = vpack.c.b16 %v7186, %v7184
    %v7225 = vpack.c.b16 %v7189, %v7187
    %v7226 = vpack.c.b16 %v7190, %v7188
    %v7227 = vpack.c.b16 %v7193, %v7191
    %v7228 = vpack.c.b16 %v7194, %v7192
    %v7229 = vpack.c.b16 %v7197, %v7195
    %v7230 = vpack.c.b16 %v7198, %v7196
    %7263 = vmatpush.bf16.msra.mxu0 %v7213
    %7264 = vmatpush.bf16.msra.mxu0 %v7211
    %7265 = vmatpush.bf16.msra.mxu0 %v7209
    %7266 = vmatpush.bf16.msra.mxu0 %v7207
    %7267 = vmatpush.bf16.msra.mxu0 %v7205
    %7268 = vmatpush.bf16.msra.mxu0 %v7203
    %7269 = vmatpush.bf16.msra.mxu0 %v7201
    %7270 = vmatpush.bf16.msra.mxu0 %v7199
    %7271 = vmatmul.bf16.gmra.mxu0 %v7028
    %v7272 = vpop.f32.mrf.mxu0
    %v7273 = vadd.f32 0.0, %v7272
    %v7274 = vpop.f32.mrf.mxu0
    %v7275 = vadd.f32 0.0, %v7274
    %7276 = vmatmul.bf16.gmra.mxu0 %v7044
    %v7277 = vpop.f32.mrf.mxu0
    %v7278 = vadd.f32 0.0, %v7277
    %v7279 = vpop.f32.mrf.mxu0
    %v7280 = vadd.f32 0.0, %v7279
    %7281 = vmatmul.bf16.gmra.mxu0 %v7052
    %v7282 = vpop.f32.mrf.mxu0
    %v7283 = vadd.f32 0.0, %v7282
    %v7284 = vpop.f32.mrf.mxu0
    %v7285 = vadd.f32 0.0, %v7284
    %7286 = vmatmul.bf16.gmra.mxu0 %v7060
    %v7287 = vpop.f32.mrf.mxu0
    %v7288 = vadd.f32 0.0, %v7287
    %v7289 = vpop.f32.mrf.mxu0
    %v7290 = vadd.f32 0.0, %v7289
    %7291 = vmatmul.bf16.gmra.mxu0 %v7068
    %v7292 = vpop.f32.mrf.mxu0
    %v7293 = vadd.f32 0.0, %v7292
    %v7294 = vpop.f32.mrf.mxu0
    %v7295 = vadd.f32 0.0, %v7294
    %7296 = vmatmul.bf16.gmra.mxu0 %v7081
    %v7297 = vpop.f32.mrf.mxu0
    %v7298 = vadd.f32 0.0, %v7297
    %v7299 = vpop.f32.mrf.mxu0
    %v7300 = vadd.f32 0.0, %v7299
    %7301 = vdwg.mxu0
    %7302 = vmatpush.bf16.msra.mxu0 %v7229
    %7303 = vmatpush.bf16.msra.mxu0 %v7227
    %7304 = vmatpush.bf16.msra.mxu0 %v7225
    %7305 = vmatpush.bf16.msra.mxu0 %v7223
    %7306 = vmatpush.bf16.msra.mxu0 %v7221
    %7307 = vmatpush.bf16.msra.mxu0 %v7219
    %7308 = vmatpush.bf16.msra.mxu0 %v7217
    %7309 = vmatpush.bf16.msra.mxu0 %v7215
    %7310 = vmatmul.bf16.gmra.mxu0 %v7040
    %v7311 = vpop.f32.mrf.mxu0
    %v7312 = vadd.f32 %v7273, %v7311
    %v7313 = vpop.f32.mrf.mxu0
    %v7314 = vadd.f32 %v7275, %v7313
    %7315 = vmatmul.bf16.gmra.mxu0 %v7048
    %v7316 = vpop.f32.mrf.mxu0
    %v7317 = vadd.f32 %v7278, %v7316
    %v7318 = vpop.f32.mrf.mxu0
    %v7319 = vadd.f32 %v7280, %v7318
    %7320 = vmatmul.bf16.gmra.mxu0 %v7056
    %v7321 = vpop.f32.mrf.mxu0
    %v7322 = vadd.f32 %v7283, %v7321
    %v7323 = vpop.f32.mrf.mxu0
    %v7324 = vadd.f32 %v7285, %v7323
    %7325 = vmatmul.bf16.gmra.mxu0 %v7064
    %v7326 = vpop.f32.mrf.mxu0
    %v7327 = vadd.f32 %v7288, %v7326
    %v7328 = vpop.f32.mrf.mxu0
    %v7329 = vadd.f32 %v7290, %v7328
    %7330 = vmatmul.bf16.gmra.mxu0 %v7072
    %v7331 = vpop.f32.mrf.mxu0
    %v7332 = vadd.f32 %v7293, %v7331
    %v7333 = vpop.f32.mrf.mxu0
    %v7334 = vadd.f32 %v7295, %v7333
    %7335 = vmatmul.bf16.gmra.mxu0 %v7090
    %v7336 = vpop.f32.mrf.mxu0
    %v7337 = vadd.f32 %v7298, %v7336
    %v7338 = vpop.f32.mrf.mxu0
    %v7339 = vadd.f32 %v7300, %v7338
    %7340 = vdwg.mxu0
    %7341 = vmatpush.bf16.msra.mxu0 %v7214
    %7342 = vmatpush.bf16.msra.mxu0 %v7212
    %7343 = vmatpush.bf16.msra.mxu0 %v7210
    %7344 = vmatpush.bf16.msra.mxu0 %v7208
    %7345 = vmatpush.bf16.msra.mxu0 %v7206
    %7346 = vmatpush.bf16.msra.mxu0 %v7204
    %7347 = vmatpush.bf16.msra.mxu0 %v7202
    %7348 = vmatpush.bf16.msra.mxu0 %v7200
    %7349 = vmatmul.bf16.gmra.mxu0 %v7028
    %v7350 = vpop.f32.mrf.mxu0
    %v7351 = vadd.f32 0.0, %v7350
    %v7352 = vpop.f32.mrf.mxu0
    %v7353 = vadd.f32 0.0, %v7352
    %7354 = vmatmul.bf16.gmra.mxu0 %v7044
    %v7355 = vpop.f32.mrf.mxu0
    %v7356 = vadd.f32 0.0, %v7355
    %v7357 = vpop.f32.mrf.mxu0
    %v7358 = vadd.f32 0.0, %v7357
    %7359 = vmatmul.bf16.gmra.mxu0 %v7052
    %v7360 = vpop.f32.mrf.mxu0
    %v7361 = vadd.f32 0.0, %v7360
    %v7362 = vpop.f32.mrf.mxu0
    %v7363 = vadd.f32 0.0, %v7362
    %7364 = vmatmul.bf16.gmra.mxu0 %v7060
    %v7365 = vpop.f32.mrf.mxu0
    %v7366 = vadd.f32 0.0, %v7365
    %v7367 = vpop.f32.mrf.mxu0
    %v7368 = vadd.f32 0.0, %v7367
    %7369 = vmatmul.bf16.gmra.mxu0 %v7068
    %v7370 = vpop.f32.mrf.mxu0
    %v7371 = vadd.f32 0.0, %v7370
    %v7372 = vpop.f32.mrf.mxu0
    %v7373 = vadd.f32 0.0, %v7372
    %7374 = vmatmul.bf16.gmra.mxu0 %v7081
    %v7375 = vpop.f32.mrf.mxu0
    %v7376 = vadd.f32 0.0, %v7375
    %v7377 = vpop.f32.mrf.mxu0
    %v7378 = vadd.f32 0.0, %v7377
    %7379 = vdwg.mxu0
    %7380 = vmatpush.bf16.msra.mxu0 %v7230
    %7381 = vmatpush.bf16.msra.mxu0 %v7228
    %7382 = vmatpush.bf16.msra.mxu0 %v7226
    %7383 = vmatpush.bf16.msra.mxu0 %v7224
    %7384 = vmatpush.bf16.msra.mxu0 %v7222
    %7385 = vmatpush.bf16.msra.mxu0 %v7220
    %7386 = vmatpush.bf16.msra.mxu0 %v7218
    %7387 = vmatpush.bf16.msra.mxu0 %v7216
    %7388 = vmatmul.bf16.gmra.mxu0 %v7040
    %v7389 = vpop.f32.mrf.mxu0
    %v7390 = vadd.f32 %v7351, %v7389
    %v7391 = vpop.f32.mrf.mxu0
    %v7392 = vadd.f32 %v7353, %v7391
    %7393 = vmatmul.bf16.gmra.mxu0 %v7048
    %v7394 = vpop.f32.mrf.mxu0
    %v7395 = vadd.f32 %v7356, %v7394
    %v7396 = vpop.f32.mrf.mxu0
    %v7397 = vadd.f32 %v7358, %v7396
    %7398 = vmatmul.bf16.gmra.mxu0 %v7056
    %v7399 = vpop.f32.mrf.mxu0
    %v7400 = vadd.f32 %v7361, %v7399
    %v7401 = vpop.f32.mrf.mxu0
    %v7402 = vadd.f32 %v7363, %v7401
    %7403 = vmatmul.bf16.gmra.mxu0 %v7064
    %v7404 = vpop.f32.mrf.mxu0
    %v7405 = vadd.f32 %v7366, %v7404
    %v7406 = vpop.f32.mrf.mxu0
    %v7407 = vadd.f32 %v7368, %v7406
    %7408 = vmatmul.bf16.gmra.mxu0 %v7072
    %v7409 = vpop.f32.mrf.mxu0
    %v7410 = vadd.f32 %v7371, %v7409
    %v7411 = vpop.f32.mrf.mxu0
    %v7412 = vadd.f32 %v7373, %v7411
    %7413 = vmatmul.bf16.gmra.mxu0 %v7090
    %v7414 = vpop.f32.mrf.mxu0
    %v7415 = vadd.f32 %v7376, %v7414
    %v7416 = vpop.f32.mrf.mxu0
    %v7417 = vadd.f32 %v7378, %v7416
    %7418 = vdwg.mxu0
    %v7419 = vadd.f32 %v6952, %v7312
    %v7420 = vadd.f32 %v6953, %v7390
    %v7421 = vadd.f32 %v6954, %v7314
    %v7422 = vadd.f32 %v6955, %v7392
    %v7423 = vadd.f32 %v6956, %v7317
    %v7424 = vadd.f32 %v6957, %v7395
    %v7425 = vadd.f32 %v6958, %v7319
    %v7426 = vadd.f32 %v6959, %v7397
    %v7427 = vadd.f32 %v6960, %v7322
    %v7428 = vadd.f32 %v6961, %v7400
    %v7429 = vadd.f32 %v6962, %v7324
    %v7430 = vadd.f32 %v6963, %v7402
    %v7431 = vadd.f32 %v6964, %v7327
    %v7432 = vadd.f32 %v6965, %v7405
    %v7433 = vadd.f32 %v6966, %v7329
    %v7434 = vadd.f32 %v6967, %v7407
    %v7435 = vadd.f32 %v6968, %v7332
    %v7436 = vadd.f32 %v6969, %v7410
    %v7437 = vadd.f32 %v6970, %v7334
    %v7438 = vadd.f32 %v6971, %v7412
    %v7439 = vadd.f32 %v6972, %v7337
    %v7440 = vadd.f32 %v6973, %v7415
    %v7441 = vadd.f32 %v6974, %v7339
    %v7442 = vadd.f32 %v6975, %v7417
    %v7443 = vld [vmem:[#allocation4 + $0x10] sm:$0xc0]
    %v7444 = vld [vmem:[#allocation4 + $0x18] sm:$0xc0]
    %v7445 = vld [vmem:[#allocation4 + $0xd0] sm:$0x3f]
    %v7446 = vld [vmem:[#allocation4 + $0xd8] sm:$0x3f]
    %v7447 = vpack.c.bf16 %v6450, %v7443
    %v7448 = vpack.c.bf16 %v6451, %v7444
    %v7449 = vpack.c.bf16 %v7445, %v7445
    %v7450 = vpack.c.bf16 %v7446, %v7446
    %v7451 = vld [vmem:[#allocation5 + $0x700] sm:$0xff]
    %v7452 = vld [vmem:[#allocation5 + $0x708] sm:$0xff]
    %v7453 = vld [vmem:[#allocation5 + $0x710] sm:$0xff]
    %v7454 = vld [vmem:[#allocation5 + $0x718] sm:$0xff]
    %v7455 = vld [vmem:[#allocation5 + $0x720] sm:$0xff]
    %v7456 = vld [vmem:[#allocation5 + $0x728] sm:$0xff]
    %v7457 = vld [vmem:[#allocation5 + $0x730] sm:$0xff]
    %v7458 = vld [vmem:[#allocation5 + $0x738] sm:$0xff]
    %v7459 = vld [vmem:[#allocation5 + $0x740] sm:$0xff]
    %v7460 = vld [vmem:[#allocation5 + $0x748] sm:$0xff]
    %v7461 = vld [vmem:[#allocation5 + $0x750] sm:$0xff]
    %v7462 = vld [vmem:[#allocation5 + $0x758] sm:$0xff]
    %v7463 = vld [vmem:[#allocation5 + $0x760] sm:$0xff]
    %v7464 = vld [vmem:[#allocation5 + $0x768] sm:$0xff]
    %v7465 = vld [vmem:[#allocation5 + $0x770] sm:$0xff]
    %v7466 = vld [vmem:[#allocation5 + $0x778] sm:$0xff]
    %v7467 = vld [vmem:[#allocation5 + $0x780] sm:$0xff]
    %v7468 = vld [vmem:[#allocation5 + $0x788] sm:$0xff]
    %v7469 = vld [vmem:[#allocation5 + $0x790] sm:$0xff]
    %v7470 = vld [vmem:[#allocation5 + $0x798] sm:$0xff]
    %v7471 = vld [vmem:[#allocation5 + $0x7a0] sm:$0xff]
    %v7472 = vld [vmem:[#allocation5 + $0x7a8] sm:$0xff]
    %v7473 = vld [vmem:[#allocation5 + $0x7b0] sm:$0xff]
    %v7474 = vld [vmem:[#allocation5 + $0x7b8] sm:$0xff]
    %v7475 = vld [vmem:[#allocation5 + $0x7c0] sm:$0xff]
    %v7476 = vld [vmem:[#allocation5 + $0x7c8] sm:$0xff]
    %v7477 = vld [vmem:[#allocation5 + $0x7d0] sm:$0xff]
    %v7478 = vld [vmem:[#allocation5 + $0x7d8] sm:$0xff]
    %v7479 = vld [vmem:[#allocation5 + $0x7e0] sm:$0xff]
    %v7480 = vld [vmem:[#allocation5 + $0x7e8] sm:$0xff]
    %v7481 = vld [vmem:[#allocation5 + $0x7f0] sm:$0xff]
    %v7482 = vld [vmem:[#allocation5 + $0x7f8] sm:$0xff]
    %vm7497 = vcmask 1044480
    %v7498 = vrot.slane %v7447, 3
    %v7499 = vrot.slane %v6476, 3
    %v7500 = vsel %vm7497, %v7498, %v7499
    %v7501 = vrot.slane %v7448, 3
    %v7502 = vrot.slane %v6477, 3
    %v7503 = vsel %vm7497, %v7501, %v7502
    %v7504 = vrot.slane %v6478, 3
    %v7505 = vsel %vm7497, %v7499, %v7504
    %v7506 = vrot.slane %v6479, 3
    %v7507 = vsel %vm7497, %v7502, %v7506
    %v7508 = vrot.slane %v6480, 3
    %v7509 = vsel %vm7497, %v7504, %v7508
    %v7510 = vrot.slane %v6481, 3
    %v7511 = vsel %vm7497, %v7506, %v7510
    %v7512 = vrot.slane %v6482, 3
    %v7513 = vsel %vm7497, %v7508, %v7512
    %v7514 = vrot.slane %v6483, 3
    %v7515 = vsel %vm7497, %v7510, %v7514
    %v7516 = vrot.slane %v6484, 3
    %v7517 = vsel %vm7497, %v7512, %v7516
    %v7518 = vrot.slane %v6485, 3
    %v7519 = vsel %vm7497, %v7514, %v7518
    %v7520 = vrot.slane %v7449, 3
    %v7521 = vsel %vm7497, %v7516, %v7520
    %v7522 = vrot.slane %v7450, 3
    %v7523 = vsel %vm7497, %v7518, %v7522
    %v7568 = vunpack.c.l.b16 %v7451
    %v7569 = vunpack.c.h.b16 %v7451
    %v7570 = vunpack.c.l.b16 %v7452
    %v7571 = vunpack.c.h.b16 %v7452
    %v7572 = vunpack.c.l.b16 %v7453
    %v7573 = vunpack.c.h.b16 %v7453
    %v7574 = vunpack.c.l.b16 %v7454
    %v7575 = vunpack.c.h.b16 %v7454
    %v7576 = vunpack.c.l.b16 %v7455
    %v7577 = vunpack.c.h.b16 %v7455
    %v7578 = vunpack.c.l.b16 %v7456
    %v7579 = vunpack.c.h.b16 %v7456
    %v7580 = vunpack.c.l.b16 %v7457
    %v7581 = vunpack.c.h.b16 %v7457
    %v7582 = vunpack.c.l.b16 %v7458
    %v7583 = vunpack.c.h.b16 %v7458
    %v7584 = vunpack.c.l.b16 %v7459
    %v7585 = vunpack.c.h.b16 %v7459
    %v7586 = vunpack.c.l.b16 %v7460
    %v7587 = vunpack.c.h.b16 %v7460
    %v7588 = vunpack.c.l.b16 %v7461
    %v7589 = vunpack.c.h.b16 %v7461
    %v7590 = vunpack.c.l.b16 %v7462
    %v7591 = vunpack.c.h.b16 %v7462
    %v7592 = vunpack.c.l.b16 %v7463
    %v7593 = vunpack.c.h.b16 %v7463
    %v7594 = vunpack.c.l.b16 %v7464
    %v7595 = vunpack.c.h.b16 %v7464
    %v7596 = vunpack.c.l.b16 %v7465
    %v7597 = vunpack.c.h.b16 %v7465
    %v7598 = vunpack.c.l.b16 %v7466
    %v7599 = vunpack.c.h.b16 %v7466
    %v7600 = vunpack.c.l.b16 %v7467
    %v7601 = vunpack.c.h.b16 %v7467
    %v7602 = vunpack.c.l.b16 %v7468
    %v7603 = vunpack.c.h.b16 %v7468
    %v7604 = vunpack.c.l.b16 %v7469
    %v7605 = vunpack.c.h.b16 %v7469
    %v7606 = vunpack.c.l.b16 %v7470
    %v7607 = vunpack.c.h.b16 %v7470
    %v7608 = vunpack.c.l.b16 %v7471
    %v7609 = vunpack.c.h.b16 %v7471
    %v7610 = vunpack.c.l.b16 %v7472
    %v7611 = vunpack.c.h.b16 %v7472
    %v7612 = vunpack.c.l.b16 %v7473
    %v7613 = vunpack.c.h.b16 %v7473
    %v7614 = vunpack.c.l.b16 %v7474
    %v7615 = vunpack.c.h.b16 %v7474
    %v7616 = vunpack.c.l.b16 %v7475
    %v7617 = vunpack.c.h.b16 %v7475
    %v7618 = vunpack.c.l.b16 %v7476
    %v7619 = vunpack.c.h.b16 %v7476
    %v7620 = vunpack.c.l.b16 %v7477
    %v7621 = vunpack.c.h.b16 %v7477
    %v7622 = vunpack.c.l.b16 %v7478
    %v7623 = vunpack.c.h.b16 %v7478
    %v7624 = vunpack.c.l.b16 %v7479
    %v7625 = vunpack.c.h.b16 %v7479
    %v7626 = vunpack.c.l.b16 %v7480
    %v7627 = vunpack.c.h.b16 %v7480
    %v7628 = vunpack.c.l.b16 %v7481
    %v7629 = vunpack.c.h.b16 %v7481
    %v7630 = vunpack.c.l.b16 %v7482
    %v7631 = vunpack.c.h.b16 %v7482
    %v7632 = vpack.c.b16 %v7570, %v7568
    %v7633 = vpack.c.b16 %v7571, %v7569
    %v7634 = vpack.c.b16 %v7574, %v7572
    %v7635 = vpack.c.b16 %v7575, %v7573
    %v7636 = vpack.c.b16 %v7578, %v7576
    %v7637 = vpack.c.b16 %v7579, %v7577
    %v7638 = vpack.c.b16 %v7582, %v7580
    %v7639 = vpack.c.b16 %v7583, %v7581
    %v7640 = vpack.c.b16 %v7586, %v7584
    %v7641 = vpack.c.b16 %v7587, %v7585
    %v7642 = vpack.c.b16 %v7590, %v7588
    %v7643 = vpack.c.b16 %v7591, %v7589
    %v7644 = vpack.c.b16 %v7594, %v7592
    %v7645 = vpack.c.b16 %v7595, %v7593
    %v7646 = vpack.c.b16 %v7598, %v7596
    %v7647 = vpack.c.b16 %v7599, %v7597
    %v7648 = vpack.c.b16 %v7602, %v7600
    %v7649 = vpack.c.b16 %v7603, %v7601
    %v7650 = vpack.c.b16 %v7606, %v7604
    %v7651 = vpack.c.b16 %v7607, %v7605
    %v7652 = vpack.c.b16 %v7610, %v7608
    %v7653 = vpack.c.b16 %v7611, %v7609
    %v7654 = vpack.c.b16 %v7614, %v7612
    %v7655 = vpack.c.b16 %v7615, %v7613
    %v7656 = vpack.c.b16 %v7618, %v7616
    %v7657 = vpack.c.b16 %v7619, %v7617
    %v7658 = vpack.c.b16 %v7622, %v7620
    %v7659 = vpack.c.b16 %v7623, %v7621
    %v7660 = vpack.c.b16 %v7626, %v7624
    %v7661 = vpack.c.b16 %v7627, %v7625
    %v7662 = vpack.c.b16 %v7630, %v7628
    %v7663 = vpack.c.b16 %v7631, %v7629
    %7696 = vmatpush.bf16.msra.mxu0 %v7646
    %7697 = vmatpush.bf16.msra.mxu0 %v7644
    %7698 = vmatpush.bf16.msra.mxu0 %v7642
    %7699 = vmatpush.bf16.msra.mxu0 %v7640
    %7700 = vmatpush.bf16.msra.mxu0 %v7638
    %7701 = vmatpush.bf16.msra.mxu0 %v7636
    %7702 = vmatpush.bf16.msra.mxu0 %v7634
    %7703 = vmatpush.bf16.msra.mxu0 %v7632
    %7704 = vmatmul.bf16.gmra.mxu0 %v7500
    %v7705 = vpop.f32.mrf.mxu0
    %v7706 = vadd.f32 0.0, %v7705
    %v7707 = vpop.f32.mrf.mxu0
    %v7708 = vadd.f32 0.0, %v7707
    %7709 = vmatmul.bf16.gmra.mxu0 %v7505
    %v7710 = vpop.f32.mrf.mxu0
    %v7711 = vadd.f32 0.0, %v7710
    %v7712 = vpop.f32.mrf.mxu0
    %v7713 = vadd.f32 0.0, %v7712
    %7714 = vmatmul.bf16.gmra.mxu0 %v7509
    %v7715 = vpop.f32.mrf.mxu0
    %v7716 = vadd.f32 0.0, %v7715
    %v7717 = vpop.f32.mrf.mxu0
    %v7718 = vadd.f32 0.0, %v7717
    %7719 = vmatmul.bf16.gmra.mxu0 %v7513
    %v7720 = vpop.f32.mrf.mxu0
    %v7721 = vadd.f32 0.0, %v7720
    %v7722 = vpop.f32.mrf.mxu0
    %v7723 = vadd.f32 0.0, %v7722
    %7724 = vmatmul.bf16.gmra.mxu0 %v7517
    %v7725 = vpop.f32.mrf.mxu0
    %v7726 = vadd.f32 0.0, %v7725
    %v7727 = vpop.f32.mrf.mxu0
    %v7728 = vadd.f32 0.0, %v7727
    %7729 = vmatmul.bf16.gmra.mxu0 %v7521
    %v7730 = vpop.f32.mrf.mxu0
    %v7731 = vadd.f32 0.0, %v7730
    %v7732 = vpop.f32.mrf.mxu0
    %v7733 = vadd.f32 0.0, %v7732
    %7734 = vdwg.mxu0
    %7735 = vmatpush.bf16.msra.mxu0 %v7662
    %7736 = vmatpush.bf16.msra.mxu0 %v7660
    %7737 = vmatpush.bf16.msra.mxu0 %v7658
    %7738 = vmatpush.bf16.msra.mxu0 %v7656
    %7739 = vmatpush.bf16.msra.mxu0 %v7654
    %7740 = vmatpush.bf16.msra.mxu0 %v7652
    %7741 = vmatpush.bf16.msra.mxu0 %v7650
    %7742 = vmatpush.bf16.msra.mxu0 %v7648
    %7743 = vmatmul.bf16.gmra.mxu0 %v7503
    %v7744 = vpop.f32.mrf.mxu0
    %v7745 = vadd.f32 %v7706, %v7744
    %v7746 = vpop.f32.mrf.mxu0
    %v7747 = vadd.f32 %v7708, %v7746
    %7748 = vmatmul.bf16.gmra.mxu0 %v7507
    %v7749 = vpop.f32.mrf.mxu0
    %v7750 = vadd.f32 %v7711, %v7749
    %v7751 = vpop.f32.mrf.mxu0
    %v7752 = vadd.f32 %v7713, %v7751
    %7753 = vmatmul.bf16.gmra.mxu0 %v7511
    %v7754 = vpop.f32.mrf.mxu0
    %v7755 = vadd.f32 %v7716, %v7754
    %v7756 = vpop.f32.mrf.mxu0
    %v7757 = vadd.f32 %v7718, %v7756
    %7758 = vmatmul.bf16.gmra.mxu0 %v7515
    %v7759 = vpop.f32.mrf.mxu0
    %v7760 = vadd.f32 %v7721, %v7759
    %v7761 = vpop.f32.mrf.mxu0
    %v7762 = vadd.f32 %v7723, %v7761
    %7763 = vmatmul.bf16.gmra.mxu0 %v7519
    %v7764 = vpop.f32.mrf.mxu0
    %v7765 = vadd.f32 %v7726, %v7764
    %v7766 = vpop.f32.mrf.mxu0
    %v7767 = vadd.f32 %v7728, %v7766
    %7768 = vmatmul.bf16.gmra.mxu0 %v7523
    %v7769 = vpop.f32.mrf.mxu0
    %v7770 = vadd.f32 %v7731, %v7769
    %v7771 = vpop.f32.mrf.mxu0
    %v7772 = vadd.f32 %v7733, %v7771
    %7773 = vdwg.mxu0
    %7774 = vmatpush.bf16.msra.mxu0 %v7647
    %7775 = vmatpush.bf16.msra.mxu0 %v7645
    %7776 = vmatpush.bf16.msra.mxu0 %v7643
    %7777 = vmatpush.bf16.msra.mxu0 %v7641
    %7778 = vmatpush.bf16.msra.mxu0 %v7639
    %7779 = vmatpush.bf16.msra.mxu0 %v7637
    %7780 = vmatpush.bf16.msra.mxu0 %v7635
    %7781 = vmatpush.bf16.msra.mxu0 %v7633
    %7782 = vmatmul.bf16.gmra.mxu0 %v7500
    %v7783 = vpop.f32.mrf.mxu0
    %v7784 = vadd.f32 0.0, %v7783
    %v7785 = vpop.f32.mrf.mxu0
    %v7786 = vadd.f32 0.0, %v7785
    %7787 = vmatmul.bf16.gmra.mxu0 %v7505
    %v7788 = vpop.f32.mrf.mxu0
    %v7789 = vadd.f32 0.0, %v7788
    %v7790 = vpop.f32.mrf.mxu0
    %v7791 = vadd.f32 0.0, %v7790
    %7792 = vmatmul.bf16.gmra.mxu0 %v7509
    %v7793 = vpop.f32.mrf.mxu0
    %v7794 = vadd.f32 0.0, %v7793
    %v7795 = vpop.f32.mrf.mxu0
    %v7796 = vadd.f32 0.0, %v7795
    %7797 = vmatmul.bf16.gmra.mxu0 %v7513
    %v7798 = vpop.f32.mrf.mxu0
    %v7799 = vadd.f32 0.0, %v7798
    %v7800 = vpop.f32.mrf.mxu0
    %v7801 = vadd.f32 0.0, %v7800
    %7802 = vmatmul.bf16.gmra.mxu0 %v7517
    %v7803 = vpop.f32.mrf.mxu0
    %v7804 = vadd.f32 0.0, %v7803
    %v7805 = vpop.f32.mrf.mxu0
    %v7806 = vadd.f32 0.0, %v7805
    %7807 = vmatmul.bf16.gmra.mxu0 %v7521
    %v7808 = vpop.f32.mrf.mxu0
    %v7809 = vadd.f32 0.0, %v7808
    %v7810 = vpop.f32.mrf.mxu0
    %v7811 = vadd.f32 0.0, %v7810
    %7812 = vdwg.mxu0
    %7813 = vmatpush.bf16.msra.mxu0 %v7663
    %7814 = vmatpush.bf16.msra.mxu0 %v7661
    %7815 = vmatpush.bf16.msra.mxu0 %v7659
    %7816 = vmatpush.bf16.msra.mxu0 %v7657
    %7817 = vmatpush.bf16.msra.mxu0 %v7655
    %7818 = vmatpush.bf16.msra.mxu0 %v7653
    %7819 = vmatpush.bf16.msra.mxu0 %v7651
    %7820 = vmatpush.bf16.msra.mxu0 %v7649
    %7821 = vmatmul.bf16.gmra.mxu0 %v7503
    %v7822 = vpop.f32.mrf.mxu0
    %v7823 = vadd.f32 %v7784, %v7822
    %v7824 = vpop.f32.mrf.mxu0
    %v7825 = vadd.f32 %v7786, %v7824
    %7826 = vmatmul.bf16.gmra.mxu0 %v7507
    %v7827 = vpop.f32.mrf.mxu0
    %v7828 = vadd.f32 %v7789, %v7827
    %v7829 = vpop.f32.mrf.mxu0
    %v7830 = vadd.f32 %v7791, %v7829
    %7831 = vmatmul.bf16.gmra.mxu0 %v7511
    %v7832 = vpop.f32.mrf.mxu0
    %v7833 = vadd.f32 %v7794, %v7832
    %v7834 = vpop.f32.mrf.mxu0
    %v7835 = vadd.f32 %v7796, %v7834
    %7836 = vmatmul.bf16.gmra.mxu0 %v7515
    %v7837 = vpop.f32.mrf.mxu0
    %v7838 = vadd.f32 %v7799, %v7837
    %v7839 = vpop.f32.mrf.mxu0
    %v7840 = vadd.f32 %v7801, %v7839
    %7841 = vmatmul.bf16.gmra.mxu0 %v7519
    %v7842 = vpop.f32.mrf.mxu0
    %v7843 = vadd.f32 %v7804, %v7842
    %v7844 = vpop.f32.mrf.mxu0
    %v7845 = vadd.f32 %v7806, %v7844
    %7846 = vmatmul.bf16.gmra.mxu0 %v7523
    %v7847 = vpop.f32.mrf.mxu0
    %v7848 = vadd.f32 %v7809, %v7847
    %v7849 = vpop.f32.mrf.mxu0
    %v7850 = vadd.f32 %v7811, %v7849
    %7851 = vdwg.mxu0
    %v7852 = vadd.f32 %v7419, %v7745
    %v7853 = vadd.f32 %v7420, %v7823
    %v7854 = vadd.f32 %v7421, %v7747
    %v7855 = vadd.f32 %v7422, %v7825
    %v7856 = vadd.f32 %v7423, %v7750
    %v7857 = vadd.f32 %v7424, %v7828
    %v7858 = vadd.f32 %v7425, %v7752
    %v7859 = vadd.f32 %v7426, %v7830
    %v7860 = vadd.f32 %v7427, %v7755
    %v7861 = vadd.f32 %v7428, %v7833
    %v7862 = vadd.f32 %v7429, %v7757
    %v7863 = vadd.f32 %v7430, %v7835
    %v7864 = vadd.f32 %v7431, %v7760
    %v7865 = vadd.f32 %v7432, %v7838
    %v7866 = vadd.f32 %v7433, %v7762
    %v7867 = vadd.f32 %v7434, %v7840
    %v7868 = vadd.f32 %v7435, %v7765
    %v7869 = vadd.f32 %v7436, %v7843
    %v7870 = vadd.f32 %v7437, %v7767
    %v7871 = vadd.f32 %v7438, %v7845
    %v7872 = vadd.f32 %v7439, %v7770
    %v7873 = vadd.f32 %v7440, %v7848
    %v7874 = vadd.f32 %v7441, %v7772
    %v7875 = vadd.f32 %v7442, %v7850
    %v7876 = vld [vmem:[#allocation4 + $0x10] sm:$0x80]
    %v7877 = vld [vmem:[#allocation4 + $0x18] sm:$0x80]
    %v7878 = vld [vmem:[#allocation4 + $0xd0] sm:$0x7f]
    %v7879 = vld [vmem:[#allocation4 + $0xd8] sm:$0x7f]
    %v7880 = vpack.c.bf16 %v6450, %v7876
    %v7881 = vpack.c.bf16 %v6451, %v7877
    %v7882 = vpack.c.bf16 %v7878, %v7878
    %v7883 = vpack.c.bf16 %v7879, %v7879
    %v7884 = vld [vmem:[#allocation5 + $0x800] sm:$0xff]
    %v7885 = vld [vmem:[#allocation5 + $0x808] sm:$0xff]
    %v7886 = vld [vmem:[#allocation5 + $0x810] sm:$0xff]
    %v7887 = vld [vmem:[#allocation5 + $0x818] sm:$0xff]
    %v7888 = vld [vmem:[#allocation5 + $0x820] sm:$0xff]
    %v7889 = vld [vmem:[#allocation5 + $0x828] sm:$0xff]
    %v7890 = vld [vmem:[#allocation5 + $0x830] sm:$0xff]
    %v7891 = vld [vmem:[#allocation5 + $0x838] sm:$0xff]
    %v7892 = vld [vmem:[#allocation5 + $0x840] sm:$0xff]
    %v7893 = vld [vmem:[#allocation5 + $0x848] sm:$0xff]
    %v7894 = vld [vmem:[#allocation5 + $0x850] sm:$0xff]
    %v7895 = vld [vmem:[#allocation5 + $0x858] sm:$0xff]
    %v7896 = vld [vmem:[#allocation5 + $0x860] sm:$0xff]
    %v7897 = vld [vmem:[#allocation5 + $0x868] sm:$0xff]
    %v7898 = vld [vmem:[#allocation5 + $0x870] sm:$0xff]
    %v7899 = vld [vmem:[#allocation5 + $0x878] sm:$0xff]
    %v7900 = vld [vmem:[#allocation5 + $0x880] sm:$0xff]
    %v7901 = vld [vmem:[#allocation5 + $0x888] sm:$0xff]
    %v7902 = vld [vmem:[#allocation5 + $0x890] sm:$0xff]
    %v7903 = vld [vmem:[#allocation5 + $0x898] sm:$0xff]
    %v7904 = vld [vmem:[#allocation5 + $0x8a0] sm:$0xff]
    %v7905 = vld [vmem:[#allocation5 + $0x8a8] sm:$0xff]
    %v7906 = vld [vmem:[#allocation5 + $0x8b0] sm:$0xff]
    %v7907 = vld [vmem:[#allocation5 + $0x8b8] sm:$0xff]
    %v7908 = vld [vmem:[#allocation5 + $0x8c0] sm:$0xff]
    %v7909 = vld [vmem:[#allocation5 + $0x8c8] sm:$0xff]
    %v7910 = vld [vmem:[#allocation5 + $0x8d0] sm:$0xff]
    %v7911 = vld [vmem:[#allocation5 + $0x8d8] sm:$0xff]
    %v7912 = vld [vmem:[#allocation5 + $0x8e0] sm:$0xff]
    %v7913 = vld [vmem:[#allocation5 + $0x8e8] sm:$0xff]
    %v7914 = vld [vmem:[#allocation5 + $0x8f0] sm:$0xff]
    %v7915 = vld [vmem:[#allocation5 + $0x8f8] sm:$0xff]
    %v7917 = vshrl.u32 %v7880, 16
    %v7919 = vrot.slane %v7917, 3
    %v7920 = vshll.u32 %v7880, 16
    %v7922 = vrot.slane %v7920, 4
    %v7923 = vor.u32 %v7919, %v7922
    %v7924 = vrot.slane %v6544, 3
    %v7925 = vrot.slane %v6528, 4
    %v7926 = vor.u32 %v7924, %v7925
    %v7927 = vsel %vm5635, %v7923, %v7926
    %v7929 = vshrl.u32 %v7881, 16
    %v7931 = vrot.slane %v7929, 3
    %v7932 = vshll.u32 %v7881, 16
    %v7934 = vrot.slane %v7932, 4
    %v7935 = vor.u32 %v7931, %v7934
    %v7936 = vrot.slane %v6552, 3
    %v7937 = vrot.slane %v6540, 4
    %v7938 = vor.u32 %v7936, %v7937
    %v7939 = vsel %vm5635, %v7935, %v7938
    %v7940 = vrot.slane %v6560, 3
    %v7941 = vrot.slane %v6548, 4
    %v7942 = vor.u32 %v7940, %v7941
    %v7943 = vsel %vm5635, %v7926, %v7942
    %v7944 = vrot.slane %v6568, 3
    %v7945 = vrot.slane %v6556, 4
    %v7946 = vor.u32 %v7944, %v7945
    %v7947 = vsel %vm5635, %v7938, %v7946
    %v7948 = vrot.slane %v6576, 3
    %v7949 = vrot.slane %v6564, 4
    %v7950 = vor.u32 %v7948, %v7949
    %v7951 = vsel %vm5635, %v7942, %v7950
    %v7952 = vrot.slane %v6584, 3
    %v7953 = vrot.slane %v6572, 4
    %v7954 = vor.u32 %v7952, %v7953
    %v7955 = vsel %vm5635, %v7946, %v7954
    %v7956 = vrot.slane %v6592, 3
    %v7957 = vrot.slane %v6580, 4
    %v7958 = vor.u32 %v7956, %v7957
    %v7959 = vsel %vm5635, %v7950, %v7958
    %v7960 = vrot.slane %v6600, 3
    %v7961 = vrot.slane %v6588, 4
    %v7962 = vor.u32 %v7960, %v7961
    %v7963 = vsel %vm5635, %v7954, %v7962
    %v7964 = vrot.slane %v6608, 3
    %v7965 = vrot.slane %v6596, 4
    %v7966 = vor.u32 %v7964, %v7965
    %v7967 = vsel %vm5635, %v7958, %v7966
    %v7968 = vrot.slane %v6616, 3
    %v7969 = vrot.slane %v6604, 4
    %v7970 = vor.u32 %v7968, %v7969
    %v7971 = vsel %vm5635, %v7962, %v7970
    %v7973 = vshrl.u32 %v7882, 16
    %v7975 = vrot.slane %v7973, 3
    %v7976 = vshll.u32 %v7882, 16
    %v7978 = vrot.slane %v7976, 4
    %v7979 = vor.u32 %v7975, %v7978
    %v7980 = vsel %vm5635, %v7966, %v7979
    %v7982 = vshrl.u32 %v7883, 16
    %v7984 = vrot.slane %v7982, 3
    %v7985 = vshll.u32 %v7883, 16
    %v7987 = vrot.slane %v7985, 4
    %v7988 = vor.u32 %v7984, %v7987
    %v7989 = vsel %vm5635, %v7970, %v7988
    %v8034 = vunpack.c.l.b16 %v7884
    %v8035 = vunpack.c.h.b16 %v7884
    %v8036 = vunpack.c.l.b16 %v7885
    %v8037 = vunpack.c.h.b16 %v7885
    %v8038 = vunpack.c.l.b16 %v7886
    %v8039 = vunpack.c.h.b16 %v7886
    %v8040 = vunpack.c.l.b16 %v7887
    %v8041 = vunpack.c.h.b16 %v7887
    %v8042 = vunpack.c.l.b16 %v7888
    %v8043 = vunpack.c.h.b16 %v7888
    %v8044 = vunpack.c.l.b16 %v7889
    %v8045 = vunpack.c.h.b16 %v7889
    %v8046 = vunpack.c.l.b16 %v7890
    %v8047 = vunpack.c.h.b16 %v7890
    %v8048 = vunpack.c.l.b16 %v7891
    %v8049 = vunpack.c.h.b16 %v7891
    %v8050 = vunpack.c.l.b16 %v7892
    %v8051 = vunpack.c.h.b16 %v7892
    %v8052 = vunpack.c.l.b16 %v7893
    %v8053 = vunpack.c.h.b16 %v7893
    %v8054 = vunpack.c.l.b16 %v7894
    %v8055 = vunpack.c.h.b16 %v7894
    %v8056 = vunpack.c.l.b16 %v7895
    %v8057 = vunpack.c.h.b16 %v7895
    %v8058 = vunpack.c.l.b16 %v7896
    %v8059 = vunpack.c.h.b16 %v7896
    %v8060 = vunpack.c.l.b16 %v7897
    %v8061 = vunpack.c.h.b16 %v7897
    %v8062 = vunpack.c.l.b16 %v7898
    %v8063 = vunpack.c.h.b16 %v7898
    %v8064 = vunpack.c.l.b16 %v7899
    %v8065 = vunpack.c.h.b16 %v7899
    %v8066 = vunpack.c.l.b16 %v7900
    %v8067 = vunpack.c.h.b16 %v7900
    %v8068 = vunpack.c.l.b16 %v7901
    %v8069 = vunpack.c.h.b16 %v7901
    %v8070 = vunpack.c.l.b16 %v7902
    %v8071 = vunpack.c.h.b16 %v7902
    %v8072 = vunpack.c.l.b16 %v7903
    %v8073 = vunpack.c.h.b16 %v7903
    %v8074 = vunpack.c.l.b16 %v7904
    %v8075 = vunpack.c.h.b16 %v7904
    %v8076 = vunpack.c.l.b16 %v7905
    %v8077 = vunpack.c.h.b16 %v7905
    %v8078 = vunpack.c.l.b16 %v7906
    %v8079 = vunpack.c.h.b16 %v7906
    %v8080 = vunpack.c.l.b16 %v7907
    %v8081 = vunpack.c.h.b16 %v7907
    %v8082 = vunpack.c.l.b16 %v7908
    %v8083 = vunpack.c.h.b16 %v7908
    %v8084 = vunpack.c.l.b16 %v7909
    %v8085 = vunpack.c.h.b16 %v7909
    %v8086 = vunpack.c.l.b16 %v7910
    %v8087 = vunpack.c.h.b16 %v7910
    %v8088 = vunpack.c.l.b16 %v7911
    %v8089 = vunpack.c.h.b16 %v7911
    %v8090 = vunpack.c.l.b16 %v7912
    %v8091 = vunpack.c.h.b16 %v7912
    %v8092 = vunpack.c.l.b16 %v7913
    %v8093 = vunpack.c.h.b16 %v7913
    %v8094 = vunpack.c.l.b16 %v7914
    %v8095 = vunpack.c.h.b16 %v7914
    %v8096 = vunpack.c.l.b16 %v7915
    %v8097 = vunpack.c.h.b16 %v7915
    %v8098 = vpack.c.b16 %v8036, %v8034
    %v8099 = vpack.c.b16 %v8037, %v8035
    %v8100 = vpack.c.b16 %v8040, %v8038
    %v8101 = vpack.c.b16 %v8041, %v8039
    %v8102 = vpack.c.b16 %v8044, %v8042
    %v8103 = vpack.c.b16 %v8045, %v8043
    %v8104 = vpack.c.b16 %v8048, %v8046
    %v8105 = vpack.c.b16 %v8049, %v8047
    %v8106 = vpack.c.b16 %v8052, %v8050
    %v8107 = vpack.c.b16 %v8053, %v8051
    %v8108 = vpack.c.b16 %v8056, %v8054
    %v8109 = vpack.c.b16 %v8057, %v8055
    %v8110 = vpack.c.b16 %v8060, %v8058
    %v8111 = vpack.c.b16 %v8061, %v8059
    %v8112 = vpack.c.b16 %v8064, %v8062
    %v8113 = vpack.c.b16 %v8065, %v8063
    %v8114 = vpack.c.b16 %v8068, %v8066
    %v8115 = vpack.c.b16 %v8069, %v8067
    %v8116 = vpack.c.b16 %v8072, %v8070
    %v8117 = vpack.c.b16 %v8073, %v8071
    %v8118 = vpack.c.b16 %v8076, %v8074
    %v8119 = vpack.c.b16 %v8077, %v8075
    %v8120 = vpack.c.b16 %v8080, %v8078
    %v8121 = vpack.c.b16 %v8081, %v8079
    %v8122 = vpack.c.b16 %v8084, %v8082
    %v8123 = vpack.c.b16 %v8085, %v8083
    %v8124 = vpack.c.b16 %v8088, %v8086
    %v8125 = vpack.c.b16 %v8089, %v8087
    %v8126 = vpack.c.b16 %v8092, %v8090
    %v8127 = vpack.c.b16 %v8093, %v8091
    %v8128 = vpack.c.b16 %v8096, %v8094
    %v8129 = vpack.c.b16 %v8097, %v8095
    %8162 = vmatpush.bf16.msra.mxu0 %v8112
    %8163 = vmatpush.bf16.msra.mxu0 %v8110
    %8164 = vmatpush.bf16.msra.mxu0 %v8108
    %8165 = vmatpush.bf16.msra.mxu0 %v8106
    %8166 = vmatpush.bf16.msra.mxu0 %v8104
    %8167 = vmatpush.bf16.msra.mxu0 %v8102
    %8168 = vmatpush.bf16.msra.mxu0 %v8100
    %8169 = vmatpush.bf16.msra.mxu0 %v8098
    %8170 = vmatmul.bf16.gmra.mxu0 %v7927
    %v8171 = vpop.f32.mrf.mxu0
    %v8172 = vadd.f32 0.0, %v8171
    %v8173 = vpop.f32.mrf.mxu0
    %v8174 = vadd.f32 0.0, %v8173
    %8175 = vmatmul.bf16.gmra.mxu0 %v7943
    %v8176 = vpop.f32.mrf.mxu0
    %v8177 = vadd.f32 0.0, %v8176
    %v8178 = vpop.f32.mrf.mxu0
    %v8179 = vadd.f32 0.0, %v8178
    %8180 = vmatmul.bf16.gmra.mxu0 %v7951
    %v8181 = vpop.f32.mrf.mxu0
    %v8182 = vadd.f32 0.0, %v8181
    %v8183 = vpop.f32.mrf.mxu0
    %v8184 = vadd.f32 0.0, %v8183
    %8185 = vmatmul.bf16.gmra.mxu0 %v7959
    %v8186 = vpop.f32.mrf.mxu0
    %v8187 = vadd.f32 0.0, %v8186
    %v8188 = vpop.f32.mrf.mxu0
    %v8189 = vadd.f32 0.0, %v8188
    %8190 = vmatmul.bf16.gmra.mxu0 %v7967
    %v8191 = vpop.f32.mrf.mxu0
    %v8192 = vadd.f32 0.0, %v8191
    %v8193 = vpop.f32.mrf.mxu0
    %v8194 = vadd.f32 0.0, %v8193
    %8195 = vmatmul.bf16.gmra.mxu0 %v7980
    %v8196 = vpop.f32.mrf.mxu0
    %v8197 = vadd.f32 0.0, %v8196
    %v8198 = vpop.f32.mrf.mxu0
    %v8199 = vadd.f32 0.0, %v8198
    %8200 = vdwg.mxu0
    %8201 = vmatpush.bf16.msra.mxu0 %v8128
    %8202 = vmatpush.bf16.msra.mxu0 %v8126
    %8203 = vmatpush.bf16.msra.mxu0 %v8124
    %8204 = vmatpush.bf16.msra.mxu0 %v8122
    %8205 = vmatpush.bf16.msra.mxu0 %v8120
    %8206 = vmatpush.bf16.msra.mxu0 %v8118
    %8207 = vmatpush.bf16.msra.mxu0 %v8116
    %8208 = vmatpush.bf16.msra.mxu0 %v8114
    %8209 = vmatmul.bf16.gmra.mxu0 %v7939
    %v8210 = vpop.f32.mrf.mxu0
    %v8211 = vadd.f32 %v8172, %v8210
    %v8212 = vpop.f32.mrf.mxu0
    %v8213 = vadd.f32 %v8174, %v8212
    %8214 = vmatmul.bf16.gmra.mxu0 %v7947
    %v8215 = vpop.f32.mrf.mxu0
    %v8216 = vadd.f32 %v8177, %v8215
    %v8217 = vpop.f32.mrf.mxu0
    %v8218 = vadd.f32 %v8179, %v8217
    %8219 = vmatmul.bf16.gmra.mxu0 %v7955
    %v8220 = vpop.f32.mrf.mxu0
    %v8221 = vadd.f32 %v8182, %v8220
    %v8222 = vpop.f32.mrf.mxu0
    %v8223 = vadd.f32 %v8184, %v8222
    %8224 = vmatmul.bf16.gmra.mxu0 %v7963
    %v8225 = vpop.f32.mrf.mxu0
    %v8226 = vadd.f32 %v8187, %v8225
    %v8227 = vpop.f32.mrf.mxu0
    %v8228 = vadd.f32 %v8189, %v8227
    %8229 = vmatmul.bf16.gmra.mxu0 %v7971
    %v8230 = vpop.f32.mrf.mxu0
    %v8231 = vadd.f32 %v8192, %v8230
    %v8232 = vpop.f32.mrf.mxu0
    %v8233 = vadd.f32 %v8194, %v8232
    %8234 = vmatmul.bf16.gmra.mxu0 %v7989
    %v8235 = vpop.f32.mrf.mxu0
    %v8236 = vadd.f32 %v8197, %v8235
    %v8237 = vpop.f32.mrf.mxu0
    %v8238 = vadd.f32 %v8199, %v8237
    %8239 = vdwg.mxu0
    %8240 = vmatpush.bf16.msra.mxu0 %v8113
    %8241 = vmatpush.bf16.msra.mxu0 %v8111
    %8242 = vmatpush.bf16.msra.mxu0 %v8109
    %8243 = vmatpush.bf16.msra.mxu0 %v8107
    %8244 = vmatpush.bf16.msra.mxu0 %v8105
    %8245 = vmatpush.bf16.msra.mxu0 %v8103
    %8246 = vmatpush.bf16.msra.mxu0 %v8101
    %8247 = vmatpush.bf16.msra.mxu0 %v8099
    %8248 = vmatmul.bf16.gmra.mxu0 %v7927
    %v8249 = vpop.f32.mrf.mxu0
    %v8250 = vadd.f32 0.0, %v8249
    %v8251 = vpop.f32.mrf.mxu0
    %v8252 = vadd.f32 0.0, %v8251
    %8253 = vmatmul.bf16.gmra.mxu0 %v7943
    %v8254 = vpop.f32.mrf.mxu0
    %v8255 = vadd.f32 0.0, %v8254
    %v8256 = vpop.f32.mrf.mxu0
    %v8257 = vadd.f32 0.0, %v8256
    %8258 = vmatmul.bf16.gmra.mxu0 %v7951
    %v8259 = vpop.f32.mrf.mxu0
    %v8260 = vadd.f32 0.0, %v8259
    %v8261 = vpop.f32.mrf.mxu0
    %v8262 = vadd.f32 0.0, %v8261
    %8263 = vmatmul.bf16.gmra.mxu0 %v7959
    %v8264 = vpop.f32.mrf.mxu0
    %v8265 = vadd.f32 0.0, %v8264
    %v8266 = vpop.f32.mrf.mxu0
    %v8267 = vadd.f32 0.0, %v8266
    %8268 = vmatmul.bf16.gmra.mxu0 %v7967
    %v8269 = vpop.f32.mrf.mxu0
    %v8270 = vadd.f32 0.0, %v8269
    %v8271 = vpop.f32.mrf.mxu0
    %v8272 = vadd.f32 0.0, %v8271
    %8273 = vmatmul.bf16.gmra.mxu0 %v7980
    %v8274 = vpop.f32.mrf.mxu0
    %v8275 = vadd.f32 0.0, %v8274
    %v8276 = vpop.f32.mrf.mxu0
    %v8277 = vadd.f32 0.0, %v8276
    %8278 = vdwg.mxu0
    %8279 = vmatpush.bf16.msra.mxu0 %v8129
    %8280 = vmatpush.bf16.msra.mxu0 %v8127
    %8281 = vmatpush.bf16.msra.mxu0 %v8125
    %8282 = vmatpush.bf16.msra.mxu0 %v8123
    %8283 = vmatpush.bf16.msra.mxu0 %v8121
    %8284 = vmatpush.bf16.msra.mxu0 %v8119
    %8285 = vmatpush.bf16.msra.mxu0 %v8117
    %8286 = vmatpush.bf16.msra.mxu0 %v8115
    %8287 = vmatmul.bf16.gmra.mxu0 %v7939
    %v8288 = vpop.f32.mrf.mxu0
    %v8289 = vadd.f32 %v8250, %v8288
    %v8290 = vpop.f32.mrf.mxu0
    %v8291 = vadd.f32 %v8252, %v8290
    %8292 = vmatmul.bf16.gmra.mxu0 %v7947
    %v8293 = vpop.f32.mrf.mxu0
    %v8294 = vadd.f32 %v8255, %v8293
    %v8295 = vpop.f32.mrf.mxu0
    %v8296 = vadd.f32 %v8257, %v8295
    %8297 = vmatmul.bf16.gmra.mxu0 %v7955
    %v8298 = vpop.f32.mrf.mxu0
    %v8299 = vadd.f32 %v8260, %v8298
    %v8300 = vpop.f32.mrf.mxu0
    %v8301 = vadd.f32 %v8262, %v8300
    %8302 = vmatmul.bf16.gmra.mxu0 %v7963
    %v8303 = vpop.f32.mrf.mxu0
    %v8304 = vadd.f32 %v8265, %v8303
    %v8305 = vpop.f32.mrf.mxu0
    %v8306 = vadd.f32 %v8267, %v8305
    %8307 = vmatmul.bf16.gmra.mxu0 %v7971
    %v8308 = vpop.f32.mrf.mxu0
    %v8309 = vadd.f32 %v8270, %v8308
    %v8310 = vpop.f32.mrf.mxu0
    %v8311 = vadd.f32 %v8272, %v8310
    %8312 = vmatmul.bf16.gmra.mxu0 %v7989
    %v8313 = vpop.f32.mrf.mxu0
    %v8314 = vadd.f32 %v8275, %v8313
    %v8315 = vpop.f32.mrf.mxu0
    %v8316 = vadd.f32 %v8277, %v8315
    %8317 = vdwg.mxu0
    %v8318 = vadd.f32 %v7852, %v8211
    %v8319 = vadd.f32 %v7853, %v8289
    %v8320 = vadd.f32 %v7854, %v8213
    %v8321 = vadd.f32 %v7855, %v8291
    %v8322 = vadd.f32 %v7856, %v8216
    %v8323 = vadd.f32 %v7857, %v8294
    %v8324 = vadd.f32 %v7858, %v8218
    %v8325 = vadd.f32 %v7859, %v8296
    %v8326 = vadd.f32 %v7860, %v8221
    %v8327 = vadd.f32 %v7861, %v8299
    %v8328 = vadd.f32 %v7862, %v8223
    %v8329 = vadd.f32 %v7863, %v8301
    %v8330 = vadd.f32 %v7864, %v8226
    %v8331 = vadd.f32 %v7865, %v8304
    %v8332 = vadd.f32 %v7866, %v8228
    %v8333 = vadd.f32 %v7867, %v8306
    %v8334 = vadd.f32 %v7868, %v8231
    %v8335 = vadd.f32 %v7869, %v8309
    %v8336 = vadd.f32 %v7870, %v8233
    %v8337 = vadd.f32 %v7871, %v8311
    %v8338 = vadd.f32 %v7872, %v8236
    %v8339 = vadd.f32 %v7873, %v8314
    %v8340 = vadd.f32 %v7874, %v8238
    %v8341 = vadd.f32 %v7875, %v8316
    %s8342 = scalar_lea.vmem [#allocation11], 3
    %v8343 = vld [vmem:[%s8342] ss:$8 sm:$0x3]
    %v8345 = vperm.slane %v8343, 0
    %v8346 = vperm.slane %v8343, 1
    %v8349 = vadd.f32 %v8318, %v8345
    %v8350 = vadd.f32 %v8319, %v8346
    %v8351 = vadd.f32 %v8320, %v8345
    %v8352 = vadd.f32 %v8321, %v8346
    %v8353 = vadd.f32 %v8322, %v8345
    %v8354 = vadd.f32 %v8323, %v8346
    %v8355 = vadd.f32 %v8324, %v8345
    %v8356 = vadd.f32 %v8325, %v8346
    %v8357 = vadd.f32 %v8326, %v8345
    %v8358 = vadd.f32 %v8327, %v8346
    %v8359 = vadd.f32 %v8328, %v8345
    %v8360 = vadd.f32 %v8329, %v8346
    %v8361 = vadd.f32 %v8330, %v8345
    %v8362 = vadd.f32 %v8331, %v8346
    %v8363 = vadd.f32 %v8332, %v8345
    %v8364 = vadd.f32 %v8333, %v8346
    %v8365 = vadd.f32 %v8334, %v8345
    %v8366 = vadd.f32 %v8335, %v8346
    %v8367 = vadd.f32 %v8336, %v8345
    %v8368 = vadd.f32 %v8337, %v8346
    %v8369 = vadd.f32 %v8338, %v8345
    %v8370 = vadd.f32 %v8339, %v8346
    %v8371 = vadd.f32 %v8340, %v8345
    %v8372 = vadd.f32 %v8341, %v8346
    %8373 = vst [vmem:[%s6] sm:$0xff] %v8349
    %8374 = vst [vmem:[%s6 + $0x8] sm:$0xff] %v8350
    %8375 = vst [vmem:[%s6 + $0x10] sm:$0xff] %v8351
    %8376 = vst [vmem:[%s6 + $0x18] sm:$0xff] %v8352
    %8377 = vst [vmem:[%s6 + $0x20] sm:$0xff] %v8353
    %8378 = vst [vmem:[%s6 + $0x28] sm:$0xff] %v8354
    %8379 = vst [vmem:[%s6 + $0x30] sm:$0xff] %v8355
    %8380 = vst [vmem:[%s6 + $0x38] sm:$0xff] %v8356
    %8381 = vst [vmem:[%s6 + $0x40] sm:$0xff] %v8357
    %8382 = vst [vmem:[%s6 + $0x48] sm:$0xff] %v8358
    %8383 = vst [vmem:[%s6 + $0x50] sm:$0xff] %v8359
    %8384 = vst [vmem:[%s6 + $0x58] sm:$0xff] %v8360
    %8385 = vst [vmem:[%s6 + $0x60] sm:$0xff] %v8361
    %8386 = vst [vmem:[%s6 + $0x68] sm:$0xff] %v8362
    %8387 = vst [vmem:[%s6 + $0x70] sm:$0xff] %v8363
    %8388 = vst [vmem:[%s6 + $0x78] sm:$0xff] %v8364
    %8389 = vst [vmem:[%s6 + $0x80] sm:$0xff] %v8365
    %8390 = vst [vmem:[%s6 + $0x88] sm:$0xff] %v8366
    %8391 = vst [vmem:[%s6 + $0x90] sm:$0xff] %v8367
    %8392 = vst [vmem:[%s6 + $0x98] sm:$0xff] %v8368
    %8393 = vst [vmem:[%s6 + $0xa0] sm:$0xff] %v8369
    %8394 = vst [vmem:[%s6 + $0xa8] sm:$0xff] %v8370
    %8395 = vst [vmem:[%s6 + $0xb0] sm:$0xff] %v8371
    %8396 = vst [vmem:[%s6 + $0xb8] sm:$0xff] %v8372
    // Predicated region
    $region38: #{cnn_c_forward.1} parent=1 // pred_check
      _
    $region39: #{cnn_c_forward.1} parent=1 // pred_check_branch
      %8398 = sbr.rel (0) target = $region41
    $region40: #{cnn_c_forward.1} parent=1 // pred_region
      _
    $region41: #{cnn_c_forward.1} parent=1 // pred_fallthru
      _
    // Predicated region
    $region42: #{cnn_c_forward.1} parent=1 // pred_check
      _
    $region43: #{cnn_c_forward.1} parent=1 // pred_check_branch
      %8400 = sbr.rel (0) target = $region45
    $region44: #{cnn_c_forward.1} parent=1 // pred_region
      _
    $region45: #{cnn_c_forward.1} parent=1 // pred_fallthru
      _
    %8401 = vsyncpa [#allocation8], 1
    %8402 = vsyncpa [#allocation10], 1
  %8403 = vsyncmov [#allocation6]
  %s8404 = vpop.sfrf %8403
  %p8405 = scmp.eq.s32.totalorder %s8404, 0
  %p8406 = pneg %p8405
  %8408 = shalt.err (%p8406)

</llo_original>
